<compile_context>
chip_gen: v7x
topology: tpu7x:2x2x1
jax: 0.10.0
libtpu: 0.0.40
codegen_flags: <defaults>
</compile_context>

<pallas_src>
from functools import partial

import numpy as np
import jax
import jax.numpy as jnp
from jax.experimental import pallas as pl
from jax.experimental.pallas import tpu as pltpu

_BN_EPS = 1e-5
_PF = 128   # front/back lane pad of each stream's phase-plane stack (>= Wo+1, aligned)


# ---------------- host-side parameter preparation (hoisted out of the forward) --------

def _build_big_weight(w_conv, cin_pad):
    """(Cout, Cin, 5, 5) conv weight -> (4*Cout, 9*4*cin_pad) big-K matrix.

    Row index   : ph*Cout + co      with pool phase ph = dh*2 + dw.
    Column index: sidx*(4*cin_pad) + plane*cin_pad + ci, with
        sidx  = (da+1)*3 + (db+1)   (lane shift da*Wo + db on the phase plane)
        plane = a2*2 + b2           (input parity plane)
    Entry = w[co, ci, kh, kw] with kh = 2*da + a2 - dh + 2, kw = 2*db + b2 - dw + 2
    when both lie in [0, 5); zero otherwise (and zero for padded input channels).
    """
    w = np.asarray(w_conv, dtype=np.float32)
    cout, cin = w.shape[0], w.shape[1]
    big = np.zeros((4, cout, 9, 4, cin_pad), np.float32)
    for dh in range(2):
        for dw in range(2):
            ph = dh * 2 + dw
            for da in (-1, 0, 1):
                for db in (-1, 0, 1):
                    sidx = (da + 1) * 3 + (db + 1)
                    for a2 in range(2):
                        for b2 in range(2):
                            kh = 2 * da + a2 - dh + 2
                            kw = 2 * db + b2 - dw + 2
                            if 0 <= kh < 5 and 0 <= kw < 5:
                                big[ph, :, sidx, a2 * 2 + b2, :cin] = w[:, :, kh, kw]
    return jnp.asarray(big.reshape(4 * cout, 9 * 4 * cin_pad), dtype=jnp.bfloat16)


def prepare_params(p):
    """One-time host-side prep: big-K conv weights, tiled bias, padded head weights."""
    cout1 = p["w1"].shape[0]
    cout2 = p["w2"].shape[0]
    cp1 = -(-p["w1"].shape[1] // 8) * 8      # pad Cin 3 -> 8 (aligned sublane chunks)
    cp2 = -(-p["w2"].shape[1] // 8) * 8      # 16 -> 16

    def bn_prep(b, g, be, cout):
        return (jnp.tile(jnp.asarray(b, jnp.float32), 4).reshape(4 * cout, 1),
                jnp.asarray(g, jnp.float32).reshape(cout, 1),
                jnp.asarray(be, jnp.float32).reshape(cout, 1))

    b1, g1, be1 = bn_prep(p["b1"], p["g1"], p["be1"], cout1)
    b2, g2, be2 = bn_prep(p["b2"], p["g2"], p["be2"], cout2)

    # fc + 3 domain heads concatenated, zero-padded to 128 lanes (lane-dense store).
    w_cat = jnp.concatenate([p["fc_w"]] + list(p["dom_w"]), axis=1).astype(jnp.float32)
    b_cat = jnp.concatenate([p["fc_b"]] + list(p["dom_b"])).astype(jnp.float32)
    ntot = w_cat.shape[1]
    ntot_pad = ((ntot + 127) // 128) * 128
    w_cat = jnp.pad(w_cat, ((0, 0), (0, ntot_pad - ntot)))
    b_cat = jnp.pad(b_cat, (0, ntot_pad - ntot)).reshape(1, ntot_pad)

    return dict(W1=_build_big_weight(p["w1"], cp1), b1=b1, g1=g1, be1=be1,
                W2=_build_big_weight(p["w2"], cp2), b2=b2, g2=g2, be2=be2,
                w_cat=w_cat, b_cat=b_cat)


# ----------------------- fused conv + BN + ReLU + pool kernel -------------------------

def _make_layer_kernel(Cout, SPS, R, Lo, PF, Wo):
    """One grid step = SPS streams; per stream: one big-K dot + fused BN/ReLU/pool.

    Refs (per grid step):
      p_ref : (SPS, R, Lp) bf16  phase-plane stacks, R = 4*Cin_pad, lane-padded by PF
      m_ref : (9, 1, Lo)  bf16   0/1 boundary masks, row (da+1)*3+(db+1)
      w_ref : (4*Cout, 9*R) bf16 big-K weight (all 4 pool phases stacked on rows)
      b_ref : (4*Cout, 1) f32    conv bias tiled over phases
      g_ref, be_ref : (Cout, 1)  BN gamma / beta
      o_ref : (SPS*Cout, Lo) f32 pooled output, Lo = N*Ho*Wo (lane-dense)
    """
    def kernel(p_ref, m_ref, w_ref, b_ref, g_ref, be_ref, o_ref):
        W = w_ref[...]                 # (4*Cout, 9*R) bf16
        masks = m_ref[...]             # (9, 1, Lo)    bf16
        bias4 = b_ref[...]             # (4*Cout, 1)   f32
        gamma = g_ref[...]             # (Cout, 1)
        beta = be_ref[...]
        inv_n = 1.0 / (4.0 * Lo)

        for si in range(SPS):
            # Build the im2col operand in VMEM: 9 lane-shifted, masked copies of the
            # 4-plane stack concatenated on sublanes -> (9*R, Lo), all tile-aligned.
            chunks = []
            for da in (-1, 0, 1):
                for db in (-1, 0, 1):
                    off = PF + da * Wo + db
                    sl = p_ref[si, :, off:off + Lo]                    # (R, Lo) bf16
                    if (da, db) != (0, 0):
                        sl = sl * masks[(da + 1) * 3 + (db + 1)]       # zero OOB taps
                    chunks.append(sl)
            xs = jnp.concatenate(chunks, axis=0)                       # (9*R, Lo)

            # One MXU dot covers all 4 pool phases: rows ph*Cout + co.
            conv = jnp.dot(W, xs, preferred_element_type=jnp.float32) + bias4

            # Train-mode BatchNorm: biased batch stats over (N, H, W) == all 4 phases,
            # one fused E[x] / E[x^2] pass; per-channel sums via aligned sublane slices.
            s1 = jnp.sum(conv, axis=1, keepdims=True)                  # (4*Cout, 1)
            s2 = jnp.sum(conv * conv, axis=1, keepdims=True)
            s1 = (s1[:Cout] + s1[Cout:2 * Cout]
                  + s1[2 * Cout:3 * Cout] + s1[3 * Cout:])
            s2 = (s2[:Cout] + s2[Cout:2 * Cout]
                  + s2[2 * Cout:3 * Cout] + s2[3 * Cout:])
            mean = s1 * inv_n
            var = jnp.maximum(s2 * inv_n - mean * mean, 0.0)
            scale = gamma * jax.lax.rsqrt(var + _BN_EPS)               # (Cout, 1)
            shift = beta - mean * scale

            # BN + 2x2 MaxPool (pairwise over phases) + trailing ReLU (max is monotone).
            y01 = jnp.maximum(conv[:Cout] * scale + shift,
                              conv[Cout:2 * Cout] * scale + shift)
            y23 = jnp.maximum(conv[2 * Cout:3 * Cout] * scale + shift,
                              conv[3 * Cout:] * scale + shift)
            o_ref[si * Cout:(si + 1) * Cout, :] = jnp.maximum(
                jnp.maximum(y01, y23), 0.0)

    return kernel


def conv_bn_relu_pool(planes, masks, W_big, bias4, gam, bet, *, S, Cout, N, Ho, Wo):
    """One fused `layer` block for all S streams (2 streams per grid step)."""
    Lo = N * Ho * Wo
    R = planes.shape[1]
    Lp = planes.shape[2]
    PF = (Lp - Lo) // 2
    SPS = 2 if S % 2 == 0 else 1
    assert W_big.shape == (4 * Cout, 9 * R)
    return pl.pallas_call(
        _make_layer_kernel(Cout, SPS, R, Lo, PF, Wo),
        out_shape=jax.ShapeDtypeStruct((S * Cout, Lo), jnp.float32),
        grid=(S // SPS,),
        in_specs=[
            pl.BlockSpec((SPS, R, Lp), lambda i: (i, 0, 0)),     # this step's streams
            pl.BlockSpec((9, 1, Lo), lambda i: (0, 0, 0)),       # boundary masks (shared)
            pl.BlockSpec((4 * Cout, 9 * R), lambda i: (0, 0)),   # big-K weight (shared)
            pl.BlockSpec((4 * Cout, 1), lambda i: (0, 0)),
            pl.BlockSpec((Cout, 1), lambda i: (0, 0)),
            pl.BlockSpec((Cout, 1), lambda i: (0, 0)),
        ],
        out_specs=pl.BlockSpec((SPS * Cout, Lo), lambda i: (i, 0)),
        compiler_params=pltpu.CompilerParams(
            dimension_semantics=("parallel",)),   # 2-way parallel: uses both v7x TCs
    )(planes, masks, W_big, bias4, gam, bet)


# ------------------------------ glue helpers (XLA side) ------------------------------

def _phase_planes(x_scnhw, cin_pad):
    """(S, Cin, N, H, W) -> (S, 4*cin_pad, N*Ho*Wo + 2*_PF) bf16, rows plane*cin_pad+ci."""
    S, Cin, N, H, W = x_scnhw.shape
    Ho, Wo = H // 2, W // 2
    Lo = N * Ho * Wo
    x = x_scnhw
    if cin_pad > Cin:
        x = jnp.pad(x, ((0, 0), (0, cin_pad - Cin), (0, 0), (0, 0), (0, 0)))
    planes = jnp.stack(
        [x[:, :, :, a2::2, b2::2] for a2 in range(2) for b2 in range(2)],
        axis=1)                                       # (S, 4, cin_pad, N, Ho, Wo)
    planes = planes.reshape(S, 4 * cin_pad, Lo)
    planes = jnp.pad(planes, ((0, 0), (0, 0), (_PF, _PF)))
    return planes.astype(jnp.bfloat16)


def _boundary_masks(N, Ho, Wo):
    """(9, 1, N*Ho*Wo) bf16 0/1 masks; row (da+1)*3+(db+1) == shift (da,db) in-image."""
    q = np.arange(N * Ho * Wo)
    hq = (q % (Ho * Wo)) // Wo
    wq = q % Wo
    rows = []
    for da in (-1, 0, 1):
        rv = (hq + da >= 0) & (hq + da < Ho)
        for db in (-1, 0, 1):
            cv = (wq + db >= 0) & (wq + db < Wo)
            rows.append(rv & cv)
    return jnp.asarray(np.stack(rows).astype(np.float32).reshape(9, 1, -1),
                       dtype=jnp.bfloat16)


# -------------------- all classifier heads in one kernel (128-lane out) ---------------

def _make_heads_kernel(seg_bounds):
    def kernel(x_ref, w_ref, b_ref, o_ref):
        logits = (jnp.dot(x_ref[...], w_ref[...], preferred_element_type=jnp.float32)
                  + b_ref[...])
        col = jax.lax.broadcasted_iota(jnp.int32, logits.shape, 1)
        out = jnp.zeros_like(logits)
        for lo, hi in seg_bounds:                       # per-head log_softmax
            in_seg = jnp.logical_and(col >= lo, col < hi)
            seg = jnp.where(in_seg, logits, -jnp.inf)
            m = jnp.max(seg, axis=-1, keepdims=True)
            sh = seg - m
            lse = jnp.log(jnp.sum(jnp.exp(sh), axis=-1, keepdims=True))
            out = jnp.where(in_seg, sh - lse, out)
        o_ref[...] = out                                 # padded cols stay 0, sliced off
    return kernel


def heads_logsoftmax(feats, w_cat, b_cat, seg_sizes):
    """log_softmax(feats @ w_cat + b_cat) per column segment; output padded to 128."""
    B, K = feats.shape
    Ntot = w_cat.shape[1]
    bounds, s = [], 0
    for n in seg_sizes:
        bounds.append((s, s + n))
        s += n
    return pl.pallas_call(
        _make_heads_kernel(tuple(bounds)),
        out_shape=jax.ShapeDtypeStruct((B, Ntot), jnp.float32),
        grid=(1,),
        in_specs=[
            pl.BlockSpec((B, K), lambda i: (0, 0)),
            pl.BlockSpec((K, Ntot), lambda i: (0, 0)),
            pl.BlockSpec((1, Ntot), lambda i: (0, 0)),
        ],
        out_specs=pl.BlockSpec((B, Ntot), lambda i: (0, 0)),
        compiler_params=pltpu.CompilerParams(dimension_semantics=("arbitrary",)),
    )(feats, w_cat, b_cat)


# ------------------------------------ forward ------------------------------------

@partial(jax.jit, static_argnames=("num_classes",))
def ournet_forward(sinputs, tinputs, prep, *, num_classes):
    # GradientReversalLayer is the identity in the forward pass (only grads negate).
    num_domains = len(sinputs)
    streams = list(sinputs) + [tinputs]
    S = len(streams)
    N, Cin, H, W = streams[0].shape

    Cout1 = prep["g1"].shape[0]
    Cp1 = prep["W1"].shape[1] // 36
    Cout2 = prep["g2"].shape[0]
    Cp2 = prep["W2"].shape[1] // 36

    # ---- layer1: Conv2d(3,16,5,p=2)+BN+ReLU+MaxPool, fused, 2 streams per grid step ----
    x = jnp.transpose(jnp.stack(streams, axis=0), (0, 2, 1, 3, 4))   # (S, Cin, N, H, W)
    Ho1, Wo1 = H // 2, W // 2
    o1 = conv_bn_relu_pool(
        _phase_planes(x, Cp1), _boundary_masks(N, Ho1, Wo1),
        prep["W1"], prep["b1"], prep["g1"], prep["be1"],
        S=S, Cout=Cout1, N=N, Ho=Ho1, Wo=Wo1)                        # (S*16, N*16*16)

    # ---- layer2: Conv2d(16,32,5,p=2)+BN+ReLU+MaxPool ----
    # Inter-layer phase-plane re-layout kept as one small XLA fusion (see header note).
    x2 = o1.reshape(S, Cout1, N, Ho1, Wo1)
    Ho2, Wo2 = Ho1 // 2, Wo1 // 2
    o2 = conv_bn_relu_pool(
        _phase_planes(x2, Cp2), _boundary_masks(N, Ho2, Wo2),
        prep["W2"], prep["b2"], prep["g2"], prep["be2"],
        S=S, Cout=Cout2, N=N, Ho=Ho2, Wo=Wo2)                        # (S*32, N*8*8)

    # ---- flatten to features in PyTorch reshape(B, -1) order: (C, H, W) ----
    feats = jnp.transpose(o2.reshape(S, Cout2, N, Ho2 * Wo2), (0, 2, 1, 3))
    feats = feats.reshape(S * N, Cout2 * Ho2 * Wo2)                  # (8, 2048)

    # ---- fc + 3 domain heads on all 4 feature sets, one kernel, 128-lane output ----
    lp = heads_logsoftmax(feats, prep["w_cat"], prep["b_cat"],
                          [num_classes] + [2] * num_domains)

    logprobs = [lp[i * N:(i + 1) * N, :num_classes] for i in range(num_domains)]
    sdomains = [lp[i * N:(i + 1) * N, num_classes + 2 * i:num_classes + 2 * i + 2]
                for i in range(num_domains)]
    t0 = num_domains * N
    tdomains = [lp[t0:t0 + N, num_classes + 2 * i:num_classes + 2 * i + 2]
                for i in range(num_domains)]
    return logprobs, sdomains, tdomains


# --------------------------------------- main ---------------------------------------

if __name__ == "__main__":
    key = jax.random.PRNGKey(0)
    ks = jax.random.split(key, 20)
    num_classes = 10

    params = dict(
        # layer1: Conv2d(3, 16, 5, s=1, p=2) + BatchNorm2d(16)
        w1=0.10 * jax.random.normal(ks[0], (16, 3, 5, 5), jnp.float32),
        b1=0.10 * jax.random.normal(ks[1], (16,), jnp.float32),
        g1=1.0 + 0.10 * jax.random.normal(ks[2], (16,), jnp.float32),
        be1=0.10 * jax.random.normal(ks[3], (16,), jnp.float32),
        # layer2: Conv2d(16, 32, 5, s=1, p=2) + BatchNorm2d(32)
        w2=0.05 * jax.random.normal(ks[4], (32, 16, 5, 5), jnp.float32),
        b2=0.10 * jax.random.normal(ks[5], (32,), jnp.float32),
        g2=1.0 + 0.10 * jax.random.normal(ks[6], (32,), jnp.float32),
        be2=0.10 * jax.random.normal(ks[7], (32,), jnp.float32),
        # fc: Linear(2048, 10) stored as (in, out) = W.T
        fc_w=0.02 * jax.random.normal(ks[8], (2048, num_classes), jnp.float32),
        fc_b=0.02 * jax.random.normal(ks[9], (num_classes,), jnp.float32),
        # 3 domain classifiers: Linear(2048, 2), stored as (in, out)
        dom_w=[0.02 * jax.random.normal(ks[10 + i], (2048, 2), jnp.float32)
               for i in range(3)],
        dom_b=[0.02 * jax.random.normal(ks[13 + i], (2,), jnp.float32)
               for i in range(3)],
    )

    # One-time host-side prep (big-K conv weights, tiled BN params, padded head weights).
    prep = prepare_params(params)

    B = 2  # small batch; spatial must be 32x32 because fc expects 8*8*32 = 2048
    sinputs = [jax.random.normal(ks[16 + i], (B, 3, 32, 32), jnp.float32)
               for i in range(3)]
    tinputs = jax.random.normal(ks[19], (B, 3, 32, 32), jnp.float32)

    logprobs, sdomains, tdomains = ournet_forward(sinputs, tinputs, prep,
                                                  num_classes=num_classes)
    jax.block_until_ready((logprobs, sdomains, tdomains))

    assert all(lp.shape == (B, num_classes) for lp in logprobs)
    assert all(sd.shape == (B, 2) for sd in sdomains)
    assert all(td.shape == (B, 2) for td in tdomains)
    assert all(bool(jnp.isfinite(lp).all()) for lp in logprobs)
    assert all(bool(jnp.isfinite(sd).all()) for sd in sdomains)
    assert all(bool(jnp.isfinite(td).all()) for td in tdomains)
    print("KERNEL_OK")
</pallas_src>

<mosaic_0001>
module attributes {stable_mosaic.version = 11 : i64} {
  func.func @kernel(%arg0: i32, %arg1: memref<2x32x768xbf16, #tpu.memory_space<vmem>>, %arg2: memref<9x1x512xbf16, #tpu.memory_space<vmem>>, %arg3: memref<64x288xbf16, #tpu.memory_space<vmem>>, %arg4: memref<64x1xf32, #tpu.memory_space<vmem>>, %arg5: memref<16x1xf32, #tpu.memory_space<vmem>>, %arg6: memref<16x1xf32, #tpu.memory_space<vmem>>, %arg7: memref<32x512xf32, #tpu.memory_space<vmem>>) attributes {dimension_semantics = [#tpu.dimension_semantics<parallel>], iteration_bounds = array<i64: 2>, scalar_prefetch = 0 : i64, scratch_operands = 0 : i64, tpu.core_type = #tpu.core_type<tc>, window_params = [{transform_indices = @transform_0, window_bounds = array<i64: 2, 32, 768>}, {pipeline_mode = #tpu.pipeline_mode<synchronous>, transform_indices = @transform_1, window_bounds = array<i64: 9, 1, 512>}, {pipeline_mode = #tpu.pipeline_mode<synchronous>, transform_indices = @transform_2, window_bounds = array<i64: 64, 288>}, {pipeline_mode = #tpu.pipeline_mode<synchronous>, transform_indices = @transform_3, window_bounds = array<i64: 64, 1>}, {pipeline_mode = #tpu.pipeline_mode<synchronous>, transform_indices = @transform_4, window_bounds = array<i64: 16, 1>}, {pipeline_mode = #tpu.pipeline_mode<synchronous>, transform_indices = @transform_5, window_bounds = array<i64: 16, 1>}, {transform_indices = @transform_6, window_bounds = array<i64: 32, 512>}]} {
    %c0 = arith.constant 0 : index
    %c0_0 = arith.constant 0 : index
    %0 = vector.load %arg3[%c0, %c0_0] : memref<64x288xbf16, #tpu.memory_space<vmem>>, vector<64x288xbf16>
    %c0_1 = arith.constant 0 : index
    %c0_2 = arith.constant 0 : index
    %c0_3 = arith.constant 0 : index
    %1 = vector.load %arg2[%c0_1, %c0_2, %c0_3] : memref<9x1x512xbf16, #tpu.memory_space<vmem>>, vector<9x1x512xbf16>
    %c0_4 = arith.constant 0 : index
    %c0_5 = arith.constant 0 : index
    %2 = vector.load %arg4[%c0_4, %c0_5] : memref<64x1xf32, #tpu.memory_space<vmem>>, vector<64x1xf32>
    %c0_6 = arith.constant 0 : index
    %c0_7 = arith.constant 0 : index
    %3 = vector.load %arg5[%c0_6, %c0_7] : memref<16x1xf32, #tpu.memory_space<vmem>>, vector<16x1xf32>
    %c0_8 = arith.constant 0 : index
    %c0_9 = arith.constant 0 : index
    %4 = vector.load %arg6[%c0_8, %c0_9] : memref<16x1xf32, #tpu.memory_space<vmem>>, vector<16x1xf32>
    %c0_10 = arith.constant 0 : index
    %c0_11 = arith.constant 0 : index
    %c111 = arith.constant 111 : index
    %5 = vector.load %arg1[%c0_10, %c0_11, %c111] : memref<2x32x768xbf16, #tpu.memory_space<vmem>>, vector<1x32x512xbf16>
    %6 = vector.shape_cast %5 : vector<1x32x512xbf16> to vector<32x512xbf16>
    %7 = vector.extract_strided_slice %1 {offsets = [0, 0, 0], sizes = [1, 1, 512], strides = [1, 1, 1]} : vector<9x1x512xbf16> to vector<1x1x512xbf16>
    %8 = vector.shape_cast %7 : vector<1x1x512xbf16> to vector<1x512xbf16>
    %9 = vector.broadcast %8 : vector<1x512xbf16> to vector<32x512xbf16>
    %10 = arith.mulf %6, %9 : vector<32x512xbf16>
    %c0_12 = arith.constant 0 : index
    %c0_13 = arith.constant 0 : index
    %c112 = arith.constant 112 : index
    %11 = vector.load %arg1[%c0_12, %c0_13, %c112] : memref<2x32x768xbf16, #tpu.memory_space<vmem>>, vector<1x32x512xbf16>
    %12 = vector.shape_cast %11 : vector<1x32x512xbf16> to vector<32x512xbf16>
    %13 = vector.extract_strided_slice %1 {offsets = [1, 0, 0], sizes = [1, 1, 512], strides = [1, 1, 1]} : vector<9x1x512xbf16> to vector<1x1x512xbf16>
    %14 = vector.shape_cast %13 : vector<1x1x512xbf16> to vector<1x512xbf16>
    %15 = vector.broadcast %14 : vector<1x512xbf16> to vector<32x512xbf16>
    %16 = arith.mulf %12, %15 : vector<32x512xbf16>
    %c0_14 = arith.constant 0 : index
    %c0_15 = arith.constant 0 : index
    %c113 = arith.constant 113 : index
    %17 = vector.load %arg1[%c0_14, %c0_15, %c113] : memref<2x32x768xbf16, #tpu.memory_space<vmem>>, vector<1x32x512xbf16>
    %18 = vector.shape_cast %17 : vector<1x32x512xbf16> to vector<32x512xbf16>
    %19 = vector.extract_strided_slice %1 {offsets = [2, 0, 0], sizes = [1, 1, 512], strides = [1, 1, 1]} : vector<9x1x512xbf16> to vector<1x1x512xbf16>
    %20 = vector.shape_cast %19 : vector<1x1x512xbf16> to vector<1x512xbf16>
    %21 = vector.broadcast %20 : vector<1x512xbf16> to vector<32x512xbf16>
    %22 = arith.mulf %18, %21 : vector<32x512xbf16>
    %c0_16 = arith.constant 0 : index
    %c0_17 = arith.constant 0 : index
    %c127 = arith.constant 127 : index
    %23 = vector.load %arg1[%c0_16, %c0_17, %c127] : memref<2x32x768xbf16, #tpu.memory_space<vmem>>, vector<1x32x512xbf16>
    %24 = vector.shape_cast %23 : vector<1x32x512xbf16> to vector<32x512xbf16>
    %25 = vector.extract_strided_slice %1 {offsets = [3, 0, 0], sizes = [1, 1, 512], strides = [1, 1, 1]} : vector<9x1x512xbf16> to vector<1x1x512xbf16>
    %26 = vector.shape_cast %25 : vector<1x1x512xbf16> to vector<1x512xbf16>
    %27 = vector.broadcast %26 : vector<1x512xbf16> to vector<32x512xbf16>
    %28 = arith.mulf %24, %27 : vector<32x512xbf16>
    %c0_18 = arith.constant 0 : index
    %c0_19 = arith.constant 0 : index
    %c128 = arith.constant 128 : index
    %29 = vector.load %arg1[%c0_18, %c0_19, %c128] : memref<2x32x768xbf16, #tpu.memory_space<vmem>>, vector<1x32x512xbf16>
    %30 = vector.shape_cast %29 : vector<1x32x512xbf16> to vector<32x512xbf16>
    %c0_20 = arith.constant 0 : index
    %c0_21 = arith.constant 0 : index
    %c129 = arith.constant 129 : index
    %31 = vector.load %arg1[%c0_20, %c0_21, %c129] : memref<2x32x768xbf16, #tpu.memory_space<vmem>>, vector<1x32x512xbf16>
    %32 = vector.shape_cast %31 : vector<1x32x512xbf16> to vector<32x512xbf16>
    %33 = vector.extract_strided_slice %1 {offsets = [5, 0, 0], sizes = [1, 1, 512], strides = [1, 1, 1]} : vector<9x1x512xbf16> to vector<1x1x512xbf16>
    %34 = vector.shape_cast %33 : vector<1x1x512xbf16> to vector<1x512xbf16>
    %35 = vector.broadcast %34 : vector<1x512xbf16> to vector<32x512xbf16>
    %36 = arith.mulf %32, %35 : vector<32x512xbf16>
    %c0_22 = arith.constant 0 : index
    %c0_23 = arith.constant 0 : index
    %c143 = arith.constant 143 : index
    %37 = vector.load %arg1[%c0_22, %c0_23, %c143] : memref<2x32x768xbf16, #tpu.memory_space<vmem>>, vector<1x32x512xbf16>
    %38 = vector.shape_cast %37 : vector<1x32x512xbf16> to vector<32x512xbf16>
    %39 = vector.extract_strided_slice %1 {offsets = [6, 0, 0], sizes = [1, 1, 512], strides = [1, 1, 1]} : vector<9x1x512xbf16> to vector<1x1x512xbf16>
    %40 = vector.shape_cast %39 : vector<1x1x512xbf16> to vector<1x512xbf16>
    %41 = vector.broadcast %40 : vector<1x512xbf16> to vector<32x512xbf16>
    %42 = arith.mulf %38, %41 : vector<32x512xbf16>
    %c0_24 = arith.constant 0 : index
    %c0_25 = arith.constant 0 : index
    %c144 = arith.constant 144 : index
    %43 = vector.load %arg1[%c0_24, %c0_25, %c144] : memref<2x32x768xbf16, #tpu.memory_space<vmem>>, vector<1x32x512xbf16>
    %44 = vector.shape_cast %43 : vector<1x32x512xbf16> to vector<32x512xbf16>
    %45 = vector.extract_strided_slice %1 {offsets = [7, 0, 0], sizes = [1, 1, 512], strides = [1, 1, 1]} : vector<9x1x512xbf16> to vector<1x1x512xbf16>
    %46 = vector.shape_cast %45 : vector<1x1x512xbf16> to vector<1x512xbf16>
    %47 = vector.broadcast %46 : vector<1x512xbf16> to vector<32x512xbf16>
    %48 = arith.mulf %44, %47 : vector<32x512xbf16>
    %c0_26 = arith.constant 0 : index
    %c0_27 = arith.constant 0 : index
    %c145 = arith.constant 145 : index
    %49 = vector.load %arg1[%c0_26, %c0_27, %c145] : memref<2x32x768xbf16, #tpu.memory_space<vmem>>, vector<1x32x512xbf16>
    %50 = vector.shape_cast %49 : vector<1x32x512xbf16> to vector<32x512xbf16>
    %51 = vector.extract_strided_slice %1 {offsets = [8, 0, 0], sizes = [1, 1, 512], strides = [1, 1, 1]} : vector<9x1x512xbf16> to vector<1x1x512xbf16>
    %52 = vector.shape_cast %51 : vector<1x1x512xbf16> to vector<1x512xbf16>
    %53 = vector.broadcast %52 : vector<1x512xbf16> to vector<32x512xbf16>
    %54 = arith.mulf %50, %53 : vector<32x512xbf16>
    %55 = tpu.concatenate %10, %16, %22, %28, %30, %36, %42, %48, %54 in 0 : vector<32x512xbf16>, vector<32x512xbf16>, vector<32x512xbf16>, vector<32x512xbf16>, vector<32x512xbf16>, vector<32x512xbf16>, vector<32x512xbf16>, vector<32x512xbf16>, vector<32x512xbf16> -> vector<288x512xbf16>
    %cst = arith.constant dense<0.000000e+00> : vector<64x512xf32>
    %56 = tpu.matmul %0, %55, %cst {dimension_numbers = #tpu.dot_dimension_numbers<[1], [0], [0], [1], [0, 0, 1, 1], [], []>} : vector<64x288xbf16>, vector<288x512xbf16>, vector<64x512xf32> -> vector<64x512xf32>
    %57 = vector.broadcast %2 : vector<64x1xf32> to vector<64x512xf32>
    %58 = arith.addf %56, %57 : vector<64x512xf32>
    %cst_28 = arith.constant dense<0.000000e+00> : vector<64xf32>
    %59 = vector.multi_reduction <add>, %58, %cst_28 [1] : vector<64x512xf32> to vector<64xf32>
    %60 = vector.shape_cast %59 : vector<64xf32> to vector<64x1xf32>
    %61 = arith.mulf %58, %58 : vector<64x512xf32>
    %cst_29 = arith.constant dense<0.000000e+00> : vector<64xf32>
    %62 = vector.multi_reduction <add>, %61, %cst_29 [1] : vector<64x512xf32> to vector<64xf32>
    %63 = vector.shape_cast %62 : vector<64xf32> to vector<64x1xf32>
    %64 = vector.extract_strided_slice %60 {offsets = [0, 0], sizes = [16, 1], strides = [1, 1]} : vector<64x1xf32> to vector<16x1xf32>
    %65 = vector.extract_strided_slice %60 {offsets = [16, 0], sizes = [16, 1], strides = [1, 1]} : vector<64x1xf32> to vector<16x1xf32>
    %66 = arith.addf %64, %65 : vector<16x1xf32>
    %67 = vector.extract_strided_slice %60 {offsets = [32, 0], sizes = [16, 1], strides = [1, 1]} : vector<64x1xf32> to vector<16x1xf32>
    %68 = arith.addf %66, %67 : vector<16x1xf32>
    %69 = vector.extract_strided_slice %60 {offsets = [48, 0], sizes = [16, 1], strides = [1, 1]} : vector<64x1xf32> to vector<16x1xf32>
    %70 = arith.addf %68, %69 : vector<16x1xf32>
    %71 = vector.extract_strided_slice %63 {offsets = [0, 0], sizes = [16, 1], strides = [1, 1]} : vector<64x1xf32> to vector<16x1xf32>
    %72 = vector.extract_strided_slice %63 {offsets = [16, 0], sizes = [16, 1], strides = [1, 1]} : vector<64x1xf32> to vector<16x1xf32>
    %73 = arith.addf %71, %72 : vector<16x1xf32>
    %74 = vector.extract_strided_slice %63 {offsets = [32, 0], sizes = [16, 1], strides = [1, 1]} : vector<64x1xf32> to vector<16x1xf32>
    %75 = arith.addf %73, %74 : vector<16x1xf32>
    %76 = vector.extract_strided_slice %63 {offsets = [48, 0], sizes = [16, 1], strides = [1, 1]} : vector<64x1xf32> to vector<16x1xf32>
    %77 = arith.addf %75, %76 : vector<16x1xf32>
    %cst_30 = arith.constant 4.8828125E-4 : f32
    %78 = vector.broadcast %cst_30 : f32 to vector<16x1xf32>
    %79 = arith.mulf %70, %78 : vector<16x1xf32>
    %cst_31 = arith.constant 4.8828125E-4 : f32
    %80 = vector.broadcast %cst_31 : f32 to vector<16x1xf32>
    %81 = arith.mulf %77, %80 : vector<16x1xf32>
    %82 = arith.mulf %79, %79 : vector<16x1xf32>
    %83 = arith.subf %81, %82 : vector<16x1xf32>
    %cst_32 = arith.constant 0.000000e+00 : f32
    %84 = vector.broadcast %cst_32 : f32 to vector<16x1xf32>
    %85 = arith.maximumf %83, %84 : vector<16x1xf32>
    %cst_33 = arith.constant 9.99999974E-6 : f32
    %86 = vector.broadcast %cst_33 : f32 to vector<16x1xf32>
    %87 = arith.addf %85, %86 : vector<16x1xf32>
    %88 = math.rsqrt %87 : vector<16x1xf32>
    %89 = arith.mulf %3, %88 : vector<16x1xf32>
    %90 = arith.mulf %79, %89 : vector<16x1xf32>
    %91 = arith.subf %4, %90 : vector<16x1xf32>
    %92 = vector.extract_strided_slice %58 {offsets = [0, 0], sizes = [16, 512], strides = [1, 1]} : vector<64x512xf32> to vector<16x512xf32>
    %93 = vector.broadcast %89 : vector<16x1xf32> to vector<16x512xf32>
    %94 = arith.mulf %92, %93 : vector<16x512xf32>
    %95 = vector.broadcast %91 : vector<16x1xf32> to vector<16x512xf32>
    %96 = arith.addf %94, %95 : vector<16x512xf32>
    %97 = vector.extract_strided_slice %58 {offsets = [16, 0], sizes = [16, 512], strides = [1, 1]} : vector<64x512xf32> to vector<16x512xf32>
    %98 = vector.broadcast %89 : vector<16x1xf32> to vector<16x512xf32>
    %99 = arith.mulf %97, %98 : vector<16x512xf32>
    %100 = vector.broadcast %91 : vector<16x1xf32> to vector<16x512xf32>
    %101 = arith.addf %99, %100 : vector<16x512xf32>
    %102 = arith.maximumf %96, %101 : vector<16x512xf32>
    %103 = vector.extract_strided_slice %58 {offsets = [32, 0], sizes = [16, 512], strides = [1, 1]} : vector<64x512xf32> to vector<16x512xf32>
    %104 = vector.broadcast %89 : vector<16x1xf32> to vector<16x512xf32>
    %105 = arith.mulf %103, %104 : vector<16x512xf32>
    %106 = vector.broadcast %91 : vector<16x1xf32> to vector<16x512xf32>
    %107 = arith.addf %105, %106 : vector<16x512xf32>
    %108 = vector.extract_strided_slice %58 {offsets = [48, 0], sizes = [16, 512], strides = [1, 1]} : vector<64x512xf32> to vector<16x512xf32>
    %109 = vector.broadcast %89 : vector<16x1xf32> to vector<16x512xf32>
    %110 = arith.mulf %108, %109 : vector<16x512xf32>
    %111 = vector.broadcast %91 : vector<16x1xf32> to vector<16x512xf32>
    %112 = arith.addf %110, %111 : vector<16x512xf32>
    %113 = arith.maximumf %107, %112 : vector<16x512xf32>
    %114 = arith.maximumf %102, %113 : vector<16x512xf32>
    %cst_34 = arith.constant 0.000000e+00 : f32
    %115 = vector.broadcast %cst_34 : f32 to vector<16x512xf32>
    %116 = arith.maximumf %114, %115 : vector<16x512xf32>
    %c0_35 = arith.constant 0 : index
    %c0_36 = arith.constant 0 : index
    %117 = vector.load %arg7[%c0_35, %c0_36] : memref<32x512xf32, #tpu.memory_space<vmem>>, vector<16x512xf32>
    tpu.vector_store %arg7[%c0_35, %c0_36], %116 {strides = array<i32>} : memref<32x512xf32, #tpu.memory_space<vmem>>, vector<16x512xf32>,
    %c1 = arith.constant 1 : index
    %c0_37 = arith.constant 0 : index
    %c111_38 = arith.constant 111 : index
    %118 = vector.load %arg1[%c1, %c0_37, %c111_38] : memref<2x32x768xbf16, #tpu.memory_space<vmem>>, vector<1x32x512xbf16>
    %119 = vector.shape_cast %118 : vector<1x32x512xbf16> to vector<32x512xbf16>
    %120 = vector.extract_strided_slice %1 {offsets = [0, 0, 0], sizes = [1, 1, 512], strides = [1, 1, 1]} : vector<9x1x512xbf16> to vector<1x1x512xbf16>
    %121 = vector.shape_cast %120 : vector<1x1x512xbf16> to vector<1x512xbf16>
    %122 = vector.broadcast %121 : vector<1x512xbf16> to vector<32x512xbf16>
    %123 = arith.mulf %119, %122 : vector<32x512xbf16>
    %c1_39 = arith.constant 1 : index
    %c0_40 = arith.constant 0 : index
    %c112_41 = arith.constant 112 : index
    %124 = vector.load %arg1[%c1_39, %c0_40, %c112_41] : memref<2x32x768xbf16, #tpu.memory_space<vmem>>, vector<1x32x512xbf16>
    %125 = vector.shape_cast %124 : vector<1x32x512xbf16> to vector<32x512xbf16>
    %126 = vector.extract_strided_slice %1 {offsets = [1, 0, 0], sizes = [1, 1, 512], strides = [1, 1, 1]} : vector<9x1x512xbf16> to vector<1x1x512xbf16>
    %127 = vector.shape_cast %126 : vector<1x1x512xbf16> to vector<1x512xbf16>
    %128 = vector.broadcast %127 : vector<1x512xbf16> to vector<32x512xbf16>
    %129 = arith.mulf %125, %128 : vector<32x512xbf16>
    %c1_42 = arith.constant 1 : index
    %c0_43 = arith.constant 0 : index
    %c113_44 = arith.constant 113 : index
    %130 = vector.load %arg1[%c1_42, %c0_43, %c113_44] : memref<2x32x768xbf16, #tpu.memory_space<vmem>>, vector<1x32x512xbf16>
    %131 = vector.shape_cast %130 : vector<1x32x512xbf16> to vector<32x512xbf16>
    %132 = vector.extract_strided_slice %1 {offsets = [2, 0, 0], sizes = [1, 1, 512], strides = [1, 1, 1]} : vector<9x1x512xbf16> to vector<1x1x512xbf16>
    %133 = vector.shape_cast %132 : vector<1x1x512xbf16> to vector<1x512xbf16>
    %134 = vector.broadcast %133 : vector<1x512xbf16> to vector<32x512xbf16>
    %135 = arith.mulf %131, %134 : vector<32x512xbf16>
    %c1_45 = arith.constant 1 : index
    %c0_46 = arith.constant 0 : index
    %c127_47 = arith.constant 127 : index
    %136 = vector.load %arg1[%c1_45, %c0_46, %c127_47] : memref<2x32x768xbf16, #tpu.memory_space<vmem>>, vector<1x32x512xbf16>
    %137 = vector.shape_cast %136 : vector<1x32x512xbf16> to vector<32x512xbf16>
    %138 = vector.extract_strided_slice %1 {offsets = [3, 0, 0], sizes = [1, 1, 512], strides = [1, 1, 1]} : vector<9x1x512xbf16> to vector<1x1x512xbf16>
    %139 = vector.shape_cast %138 : vector<1x1x512xbf16> to vector<1x512xbf16>
    %140 = vector.broadcast %139 : vector<1x512xbf16> to vector<32x512xbf16>
    %141 = arith.mulf %137, %140 : vector<32x512xbf16>
    %c1_48 = arith.constant 1 : index
    %c0_49 = arith.constant 0 : index
    %c128_50 = arith.constant 128 : index
    %142 = vector.load %arg1[%c1_48, %c0_49, %c128_50] : memref<2x32x768xbf16, #tpu.memory_space<vmem>>, vector<1x32x512xbf16>
    %143 = vector.shape_cast %142 : vector<1x32x512xbf16> to vector<32x512xbf16>
    %c1_51 = arith.constant 1 : index
    %c0_52 = arith.constant 0 : index
    %c129_53 = arith.constant 129 : index
    %144 = vector.load %arg1[%c1_51, %c0_52, %c129_53] : memref<2x32x768xbf16, #tpu.memory_space<vmem>>, vector<1x32x512xbf16>
    %145 = vector.shape_cast %144 : vector<1x32x512xbf16> to vector<32x512xbf16>
    %146 = vector.extract_strided_slice %1 {offsets = [5, 0, 0], sizes = [1, 1, 512], strides = [1, 1, 1]} : vector<9x1x512xbf16> to vector<1x1x512xbf16>
    %147 = vector.shape_cast %146 : vector<1x1x512xbf16> to vector<1x512xbf16>
    %148 = vector.broadcast %147 : vector<1x512xbf16> to vector<32x512xbf16>
    %149 = arith.mulf %145, %148 : vector<32x512xbf16>
    %c1_54 = arith.constant 1 : index
    %c0_55 = arith.constant 0 : index
    %c143_56 = arith.constant 143 : index
    %150 = vector.load %arg1[%c1_54, %c0_55, %c143_56] : memref<2x32x768xbf16, #tpu.memory_space<vmem>>, vector<1x32x512xbf16>
    %151 = vector.shape_cast %150 : vector<1x32x512xbf16> to vector<32x512xbf16>
    %152 = vector.extract_strided_slice %1 {offsets = [6, 0, 0], sizes = [1, 1, 512], strides = [1, 1, 1]} : vector<9x1x512xbf16> to vector<1x1x512xbf16>
    %153 = vector.shape_cast %152 : vector<1x1x512xbf16> to vector<1x512xbf16>
    %154 = vector.broadcast %153 : vector<1x512xbf16> to vector<32x512xbf16>
    %155 = arith.mulf %151, %154 : vector<32x512xbf16>
    %c1_57 = arith.constant 1 : index
    %c0_58 = arith.constant 0 : index
    %c144_59 = arith.constant 144 : index
    %156 = vector.load %arg1[%c1_57, %c0_58, %c144_59] : memref<2x32x768xbf16, #tpu.memory_space<vmem>>, vector<1x32x512xbf16>
    %157 = vector.shape_cast %156 : vector<1x32x512xbf16> to vector<32x512xbf16>
    %158 = vector.extract_strided_slice %1 {offsets = [7, 0, 0], sizes = [1, 1, 512], strides = [1, 1, 1]} : vector<9x1x512xbf16> to vector<1x1x512xbf16>
    %159 = vector.shape_cast %158 : vector<1x1x512xbf16> to vector<1x512xbf16>
    %160 = vector.broadcast %159 : vector<1x512xbf16> to vector<32x512xbf16>
    %161 = arith.mulf %157, %160 : vector<32x512xbf16>
    %c1_60 = arith.constant 1 : index
    %c0_61 = arith.constant 0 : index
    %c145_62 = arith.constant 145 : index
    %162 = vector.load %arg1[%c1_60, %c0_61, %c145_62] : memref<2x32x768xbf16, #tpu.memory_space<vmem>>, vector<1x32x512xbf16>
    %163 = vector.shape_cast %162 : vector<1x32x512xbf16> to vector<32x512xbf16>
    %164 = vector.extract_strided_slice %1 {offsets = [8, 0, 0], sizes = [1, 1, 512], strides = [1, 1, 1]} : vector<9x1x512xbf16> to vector<1x1x512xbf16>
    %165 = vector.shape_cast %164 : vector<1x1x512xbf16> to vector<1x512xbf16>
    %166 = vector.broadcast %165 : vector<1x512xbf16> to vector<32x512xbf16>
    %167 = arith.mulf %163, %166 : vector<32x512xbf16>
    %168 = tpu.concatenate %123, %129, %135, %141, %143, %149, %155, %161, %167 in 0 : vector<32x512xbf16>, vector<32x512xbf16>, vector<32x512xbf16>, vector<32x512xbf16>, vector<32x512xbf16>, vector<32x512xbf16>, vector<32x512xbf16>, vector<32x512xbf16>, vector<32x512xbf16> -> vector<288x512xbf16>
    %cst_63 = arith.constant dense<0.000000e+00> : vector<64x512xf32>
    %169 = tpu.matmul %0, %168, %cst_63 {dimension_numbers = #tpu.dot_dimension_numbers<[1], [0], [0], [1], [0, 0, 1, 1], [], []>} : vector<64x288xbf16>, vector<288x512xbf16>, vector<64x512xf32> -> vector<64x512xf32>
    %170 = vector.broadcast %2 : vector<64x1xf32> to vector<64x512xf32>
    %171 = arith.addf %169, %170 : vector<64x512xf32>
    %cst_64 = arith.constant dense<0.000000e+00> : vector<64xf32>
    %172 = vector.multi_reduction <add>, %171, %cst_64 [1] : vector<64x512xf32> to vector<64xf32>
    %173 = vector.shape_cast %172 : vector<64xf32> to vector<64x1xf32>
    %174 = arith.mulf %171, %171 : vector<64x512xf32>
    %cst_65 = arith.constant dense<0.000000e+00> : vector<64xf32>
    %175 = vector.multi_reduction <add>, %174, %cst_65 [1] : vector<64x512xf32> to vector<64xf32>
    %176 = vector.shape_cast %175 : vector<64xf32> to vector<64x1xf32>
    %177 = vector.extract_strided_slice %173 {offsets = [0, 0], sizes = [16, 1], strides = [1, 1]} : vector<64x1xf32> to vector<16x1xf32>
    %178 = vector.extract_strided_slice %173 {offsets = [16, 0], sizes = [16, 1], strides = [1, 1]} : vector<64x1xf32> to vector<16x1xf32>
    %179 = arith.addf %177, %178 : vector<16x1xf32>
    %180 = vector.extract_strided_slice %173 {offsets = [32, 0], sizes = [16, 1], strides = [1, 1]} : vector<64x1xf32> to vector<16x1xf32>
    %181 = arith.addf %179, %180 : vector<16x1xf32>
    %182 = vector.extract_strided_slice %173 {offsets = [48, 0], sizes = [16, 1], strides = [1, 1]} : vector<64x1xf32> to vector<16x1xf32>
    %183 = arith.addf %181, %182 : vector<16x1xf32>
    %184 = vector.extract_strided_slice %176 {offsets = [0, 0], sizes = [16, 1], strides = [1, 1]} : vector<64x1xf32> to vector<16x1xf32>
    %185 = vector.extract_strided_slice %176 {offsets = [16, 0], sizes = [16, 1], strides = [1, 1]} : vector<64x1xf32> to vector<16x1xf32>
    %186 = arith.addf %184, %185 : vector<16x1xf32>
    %187 = vector.extract_strided_slice %176 {offsets = [32, 0], sizes = [16, 1], strides = [1, 1]} : vector<64x1xf32> to vector<16x1xf32>
    %188 = arith.addf %186, %187 : vector<16x1xf32>
    %189 = vector.extract_strided_slice %176 {offsets = [48, 0], sizes = [16, 1], strides = [1, 1]} : vector<64x1xf32> to vector<16x1xf32>
    %190 = arith.addf %188, %189 : vector<16x1xf32>
    %cst_66 = arith.constant 4.8828125E-4 : f32
    %191 = vector.broadcast %cst_66 : f32 to vector<16x1xf32>
    %192 = arith.mulf %183, %191 : vector<16x1xf32>
    %cst_67 = arith.constant 4.8828125E-4 : f32
    %193 = vector.broadcast %cst_67 : f32 to vector<16x1xf32>
    %194 = arith.mulf %190, %193 : vector<16x1xf32>
    %195 = arith.mulf %192, %192 : vector<16x1xf32>
    %196 = arith.subf %194, %195 : vector<16x1xf32>
    %cst_68 = arith.constant 0.000000e+00 : f32
    %197 = vector.broadcast %cst_68 : f32 to vector<16x1xf32>
    %198 = arith.maximumf %196, %197 : vector<16x1xf32>
    %cst_69 = arith.constant 9.99999974E-6 : f32
    %199 = vector.broadcast %cst_69 : f32 to vector<16x1xf32>
    %200 = arith.addf %198, %199 : vector<16x1xf32>
    %201 = math.rsqrt %200 : vector<16x1xf32>
    %202 = arith.mulf %3, %201 : vector<16x1xf32>
    %203 = arith.mulf %192, %202 : vector<16x1xf32>
    %204 = arith.subf %4, %203 : vector<16x1xf32>
    %205 = vector.extract_strided_slice %171 {offsets = [0, 0], sizes = [16, 512], strides = [1, 1]} : vector<64x512xf32> to vector<16x512xf32>
    %206 = vector.broadcast %202 : vector<16x1xf32> to vector<16x512xf32>
    %207 = arith.mulf %205, %206 : vector<16x512xf32>
    %208 = vector.broadcast %204 : vector<16x1xf32> to vector<16x512xf32>
    %209 = arith.addf %207, %208 : vector<16x512xf32>
    %210 = vector.extract_strided_slice %171 {offsets = [16, 0], sizes = [16, 512], strides = [1, 1]} : vector<64x512xf32> to vector<16x512xf32>
    %211 = vector.broadcast %202 : vector<16x1xf32> to vector<16x512xf32>
    %212 = arith.mulf %210, %211 : vector<16x512xf32>
    %213 = vector.broadcast %204 : vector<16x1xf32> to vector<16x512xf32>
    %214 = arith.addf %212, %213 : vector<16x512xf32>
    %215 = arith.maximumf %209, %214 : vector<16x512xf32>
    %216 = vector.extract_strided_slice %171 {offsets = [32, 0], sizes = [16, 512], strides = [1, 1]} : vector<64x512xf32> to vector<16x512xf32>
    %217 = vector.broadcast %202 : vector<16x1xf32> to vector<16x512xf32>
    %218 = arith.mulf %216, %217 : vector<16x512xf32>
    %219 = vector.broadcast %204 : vector<16x1xf32> to vector<16x512xf32>
    %220 = arith.addf %218, %219 : vector<16x512xf32>
    %221 = vector.extract_strided_slice %171 {offsets = [48, 0], sizes = [16, 512], strides = [1, 1]} : vector<64x512xf32> to vector<16x512xf32>
    %222 = vector.broadcast %202 : vector<16x1xf32> to vector<16x512xf32>
    %223 = arith.mulf %221, %222 : vector<16x512xf32>
    %224 = vector.broadcast %204 : vector<16x1xf32> to vector<16x512xf32>
    %225 = arith.addf %223, %224 : vector<16x512xf32>
    %226 = arith.maximumf %220, %225 : vector<16x512xf32>
    %227 = arith.maximumf %215, %226 : vector<16x512xf32>
    %cst_70 = arith.constant 0.000000e+00 : f32
    %228 = vector.broadcast %cst_70 : f32 to vector<16x512xf32>
    %229 = arith.maximumf %227, %228 : vector<16x512xf32>
    %c16 = arith.constant 16 : index
    %c0_71 = arith.constant 0 : index
    %230 = vector.load %arg7[%c16, %c0_71] : memref<32x512xf32, #tpu.memory_space<vmem>>, vector<16x512xf32>
    tpu.vector_store %arg7[%c16, %c0_71], %229 {strides = array<i32>} : memref<32x512xf32, #tpu.memory_space<vmem>>, vector<16x512xf32>,
    return
  }
  func.func @transform_0(%arg0: i32) -> (i32, i32, i32) {
    %c0_i32 = arith.constant 0 : i32
    %c0_i32_0 = arith.constant 0 : i32
    %c0_i32_1 = arith.constant 0 : i32
    return %arg0, %c0_i32, %c0_i32_0 : i32, i32, i32
  }
  func.func @transform_1(%arg0: i32) -> (i32, i32, i32) {
    %c0_i32 = arith.constant 0 : i32
    %c0_i32_0 = arith.constant 0 : i32
    %c0_i32_1 = arith.constant 0 : i32
    %c0_i32_2 = arith.constant 0 : i32
    return %c0_i32, %c0_i32_0, %c0_i32_1 : i32, i32, i32
  }
  func.func @transform_2(%arg0: i32) -> (i32, i32) {
    %c0_i32 = arith.constant 0 : i32
    %c0_i32_0 = arith.constant 0 : i32
    %c0_i32_1 = arith.constant 0 : i32
    return %c0_i32, %c0_i32_0 : i32, i32
  }
  func.func @transform_3(%arg0: i32) -> (i32, i32) {
    %c0_i32 = arith.constant 0 : i32
    %c0_i32_0 = arith.constant 0 : i32
    %c0_i32_1 = arith.constant 0 : i32
    return %c0_i32, %c0_i32_0 : i32, i32
  }
  func.func @transform_4(%arg0: i32) -> (i32, i32) {
    %c0_i32 = arith.constant 0 : i32
    %c0_i32_0 = arith.constant 0 : i32
    %c0_i32_1 = arith.constant 0 : i32
    return %c0_i32, %c0_i32_0 : i32, i32
  }
  func.func @transform_5(%arg0: i32) -> (i32, i32) {
    %c0_i32 = arith.constant 0 : i32
    %c0_i32_0 = arith.constant 0 : i32
    %c0_i32_1 = arith.constant 0 : i32
    return %c0_i32, %c0_i32_0 : i32, i32
  }
  func.func @transform_6(%arg0: i32) -> (i32, i32) {
    %c0_i32 = arith.constant 0 : i32
    %c0_i32_0 = arith.constant 0 : i32
    return %arg0, %c0_i32 : i32, i32
  }
}

module attributes {stable_mosaic.version = 11 : i64} {
  func.func @kernel(%arg0: i32, %arg1: memref<2x64x384xbf16, #tpu.memory_space<vmem>>, %arg2: memref<9x1x128xbf16, #tpu.memory_space<vmem>>, %arg3: memref<128x576xbf16, #tpu.memory_space<vmem>>, %arg4: memref<128x1xf32, #tpu.memory_space<vmem>>, %arg5: memref<32x1xf32, #tpu.memory_space<vmem>>, %arg6: memref<32x1xf32, #tpu.memory_space<vmem>>, %arg7: memref<64x128xf32, #tpu.memory_space<vmem>>) attributes {dimension_semantics = [#tpu.dimension_semantics<parallel>], iteration_bounds = array<i64: 2>, scalar_prefetch = 0 : i64, scratch_operands = 0 : i64, tpu.core_type = #tpu.core_type<tc>, window_params = [{transform_indices = @transform_0, window_bounds = array<i64: 2, 64, 384>}, {pipeline_mode = #tpu.pipeline_mode<synchronous>, transform_indices = @transform_1, window_bounds = array<i64: 9, 1, 128>}, {pipeline_mode = #tpu.pipeline_mode<synchronous>, transform_indices = @transform_2, window_bounds = array<i64: 128, 576>}, {pipeline_mode = #tpu.pipeline_mode<synchronous>, transform_indices = @transform_3, window_bounds = array<i64: 128, 1>}, {pipeline_mode = #tpu.pipeline_mode<synchronous>, transform_indices = @transform_4, window_bounds = array<i64: 32, 1>}, {pipeline_mode = #tpu.pipeline_mode<synchronous>, transform_indices = @transform_5, window_bounds = array<i64: 32, 1>}, {transform_indices = @transform_6, window_bounds = array<i64: 64, 128>}]} {
    %c0 = arith.constant 0 : index
    %c0_0 = arith.constant 0 : index
    %0 = vector.load %arg3[%c0, %c0_0] : memref<128x576xbf16, #tpu.memory_space<vmem>>, vector<128x576xbf16>
    %c0_1 = arith.constant 0 : index
    %c0_2 = arith.constant 0 : index
    %c0_3 = arith.constant 0 : index
    %1 = vector.load %arg2[%c0_1, %c0_2, %c0_3] : memref<9x1x128xbf16, #tpu.memory_space<vmem>>, vector<9x1x128xbf16>
    %c0_4 = arith.constant 0 : index
    %c0_5 = arith.constant 0 : index
    %2 = vector.load %arg4[%c0_4, %c0_5] : memref<128x1xf32, #tpu.memory_space<vmem>>, vector<128x1xf32>
    %c0_6 = arith.constant 0 : index
    %c0_7 = arith.constant 0 : index
    %3 = vector.load %arg5[%c0_6, %c0_7] : memref<32x1xf32, #tpu.memory_space<vmem>>, vector<32x1xf32>
    %c0_8 = arith.constant 0 : index
    %c0_9 = arith.constant 0 : index
    %4 = vector.load %arg6[%c0_8, %c0_9] : memref<32x1xf32, #tpu.memory_space<vmem>>, vector<32x1xf32>
    %c0_10 = arith.constant 0 : index
    %c0_11 = arith.constant 0 : index
    %c119 = arith.constant 119 : index
    %5 = vector.load %arg1[%c0_10, %c0_11, %c119] : memref<2x64x384xbf16, #tpu.memory_space<vmem>>, vector<1x64x128xbf16>
    %6 = vector.shape_cast %5 : vector<1x64x128xbf16> to vector<64x128xbf16>
    %7 = vector.extract_strided_slice %1 {offsets = [0, 0, 0], sizes = [1, 1, 128], strides = [1, 1, 1]} : vector<9x1x128xbf16> to vector<1x1x128xbf16>
    %8 = vector.shape_cast %7 : vector<1x1x128xbf16> to vector<1x128xbf16>
    %9 = vector.broadcast %8 : vector<1x128xbf16> to vector<64x128xbf16>
    %10 = arith.mulf %6, %9 : vector<64x128xbf16>
    %c0_12 = arith.constant 0 : index
    %c0_13 = arith.constant 0 : index
    %c120 = arith.constant 120 : index
    %11 = vector.load %arg1[%c0_12, %c0_13, %c120] : memref<2x64x384xbf16, #tpu.memory_space<vmem>>, vector<1x64x128xbf16>
    %12 = vector.shape_cast %11 : vector<1x64x128xbf16> to vector<64x128xbf16>
    %13 = vector.extract_strided_slice %1 {offsets = [1, 0, 0], sizes = [1, 1, 128], strides = [1, 1, 1]} : vector<9x1x128xbf16> to vector<1x1x128xbf16>
    %14 = vector.shape_cast %13 : vector<1x1x128xbf16> to vector<1x128xbf16>
    %15 = vector.broadcast %14 : vector<1x128xbf16> to vector<64x128xbf16>
    %16 = arith.mulf %12, %15 : vector<64x128xbf16>
    %c0_14 = arith.constant 0 : index
    %c0_15 = arith.constant 0 : index
    %c121 = arith.constant 121 : index
    %17 = vector.load %arg1[%c0_14, %c0_15, %c121] : memref<2x64x384xbf16, #tpu.memory_space<vmem>>, vector<1x64x128xbf16>
    %18 = vector.shape_cast %17 : vector<1x64x128xbf16> to vector<64x128xbf16>
    %19 = vector.extract_strided_slice %1 {offsets = [2, 0, 0], sizes = [1, 1, 128], strides = [1, 1, 1]} : vector<9x1x128xbf16> to vector<1x1x128xbf16>
    %20 = vector.shape_cast %19 : vector<1x1x128xbf16> to vector<1x128xbf16>
    %21 = vector.broadcast %20 : vector<1x128xbf16> to vector<64x128xbf16>
    %22 = arith.mulf %18, %21 : vector<64x128xbf16>
    %c0_16 = arith.constant 0 : index
    %c0_17 = arith.constant 0 : index
    %c127 = arith.constant 127 : index
    %23 = vector.load %arg1[%c0_16, %c0_17, %c127] : memref<2x64x384xbf16, #tpu.memory_space<vmem>>, vector<1x64x128xbf16>
    %24 = vector.shape_cast %23 : vector<1x64x128xbf16> to vector<64x128xbf16>
    %25 = vector.extract_strided_slice %1 {offsets = [3, 0, 0], sizes = [1, 1, 128], strides = [1, 1, 1]} : vector<9x1x128xbf16> to vector<1x1x128xbf16>
    %26 = vector.shape_cast %25 : vector<1x1x128xbf16> to vector<1x128xbf16>
    %27 = vector.broadcast %26 : vector<1x128xbf16> to vector<64x128xbf16>
    %28 = arith.mulf %24, %27 : vector<64x128xbf16>
    %c0_18 = arith.constant 0 : index
    %c0_19 = arith.constant 0 : index
    %c128 = arith.constant 128 : index
    %29 = vector.load %arg1[%c0_18, %c0_19, %c128] : memref<2x64x384xbf16, #tpu.memory_space<vmem>>, vector<1x64x128xbf16>
    %30 = vector.shape_cast %29 : vector<1x64x128xbf16> to vector<64x128xbf16>
    %c0_20 = arith.constant 0 : index
    %c0_21 = arith.constant 0 : index
    %c129 = arith.constant 129 : index
    %31 = vector.load %arg1[%c0_20, %c0_21, %c129] : memref<2x64x384xbf16, #tpu.memory_space<vmem>>, vector<1x64x128xbf16>
    %32 = vector.shape_cast %31 : vector<1x64x128xbf16> to vector<64x128xbf16>
    %33 = vector.extract_strided_slice %1 {offsets = [5, 0, 0], sizes = [1, 1, 128], strides = [1, 1, 1]} : vector<9x1x128xbf16> to vector<1x1x128xbf16>
    %34 = vector.shape_cast %33 : vector<1x1x128xbf16> to vector<1x128xbf16>
    %35 = vector.broadcast %34 : vector<1x128xbf16> to vector<64x128xbf16>
    %36 = arith.mulf %32, %35 : vector<64x128xbf16>
    %c0_22 = arith.constant 0 : index
    %c0_23 = arith.constant 0 : index
    %c135 = arith.constant 135 : index
    %37 = vector.load %arg1[%c0_22, %c0_23, %c135] : memref<2x64x384xbf16, #tpu.memory_space<vmem>>, vector<1x64x128xbf16>
    %38 = vector.shape_cast %37 : vector<1x64x128xbf16> to vector<64x128xbf16>
    %39 = vector.extract_strided_slice %1 {offsets = [6, 0, 0], sizes = [1, 1, 128], strides = [1, 1, 1]} : vector<9x1x128xbf16> to vector<1x1x128xbf16>
    %40 = vector.shape_cast %39 : vector<1x1x128xbf16> to vector<1x128xbf16>
    %41 = vector.broadcast %40 : vector<1x128xbf16> to vector<64x128xbf16>
    %42 = arith.mulf %38, %41 : vector<64x128xbf16>
    %c0_24 = arith.constant 0 : index
    %c0_25 = arith.constant 0 : index
    %c136 = arith.constant 136 : index
    %43 = vector.load %arg1[%c0_24, %c0_25, %c136] : memref<2x64x384xbf16, #tpu.memory_space<vmem>>, vector<1x64x128xbf16>
    %44 = vector.shape_cast %43 : vector<1x64x128xbf16> to vector<64x128xbf16>
    %45 = vector.extract_strided_slice %1 {offsets = [7, 0, 0], sizes = [1, 1, 128], strides = [1, 1, 1]} : vector<9x1x128xbf16> to vector<1x1x128xbf16>
    %46 = vector.shape_cast %45 : vector<1x1x128xbf16> to vector<1x128xbf16>
    %47 = vector.broadcast %46 : vector<1x128xbf16> to vector<64x128xbf16>
    %48 = arith.mulf %44, %47 : vector<64x128xbf16>
    %c0_26 = arith.constant 0 : index
    %c0_27 = arith.constant 0 : index
    %c137 = arith.constant 137 : index
    %49 = vector.load %arg1[%c0_26, %c0_27, %c137] : memref<2x64x384xbf16, #tpu.memory_space<vmem>>, vector<1x64x128xbf16>
    %50 = vector.shape_cast %49 : vector<1x64x128xbf16> to vector<64x128xbf16>
    %51 = vector.extract_strided_slice %1 {offsets = [8, 0, 0], sizes = [1, 1, 128], strides = [1, 1, 1]} : vector<9x1x128xbf16> to vector<1x1x128xbf16>
    %52 = vector.shape_cast %51 : vector<1x1x128xbf16> to vector<1x128xbf16>
    %53 = vector.broadcast %52 : vector<1x128xbf16> to vector<64x128xbf16>
    %54 = arith.mulf %50, %53 : vector<64x128xbf16>
    %55 = tpu.concatenate %10, %16, %22, %28, %30, %36, %42, %48, %54 in 0 : vector<64x128xbf16>, vector<64x128xbf16>, vector<64x128xbf16>, vector<64x128xbf16>, vector<64x128xbf16>, vector<64x128xbf16>, vector<64x128xbf16>, vector<64x128xbf16>, vector<64x128xbf16> -> vector<576x128xbf16>
    %cst = arith.constant dense<0.000000e+00> : vector<128x128xf32>
    %56 = tpu.matmul %0, %55, %cst {dimension_numbers = #tpu.dot_dimension_numbers<[1], [0], [0], [1], [0, 0, 1, 1], [], []>} : vector<128x576xbf16>, vector<576x128xbf16>, vector<128x128xf32> -> vector<128x128xf32>
    %57 = vector.broadcast %2 : vector<128x1xf32> to vector<128x128xf32>
    %58 = arith.addf %56, %57 : vector<128x128xf32>
    %cst_28 = arith.constant dense<0.000000e+00> : vector<128xf32>
    %59 = vector.multi_reduction <add>, %58, %cst_28 [1] : vector<128x128xf32> to vector<128xf32>
    %60 = vector.shape_cast %59 : vector<128xf32> to vector<128x1xf32>
    %61 = arith.mulf %58, %58 : vector<128x128xf32>
    %cst_29 = arith.constant dense<0.000000e+00> : vector<128xf32>
    %62 = vector.multi_reduction <add>, %61, %cst_29 [1] : vector<128x128xf32> to vector<128xf32>
    %63 = vector.shape_cast %62 : vector<128xf32> to vector<128x1xf32>
    %64 = vector.extract_strided_slice %60 {offsets = [0, 0], sizes = [32, 1], strides = [1, 1]} : vector<128x1xf32> to vector<32x1xf32>
    %65 = vector.extract_strided_slice %60 {offsets = [32, 0], sizes = [32, 1], strides = [1, 1]} : vector<128x1xf32> to vector<32x1xf32>
    %66 = arith.addf %64, %65 : vector<32x1xf32>
    %67 = vector.extract_strided_slice %60 {offsets = [64, 0], sizes = [32, 1], strides = [1, 1]} : vector<128x1xf32> to vector<32x1xf32>
    %68 = arith.addf %66, %67 : vector<32x1xf32>
    %69 = vector.extract_strided_slice %60 {offsets = [96, 0], sizes = [32, 1], strides = [1, 1]} : vector<128x1xf32> to vector<32x1xf32>
    %70 = arith.addf %68, %69 : vector<32x1xf32>
    %71 = vector.extract_strided_slice %63 {offsets = [0, 0], sizes = [32, 1], strides = [1, 1]} : vector<128x1xf32> to vector<32x1xf32>
    %72 = vector.extract_strided_slice %63 {offsets = [32, 0], sizes = [32, 1], strides = [1, 1]} : vector<128x1xf32> to vector<32x1xf32>
    %73 = arith.addf %71, %72 : vector<32x1xf32>
    %74 = vector.extract_strided_slice %63 {offsets = [64, 0], sizes = [32, 1], strides = [1, 1]} : vector<128x1xf32> to vector<32x1xf32>
    %75 = arith.addf %73, %74 : vector<32x1xf32>
    %76 = vector.extract_strided_slice %63 {offsets = [96, 0], sizes = [32, 1], strides = [1, 1]} : vector<128x1xf32> to vector<32x1xf32>
    %77 = arith.addf %75, %76 : vector<32x1xf32>
    %cst_30 = arith.constant 0.001953125 : f32
    %78 = vector.broadcast %cst_30 : f32 to vector<32x1xf32>
    %79 = arith.mulf %70, %78 : vector<32x1xf32>
    %cst_31 = arith.constant 0.001953125 : f32
    %80 = vector.broadcast %cst_31 : f32 to vector<32x1xf32>
    %81 = arith.mulf %77, %80 : vector<32x1xf32>
    %82 = arith.mulf %79, %79 : vector<32x1xf32>
    %83 = arith.subf %81, %82 : vector<32x1xf32>
    %cst_32 = arith.constant 0.000000e+00 : f32
    %84 = vector.broadcast %cst_32 : f32 to vector<32x1xf32>
    %85 = arith.maximumf %83, %84 : vector<32x1xf32>
    %cst_33 = arith.constant 9.99999974E-6 : f32
    %86 = vector.broadcast %cst_33 : f32 to vector<32x1xf32>
    %87 = arith.addf %85, %86 : vector<32x1xf32>
    %88 = math.rsqrt %87 : vector<32x1xf32>
    %89 = arith.mulf %3, %88 : vector<32x1xf32>
    %90 = arith.mulf %79, %89 : vector<32x1xf32>
    %91 = arith.subf %4, %90 : vector<32x1xf32>
    %92 = vector.extract_strided_slice %58 {offsets = [0, 0], sizes = [32, 128], strides = [1, 1]} : vector<128x128xf32> to vector<32x128xf32>
    %93 = vector.broadcast %89 : vector<32x1xf32> to vector<32x128xf32>
    %94 = arith.mulf %92, %93 : vector<32x128xf32>
    %95 = vector.broadcast %91 : vector<32x1xf32> to vector<32x128xf32>
    %96 = arith.addf %94, %95 : vector<32x128xf32>
    %97 = vector.extract_strided_slice %58 {offsets = [32, 0], sizes = [32, 128], strides = [1, 1]} : vector<128x128xf32> to vector<32x128xf32>
    %98 = vector.broadcast %89 : vector<32x1xf32> to vector<32x128xf32>
    %99 = arith.mulf %97, %98 : vector<32x128xf32>
    %100 = vector.broadcast %91 : vector<32x1xf32> to vector<32x128xf32>
    %101 = arith.addf %99, %100 : vector<32x128xf32>
    %102 = arith.maximumf %96, %101 : vector<32x128xf32>
    %103 = vector.extract_strided_slice %58 {offsets = [64, 0], sizes = [32, 128], strides = [1, 1]} : vector<128x128xf32> to vector<32x128xf32>
    %104 = vector.broadcast %89 : vector<32x1xf32> to vector<32x128xf32>
    %105 = arith.mulf %103, %104 : vector<32x128xf32>
    %106 = vector.broadcast %91 : vector<32x1xf32> to vector<32x128xf32>
    %107 = arith.addf %105, %106 : vector<32x128xf32>
    %108 = vector.extract_strided_slice %58 {offsets = [96, 0], sizes = [32, 128], strides = [1, 1]} : vector<128x128xf32> to vector<32x128xf32>
    %109 = vector.broadcast %89 : vector<32x1xf32> to vector<32x128xf32>
    %110 = arith.mulf %108, %109 : vector<32x128xf32>
    %111 = vector.broadcast %91 : vector<32x1xf32> to vector<32x128xf32>
    %112 = arith.addf %110, %111 : vector<32x128xf32>
    %113 = arith.maximumf %107, %112 : vector<32x128xf32>
    %114 = arith.maximumf %102, %113 : vector<32x128xf32>
    %cst_34 = arith.constant 0.000000e+00 : f32
    %115 = vector.broadcast %cst_34 : f32 to vector<32x128xf32>
    %116 = arith.maximumf %114, %115 : vector<32x128xf32>
    %c0_35 = arith.constant 0 : index
    %c0_36 = arith.constant 0 : index
    %117 = vector.load %arg7[%c0_35, %c0_36] : memref<64x128xf32, #tpu.memory_space<vmem>>, vector<32x128xf32>
    tpu.vector_store %arg7[%c0_35, %c0_36], %116 {strides = array<i32>} : memref<64x128xf32, #tpu.memory_space<vmem>>, vector<32x128xf32>,
    %c1 = arith.constant 1 : index
    %c0_37 = arith.constant 0 : index
    %c119_38 = arith.constant 119 : index
    %118 = vector.load %arg1[%c1, %c0_37, %c119_38] : memref<2x64x384xbf16, #tpu.memory_space<vmem>>, vector<1x64x128xbf16>
    %119 = vector.shape_cast %118 : vector<1x64x128xbf16> to vector<64x128xbf16>
    %120 = vector.extract_strided_slice %1 {offsets = [0, 0, 0], sizes = [1, 1, 128], strides = [1, 1, 1]} : vector<9x1x128xbf16> to vector<1x1x128xbf16>
    %121 = vector.shape_cast %120 : vector<1x1x128xbf16> to vector<1x128xbf16>
    %122 = vector.broadcast %121 : vector<1x128xbf16> to vector<64x128xbf16>
    %123 = arith.mulf %119, %122 : vector<64x128xbf16>
    %c1_39 = arith.constant 1 : index
    %c0_40 = arith.constant 0 : index
    %c120_41 = arith.constant 120 : index
    %124 = vector.load %arg1[%c1_39, %c0_40, %c120_41] : memref<2x64x384xbf16, #tpu.memory_space<vmem>>, vector<1x64x128xbf16>
    %125 = vector.shape_cast %124 : vector<1x64x128xbf16> to vector<64x128xbf16>
    %126 = vector.extract_strided_slice %1 {offsets = [1, 0, 0], sizes = [1, 1, 128], strides = [1, 1, 1]} : vector<9x1x128xbf16> to vector<1x1x128xbf16>
    %127 = vector.shape_cast %126 : vector<1x1x128xbf16> to vector<1x128xbf16>
    %128 = vector.broadcast %127 : vector<1x128xbf16> to vector<64x128xbf16>
    %129 = arith.mulf %125, %128 : vector<64x128xbf16>
    %c1_42 = arith.constant 1 : index
    %c0_43 = arith.constant 0 : index
    %c121_44 = arith.constant 121 : index
    %130 = vector.load %arg1[%c1_42, %c0_43, %c121_44] : memref<2x64x384xbf16, #tpu.memory_space<vmem>>, vector<1x64x128xbf16>
    %131 = vector.shape_cast %130 : vector<1x64x128xbf16> to vector<64x128xbf16>
    %132 = vector.extract_strided_slice %1 {offsets = [2, 0, 0], sizes = [1, 1, 128], strides = [1, 1, 1]} : vector<9x1x128xbf16> to vector<1x1x128xbf16>
    %133 = vector.shape_cast %132 : vector<1x1x128xbf16> to vector<1x128xbf16>
    %134 = vector.broadcast %133 : vector<1x128xbf16> to vector<64x128xbf16>
    %135 = arith.mulf %131, %134 : vector<64x128xbf16>
    %c1_45 = arith.constant 1 : index
    %c0_46 = arith.constant 0 : index
    %c127_47 = arith.constant 127 : index
    %136 = vector.load %arg1[%c1_45, %c0_46, %c127_47] : memref<2x64x384xbf16, #tpu.memory_space<vmem>>, vector<1x64x128xbf16>
    %137 = vector.shape_cast %136 : vector<1x64x128xbf16> to vector<64x128xbf16>
    %138 = vector.extract_strided_slice %1 {offsets = [3, 0, 0], sizes = [1, 1, 128], strides = [1, 1, 1]} : vector<9x1x128xbf16> to vector<1x1x128xbf16>
    %139 = vector.shape_cast %138 : vector<1x1x128xbf16> to vector<1x128xbf16>
    %140 = vector.broadcast %139 : vector<1x128xbf16> to vector<64x128xbf16>
    %141 = arith.mulf %137, %140 : vector<64x128xbf16>
    %c1_48 = arith.constant 1 : index
    %c0_49 = arith.constant 0 : index
    %c128_50 = arith.constant 128 : index
    %142 = vector.load %arg1[%c1_48, %c0_49, %c128_50] : memref<2x64x384xbf16, #tpu.memory_space<vmem>>, vector<1x64x128xbf16>
    %143 = vector.shape_cast %142 : vector<1x64x128xbf16> to vector<64x128xbf16>
    %c1_51 = arith.constant 1 : index
    %c0_52 = arith.constant 0 : index
    %c129_53 = arith.constant 129 : index
    %144 = vector.load %arg1[%c1_51, %c0_52, %c129_53] : memref<2x64x384xbf16, #tpu.memory_space<vmem>>, vector<1x64x128xbf16>
    %145 = vector.shape_cast %144 : vector<1x64x128xbf16> to vector<64x128xbf16>
    %146 = vector.extract_strided_slice %1 {offsets = [5, 0, 0], sizes = [1, 1, 128], strides = [1, 1, 1]} : vector<9x1x128xbf16> to vector<1x1x128xbf16>
    %147 = vector.shape_cast %146 : vector<1x1x128xbf16> to vector<1x128xbf16>
    %148 = vector.broadcast %147 : vector<1x128xbf16> to vector<64x128xbf16>
    %149 = arith.mulf %145, %148 : vector<64x128xbf16>
    %c1_54 = arith.constant 1 : index
    %c0_55 = arith.constant 0 : index
    %c135_56 = arith.constant 135 : index
    %150 = vector.load %arg1[%c1_54, %c0_55, %c135_56] : memref<2x64x384xbf16, #tpu.memory_space<vmem>>, vector<1x64x128xbf16>
    %151 = vector.shape_cast %150 : vector<1x64x128xbf16> to vector<64x128xbf16>
    %152 = vector.extract_strided_slice %1 {offsets = [6, 0, 0], sizes = [1, 1, 128], strides = [1, 1, 1]} : vector<9x1x128xbf16> to vector<1x1x128xbf16>
    %153 = vector.shape_cast %152 : vector<1x1x128xbf16> to vector<1x128xbf16>
    %154 = vector.broadcast %153 : vector<1x128xbf16> to vector<64x128xbf16>
    %155 = arith.mulf %151, %154 : vector<64x128xbf16>
    %c1_57 = arith.constant 1 : index
    %c0_58 = arith.constant 0 : index
    %c136_59 = arith.constant 136 : index
    %156 = vector.load %arg1[%c1_57, %c0_58, %c136_59] : memref<2x64x384xbf16, #tpu.memory_space<vmem>>, vector<1x64x128xbf16>
    %157 = vector.shape_cast %156 : vector<1x64x128xbf16> to vector<64x128xbf16>
    %158 = vector.extract_strided_slice %1 {offsets = [7, 0, 0], sizes = [1, 1, 128], strides = [1, 1, 1]} : vector<9x1x128xbf16> to vector<1x1x128xbf16>
    %159 = vector.shape_cast %158 : vector<1x1x128xbf16> to vector<1x128xbf16>
    %160 = vector.broadcast %159 : vector<1x128xbf16> to vector<64x128xbf16>
    %161 = arith.mulf %157, %160 : vector<64x128xbf16>
    %c1_60 = arith.constant 1 : index
    %c0_61 = arith.constant 0 : index
    %c137_62 = arith.constant 137 : index
    %162 = vector.load %arg1[%c1_60, %c0_61, %c137_62] : memref<2x64x384xbf16, #tpu.memory_space<vmem>>, vector<1x64x128xbf16>
    %163 = vector.shape_cast %162 : vector<1x64x128xbf16> to vector<64x128xbf16>
    %164 = vector.extract_strided_slice %1 {offsets = [8, 0, 0], sizes = [1, 1, 128], strides = [1, 1, 1]} : vector<9x1x128xbf16> to vector<1x1x128xbf16>
    %165 = vector.shape_cast %164 : vector<1x1x128xbf16> to vector<1x128xbf16>
    %166 = vector.broadcast %165 : vector<1x128xbf16> to vector<64x128xbf16>
    %167 = arith.mulf %163, %166 : vector<64x128xbf16>
    %168 = tpu.concatenate %123, %129, %135, %141, %143, %149, %155, %161, %167 in 0 : vector<64x128xbf16>, vector<64x128xbf16>, vector<64x128xbf16>, vector<64x128xbf16>, vector<64x128xbf16>, vector<64x128xbf16>, vector<64x128xbf16>, vector<64x128xbf16>, vector<64x128xbf16> -> vector<576x128xbf16>
    %cst_63 = arith.constant dense<0.000000e+00> : vector<128x128xf32>
    %169 = tpu.matmul %0, %168, %cst_63 {dimension_numbers = #tpu.dot_dimension_numbers<[1], [0], [0], [1], [0, 0, 1, 1], [], []>} : vector<128x576xbf16>, vector<576x128xbf16>, vector<128x128xf32> -> vector<128x128xf32>
    %170 = vector.broadcast %2 : vector<128x1xf32> to vector<128x128xf32>
    %171 = arith.addf %169, %170 : vector<128x128xf32>
    %cst_64 = arith.constant dense<0.000000e+00> : vector<128xf32>
    %172 = vector.multi_reduction <add>, %171, %cst_64 [1] : vector<128x128xf32> to vector<128xf32>
    %173 = vector.shape_cast %172 : vector<128xf32> to vector<128x1xf32>
    %174 = arith.mulf %171, %171 : vector<128x128xf32>
    %cst_65 = arith.constant dense<0.000000e+00> : vector<128xf32>
    %175 = vector.multi_reduction <add>, %174, %cst_65 [1] : vector<128x128xf32> to vector<128xf32>
    %176 = vector.shape_cast %175 : vector<128xf32> to vector<128x1xf32>
    %177 = vector.extract_strided_slice %173 {offsets = [0, 0], sizes = [32, 1], strides = [1, 1]} : vector<128x1xf32> to vector<32x1xf32>
    %178 = vector.extract_strided_slice %173 {offsets = [32, 0], sizes = [32, 1], strides = [1, 1]} : vector<128x1xf32> to vector<32x1xf32>
    %179 = arith.addf %177, %178 : vector<32x1xf32>
    %180 = vector.extract_strided_slice %173 {offsets = [64, 0], sizes = [32, 1], strides = [1, 1]} : vector<128x1xf32> to vector<32x1xf32>
    %181 = arith.addf %179, %180 : vector<32x1xf32>
    %182 = vector.extract_strided_slice %173 {offsets = [96, 0], sizes = [32, 1], strides = [1, 1]} : vector<128x1xf32> to vector<32x1xf32>
    %183 = arith.addf %181, %182 : vector<32x1xf32>
    %184 = vector.extract_strided_slice %176 {offsets = [0, 0], sizes = [32, 1], strides = [1, 1]} : vector<128x1xf32> to vector<32x1xf32>
    %185 = vector.extract_strided_slice %176 {offsets = [32, 0], sizes = [32, 1], strides = [1, 1]} : vector<128x1xf32> to vector<32x1xf32>
    %186 = arith.addf %184, %185 : vector<32x1xf32>
    %187 = vector.extract_strided_slice %176 {offsets = [64, 0], sizes = [32, 1], strides = [1, 1]} : vector<128x1xf32> to vector<32x1xf32>
    %188 = arith.addf %186, %187 : vector<32x1xf32>
    %189 = vector.extract_strided_slice %176 {offsets = [96, 0], sizes = [32, 1], strides = [1, 1]} : vector<128x1xf32> to vector<32x1xf32>
    %190 = arith.addf %188, %189 : vector<32x1xf32>
    %cst_66 = arith.constant 0.001953125 : f32
    %191 = vector.broadcast %cst_66 : f32 to vector<32x1xf32>
    %192 = arith.mulf %183, %191 : vector<32x1xf32>
    %cst_67 = arith.constant 0.001953125 : f32
    %193 = vector.broadcast %cst_67 : f32 to vector<32x1xf32>
    %194 = arith.mulf %190, %193 : vector<32x1xf32>
    %195 = arith.mulf %192, %192 : vector<32x1xf32>
    %196 = arith.subf %194, %195 : vector<32x1xf32>
    %cst_68 = arith.constant 0.000000e+00 : f32
    %197 = vector.broadcast %cst_68 : f32 to vector<32x1xf32>
    %198 = arith.maximumf %196, %197 : vector<32x1xf32>
    %cst_69 = arith.constant 9.99999974E-6 : f32
    %199 = vector.broadcast %cst_69 : f32 to vector<32x1xf32>
    %200 = arith.addf %198, %199 : vector<32x1xf32>
    %201 = math.rsqrt %200 : vector<32x1xf32>
    %202 = arith.mulf %3, %201 : vector<32x1xf32>
    %203 = arith.mulf %192, %202 : vector<32x1xf32>
    %204 = arith.subf %4, %203 : vector<32x1xf32>
    %205 = vector.extract_strided_slice %171 {offsets = [0, 0], sizes = [32, 128], strides = [1, 1]} : vector<128x128xf32> to vector<32x128xf32>
    %206 = vector.broadcast %202 : vector<32x1xf32> to vector<32x128xf32>
    %207 = arith.mulf %205, %206 : vector<32x128xf32>
    %208 = vector.broadcast %204 : vector<32x1xf32> to vector<32x128xf32>
    %209 = arith.addf %207, %208 : vector<32x128xf32>
    %210 = vector.extract_strided_slice %171 {offsets = [32, 0], sizes = [32, 128], strides = [1, 1]} : vector<128x128xf32> to vector<32x128xf32>
    %211 = vector.broadcast %202 : vector<32x1xf32> to vector<32x128xf32>
    %212 = arith.mulf %210, %211 : vector<32x128xf32>
    %213 = vector.broadcast %204 : vector<32x1xf32> to vector<32x128xf32>
    %214 = arith.addf %212, %213 : vector<32x128xf32>
    %215 = arith.maximumf %209, %214 : vector<32x128xf32>
    %216 = vector.extract_strided_slice %171 {offsets = [64, 0], sizes = [32, 128], strides = [1, 1]} : vector<128x128xf32> to vector<32x128xf32>
    %217 = vector.broadcast %202 : vector<32x1xf32> to vector<32x128xf32>
    %218 = arith.mulf %216, %217 : vector<32x128xf32>
    %219 = vector.broadcast %204 : vector<32x1xf32> to vector<32x128xf32>
    %220 = arith.addf %218, %219 : vector<32x128xf32>
    %221 = vector.extract_strided_slice %171 {offsets = [96, 0], sizes = [32, 128], strides = [1, 1]} : vector<128x128xf32> to vector<32x128xf32>
    %222 = vector.broadcast %202 : vector<32x1xf32> to vector<32x128xf32>
    %223 = arith.mulf %221, %222 : vector<32x128xf32>
    %224 = vector.broadcast %204 : vector<32x1xf32> to vector<32x128xf32>
    %225 = arith.addf %223, %224 : vector<32x128xf32>
    %226 = arith.maximumf %220, %225 : vector<32x128xf32>
    %227 = arith.maximumf %215, %226 : vector<32x128xf32>
    %cst_70 = arith.constant 0.000000e+00 : f32
    %228 = vector.broadcast %cst_70 : f32 to vector<32x128xf32>
    %229 = arith.maximumf %227, %228 : vector<32x128xf32>
    %c32 = arith.constant 32 : index
    %c0_71 = arith.constant 0 : index
    %230 = vector.load %arg7[%c32, %c0_71] : memref<64x128xf32, #tpu.memory_space<vmem>>, vector<32x128xf32>
    tpu.vector_store %arg7[%c32, %c0_71], %229 {strides = array<i32>} : memref<64x128xf32, #tpu.memory_space<vmem>>, vector<32x128xf32>,
    return
  }
  func.func @transform_0(%arg0: i32) -> (i32, i32, i32) {
    %c0_i32 = arith.constant 0 : i32
    %c0_i32_0 = arith.constant 0 : i32
    %c0_i32_1 = arith.constant 0 : i32
    return %arg0, %c0_i32, %c0_i32_0 : i32, i32, i32
  }
  func.func @transform_1(%arg0: i32) -> (i32, i32, i32) {
    %c0_i32 = arith.constant 0 : i32
    %c0_i32_0 = arith.constant 0 : i32
    %c0_i32_1 = arith.constant 0 : i32
    %c0_i32_2 = arith.constant 0 : i32
    return %c0_i32, %c0_i32_0, %c0_i32_1 : i32, i32, i32
  }
  func.func @transform_2(%arg0: i32) -> (i32, i32) {
    %c0_i32 = arith.constant 0 : i32
    %c0_i32_0 = arith.constant 0 : i32
    %c0_i32_1 = arith.constant 0 : i32
    return %c0_i32, %c0_i32_0 : i32, i32
  }
  func.func @transform_3(%arg0: i32) -> (i32, i32) {
    %c0_i32 = arith.constant 0 : i32
    %c0_i32_0 = arith.constant 0 : i32
    %c0_i32_1 = arith.constant 0 : i32
    return %c0_i32, %c0_i32_0 : i32, i32
  }
  func.func @transform_4(%arg0: i32) -> (i32, i32) {
    %c0_i32 = arith.constant 0 : i32
    %c0_i32_0 = arith.constant 0 : i32
    %c0_i32_1 = arith.constant 0 : i32
    return %c0_i32, %c0_i32_0 : i32, i32
  }
  func.func @transform_5(%arg0: i32) -> (i32, i32) {
    %c0_i32 = arith.constant 0 : i32
    %c0_i32_0 = arith.constant 0 : i32
    %c0_i32_1 = arith.constant 0 : i32
    return %c0_i32, %c0_i32_0 : i32, i32
  }
  func.func @transform_6(%arg0: i32) -> (i32, i32) {
    %c0_i32 = arith.constant 0 : i32
    %c0_i32_0 = arith.constant 0 : i32
    return %arg0, %c0_i32 : i32, i32
  }
}

module attributes {stable_mosaic.version = 11 : i64} {
  func.func @kernel(%arg0: i32, %arg1: memref<8x2048xf32, #tpu.memory_space<vmem>>, %arg2: memref<2048x128xf32, #tpu.memory_space<vmem>>, %arg3: memref<1x128xf32, #tpu.memory_space<vmem>>, %arg4: memref<8x128xf32, #tpu.memory_space<vmem>>) attributes {dimension_semantics = [#tpu.dimension_semantics<arbitrary>], iteration_bounds = array<i64: 1>, scalar_prefetch = 0 : i64, scratch_operands = 0 : i64, tpu.core_type = #tpu.core_type<tc>, window_params = [{pipeline_mode = #tpu.pipeline_mode<synchronous>, transform_indices = @transform_0, window_bounds = array<i64: 8, 2048>}, {pipeline_mode = #tpu.pipeline_mode<synchronous>, transform_indices = @transform_1, window_bounds = array<i64: 2048, 128>}, {pipeline_mode = #tpu.pipeline_mode<synchronous>, transform_indices = @transform_2, window_bounds = array<i64: 1, 128>}, {pipeline_mode = #tpu.pipeline_mode<synchronous>, transform_indices = @transform_3, window_bounds = array<i64: 8, 128>}]} {
    %c0 = arith.constant 0 : index
    %c0_0 = arith.constant 0 : index
    %0 = vector.load %arg1[%c0, %c0_0] : memref<8x2048xf32, #tpu.memory_space<vmem>>, vector<8x2048xf32>
    %c0_1 = arith.constant 0 : index
    %c0_2 = arith.constant 0 : index
    %1 = vector.load %arg2[%c0_1, %c0_2] : memref<2048x128xf32, #tpu.memory_space<vmem>>, vector<2048x128xf32>
    %cst = arith.constant dense<0.000000e+00> : vector<8x128xf32>
    %2 = tpu.matmul %0, %1, %cst {dimension_numbers = #tpu.dot_dimension_numbers<[1], [0], [0], [1], [0, 0, 1, 1], [], []>} : vector<8x2048xf32>, vector<2048x128xf32>, vector<8x128xf32> -> vector<8x128xf32>
    %c0_3 = arith.constant 0 : index
    %c0_4 = arith.constant 0 : index
    %3 = vector.load %arg3[%c0_3, %c0_4] : memref<1x128xf32, #tpu.memory_space<vmem>>, vector<1x128xf32>
    %4 = vector.broadcast %3 : vector<1x128xf32> to vector<8x128xf32>
    %5 = arith.addf %2, %4 : vector<8x128xf32>
    %6 = tpu.iota {dimensions = array<i32: 1>} : vector<8x128xi32>
    %cst_5 = arith.constant 0.000000e+00 : f32
    %7 = vector.broadcast %cst_5 : f32 to vector<8x128xf32>
    %c0_i32 = arith.constant 0 : i32
    %8 = vector.broadcast %c0_i32 : i32 to vector<8x128xi32>
    %9 = arith.cmpi sge, %6, %8 : vector<8x128xi32>
    %c10_i32 = arith.constant 10 : i32
    %10 = vector.broadcast %c10_i32 : i32 to vector<8x128xi32>
    %11 = arith.cmpi slt, %6, %10 : vector<8x128xi32>
    %12 = arith.andi %9, %11 : vector<8x128xi1>
    %cst_6 = arith.constant 0xFF800000 : f32
    %13 = vector.broadcast %cst_6 : f32 to vector<8x128xf32>
    %14 = arith.select %12, %5, %13 : vector<8x128xi1>, vector<8x128xf32>
    %cst_7 = arith.constant dense<0xFF800000> : vector<8xf32>
    %15 = vector.multi_reduction <maximumf>, %14, %cst_7 [1] : vector<8x128xf32> to vector<8xf32>
    %16 = vector.shape_cast %15 : vector<8xf32> to vector<8x1xf32>
    %17 = vector.broadcast %16 : vector<8x1xf32> to vector<8x128xf32>
    %18 = arith.subf %14, %17 : vector<8x128xf32>
    %19 = math.exp %18 : vector<8x128xf32>
    %cst_8 = arith.constant dense<0.000000e+00> : vector<8xf32>
    %20 = vector.multi_reduction <add>, %19, %cst_8 [1] : vector<8x128xf32> to vector<8xf32>
    %21 = vector.shape_cast %20 : vector<8xf32> to vector<8x1xf32>
    %22 = math.log %21 : vector<8x1xf32>
    %23 = vector.broadcast %22 : vector<8x1xf32> to vector<8x128xf32>
    %24 = arith.subf %18, %23 : vector<8x128xf32>
    %25 = arith.select %12, %24, %7 : vector<8x128xi1>, vector<8x128xf32>
    %c10_i32_9 = arith.constant 10 : i32
    %26 = vector.broadcast %c10_i32_9 : i32 to vector<8x128xi32>
    %27 = arith.cmpi sge, %6, %26 : vector<8x128xi32>
    %c12_i32 = arith.constant 12 : i32
    %28 = vector.broadcast %c12_i32 : i32 to vector<8x128xi32>
    %29 = arith.cmpi slt, %6, %28 : vector<8x128xi32>
    %30 = arith.andi %27, %29 : vector<8x128xi1>
    %cst_10 = arith.constant 0xFF800000 : f32
    %31 = vector.broadcast %cst_10 : f32 to vector<8x128xf32>
    %32 = arith.select %30, %5, %31 : vector<8x128xi1>, vector<8x128xf32>
    %cst_11 = arith.constant dense<0xFF800000> : vector<8xf32>
    %33 = vector.multi_reduction <maximumf>, %32, %cst_11 [1] : vector<8x128xf32> to vector<8xf32>
    %34 = vector.shape_cast %33 : vector<8xf32> to vector<8x1xf32>
    %35 = vector.broadcast %34 : vector<8x1xf32> to vector<8x128xf32>
    %36 = arith.subf %32, %35 : vector<8x128xf32>
    %37 = math.exp %36 : vector<8x128xf32>
    %cst_12 = arith.constant dense<0.000000e+00> : vector<8xf32>
    %38 = vector.multi_reduction <add>, %37, %cst_12 [1] : vector<8x128xf32> to vector<8xf32>
    %39 = vector.shape_cast %38 : vector<8xf32> to vector<8x1xf32>
    %40 = math.log %39 : vector<8x1xf32>
    %41 = vector.broadcast %40 : vector<8x1xf32> to vector<8x128xf32>
    %42 = arith.subf %36, %41 : vector<8x128xf32>
    %43 = arith.select %30, %42, %25 : vector<8x128xi1>, vector<8x128xf32>
    %c12_i32_13 = arith.constant 12 : i32
    %44 = vector.broadcast %c12_i32_13 : i32 to vector<8x128xi32>
    %45 = arith.cmpi sge, %6, %44 : vector<8x128xi32>
    %c14_i32 = arith.constant 14 : i32
    %46 = vector.broadcast %c14_i32 : i32 to vector<8x128xi32>
    %47 = arith.cmpi slt, %6, %46 : vector<8x128xi32>
    %48 = arith.andi %45, %47 : vector<8x128xi1>
    %cst_14 = arith.constant 0xFF800000 : f32
    %49 = vector.broadcast %cst_14 : f32 to vector<8x128xf32>
    %50 = arith.select %48, %5, %49 : vector<8x128xi1>, vector<8x128xf32>
    %cst_15 = arith.constant dense<0xFF800000> : vector<8xf32>
    %51 = vector.multi_reduction <maximumf>, %50, %cst_15 [1] : vector<8x128xf32> to vector<8xf32>
    %52 = vector.shape_cast %51 : vector<8xf32> to vector<8x1xf32>
    %53 = vector.broadcast %52 : vector<8x1xf32> to vector<8x128xf32>
    %54 = arith.subf %50, %53 : vector<8x128xf32>
    %55 = math.exp %54 : vector<8x128xf32>
    %cst_16 = arith.constant dense<0.000000e+00> : vector<8xf32>
    %56 = vector.multi_reduction <add>, %55, %cst_16 [1] : vector<8x128xf32> to vector<8xf32>
    %57 = vector.shape_cast %56 : vector<8xf32> to vector<8x1xf32>
    %58 = math.log %57 : vector<8x1xf32>
    %59 = vector.broadcast %58 : vector<8x1xf32> to vector<8x128xf32>
    %60 = arith.subf %54, %59 : vector<8x128xf32>
    %61 = arith.select %48, %60, %43 : vector<8x128xi1>, vector<8x128xf32>
    %c14_i32_17 = arith.constant 14 : i32
    %62 = vector.broadcast %c14_i32_17 : i32 to vector<8x128xi32>
    %63 = arith.cmpi sge, %6, %62 : vector<8x128xi32>
    %c16_i32 = arith.constant 16 : i32
    %64 = vector.broadcast %c16_i32 : i32 to vector<8x128xi32>
    %65 = arith.cmpi slt, %6, %64 : vector<8x128xi32>
    %66 = arith.andi %63, %65 : vector<8x128xi1>
    %cst_18 = arith.constant 0xFF800000 : f32
    %67 = vector.broadcast %cst_18 : f32 to vector<8x128xf32>
    %68 = arith.select %66, %5, %67 : vector<8x128xi1>, vector<8x128xf32>
    %cst_19 = arith.constant dense<0xFF800000> : vector<8xf32>
    %69 = vector.multi_reduction <maximumf>, %68, %cst_19 [1] : vector<8x128xf32> to vector<8xf32>
    %70 = vector.shape_cast %69 : vector<8xf32> to vector<8x1xf32>
    %71 = vector.broadcast %70 : vector<8x1xf32> to vector<8x128xf32>
    %72 = arith.subf %68, %71 : vector<8x128xf32>
    %73 = math.exp %72 : vector<8x128xf32>
    %cst_20 = arith.constant dense<0.000000e+00> : vector<8xf32>
    %74 = vector.multi_reduction <add>, %73, %cst_20 [1] : vector<8x128xf32> to vector<8xf32>
    %75 = vector.shape_cast %74 : vector<8xf32> to vector<8x1xf32>
    %76 = math.log %75 : vector<8x1xf32>
    %77 = vector.broadcast %76 : vector<8x1xf32> to vector<8x128xf32>
    %78 = arith.subf %72, %77 : vector<8x128xf32>
    %79 = arith.select %66, %78, %61 : vector<8x128xi1>, vector<8x128xf32>
    %c0_21 = arith.constant 0 : index
    %c0_22 = arith.constant 0 : index
    %80 = vector.load %arg4[%c0_21, %c0_22] : memref<8x128xf32, #tpu.memory_space<vmem>>, vector<8x128xf32>
    tpu.vector_store %arg4[%c0_21, %c0_22], %79 {strides = array<i32>} : memref<8x128xf32, #tpu.memory_space<vmem>>, vector<8x128xf32>,
    return
  }
  func.func @transform_0(%arg0: i32) -> (i32, i32) {
    %c0_i32 = arith.constant 0 : i32
    %c0_i32_0 = arith.constant 0 : i32
    %c0_i32_1 = arith.constant 0 : i32
    return %c0_i32, %c0_i32_0 : i32, i32
  }
  func.func @transform_1(%arg0: i32) -> (i32, i32) {
    %c0_i32 = arith.constant 0 : i32
    %c0_i32_0 = arith.constant 0 : i32
    %c0_i32_1 = arith.constant 0 : i32
    return %c0_i32, %c0_i32_0 : i32, i32
  }
  func.func @transform_2(%arg0: i32) -> (i32, i32) {
    %c0_i32 = arith.constant 0 : i32
    %c0_i32_0 = arith.constant 0 : i32
    %c0_i32_1 = arith.constant 0 : i32
    return %c0_i32, %c0_i32_0 : i32, i32
  }
  func.func @transform_3(%arg0: i32) -> (i32, i32) {
    %c0_i32 = arith.constant 0 : i32
    %c0_i32_0 = arith.constant 0 : i32
    %c0_i32_1 = arith.constant 0 : i32
    return %c0_i32, %c0_i32_0 : i32, i32
  }
}

</mosaic_0001>

<llo_original>
// kernel: ournet_forward.3
$region0: #{ournet_forward.3}
  #allocation0 [shape = 'u32[]', space=smem, size = 0x4, offset = 0x4, fixed_abs, tag = 'smem constant byte address 0x4 - core index']
  #allocation1 [shape = 'u32[144,128]{1,0:T(1,128)}', space=vmem, size = 0x12000, scoped, tag = 'internal scratch']
  %s0 = inlined_call_operand.vmem [shape: bf16[4,32,768], index: 0, kind: input, shape index: {}]
  %s1 = inlined_call_operand.vmem [shape: bf16[9,1,512], index: 1, kind: input, shape index: {}]
  %s2 = inlined_call_operand.vmem [shape: bf16[64,288], index: 2, kind: input, shape index: {}]
  %s3 = inlined_call_operand.vmem [shape: f32[64,1], index: 3, kind: input, shape index: {}]
  %s4 = inlined_call_operand.vmem [shape: f32[16,1], index: 4, kind: input, shape index: {}]
  %s5 = inlined_call_operand.vmem [shape: f32[16,1], index: 5, kind: input, shape index: {}]
  %s6 = inlined_call_operand.vmem [shape: f32[64,512], index: 6, kind: output, shape index: {}]
  %s7 = sld [smem:[#allocation0]]
  $region57: #{ournet_forward.3} parent=0
    _
  %s9 = ssub.s32 1, %s7
  %s10 = scalar_select 0, %s9, %s7
  loop: start=0, step=1, limit=4
  $region2: #{ournet_forward.3} parent=0 // loop_pre_header
    _
  $region3: #{ournet_forward.3} parent=0 // loop_header
    %s12 = sphi 0, %s16
    %p13 = scmp.ge.s32.totalorder %s12, 4
    %s22 = sphi 0, %s24
    %s25 = sphi 0, %s22
    %s26 = sphi 0, %s25
    %s42 = sphi 0, %s26
    %s46 = sphi 0, %s46
    %s48 = sphi 0, %s46
    %s49 = sphi 0, %s48
    %s63 = sphi 0, %s49
    %s67 = sphi 0, %s67
    %s69 = sphi 0, %s67
    %s70 = sphi 0, %s69
    %s84 = sphi 0, %s70
    %s88 = sphi 0, %s88
    %s90 = sphi 0, %s88
    %s91 = sphi 0, %s90
    %s105 = sphi 0, %s91
    %s109 = sphi 0, %s109
    %s111 = sphi 0, %s109
    %s112 = sphi 0, %s111
    %s126 = sphi 0, %s112
    %s130 = sphi 0, %s130
    %s132 = sphi 0, %s130
    %s133 = sphi 0, %s132
    %s147 = sphi 0, %s133
    %s153 = sphi 0, %s155
    %s156 = sphi 0, %s153
    %s157 = sphi 0, %s156
    %s173 = sphi 0, %s157
  $region4: #{ournet_forward.3} parent=0 // loop_header_branch
    %15 = sbr.rel (%p13) target = $region8
  $region5: #{ournet_forward.3} parent=0 // loop_body
    %s17 = ssub.s32 %s12, 1
    %s18 = ssub.s32 %s12, 2
    %s19 = sadd.s32 %s12, 1
    %s20 = ssub.s32 %s12, %s19
    %p21 = scmp.eq.s32.totalorder %s20, 0
    %s23 = sadd.s32 %s22, 1
    %s24 = scalar_select %p21, %s22, %s23
    %p27 = pneg %p21
    %p28 = scmp.eq.s32.totalorder %s12, 1
    %p29 = por %p27, %p28
    %p30 = scmp.ne.s32.totalorder %s22, %s25
    %p31 = scmp.eq.s32.totalorder %s12, 0
    %p32 = por %p30, %p31
    %p33 = scmp.ne.s32.totalorder %s22, %s25
    %p34 = scmp.eq.s32.totalorder %s17, 1
    %p35 = por %p33, %p34
    %p36 = scmp.ne.s32.totalorder %s25, %s26
    %p37 = scmp.eq.s32.totalorder %s17, 0
    %p38 = por %p36, %p37
    %p39 = scmp.ne.s32.totalorder %s25, %s26
    %p40 = scmp.eq.s32.totalorder %s18, 1
    %p41 = por %p39, %p40
    %p43 = scmp.ne.s32.totalorder %s26, %s42
    %p44 = scmp.eq.s32.totalorder %s18, 0
    %p45 = por %p43, %p44
    %s47 = sadd.s32 %s46, 1
    %p50 = scmp.eq.s32.totalorder %s12, 1
    %p51 = scmp.ne.s32.totalorder %s46, %s48
    %p52 = scmp.eq.s32.totalorder %s12, 0
    %p53 = por %p51, %p52
    %p54 = scmp.ne.s32.totalorder %s46, %s48
    %p55 = scmp.eq.s32.totalorder %s17, 1
    %p56 = por %p54, %p55
    %p57 = scmp.ne.s32.totalorder %s48, %s49
    %p58 = scmp.eq.s32.totalorder %s17, 0
    %p59 = por %p57, %p58
    %p60 = scmp.ne.s32.totalorder %s48, %s49
    %p61 = scmp.eq.s32.totalorder %s18, 1
    %p62 = por %p60, %p61
    %p64 = scmp.ne.s32.totalorder %s49, %s63
    %p65 = scmp.eq.s32.totalorder %s18, 0
    %p66 = por %p64, %p65
    %s68 = sadd.s32 %s67, 1
    %p71 = scmp.eq.s32.totalorder %s12, 1
    %p72 = scmp.ne.s32.totalorder %s67, %s69
    %p73 = scmp.eq.s32.totalorder %s12, 0
    %p74 = por %p72, %p73
    %p75 = scmp.ne.s32.totalorder %s67, %s69
    %p76 = scmp.eq.s32.totalorder %s17, 1
    %p77 = por %p75, %p76
    %p78 = scmp.ne.s32.totalorder %s69, %s70
    %p79 = scmp.eq.s32.totalorder %s17, 0
    %p80 = por %p78, %p79
    %p81 = scmp.ne.s32.totalorder %s69, %s70
    %p82 = scmp.eq.s32.totalorder %s18, 1
    %p83 = por %p81, %p82
    %p85 = scmp.ne.s32.totalorder %s70, %s84
    %p86 = scmp.eq.s32.totalorder %s18, 0
    %p87 = por %p85, %p86
    %s89 = sadd.s32 %s88, 1
    %p92 = scmp.eq.s32.totalorder %s12, 1
    %p93 = scmp.ne.s32.totalorder %s88, %s90
    %p94 = scmp.eq.s32.totalorder %s12, 0
    %p95 = por %p93, %p94
    %p96 = scmp.ne.s32.totalorder %s88, %s90
    %p97 = scmp.eq.s32.totalorder %s17, 1
    %p98 = por %p96, %p97
    %p99 = scmp.ne.s32.totalorder %s90, %s91
    %p100 = scmp.eq.s32.totalorder %s17, 0
    %p101 = por %p99, %p100
    %p102 = scmp.ne.s32.totalorder %s90, %s91
    %p103 = scmp.eq.s32.totalorder %s18, 1
    %p104 = por %p102, %p103
    %p106 = scmp.ne.s32.totalorder %s91, %s105
    %p107 = scmp.eq.s32.totalorder %s18, 0
    %p108 = por %p106, %p107
    %s110 = sadd.s32 %s109, 1
    %p113 = scmp.eq.s32.totalorder %s12, 1
    %p114 = scmp.ne.s32.totalorder %s109, %s111
    %p115 = scmp.eq.s32.totalorder %s12, 0
    %p116 = por %p114, %p115
    %p117 = scmp.ne.s32.totalorder %s109, %s111
    %p118 = scmp.eq.s32.totalorder %s17, 1
    %p119 = por %p117, %p118
    %p120 = scmp.ne.s32.totalorder %s111, %s112
    %p121 = scmp.eq.s32.totalorder %s17, 0
    %p122 = por %p120, %p121
    %p123 = scmp.ne.s32.totalorder %s111, %s112
    %p124 = scmp.eq.s32.totalorder %s18, 1
    %p125 = por %p123, %p124
    %p127 = scmp.ne.s32.totalorder %s112, %s126
    %p128 = scmp.eq.s32.totalorder %s18, 0
    %p129 = por %p127, %p128
    %s131 = sadd.s32 %s130, 1
    %p134 = scmp.eq.s32.totalorder %s12, 1
    %p135 = scmp.ne.s32.totalorder %s130, %s132
    %p136 = scmp.eq.s32.totalorder %s12, 0
    %p137 = por %p135, %p136
    %p138 = scmp.ne.s32.totalorder %s130, %s132
    %p139 = scmp.eq.s32.totalorder %s17, 1
    %p140 = por %p138, %p139
    %p141 = scmp.ne.s32.totalorder %s132, %s133
    %p142 = scmp.eq.s32.totalorder %s17, 0
    %p143 = por %p141, %p142
    %p144 = scmp.ne.s32.totalorder %s132, %s133
    %p145 = scmp.eq.s32.totalorder %s18, 1
    %p146 = por %p144, %p145
    %p148 = scmp.ne.s32.totalorder %s133, %s147
    %p149 = scmp.eq.s32.totalorder %s18, 0
    %p150 = por %p148, %p149
    %s151 = ssub.s32 %s12, %s19
    %p152 = scmp.eq.s32.totalorder %s151, 0
    %s154 = sadd.s32 %s153, 1
    %s155 = scalar_select %p152, %s153, %s154
    %p158 = pneg %p152
    %p159 = scmp.eq.s32.totalorder %s12, 1
    %p160 = por %p158, %p159
    %p161 = scmp.ne.s32.totalorder %s153, %s156
    %p162 = scmp.eq.s32.totalorder %s12, 0
    %p163 = por %p161, %p162
    %p164 = scmp.ne.s32.totalorder %s153, %s156
    %p165 = scmp.eq.s32.totalorder %s17, 1
    %p166 = por %p164, %p165
    %p167 = scmp.ne.s32.totalorder %s156, %s157
    %p168 = scmp.eq.s32.totalorder %s17, 0
    %p169 = por %p167, %p168
    %p170 = scmp.ne.s32.totalorder %s156, %s157
    %p171 = scmp.eq.s32.totalorder %s18, 1
    %p172 = por %p170, %p171
    %p174 = scmp.ne.s32.totalorder %s157, %s173
    %p175 = scmp.eq.s32.totalorder %s18, 0
    %p176 = por %p174, %p175
    %p177 = scmp.le.s32.totalorder 1, %s12
    %p178 = scmp.lt.s32.totalorder %s12, 3
    %p179 = pnand %p177, %p178
    %p180 = pneg %p179
    // Predicated region
    $region9: #{ournet_forward.3} parent=5 // pred_check
      _
    $region10: #{ournet_forward.3} parent=5 // pred_check_branch
      %182 = sbr.rel (%p179) target = $region12
    $region11: #{ournet_forward.3} parent=5 // pred_region
      %s183 = ssub.s32 %s12, 1
      // Predicated region
      $region13: #{ournet_forward.3} parent=11 // pred_check
        %p184 = pneg %p59
      $region14: #{ournet_forward.3} parent=11 // pred_check_branch
        %186 = sbr.rel (%p184) target = $region16
      $region15: #{ournet_forward.3} parent=11 // pred_region
        _
      $region16: #{ournet_forward.3} parent=11 // pred_fallthru
        _
      // Predicated region
      $region17: #{ournet_forward.3} parent=11 // pred_check
        %p187 = pneg %p80
      $region18: #{ournet_forward.3} parent=11 // pred_check_branch
        %189 = sbr.rel (%p187) target = $region20
      $region19: #{ournet_forward.3} parent=11 // pred_region
        _
      $region20: #{ournet_forward.3} parent=11 // pred_fallthru
        _
      // Predicated region
      $region21: #{ournet_forward.3} parent=11 // pred_check
        %p190 = pneg %p101
      $region22: #{ournet_forward.3} parent=11 // pred_check_branch
        %192 = sbr.rel (%p190) target = $region24
      $region23: #{ournet_forward.3} parent=11 // pred_region
        _
      $region24: #{ournet_forward.3} parent=11 // pred_fallthru
        _
      // Predicated region
      $region25: #{ournet_forward.3} parent=11 // pred_check
        %p193 = pneg %p122
      $region26: #{ournet_forward.3} parent=11 // pred_check_branch
        %195 = sbr.rel (%p193) target = $region28
      $region27: #{ournet_forward.3} parent=11 // pred_region
        _
      $region28: #{ournet_forward.3} parent=11 // pred_fallthru
        _
      // Predicated region
      $region29: #{ournet_forward.3} parent=11 // pred_check
        %p196 = pneg %p143
      $region30: #{ournet_forward.3} parent=11 // pred_check_branch
        %198 = sbr.rel (%p196) target = $region32
      $region31: #{ournet_forward.3} parent=11 // pred_region
        _
      $region32: #{ournet_forward.3} parent=11 // pred_fallthru
        _
    $region12: #{ournet_forward.3} parent=5 // pred_fallthru
      _
    %p199 = scmp.lt.s32.totalorder %s12, 2
    // Predicated region
    $region33: #{ournet_forward.3} parent=5 // pred_check
      %p200 = pneg %p199
    $region34: #{ournet_forward.3} parent=5 // pred_check_branch
      %202 = sbr.rel (%p200) target = $region36
    $region35: #{ournet_forward.3} parent=5 // pred_region
      // Predicated region
      $region37: #{ournet_forward.3} parent=35 // pred_check
        %p203 = pneg %p32
      $region38: #{ournet_forward.3} parent=35 // pred_check_branch
        %205 = sbr.rel (%p203) target = $region40
      $region39: #{ournet_forward.3} parent=35 // pred_region
        %s206 = smul.u32 2, %s12
        %p207 = scmp.lt.s32.totalorder %s206, 3
        %s208 = scalar_select %p207, %s206, 3
        %s209 = smul.addr %s208, 24
        %s210 = smul.addr %s209, 4
        %s211 = scalar_lea.vmem %s0, %s210
        %s212 = smul.u32 2, %s12
      $region40: #{ournet_forward.3} parent=35 // pred_fallthru
        _
    $region36: #{ournet_forward.3} parent=5 // pred_fallthru
      _
    %p213 = scmp.le.s32.totalorder 1, %s12
    %p214 = scmp.lt.s32.totalorder %s12, 3
    %p215 = pnand %p213, %p214
    %p216 = pneg %p215
    // Predicated region
    $region41: #{ournet_forward.3} parent=5 // pred_check
      _
    $region42: #{ournet_forward.3} parent=5 // pred_check_branch
      %218 = sbr.rel (%p215) target = $region44
    $region43: #{ournet_forward.3} parent=5 // pred_region
      %s219 = ssub.s32 %s12, 1
      %s220 = smul.u32 2, %s17
      %p221 = scmp.lt.s32.totalorder %s220, 3
      %s222 = scalar_select %p221, %s220, 3
      %s223 = smul.addr %s222, 24
      %s224 = smul.addr %s223, 4
      %s225 = scalar_lea.vmem %s0, %s224
      %p226 = pneg %p38
      %p227 = pneg %p35
      %p228 = pneg %p59
      %p229 = pneg %p56
      %p230 = pneg %p80
      %p231 = pneg %p77
      %p232 = pneg %p101
      %p233 = pneg %p98
      %p234 = pneg %p122
      %p235 = pneg %p119
      %p236 = pneg %p143
      %p237 = pneg %p140
      %p238 = pneg %p169
      %p239 = pneg %p166
      %s240 = smul.u32 4, %s17
      %p241 = scmp.lt.s32.totalorder %s240, 7
      %s242 = scalar_select %p241, %s240, 7
      %s243 = smul.addr %s242, 4
      %s244 = smul.addr %s243, 8
      %s245 = scalar_lea.vmem %s6, %s244
      %s246 = smul.u32 2, %s17
      %p247 = scmp.lt.s32.totalorder %s246, 3
      %s248 = scalar_select %p247, %s246, 3
      %s249 = smul.addr %s248, 24
      %s250 = smul.addr %s249, 4
      %s251 = scalar_lea.vmem %s0, %s250
      %s252 = smul.u32 2, %s17
      %s253 = smul.u32 4, %s17
      %p254 = scmp.lt.s32.totalorder %s253, 7
      %s255 = scalar_select %p254, %s253, 7
      %s256 = smul.addr %s255, 4
      %s257 = smul.addr %s256, 8
      %s258 = scalar_lea.vmem %s6, %s257
      %s259 = smul.u32 4, %s17
      %v261 = vld [vmem:[%s2] sm:$0xff]
      %v262 = vld [vmem:[%s2 + $0x8] sm:$0xf]
      %v263 = vld [vmem:[%s2 + $0xc] sm:$0xff]
      %v264 = vld [vmem:[%s2 + $0x14] sm:$0xf]
      %v265 = vld [vmem:[%s2 + $0x18] sm:$0xff]
      %v266 = vld [vmem:[%s2 + $0x20] sm:$0xf]
      %v267 = vld [vmem:[%s2 + $0x24] sm:$0xff]
      %v268 = vld [vmem:[%s2 + $0x2c] sm:$0xf]
      %v269 = vld [vmem:[%s2 + $0x30] sm:$0xff]
      %v270 = vld [vmem:[%s2 + $0x38] sm:$0xf]
      %v271 = vld [vmem:[%s2 + $0x3c] sm:$0xff]
      %v272 = vld [vmem:[%s2 + $0x44] sm:$0xf]
      %v273 = vld [vmem:[%s2 + $0x48] sm:$0xff]
      %v274 = vld [vmem:[%s2 + $0x50] sm:$0xf]
      %v275 = vld [vmem:[%s2 + $0x54] sm:$0xff]
      %v276 = vld [vmem:[%s2 + $0x5c] sm:$0xf]
      %v277 = vld [vmem:[%s1] sm:$0xf]
      %v278 = vld [vmem:[%s1 + $0x4] sm:$0xf]
      %v279 = vld [vmem:[%s1 + $0x8] sm:$0xf]
      %v280 = vld [vmem:[%s1 + $0xc] sm:$0xf]
      %v281 = vld [vmem:[%s1 + $0x14] sm:$0xf]
      %v282 = vld [vmem:[%s1 + $0x18] sm:$0xf]
      %v283 = vld [vmem:[%s1 + $0x1c] sm:$0xf]
      %v284 = vld [vmem:[%s1 + $0x20] sm:$0xf]
      %v285 = vld [vmem:[%s3] sm:$0xff]
      %v286 = vld [vmem:[%s3 + $0x8] sm:$0xff]
      %v287 = vld [vmem:[%s3 + $0x10] sm:$0xff]
      %v288 = vld [vmem:[%s3 + $0x18] sm:$0xff]
      %v289 = vld [vmem:[%s3 + $0x20] sm:$0xff]
      %v290 = vld [vmem:[%s3 + $0x28] sm:$0xff]
      %v291 = vld [vmem:[%s3 + $0x30] sm:$0xff]
      %v292 = vld [vmem:[%s3 + $0x38] sm:$0xff]
      %v293 = vld [vmem:[%s4] sm:$0xff]
      %v294 = vld [vmem:[%s4 + $0x8] sm:$0xff]
      %v295 = vld [vmem:[%s5] sm:$0xff]
      %v296 = vld [vmem:[%s5 + $0x8] sm:$0xff]
      %v297 = vld [vmem:[%s251] sm:$0xff]
      %v298 = vld [vmem:[%s251 + $0x8] sm:$0xff]
      %v299 = vld [vmem:[%s251 + $0x10] sm:$0xf]
      %v300 = vld [vmem:[%s251 + $0x18] sm:$0xff]
      %v301 = vld [vmem:[%s251 + $0x20] sm:$0xff]
      %v302 = vld [vmem:[%s251 + $0x28] sm:$0xf]
      %v303 = vld [vmem:[%s251 + $0x30] sm:$0xff]
      %v304 = vld [vmem:[%s251 + $0x38] sm:$0xff]
      %v305 = vld [vmem:[%s251 + $0x40] sm:$0xf]
      %v306 = vld [vmem:[%s251 + $0x48] sm:$0xff]
      %v307 = vld [vmem:[%s251 + $0x50] sm:$0xff]
      %v308 = vld [vmem:[%s251 + $0x58] sm:$0xf]
      %v311 = vunpack.c.l.s4 1966171168
      %v312 = vunpack.c.0.s8 %v311
      %v313 = vlaneseq
      %v314 = vshrl.u32 %v313, 7
      %v315 = vsub.s32 %v312, %v314
      %v316 = vrot.slane %v277, %v315
      %v317 = vcombine.high %v316, %v316
      %v319 = vunpack.c.l.s4 1966171168
      %v320 = vunpack.c.0.s8 %v319
      %v321 = vlaneseq
      %v322 = vshrl.u32 %v321, 7
      %v323 = vsub.s32 %v320, %v322
      %v324 = vrot.slane %v316, %v323
      %v326 = vunpack.c.l.s4 1966171168
      %v327 = vunpack.c.0.s8 %v326
      %v328 = vlaneseq
      %v329 = vshrl.u32 %v328, 7
      %v330 = vsub.s32 %v327, %v329
      %v331 = vrot.slane %v317, %v330
      %v332 = vcombine.high %v324, %v324
      %v333 = vcombine.high %v331, %v331
      %v335 = vpack.i.b16 %v324, %v324
      %v337 = vlaneseq
      %v338 = vshrl.u32 %v337, 7
      %v339 = vsub.s32 0, %v338
      %v340 = vrot.slane %v335, %v339
      %v342 = vpack.i.b16 %v331, %v331
      %v344 = vlaneseq
      %v345 = vshrl.u32 %v344, 7
      %v346 = vsub.s32 0, %v345
      %v347 = vrot.slane %v342, %v346
      %v349 = vpack.i.b16 %v332, %v332
      %v351 = vlaneseq
      %v352 = vshrl.u32 %v351, 7
      %v353 = vsub.s32 0, %v352
      %v354 = vrot.slane %v349, %v353
      %v356 = vpack.i.b16 %v333, %v333
      %v358 = vlaneseq
      %v359 = vshrl.u32 %v358, 7
      %v360 = vsub.s32 0, %v359
      %v361 = vrot.slane %v356, %v360
      %v366 = vunpack.c.l.b16 %v340
      %v367 = vunpack.c.l.b16 %v347
      %v368 = vunpack.c.l.b16 %v354
      %v369 = vunpack.c.l.b16 %v361
      %v370 = vpack.c.b16 %v367, %v366
      %v371 = vpack.c.b16 %v369, %v368
      %372 = vrot.lane.b32.xlu0 %v370, 111
      %v373 = vpop.permute.xlu0 %372
      %374 = vrot.lane.b32.xlu0 %v371, 111
      %v375 = vpop.permute.xlu0 %374
      %v376 = vrot.slane %v373, 4
      %v377 = vrot.slane %v375, 4
      %vm378 = vcmask 908288
      %v379 = vsel %vm378, %v376, %v373
      %vm380 = vcmask 1043456
      %v381 = vsel %vm380, %v376, %v377
      %v382 = vsel %vm378, %v381, %v375
      %v386 = vmul.bf16 %v297, %v379
      %v387 = vmul.bf16 %v298, %v382
      %v388 = vmul.bf16 %v299, %v377
      %v389 = vmul.bf16 %v300, %v379
      %v390 = vmul.bf16 %v301, %v382
      %v391 = vmul.bf16 %v302, %v377
      %v392 = vmul.bf16 %v303, %v379
      %v393 = vmul.bf16 %v304, %v382
      %v394 = vmul.bf16 %v305, %v377
      %v395 = vmul.bf16 %v306, %v379
      %v396 = vmul.bf16 %v307, %v382
      %v397 = vmul.bf16 %v308, %v377
      %v400 = vunpack.c.l.s4 1966171168
      %v401 = vunpack.c.0.s8 %v400
      %v402 = vlaneseq
      %v403 = vshrl.u32 %v402, 7
      %v404 = vsub.s32 %v401, %v403
      %v405 = vrot.slane %v278, %v404
      %v406 = vcombine.high %v405, %v405
      %v408 = vunpack.c.l.s4 1966171168
      %v409 = vunpack.c.0.s8 %v408
      %v410 = vlaneseq
      %v411 = vshrl.u32 %v410, 7
      %v412 = vsub.s32 %v409, %v411
      %v413 = vrot.slane %v405, %v412
      %v415 = vunpack.c.l.s4 1966171168
      %v416 = vunpack.c.0.s8 %v415
      %v417 = vlaneseq
      %v418 = vshrl.u32 %v417, 7
      %v419 = vsub.s32 %v416, %v418
      %v420 = vrot.slane %v406, %v419
      %v421 = vcombine.high %v413, %v413
      %v422 = vcombine.high %v420, %v420
      %v424 = vpack.i.b16 %v413, %v413
      %v426 = vlaneseq
      %v427 = vshrl.u32 %v426, 7
      %v428 = vsub.s32 0, %v427
      %v429 = vrot.slane %v424, %v428
      %v431 = vpack.i.b16 %v420, %v420
      %v433 = vlaneseq
      %v434 = vshrl.u32 %v433, 7
      %v435 = vsub.s32 0, %v434
      %v436 = vrot.slane %v431, %v435
      %v438 = vpack.i.b16 %v421, %v421
      %v440 = vlaneseq
      %v441 = vshrl.u32 %v440, 7
      %v442 = vsub.s32 0, %v441
      %v443 = vrot.slane %v438, %v442
      %v445 = vpack.i.b16 %v422, %v422
      %v447 = vlaneseq
      %v448 = vshrl.u32 %v447, 7
      %v449 = vsub.s32 0, %v448
      %v450 = vrot.slane %v445, %v449
      %v455 = vunpack.c.l.b16 %v429
      %v456 = vunpack.c.l.b16 %v436
      %v457 = vunpack.c.l.b16 %v443
      %v458 = vunpack.c.l.b16 %v450
      %v459 = vpack.c.b16 %v456, %v455
      %v460 = vpack.c.b16 %v458, %v457
      %461 = vrot.lane.b32.xlu0 %v459, 112
      %v462 = vpop.permute.xlu0 %461
      %463 = vrot.lane.b32.xlu0 %v460, 112
      %v464 = vpop.permute.xlu0 %463
      %v465 = vrot.slane %v462, 4
      %v466 = vrot.slane %v464, 4
      %vm467 = vcmask 916480
      %v468 = vsel %vm467, %v465, %v462
      %v469 = vsel %vm380, %v465, %v466
      %v470 = vsel %vm467, %v469, %v464
      %v474 = vmul.bf16 %v297, %v468
      %v475 = vmul.bf16 %v298, %v470
      %v476 = vmul.bf16 %v299, %v466
      %v477 = vmul.bf16 %v300, %v468
      %v478 = vmul.bf16 %v301, %v470
      %v479 = vmul.bf16 %v302, %v466
      %v480 = vmul.bf16 %v303, %v468
      %v481 = vmul.bf16 %v304, %v470
      %v482 = vmul.bf16 %v305, %v466
      %v483 = vmul.bf16 %v306, %v468
      %v484 = vmul.bf16 %v307, %v470
      %v485 = vmul.bf16 %v308, %v466
      %v488 = vunpack.c.l.s4 1966171168
      %v489 = vunpack.c.0.s8 %v488
      %v490 = vlaneseq
      %v491 = vshrl.u32 %v490, 7
      %v492 = vsub.s32 %v489, %v491
      %v493 = vrot.slane %v279, %v492
      %v494 = vcombine.high %v493, %v493
      %v496 = vunpack.c.l.s4 1966171168
      %v497 = vunpack.c.0.s8 %v496
      %v498 = vlaneseq
      %v499 = vshrl.u32 %v498, 7
      %v500 = vsub.s32 %v497, %v499
      %v501 = vrot.slane %v493, %v500
      %v503 = vunpack.c.l.s4 1966171168
      %v504 = vunpack.c.0.s8 %v503
      %v505 = vlaneseq
      %v506 = vshrl.u32 %v505, 7
      %v507 = vsub.s32 %v504, %v506
      %v508 = vrot.slane %v494, %v507
      %v509 = vcombine.high %v501, %v501
      %v510 = vcombine.high %v508, %v508
      %v512 = vpack.i.b16 %v501, %v501
      %v514 = vlaneseq
      %v515 = vshrl.u32 %v514, 7
      %v516 = vsub.s32 0, %v515
      %v517 = vrot.slane %v512, %v516
      %v519 = vpack.i.b16 %v508, %v508
      %v521 = vlaneseq
      %v522 = vshrl.u32 %v521, 7
      %v523 = vsub.s32 0, %v522
      %v524 = vrot.slane %v519, %v523
      %v526 = vpack.i.b16 %v509, %v509
      %v528 = vlaneseq
      %v529 = vshrl.u32 %v528, 7
      %v530 = vsub.s32 0, %v529
      %v531 = vrot.slane %v526, %v530
      %v533 = vpack.i.b16 %v510, %v510
      %v535 = vlaneseq
      %v536 = vshrl.u32 %v535, 7
      %v537 = vsub.s32 0, %v536
      %v538 = vrot.slane %v533, %v537
      %v543 = vunpack.c.l.b16 %v517
      %v544 = vunpack.c.l.b16 %v524
      %v545 = vunpack.c.l.b16 %v531
      %v546 = vunpack.c.l.b16 %v538
      %v547 = vpack.c.b16 %v544, %v543
      %v548 = vpack.c.b16 %v546, %v545
      %549 = vrot.lane.b32.xlu0 %v547, 113
      %v550 = vpop.permute.xlu0 %549
      %551 = vrot.lane.b32.xlu0 %v548, 113
      %v552 = vpop.permute.xlu0 %551
      %v553 = vrot.slane %v550, 4
      %v554 = vrot.slane %v552, 4
      %vm555 = vcmask 924672
      %v556 = vsel %vm555, %v553, %v550
      %v557 = vsel %vm380, %v553, %v554
      %v558 = vsel %vm555, %v557, %v552
      %v562 = vmul.bf16 %v297, %v556
      %v563 = vmul.bf16 %v298, %v558
      %v564 = vmul.bf16 %v299, %v554
      %v565 = vmul.bf16 %v300, %v556
      %v566 = vmul.bf16 %v301, %v558
      %v567 = vmul.bf16 %v302, %v554
      %v568 = vmul.bf16 %v303, %v556
      %v569 = vmul.bf16 %v304, %v558
      %v570 = vmul.bf16 %v305, %v554
      %v571 = vmul.bf16 %v306, %v556
      %v572 = vmul.bf16 %v307, %v558
      %v573 = vmul.bf16 %v308, %v554
      %v576 = vunpack.c.l.s4 1966171168
      %v577 = vunpack.c.0.s8 %v576
      %v578 = vlaneseq
      %v579 = vshrl.u32 %v578, 7
      %v580 = vsub.s32 %v577, %v579
      %v581 = vrot.slane %v280, %v580
      %v582 = vcombine.high %v581, %v581
      %v584 = vunpack.c.l.s4 1966171168
      %v585 = vunpack.c.0.s8 %v584
      %v586 = vlaneseq
      %v587 = vshrl.u32 %v586, 7
      %v588 = vsub.s32 %v585, %v587
      %v589 = vrot.slane %v581, %v588
      %v591 = vunpack.c.l.s4 1966171168
      %v592 = vunpack.c.0.s8 %v591
      %v593 = vlaneseq
      %v594 = vshrl.u32 %v593, 7
      %v595 = vsub.s32 %v592, %v594
      %v596 = vrot.slane %v582, %v595
      %v597 = vcombine.high %v589, %v589
      %v598 = vcombine.high %v596, %v596
      %v600 = vpack.i.b16 %v589, %v589
      %v602 = vlaneseq
      %v603 = vshrl.u32 %v602, 7
      %v604 = vsub.s32 0, %v603
      %v605 = vrot.slane %v600, %v604
      %v607 = vpack.i.b16 %v596, %v596
      %v609 = vlaneseq
      %v610 = vshrl.u32 %v609, 7
      %v611 = vsub.s32 0, %v610
      %v612 = vrot.slane %v607, %v611
      %v614 = vpack.i.b16 %v597, %v597
      %v616 = vlaneseq
      %v617 = vshrl.u32 %v616, 7
      %v618 = vsub.s32 0, %v617
      %v619 = vrot.slane %v614, %v618
      %v621 = vpack.i.b16 %v598, %v598
      %v623 = vlaneseq
      %v624 = vshrl.u32 %v623, 7
      %v625 = vsub.s32 0, %v624
      %v626 = vrot.slane %v621, %v625
      %v631 = vunpack.c.l.b16 %v605
      %v632 = vunpack.c.l.b16 %v612
      %v633 = vunpack.c.l.b16 %v619
      %v634 = vunpack.c.l.b16 %v626
      %v635 = vpack.c.b16 %v632, %v631
      %v636 = vpack.c.b16 %v634, %v633
      %637 = vrot.lane.b32.xlu0 %v635, 127
      %v638 = vpop.permute.xlu0 %637
      %639 = vrot.lane.b32.xlu0 %v636, 127
      %v640 = vpop.permute.xlu0 %639
      %v641 = vrot.slane %v638, 4
      %v642 = vrot.slane %v640, 4
      %vm643 = vcmask 1039360
      %v644 = vsel %vm643, %v641, %v638
      %v645 = vsel %vm380, %v641, %v642
      %v646 = vsel %vm643, %v645, %v640
      %v650 = vmul.bf16 %v297, %v644
      %v651 = vmul.bf16 %v298, %v646
      %v652 = vmul.bf16 %v299, %v642
      %v653 = vmul.bf16 %v300, %v644
      %v654 = vmul.bf16 %v301, %v646
      %v655 = vmul.bf16 %v302, %v642
      %v656 = vmul.bf16 %v303, %v644
      %v657 = vmul.bf16 %v304, %v646
      %v658 = vmul.bf16 %v305, %v642
      %v659 = vmul.bf16 %v306, %v644
      %v660 = vmul.bf16 %v307, %v646
      %v661 = vmul.bf16 %v308, %v642
      %v662 = vld [vmem:[%s251 + $0x4] sm:$0xff]
      %v663 = vld [vmem:[%s251 + $0xc] sm:$0xff]
      %v664 = vld [vmem:[%s251 + $0x1c] sm:$0xff]
      %v665 = vld [vmem:[%s251 + $0x24] sm:$0xff]
      %v666 = vld [vmem:[%s251 + $0x34] sm:$0xff]
      %v667 = vld [vmem:[%s251 + $0x3c] sm:$0xff]
      %v668 = vld [vmem:[%s251 + $0x4c] sm:$0xff]
      %v669 = vld [vmem:[%s251 + $0x54] sm:$0xff]
      %v670 = vld [vmem:[%s251 + $0x14] sm:$0xf]
      %v671 = vld [vmem:[%s251 + $0x2c] sm:$0xf]
      %v672 = vld [vmem:[%s251 + $0x44] sm:$0xf]
      %v673 = vld [vmem:[%s251 + $0x5c] sm:$0xf]
      %v676 = vunpack.c.l.s4 1966171168
      %v677 = vunpack.c.0.s8 %v676
      %v678 = vlaneseq
      %v679 = vshrl.u32 %v678, 7
      %v680 = vsub.s32 %v677, %v679
      %v681 = vrot.slane %v281, %v680
      %v682 = vcombine.high %v681, %v681
      %v684 = vunpack.c.l.s4 1966171168
      %v685 = vunpack.c.0.s8 %v684
      %v686 = vlaneseq
      %v687 = vshrl.u32 %v686, 7
      %v688 = vsub.s32 %v685, %v687
      %v689 = vrot.slane %v681, %v688
      %v691 = vunpack.c.l.s4 1966171168
      %v692 = vunpack.c.0.s8 %v691
      %v693 = vlaneseq
      %v694 = vshrl.u32 %v693, 7
      %v695 = vsub.s32 %v692, %v694
      %v696 = vrot.slane %v682, %v695
      %v697 = vcombine.high %v689, %v689
      %v698 = vcombine.high %v696, %v696
      %v700 = vpack.i.b16 %v689, %v689
      %v702 = vlaneseq
      %v703 = vshrl.u32 %v702, 7
      %v704 = vsub.s32 0, %v703
      %v705 = vrot.slane %v700, %v704
      %v707 = vpack.i.b16 %v696, %v696
      %v709 = vlaneseq
      %v710 = vshrl.u32 %v709, 7
      %v711 = vsub.s32 0, %v710
      %v712 = vrot.slane %v707, %v711
      %v714 = vpack.i.b16 %v697, %v697
      %v716 = vlaneseq
      %v717 = vshrl.u32 %v716, 7
      %v718 = vsub.s32 0, %v717
      %v719 = vrot.slane %v714, %v718
      %v721 = vpack.i.b16 %v698, %v698
      %v723 = vlaneseq
      %v724 = vshrl.u32 %v723, 7
      %v725 = vsub.s32 0, %v724
      %v726 = vrot.slane %v721, %v725
      %v731 = vunpack.c.l.b16 %v705
      %v732 = vunpack.c.l.b16 %v712
      %v733 = vunpack.c.l.b16 %v719
      %v734 = vunpack.c.l.b16 %v726
      %v735 = vpack.c.b16 %v732, %v731
      %v736 = vpack.c.b16 %v734, %v733
      %737 = vrot.lane.b32.xlu0 %v735, 1
      %v738 = vpop.permute.xlu0 %737
      %739 = vrot.lane.b32.xlu0 %v736, 1
      %v740 = vpop.permute.xlu0 %739
      %v741 = vrot.slane %v738, 4
      %v742 = vrot.slane %v740, 4
      %vm743 = vcmask 7168
      %v744 = vsel %vm743, %v741, %v738
      %v745 = vsel %vm380, %v741, %v742
      %v746 = vsel %vm743, %v745, %v740
      %v750 = vmul.bf16 %v662, %v744
      %v751 = vmul.bf16 %v663, %v746
      %v752 = vmul.bf16 %v670, %v742
      %v753 = vmul.bf16 %v664, %v744
      %v754 = vmul.bf16 %v665, %v746
      %v755 = vmul.bf16 %v671, %v742
      %v756 = vmul.bf16 %v666, %v744
      %v757 = vmul.bf16 %v667, %v746
      %v758 = vmul.bf16 %v672, %v742
      %v759 = vmul.bf16 %v668, %v744
      %v760 = vmul.bf16 %v669, %v746
      %v761 = vmul.bf16 %v673, %v742
      %v764 = vunpack.c.l.s4 1966171168
      %v765 = vunpack.c.0.s8 %v764
      %v766 = vlaneseq
      %v767 = vshrl.u32 %v766, 7
      %v768 = vsub.s32 %v765, %v767
      %v769 = vrot.slane %v282, %v768
      %v770 = vcombine.high %v769, %v769
      %v772 = vunpack.c.l.s4 1966171168
      %v773 = vunpack.c.0.s8 %v772
      %v774 = vlaneseq
      %v775 = vshrl.u32 %v774, 7
      %v776 = vsub.s32 %v773, %v775
      %v777 = vrot.slane %v769, %v776
      %v779 = vunpack.c.l.s4 1966171168
      %v780 = vunpack.c.0.s8 %v779
      %v781 = vlaneseq
      %v782 = vshrl.u32 %v781, 7
      %v783 = vsub.s32 %v780, %v782
      %v784 = vrot.slane %v770, %v783
      %v785 = vcombine.high %v777, %v777
      %v786 = vcombine.high %v784, %v784
      %v788 = vpack.i.b16 %v777, %v777
      %v790 = vlaneseq
      %v791 = vshrl.u32 %v790, 7
      %v792 = vsub.s32 0, %v791
      %v793 = vrot.slane %v788, %v792
      %v795 = vpack.i.b16 %v784, %v784
      %v797 = vlaneseq
      %v798 = vshrl.u32 %v797, 7
      %v799 = vsub.s32 0, %v798
      %v800 = vrot.slane %v795, %v799
      %v802 = vpack.i.b16 %v785, %v785
      %v804 = vlaneseq
      %v805 = vshrl.u32 %v804, 7
      %v806 = vsub.s32 0, %v805
      %v807 = vrot.slane %v802, %v806
      %v809 = vpack.i.b16 %v786, %v786
      %v811 = vlaneseq
      %v812 = vshrl.u32 %v811, 7
      %v813 = vsub.s32 0, %v812
      %v814 = vrot.slane %v809, %v813
      %v819 = vunpack.c.l.b16 %v793
      %v820 = vunpack.c.l.b16 %v800
      %v821 = vunpack.c.l.b16 %v807
      %v822 = vunpack.c.l.b16 %v814
      %v823 = vpack.c.b16 %v820, %v819
      %v824 = vpack.c.b16 %v822, %v821
      %825 = vrot.lane.b32.xlu0 %v823, 15
      %v826 = vpop.permute.xlu0 %825
      %827 = vrot.lane.b32.xlu0 %v824, 15
      %v828 = vpop.permute.xlu0 %827
      %v829 = vrot.slane %v826, 4
      %v830 = vrot.slane %v828, 4
      %vm831 = vcmask 121856
      %v832 = vsel %vm831, %v829, %v826
      %v833 = vsel %vm380, %v829, %v830
      %v834 = vsel %vm831, %v833, %v828
      %v838 = vmul.bf16 %v662, %v832
      %v839 = vmul.bf16 %v663, %v834
      %v840 = vmul.bf16 %v670, %v830
      %v841 = vmul.bf16 %v664, %v832
      %v842 = vmul.bf16 %v665, %v834
      %v843 = vmul.bf16 %v671, %v830
      %v844 = vmul.bf16 %v666, %v832
      %v845 = vmul.bf16 %v667, %v834
      %v846 = vmul.bf16 %v672, %v830
      %v847 = vmul.bf16 %v668, %v832
      %v848 = vmul.bf16 %v669, %v834
      %v849 = vmul.bf16 %v673, %v830
      %v852 = vunpack.c.l.s4 1966171168
      %v853 = vunpack.c.0.s8 %v852
      %v854 = vlaneseq
      %v855 = vshrl.u32 %v854, 7
      %v856 = vsub.s32 %v853, %v855
      %v857 = vrot.slane %v283, %v856
      %v858 = vcombine.high %v857, %v857
      %v860 = vunpack.c.l.s4 1966171168
      %v861 = vunpack.c.0.s8 %v860
      %v862 = vlaneseq
      %v863 = vshrl.u32 %v862, 7
      %v864 = vsub.s32 %v861, %v863
      %v865 = vrot.slane %v857, %v864
      %v867 = vunpack.c.l.s4 1966171168
      %v868 = vunpack.c.0.s8 %v867
      %v869 = vlaneseq
      %v870 = vshrl.u32 %v869, 7
      %v871 = vsub.s32 %v868, %v870
      %v872 = vrot.slane %v858, %v871
      %v873 = vcombine.high %v865, %v865
      %v874 = vcombine.high %v872, %v872
      %v876 = vpack.i.b16 %v865, %v865
      %v878 = vlaneseq
      %v879 = vshrl.u32 %v878, 7
      %v880 = vsub.s32 0, %v879
      %v881 = vrot.slane %v876, %v880
      %v883 = vpack.i.b16 %v872, %v872
      %v885 = vlaneseq
      %v886 = vshrl.u32 %v885, 7
      %v887 = vsub.s32 0, %v886
      %v888 = vrot.slane %v883, %v887
      %v890 = vpack.i.b16 %v873, %v873
      %v892 = vlaneseq
      %v893 = vshrl.u32 %v892, 7
      %v894 = vsub.s32 0, %v893
      %v895 = vrot.slane %v890, %v894
      %v897 = vpack.i.b16 %v874, %v874
      %v899 = vlaneseq
      %v900 = vshrl.u32 %v899, 7
      %v901 = vsub.s32 0, %v900
      %v902 = vrot.slane %v897, %v901
      %v907 = vunpack.c.l.b16 %v881
      %v908 = vunpack.c.l.b16 %v888
      %v909 = vunpack.c.l.b16 %v895
      %v910 = vunpack.c.l.b16 %v902
      %v911 = vpack.c.b16 %v908, %v907
      %v912 = vpack.c.b16 %v910, %v909
      %913 = vrot.lane.b32.xlu0 %v911, 16
      %v914 = vpop.permute.xlu0 %913
      %915 = vrot.lane.b32.xlu0 %v912, 16
      %v916 = vpop.permute.xlu0 %915
      %v917 = vrot.slane %v914, 4
      %v918 = vrot.slane %v916, 4
      %vm919 = vcmask 130048
      %v920 = vsel %vm919, %v917, %v914
      %v921 = vsel %vm380, %v917, %v918
      %v922 = vsel %vm919, %v921, %v916
      %v926 = vmul.bf16 %v662, %v920
      %v927 = vmul.bf16 %v663, %v922
      %v928 = vmul.bf16 %v670, %v918
      %v929 = vmul.bf16 %v664, %v920
      %v930 = vmul.bf16 %v665, %v922
      %v931 = vmul.bf16 %v671, %v918
      %v932 = vmul.bf16 %v666, %v920
      %v933 = vmul.bf16 %v667, %v922
      %v934 = vmul.bf16 %v672, %v918
      %v935 = vmul.bf16 %v668, %v920
      %v936 = vmul.bf16 %v669, %v922
      %v937 = vmul.bf16 %v673, %v918
      %v940 = vunpack.c.l.s4 1966171168
      %v941 = vunpack.c.0.s8 %v940
      %v942 = vlaneseq
      %v943 = vshrl.u32 %v942, 7
      %v944 = vsub.s32 %v941, %v943
      %v945 = vrot.slane %v284, %v944
      %v946 = vcombine.high %v945, %v945
      %v948 = vunpack.c.l.s4 1966171168
      %v949 = vunpack.c.0.s8 %v948
      %v950 = vlaneseq
      %v951 = vshrl.u32 %v950, 7
      %v952 = vsub.s32 %v949, %v951
      %v953 = vrot.slane %v945, %v952
      %v955 = vunpack.c.l.s4 1966171168
      %v956 = vunpack.c.0.s8 %v955
      %v957 = vlaneseq
      %v958 = vshrl.u32 %v957, 7
      %v959 = vsub.s32 %v956, %v958
      %v960 = vrot.slane %v946, %v959
      %v961 = vcombine.high %v953, %v953
      %v962 = vcombine.high %v960, %v960
      %v964 = vpack.i.b16 %v953, %v953
      %v966 = vlaneseq
      %v967 = vshrl.u32 %v966, 7
      %v968 = vsub.s32 0, %v967
      %v969 = vrot.slane %v964, %v968
      %v971 = vpack.i.b16 %v960, %v960
      %v973 = vlaneseq
      %v974 = vshrl.u32 %v973, 7
      %v975 = vsub.s32 0, %v974
      %v976 = vrot.slane %v971, %v975
      %v978 = vpack.i.b16 %v961, %v961
      %v980 = vlaneseq
      %v981 = vshrl.u32 %v980, 7
      %v982 = vsub.s32 0, %v981
      %v983 = vrot.slane %v978, %v982
      %v985 = vpack.i.b16 %v962, %v962
      %v987 = vlaneseq
      %v988 = vshrl.u32 %v987, 7
      %v989 = vsub.s32 0, %v988
      %v990 = vrot.slane %v985, %v989
      %v995 = vunpack.c.l.b16 %v969
      %v996 = vunpack.c.l.b16 %v976
      %v997 = vunpack.c.l.b16 %v983
      %v998 = vunpack.c.l.b16 %v990
      %v999 = vpack.c.b16 %v996, %v995
      %v1000 = vpack.c.b16 %v998, %v997
      %1001 = vrot.lane.b32.xlu0 %v999, 17
      %v1002 = vpop.permute.xlu0 %1001
      %1003 = vrot.lane.b32.xlu0 %v1000, 17
      %v1004 = vpop.permute.xlu0 %1003
      %v1005 = vrot.slane %v1002, 4
      %v1006 = vrot.slane %v1004, 4
      %vm1007 = vcmask 138240
      %v1008 = vsel %vm1007, %v1005, %v1002
      %v1009 = vsel %vm380, %v1005, %v1006
      %v1010 = vsel %vm1007, %v1009, %v1004
      %v1014 = vmul.bf16 %v662, %v1008
      %v1015 = vmul.bf16 %v663, %v1010
      %v1016 = vmul.bf16 %v670, %v1006
      %v1017 = vmul.bf16 %v664, %v1008
      %v1018 = vmul.bf16 %v665, %v1010
      %v1019 = vmul.bf16 %v671, %v1006
      %v1020 = vmul.bf16 %v666, %v1008
      %v1021 = vmul.bf16 %v667, %v1010
      %v1022 = vmul.bf16 %v672, %v1006
      %v1023 = vmul.bf16 %v668, %v1008
      %v1024 = vmul.bf16 %v669, %v1010
      %v1025 = vmul.bf16 %v673, %v1006
      %v1038 = vunpack.c.l.b16 %v386
      %v1039 = vunpack.c.h.b16 %v386
      %v1040 = vunpack.c.l.b16 %v387
      %v1041 = vunpack.c.h.b16 %v387
      %v1042 = vunpack.c.l.b16 %v388
      %v1043 = vunpack.c.l.b16 %v389
      %v1044 = vunpack.c.h.b16 %v389
      %v1045 = vunpack.c.l.b16 %v390
      %v1046 = vunpack.c.h.b16 %v390
      %v1047 = vunpack.c.l.b16 %v391
      %v1048 = vunpack.c.l.b16 %v392
      %v1049 = vunpack.c.h.b16 %v392
      %v1050 = vunpack.c.l.b16 %v393
      %v1051 = vunpack.c.h.b16 %v393
      %v1052 = vunpack.c.l.b16 %v394
      %v1053 = vunpack.c.l.b16 %v395
      %v1054 = vunpack.c.h.b16 %v395
      %v1055 = vunpack.c.l.b16 %v396
      %v1056 = vunpack.c.h.b16 %v396
      %v1057 = vunpack.c.l.b16 %v397
      %v1058 = vpack.c.b16 %v1043, %v1038
      %v1059 = vpack.c.b16 %v1044, %v1039
      %v1060 = vpack.c.b16 %v1045, %v1040
      %v1061 = vpack.c.b16 %v1046, %v1041
      %v1062 = vpack.c.b16 %v1047, %v1042
      %v1063 = vpack.c.b16 %v1053, %v1048
      %v1064 = vpack.c.b16 %v1054, %v1049
      %v1065 = vpack.c.b16 %v1055, %v1050
      %v1066 = vpack.c.b16 %v1056, %v1051
      %v1067 = vpack.c.b16 %v1057, %v1052
      %v1080 = vunpack.c.l.b16 %v474
      %v1081 = vunpack.c.h.b16 %v474
      %v1082 = vunpack.c.l.b16 %v475
      %v1083 = vunpack.c.h.b16 %v475
      %v1084 = vunpack.c.l.b16 %v476
      %v1085 = vunpack.c.l.b16 %v477
      %v1086 = vunpack.c.h.b16 %v477
      %v1087 = vunpack.c.l.b16 %v478
      %v1088 = vunpack.c.h.b16 %v478
      %v1089 = vunpack.c.l.b16 %v479
      %v1090 = vunpack.c.l.b16 %v480
      %v1091 = vunpack.c.h.b16 %v480
      %v1092 = vunpack.c.l.b16 %v481
      %v1093 = vunpack.c.h.b16 %v481
      %v1094 = vunpack.c.l.b16 %v482
      %v1095 = vunpack.c.l.b16 %v483
      %v1096 = vunpack.c.h.b16 %v483
      %v1097 = vunpack.c.l.b16 %v484
      %v1098 = vunpack.c.h.b16 %v484
      %v1099 = vunpack.c.l.b16 %v485
      %v1100 = vpack.c.b16 %v1085, %v1080
      %v1101 = vpack.c.b16 %v1086, %v1081
      %v1102 = vpack.c.b16 %v1087, %v1082
      %v1103 = vpack.c.b16 %v1088, %v1083
      %v1104 = vpack.c.b16 %v1089, %v1084
      %v1105 = vpack.c.b16 %v1095, %v1090
      %v1106 = vpack.c.b16 %v1096, %v1091
      %v1107 = vpack.c.b16 %v1097, %v1092
      %v1108 = vpack.c.b16 %v1098, %v1093
      %v1109 = vpack.c.b16 %v1099, %v1094
      %1110 = vrot.lane.b32.xlu0 %v1100, 127
      %v1111 = vpop.permute.xlu0 %1110
      %1112 = vrot.lane.b32.xlu0 %v1101, 127
      %v1113 = vpop.permute.xlu0 %1112
      %1114 = vrot.lane.b32.xlu0 %v1102, 127
      %v1115 = vpop.permute.xlu0 %1114
      %1116 = vrot.lane.b32.xlu0 %v1103, 127
      %v1117 = vpop.permute.xlu0 %1116
      %1118 = vrot.lane.b32.xlu0 %v1104, 127
      %v1119 = vpop.permute.xlu0 %1118
      %1120 = vrot.lane.b32.xlu0 %v1105, 127
      %v1121 = vpop.permute.xlu0 %1120
      %1122 = vrot.lane.b32.xlu0 %v1106, 127
      %v1123 = vpop.permute.xlu0 %1122
      %1124 = vrot.lane.b32.xlu0 %v1107, 127
      %v1125 = vpop.permute.xlu0 %1124
      %1126 = vrot.lane.b32.xlu0 %v1108, 127
      %v1127 = vpop.permute.xlu0 %1126
      %1128 = vrot.lane.b32.xlu0 %v1109, 127
      %v1129 = vpop.permute.xlu0 %1128
      %v1130 = vsel %vm643, %v1111, %v1113
      %v1131 = vsel %vm643, %v1113, %v1115
      %v1132 = vsel %vm643, %v1115, %v1117
      %v1133 = vsel %vm643, %v1117, %v1119
      %v1134 = vsel %vm643, %v1121, %v1123
      %v1135 = vsel %vm643, %v1123, %v1125
      %v1136 = vsel %vm643, %v1125, %v1127
      %v1137 = vsel %vm643, %v1127, %v1129
      %v1150 = vunpack.c.l.b16 %v562
      %v1151 = vunpack.c.h.b16 %v562
      %v1152 = vunpack.c.l.b16 %v563
      %v1153 = vunpack.c.h.b16 %v563
      %v1154 = vunpack.c.l.b16 %v564
      %v1155 = vunpack.c.l.b16 %v565
      %v1156 = vunpack.c.h.b16 %v565
      %v1157 = vunpack.c.l.b16 %v566
      %v1158 = vunpack.c.h.b16 %v566
      %v1159 = vunpack.c.l.b16 %v567
      %v1160 = vunpack.c.l.b16 %v568
      %v1161 = vunpack.c.h.b16 %v568
      %v1162 = vunpack.c.l.b16 %v569
      %v1163 = vunpack.c.h.b16 %v569
      %v1164 = vunpack.c.l.b16 %v570
      %v1165 = vunpack.c.l.b16 %v571
      %v1166 = vunpack.c.h.b16 %v571
      %v1167 = vunpack.c.l.b16 %v572
      %v1168 = vunpack.c.h.b16 %v572
      %v1169 = vunpack.c.l.b16 %v573
      %v1170 = vpack.c.b16 %v1155, %v1150
      %v1171 = vpack.c.b16 %v1156, %v1151
      %v1172 = vpack.c.b16 %v1157, %v1152
      %v1173 = vpack.c.b16 %v1158, %v1153
      %v1174 = vpack.c.b16 %v1159, %v1154
      %v1175 = vpack.c.b16 %v1165, %v1160
      %v1176 = vpack.c.b16 %v1166, %v1161
      %v1177 = vpack.c.b16 %v1167, %v1162
      %v1178 = vpack.c.b16 %v1168, %v1163
      %v1179 = vpack.c.b16 %v1169, %v1164
      %1180 = vrot.lane.b32.xlu0 %v1170, 126
      %v1181 = vpop.permute.xlu0 %1180
      %1182 = vrot.lane.b32.xlu0 %v1171, 126
      %v1183 = vpop.permute.xlu0 %1182
      %1184 = vrot.lane.b32.xlu0 %v1172, 126
      %v1185 = vpop.permute.xlu0 %1184
      %1186 = vrot.lane.b32.xlu0 %v1173, 126
      %v1187 = vpop.permute.xlu0 %1186
      %1188 = vrot.lane.b32.xlu0 %v1174, 126
      %v1189 = vpop.permute.xlu0 %1188
      %1190 = vrot.lane.b32.xlu0 %v1175, 126
      %v1191 = vpop.permute.xlu0 %1190
      %1192 = vrot.lane.b32.xlu0 %v1176, 126
      %v1193 = vpop.permute.xlu0 %1192
      %1194 = vrot.lane.b32.xlu0 %v1177, 126
      %v1195 = vpop.permute.xlu0 %1194
      %1196 = vrot.lane.b32.xlu0 %v1178, 126
      %v1197 = vpop.permute.xlu0 %1196
      %1198 = vrot.lane.b32.xlu0 %v1179, 126
      %v1199 = vpop.permute.xlu0 %1198
      %vm1200 = vcmask 1031168
      %v1201 = vsel %vm1200, %v1181, %v1183
      %v1202 = vsel %vm1200, %v1183, %v1185
      %v1203 = vsel %vm1200, %v1185, %v1187
      %v1204 = vsel %vm1200, %v1187, %v1189
      %v1205 = vsel %vm1200, %v1191, %v1193
      %v1206 = vsel %vm1200, %v1193, %v1195
      %v1207 = vsel %vm1200, %v1195, %v1197
      %v1208 = vsel %vm1200, %v1197, %v1199
      %v1221 = vunpack.c.l.b16 %v650
      %v1222 = vunpack.c.h.b16 %v650
      %v1223 = vunpack.c.l.b16 %v651
      %v1224 = vunpack.c.h.b16 %v651
      %v1225 = vunpack.c.l.b16 %v652
      %v1226 = vunpack.c.l.b16 %v653
      %v1227 = vunpack.c.h.b16 %v653
      %v1228 = vunpack.c.l.b16 %v654
      %v1229 = vunpack.c.h.b16 %v654
      %v1230 = vunpack.c.l.b16 %v655
      %v1231 = vunpack.c.l.b16 %v656
      %v1232 = vunpack.c.h.b16 %v656
      %v1233 = vunpack.c.l.b16 %v657
      %v1234 = vunpack.c.h.b16 %v657
      %v1235 = vunpack.c.l.b16 %v658
      %v1236 = vunpack.c.l.b16 %v659
      %v1237 = vunpack.c.h.b16 %v659
      %v1238 = vunpack.c.l.b16 %v660
      %v1239 = vunpack.c.h.b16 %v660
      %v1240 = vunpack.c.l.b16 %v661
      %v1241 = vpack.c.b16 %v1226, %v1221
      %v1242 = vpack.c.b16 %v1227, %v1222
      %v1243 = vpack.c.b16 %v1228, %v1223
      %v1244 = vpack.c.b16 %v1229, %v1224
      %v1245 = vpack.c.b16 %v1230, %v1225
      %v1246 = vpack.c.b16 %v1236, %v1231
      %v1247 = vpack.c.b16 %v1237, %v1232
      %v1248 = vpack.c.b16 %v1238, %v1233
      %v1249 = vpack.c.b16 %v1239, %v1234
      %v1250 = vpack.c.b16 %v1240, %v1235
      %1251 = vrot.lane.b32.xlu0 %v1241, 112
      %v1252 = vpop.permute.xlu0 %1251
      %1253 = vrot.lane.b32.xlu0 %v1242, 112
      %v1254 = vpop.permute.xlu0 %1253
      %1255 = vrot.lane.b32.xlu0 %v1243, 112
      %v1256 = vpop.permute.xlu0 %1255
      %1257 = vrot.lane.b32.xlu0 %v1244, 112
      %v1258 = vpop.permute.xlu0 %1257
      %1259 = vrot.lane.b32.xlu0 %v1245, 112
      %v1260 = vpop.permute.xlu0 %1259
      %1261 = vrot.lane.b32.xlu0 %v1246, 112
      %v1262 = vpop.permute.xlu0 %1261
      %1263 = vrot.lane.b32.xlu0 %v1247, 112
      %v1264 = vpop.permute.xlu0 %1263
      %1265 = vrot.lane.b32.xlu0 %v1248, 112
      %v1266 = vpop.permute.xlu0 %1265
      %1267 = vrot.lane.b32.xlu0 %v1249, 112
      %v1268 = vpop.permute.xlu0 %1267
      %1269 = vrot.lane.b32.xlu0 %v1250, 112
      %v1270 = vpop.permute.xlu0 %1269
      %v1271 = vsel %vm467, %v1252, %v1254
      %v1272 = vsel %vm467, %v1254, %v1256
      %v1273 = vsel %vm467, %v1256, %v1258
      %v1274 = vsel %vm467, %v1258, %v1260
      %v1275 = vsel %vm467, %v1262, %v1264
      %v1276 = vsel %vm467, %v1264, %v1266
      %v1277 = vsel %vm467, %v1266, %v1268
      %v1278 = vsel %vm467, %v1268, %v1270
      %v1287 = vunpack.c.l.b16 %v662
      %v1288 = vunpack.c.h.b16 %v662
      %v1289 = vunpack.c.l.b16 %v663
      %v1290 = vunpack.c.h.b16 %v663
      %v1291 = vunpack.c.l.b16 %v664
      %v1292 = vunpack.c.h.b16 %v664
      %v1293 = vunpack.c.l.b16 %v665
      %v1294 = vunpack.c.h.b16 %v665
      %v1295 = vunpack.c.l.b16 %v666
      %v1296 = vunpack.c.h.b16 %v666
      %v1297 = vunpack.c.l.b16 %v667
      %v1298 = vunpack.c.h.b16 %v667
      %v1299 = vunpack.c.l.b16 %v668
      %v1300 = vunpack.c.h.b16 %v668
      %v1301 = vunpack.c.l.b16 %v669
      %v1302 = vunpack.c.h.b16 %v669
      %v1303 = vpack.c.b16 %v1291, %v1287
      %v1304 = vpack.c.b16 %v1292, %v1288
      %v1305 = vpack.c.b16 %v1293, %v1289
      %v1306 = vpack.c.b16 %v1294, %v1290
      %v1307 = vpack.c.b16 %v1299, %v1295
      %v1308 = vpack.c.b16 %v1300, %v1296
      %v1309 = vpack.c.b16 %v1301, %v1297
      %v1310 = vpack.c.b16 %v1302, %v1298
      %1311 = vrot.lane.b32.xlu0 %v1303, 111
      %v1312 = vpop.permute.xlu0 %1311
      %1313 = vrot.lane.b32.xlu0 %v1304, 111
      %v1314 = vpop.permute.xlu0 %1313
      %1315 = vrot.lane.b32.xlu0 %v1305, 111
      %v1316 = vpop.permute.xlu0 %1315
      %1317 = vrot.lane.b32.xlu0 %v1306, 111
      %v1318 = vpop.permute.xlu0 %1317
      %1319 = vrot.lane.b32.xlu0 %v1307, 111
      %v1320 = vpop.permute.xlu0 %1319
      %1321 = vrot.lane.b32.xlu0 %v1308, 111
      %v1322 = vpop.permute.xlu0 %1321
      %1323 = vrot.lane.b32.xlu0 %v1309, 111
      %v1324 = vpop.permute.xlu0 %1323
      %1325 = vrot.lane.b32.xlu0 %v1310, 111
      %v1326 = vpop.permute.xlu0 %1325
      %v1327 = vsel %vm378, %v1312, %v1314
      %v1328 = vsel %vm378, %v1314, %v1316
      %v1329 = vsel %vm378, %v1316, %v1318
      %v1330 = vsel %vm378, %v1320, %v1322
      %v1331 = vsel %vm378, %v1322, %v1324
      %v1332 = vsel %vm378, %v1324, %v1326
      %v1345 = vunpack.c.l.b16 %v750
      %v1346 = vunpack.c.h.b16 %v750
      %v1347 = vunpack.c.l.b16 %v751
      %v1348 = vunpack.c.h.b16 %v751
      %v1349 = vunpack.c.l.b16 %v752
      %v1350 = vunpack.c.l.b16 %v753
      %v1351 = vunpack.c.h.b16 %v753
      %v1352 = vunpack.c.l.b16 %v754
      %v1353 = vunpack.c.h.b16 %v754
      %v1354 = vunpack.c.l.b16 %v755
      %v1355 = vunpack.c.l.b16 %v756
      %v1356 = vunpack.c.h.b16 %v756
      %v1357 = vunpack.c.l.b16 %v757
      %v1358 = vunpack.c.h.b16 %v757
      %v1359 = vunpack.c.l.b16 %v758
      %v1360 = vunpack.c.l.b16 %v759
      %v1361 = vunpack.c.h.b16 %v759
      %v1362 = vunpack.c.l.b16 %v760
      %v1363 = vunpack.c.h.b16 %v760
      %v1364 = vunpack.c.l.b16 %v761
      %v1365 = vpack.c.b16 %v1350, %v1345
      %v1366 = vpack.c.b16 %v1351, %v1346
      %v1367 = vpack.c.b16 %v1352, %v1347
      %v1368 = vpack.c.b16 %v1353, %v1348
      %v1369 = vpack.c.b16 %v1354, %v1349
      %v1370 = vpack.c.b16 %v1360, %v1355
      %v1371 = vpack.c.b16 %v1361, %v1356
      %v1372 = vpack.c.b16 %v1362, %v1357
      %v1373 = vpack.c.b16 %v1363, %v1358
      %v1374 = vpack.c.b16 %v1364, %v1359
      %1375 = vrot.lane.b32.xlu0 %v1365, 110
      %v1376 = vpop.permute.xlu0 %1375
      %1377 = vrot.lane.b32.xlu0 %v1366, 110
      %v1378 = vpop.permute.xlu0 %1377
      %1379 = vrot.lane.b32.xlu0 %v1367, 110
      %v1380 = vpop.permute.xlu0 %1379
      %1381 = vrot.lane.b32.xlu0 %v1368, 110
      %v1382 = vpop.permute.xlu0 %1381
      %1383 = vrot.lane.b32.xlu0 %v1369, 110
      %v1384 = vpop.permute.xlu0 %1383
      %1385 = vrot.lane.b32.xlu0 %v1370, 110
      %v1386 = vpop.permute.xlu0 %1385
      %1387 = vrot.lane.b32.xlu0 %v1371, 110
      %v1388 = vpop.permute.xlu0 %1387
      %1389 = vrot.lane.b32.xlu0 %v1372, 110
      %v1390 = vpop.permute.xlu0 %1389
      %1391 = vrot.lane.b32.xlu0 %v1373, 110
      %v1392 = vpop.permute.xlu0 %1391
      %1393 = vrot.lane.b32.xlu0 %v1374, 110
      %v1394 = vpop.permute.xlu0 %1393
      %vm1395 = vcmask 900096
      %v1396 = vsel %vm1395, %v1376, %v1378
      %v1397 = vsel %vm1395, %v1378, %v1380
      %v1398 = vsel %vm1395, %v1380, %v1382
      %v1399 = vsel %vm1395, %v1382, %v1384
      %v1400 = vsel %vm1395, %v1386, %v1388
      %v1401 = vsel %vm1395, %v1388, %v1390
      %v1402 = vsel %vm1395, %v1390, %v1392
      %v1403 = vsel %vm1395, %v1392, %v1394
      %v1416 = vunpack.c.l.b16 %v838
      %v1417 = vunpack.c.h.b16 %v838
      %v1418 = vunpack.c.l.b16 %v839
      %v1419 = vunpack.c.h.b16 %v839
      %v1420 = vunpack.c.l.b16 %v840
      %v1421 = vunpack.c.l.b16 %v841
      %v1422 = vunpack.c.h.b16 %v841
      %v1423 = vunpack.c.l.b16 %v842
      %v1424 = vunpack.c.h.b16 %v842
      %v1425 = vunpack.c.l.b16 %v843
      %v1426 = vunpack.c.l.b16 %v844
      %v1427 = vunpack.c.h.b16 %v844
      %v1428 = vunpack.c.l.b16 %v845
      %v1429 = vunpack.c.h.b16 %v845
      %v1430 = vunpack.c.l.b16 %v846
      %v1431 = vunpack.c.l.b16 %v847
      %v1432 = vunpack.c.h.b16 %v847
      %v1433 = vunpack.c.l.b16 %v848
      %v1434 = vunpack.c.h.b16 %v848
      %v1435 = vunpack.c.l.b16 %v849
      %v1436 = vpack.c.b16 %v1421, %v1416
      %v1437 = vpack.c.b16 %v1422, %v1417
      %v1438 = vpack.c.b16 %v1423, %v1418
      %v1439 = vpack.c.b16 %v1424, %v1419
      %v1440 = vpack.c.b16 %v1425, %v1420
      %v1441 = vpack.c.b16 %v1431, %v1426
      %v1442 = vpack.c.b16 %v1432, %v1427
      %v1443 = vpack.c.b16 %v1433, %v1428
      %v1444 = vpack.c.b16 %v1434, %v1429
      %v1445 = vpack.c.b16 %v1435, %v1430
      %1446 = vrot.lane.b32.xlu0 %v1436, 96
      %v1447 = vpop.permute.xlu0 %1446
      %1448 = vrot.lane.b32.xlu0 %v1437, 96
      %v1449 = vpop.permute.xlu0 %1448
      %1450 = vrot.lane.b32.xlu0 %v1438, 96
      %v1451 = vpop.permute.xlu0 %1450
      %1452 = vrot.lane.b32.xlu0 %v1439, 96
      %v1453 = vpop.permute.xlu0 %1452
      %1454 = vrot.lane.b32.xlu0 %v1440, 96
      %v1455 = vpop.permute.xlu0 %1454
      %1456 = vrot.lane.b32.xlu0 %v1441, 96
      %v1457 = vpop.permute.xlu0 %1456
      %1458 = vrot.lane.b32.xlu0 %v1442, 96
      %v1459 = vpop.permute.xlu0 %1458
      %1460 = vrot.lane.b32.xlu0 %v1443, 96
      %v1461 = vpop.permute.xlu0 %1460
      %1462 = vrot.lane.b32.xlu0 %v1444, 96
      %v1463 = vpop.permute.xlu0 %1462
      %1464 = vrot.lane.b32.xlu0 %v1445, 96
      %v1465 = vpop.permute.xlu0 %1464
      %vm1466 = vcmask 785408
      %v1467 = vsel %vm1466, %v1447, %v1449
      %v1468 = vsel %vm1466, %v1449, %v1451
      %v1469 = vsel %vm1466, %v1451, %v1453
      %v1470 = vsel %vm1466, %v1453, %v1455
      %v1471 = vsel %vm1466, %v1457, %v1459
      %v1472 = vsel %vm1466, %v1459, %v1461
      %v1473 = vsel %vm1466, %v1461, %v1463
      %v1474 = vsel %vm1466, %v1463, %v1465
      %v1487 = vunpack.c.l.b16 %v926
      %v1488 = vunpack.c.h.b16 %v926
      %v1489 = vunpack.c.l.b16 %v927
      %v1490 = vunpack.c.h.b16 %v927
      %v1491 = vunpack.c.l.b16 %v928
      %v1492 = vunpack.c.l.b16 %v929
      %v1493 = vunpack.c.h.b16 %v929
      %v1494 = vunpack.c.l.b16 %v930
      %v1495 = vunpack.c.h.b16 %v930
      %v1496 = vunpack.c.l.b16 %v931
      %v1497 = vunpack.c.l.b16 %v932
      %v1498 = vunpack.c.h.b16 %v932
      %v1499 = vunpack.c.l.b16 %v933
      %v1500 = vunpack.c.h.b16 %v933
      %v1501 = vunpack.c.l.b16 %v934
      %v1502 = vunpack.c.l.b16 %v935
      %v1503 = vunpack.c.h.b16 %v935
      %v1504 = vunpack.c.l.b16 %v936
      %v1505 = vunpack.c.h.b16 %v936
      %v1506 = vunpack.c.l.b16 %v937
      %v1507 = vpack.c.b16 %v1492, %v1487
      %v1508 = vpack.c.b16 %v1493, %v1488
      %v1509 = vpack.c.b16 %v1494, %v1489
      %v1510 = vpack.c.b16 %v1495, %v1490
      %v1511 = vpack.c.b16 %v1496, %v1491
      %v1512 = vpack.c.b16 %v1502, %v1497
      %v1513 = vpack.c.b16 %v1503, %v1498
      %v1514 = vpack.c.b16 %v1504, %v1499
      %v1515 = vpack.c.b16 %v1505, %v1500
      %v1516 = vpack.c.b16 %v1506, %v1501
      %1517 = vrot.lane.b32.xlu0 %v1507, 95
      %v1518 = vpop.permute.xlu0 %1517
      %1519 = vrot.lane.b32.xlu0 %v1508, 95
      %v1520 = vpop.permute.xlu0 %1519
      %1521 = vrot.lane.b32.xlu0 %v1509, 95
      %v1522 = vpop.permute.xlu0 %1521
      %1523 = vrot.lane.b32.xlu0 %v1510, 95
      %v1524 = vpop.permute.xlu0 %1523
      %1525 = vrot.lane.b32.xlu0 %v1511, 95
      %v1526 = vpop.permute.xlu0 %1525
      %1527 = vrot.lane.b32.xlu0 %v1512, 95
      %v1528 = vpop.permute.xlu0 %1527
      %1529 = vrot.lane.b32.xlu0 %v1513, 95
      %v1530 = vpop.permute.xlu0 %1529
      %1531 = vrot.lane.b32.xlu0 %v1514, 95
      %v1532 = vpop.permute.xlu0 %1531
      %1533 = vrot.lane.b32.xlu0 %v1515, 95
      %v1534 = vpop.permute.xlu0 %1533
      %1535 = vrot.lane.b32.xlu0 %v1516, 95
      %v1536 = vpop.permute.xlu0 %1535
      %vm1537 = vcmask 777216
      %v1538 = vsel %vm1537, %v1518, %v1520
      %v1539 = vsel %vm1537, %v1520, %v1522
      %v1540 = vsel %vm1537, %v1522, %v1524
      %v1541 = vsel %vm1537, %v1524, %v1526
      %v1542 = vsel %vm1537, %v1528, %v1530
      %v1543 = vsel %vm1537, %v1530, %v1532
      %v1544 = vsel %vm1537, %v1532, %v1534
      %v1545 = vsel %vm1537, %v1534, %v1536
      %v1558 = vunpack.c.l.b16 %v1014
      %v1559 = vunpack.c.h.b16 %v1014
      %v1560 = vunpack.c.l.b16 %v1015
      %v1561 = vunpack.c.h.b16 %v1015
      %v1562 = vunpack.c.l.b16 %v1016
      %v1563 = vunpack.c.l.b16 %v1017
      %v1564 = vunpack.c.h.b16 %v1017
      %v1565 = vunpack.c.l.b16 %v1018
      %v1566 = vunpack.c.h.b16 %v1018
      %v1567 = vunpack.c.l.b16 %v1019
      %v1568 = vunpack.c.l.b16 %v1020
      %v1569 = vunpack.c.h.b16 %v1020
      %v1570 = vunpack.c.l.b16 %v1021
      %v1571 = vunpack.c.h.b16 %v1021
      %v1572 = vunpack.c.l.b16 %v1022
      %v1573 = vunpack.c.l.b16 %v1023
      %v1574 = vunpack.c.h.b16 %v1023
      %v1575 = vunpack.c.l.b16 %v1024
      %v1576 = vunpack.c.h.b16 %v1024
      %v1577 = vunpack.c.l.b16 %v1025
      %v1578 = vpack.c.b16 %v1563, %v1558
      %v1579 = vpack.c.b16 %v1564, %v1559
      %v1580 = vpack.c.b16 %v1565, %v1560
      %v1581 = vpack.c.b16 %v1566, %v1561
      %v1582 = vpack.c.b16 %v1567, %v1562
      %v1583 = vpack.c.b16 %v1573, %v1568
      %v1584 = vpack.c.b16 %v1574, %v1569
      %v1585 = vpack.c.b16 %v1575, %v1570
      %v1586 = vpack.c.b16 %v1576, %v1571
      %v1587 = vpack.c.b16 %v1577, %v1572
      %1588 = vrot.lane.b32.xlu0 %v1578, 94
      %v1589 = vpop.permute.xlu0 %1588
      %1590 = vrot.lane.b32.xlu0 %v1579, 94
      %v1591 = vpop.permute.xlu0 %1590
      %1592 = vrot.lane.b32.xlu0 %v1580, 94
      %v1593 = vpop.permute.xlu0 %1592
      %1594 = vrot.lane.b32.xlu0 %v1581, 94
      %v1595 = vpop.permute.xlu0 %1594
      %1596 = vrot.lane.b32.xlu0 %v1582, 94
      %v1597 = vpop.permute.xlu0 %1596
      %1598 = vrot.lane.b32.xlu0 %v1583, 94
      %v1599 = vpop.permute.xlu0 %1598
      %1600 = vrot.lane.b32.xlu0 %v1584, 94
      %v1601 = vpop.permute.xlu0 %1600
      %1602 = vrot.lane.b32.xlu0 %v1585, 94
      %v1603 = vpop.permute.xlu0 %1602
      %1604 = vrot.lane.b32.xlu0 %v1586, 94
      %v1605 = vpop.permute.xlu0 %1604
      %1606 = vrot.lane.b32.xlu0 %v1587, 94
      %v1607 = vpop.permute.xlu0 %1606
      %vm1608 = vcmask 769024
      %v1609 = vsel %vm1608, %v1589, %v1591
      %v1610 = vsel %vm1608, %v1591, %v1593
      %v1611 = vsel %vm1608, %v1593, %v1595
      %v1612 = vsel %vm1608, %v1595, %v1597
      %v1613 = vsel %vm1608, %v1599, %v1601
      %v1614 = vsel %vm1608, %v1601, %v1603
      %v1615 = vsel %vm1608, %v1603, %v1605
      %v1616 = vsel %vm1608, %v1605, %v1607
      %1618 = vset.pattern.permute.xlu0 0
      %1619 = vperm.xlu0 %1618, %v285
      %v1620 = vpop.permute.xlu0 %1619
      %1623 = vset.pattern.permute.xlu0 0
      %1624 = vperm.xlu0 %1623, %v286
      %v1625 = vpop.permute.xlu0 %1624
      %1628 = vset.pattern.permute.xlu0 0
      %1629 = vperm.xlu0 %1628, %v287
      %v1630 = vpop.permute.xlu0 %1629
      %1633 = vset.pattern.permute.xlu0 0
      %1634 = vperm.xlu0 %1633, %v288
      %v1635 = vpop.permute.xlu0 %1634
      %1638 = vset.pattern.permute.xlu0 0
      %1639 = vperm.xlu0 %1638, %v289
      %v1640 = vpop.permute.xlu0 %1639
      %1643 = vset.pattern.permute.xlu0 0
      %1644 = vperm.xlu0 %1643, %v290
      %v1645 = vpop.permute.xlu0 %1644
      %1648 = vset.pattern.permute.xlu0 0
      %1649 = vperm.xlu0 %1648, %v291
      %v1650 = vpop.permute.xlu0 %1649
      %1653 = vset.pattern.permute.xlu0 0
      %1654 = vperm.xlu0 %1653, %v292
      %v1655 = vpop.permute.xlu0 %1654
      %v1673 = vunpack.c.l.b16 %v261
      %v1674 = vunpack.c.h.b16 %v261
      %v1675 = vunpack.c.l.b16 %v262
      %v1676 = vunpack.c.l.b16 %v263
      %v1677 = vunpack.c.h.b16 %v263
      %v1678 = vunpack.c.l.b16 %v264
      %v1679 = vunpack.c.l.b16 %v265
      %v1680 = vunpack.c.h.b16 %v265
      %v1681 = vunpack.c.l.b16 %v266
      %v1682 = vunpack.c.l.b16 %v267
      %v1683 = vunpack.c.h.b16 %v267
      %v1684 = vunpack.c.l.b16 %v268
      %v1685 = vunpack.c.l.b16 %v269
      %v1686 = vunpack.c.h.b16 %v269
      %v1687 = vunpack.c.l.b16 %v270
      %v1688 = vunpack.c.l.b16 %v271
      %v1689 = vunpack.c.h.b16 %v271
      %v1690 = vunpack.c.l.b16 %v272
      %v1691 = vunpack.c.l.b16 %v273
      %v1692 = vunpack.c.h.b16 %v273
      %v1693 = vunpack.c.l.b16 %v274
      %v1694 = vunpack.c.l.b16 %v275
      %v1695 = vunpack.c.h.b16 %v275
      %v1696 = vunpack.c.l.b16 %v276
      %v1697 = vpack.c.b16 %v1676, %v1673
      %v1698 = vpack.c.b16 %v1677, %v1674
      %v1699 = vpack.c.b16 %v1678, %v1675
      %v1700 = vpack.c.b16 %v1682, %v1679
      %v1701 = vpack.c.b16 %v1683, %v1680
      %v1702 = vpack.c.b16 %v1684, %v1681
      %v1703 = vpack.c.b16 %v1688, %v1685
      %v1704 = vpack.c.b16 %v1689, %v1686
      %v1705 = vpack.c.b16 %v1690, %v1687
      %v1706 = vpack.c.b16 %v1694, %v1691
      %v1707 = vpack.c.b16 %v1695, %v1692
      %v1708 = vpack.c.b16 %v1696, %v1693
      %1717 = vrot.lane.b32.xlu0 %v1058, 17
      %v1718 = vpop.permute.xlu0 %1717
      %1719 = vrot.lane.b32.xlu0 %v1059, 17
      %v1720 = vpop.permute.xlu0 %1719
      %1721 = vrot.lane.b32.xlu0 %v1060, 17
      %v1722 = vpop.permute.xlu0 %1721
      %1723 = vrot.lane.b32.xlu0 %v1061, 17
      %v1724 = vpop.permute.xlu0 %1723
      %1725 = vrot.lane.b32.xlu0 %v1062, 17
      %v1726 = vpop.permute.xlu0 %1725
      %1727 = vrot.lane.b32.xlu0 %v1063, 17
      %v1728 = vpop.permute.xlu0 %1727
      %1729 = vrot.lane.b32.xlu0 %v1064, 17
      %v1730 = vpop.permute.xlu0 %1729
      %1731 = vrot.lane.b32.xlu0 %v1065, 17
      %v1732 = vpop.permute.xlu0 %1731
      %1733 = vrot.lane.b32.xlu0 %v1066, 17
      %v1734 = vpop.permute.xlu0 %1733
      %1735 = vrot.lane.b32.xlu0 %v1067, 17
      %v1736 = vpop.permute.xlu0 %1735
      %1737 = vrot.lane.b32.xlu0 %v1130, 17
      %v1738 = vpop.permute.xlu0 %1737
      %1739 = vrot.lane.b32.xlu0 %v1131, 17
      %v1740 = vpop.permute.xlu0 %1739
      %1741 = vrot.lane.b32.xlu0 %v1132, 17
      %v1742 = vpop.permute.xlu0 %1741
      %1743 = vrot.lane.b32.xlu0 %v1133, 17
      %v1744 = vpop.permute.xlu0 %1743
      %1745 = vrot.lane.b32.xlu0 %v1119, 17
      %v1746 = vpop.permute.xlu0 %1745
      %1747 = vrot.lane.b32.xlu0 %v1134, 17
      %v1748 = vpop.permute.xlu0 %1747
      %1749 = vrot.lane.b32.xlu0 %v1135, 17
      %v1750 = vpop.permute.xlu0 %1749
      %1751 = vrot.lane.b32.xlu0 %v1136, 17
      %v1752 = vpop.permute.xlu0 %1751
      %1753 = vrot.lane.b32.xlu0 %v1137, 17
      %v1754 = vpop.permute.xlu0 %1753
      %1755 = vrot.lane.b32.xlu0 %v1129, 17
      %v1756 = vpop.permute.xlu0 %1755
      %1757 = vrot.lane.b32.xlu0 %v1201, 17
      %v1758 = vpop.permute.xlu0 %1757
      %1759 = vrot.lane.b32.xlu0 %v1202, 17
      %v1760 = vpop.permute.xlu0 %1759
      %1761 = vrot.lane.b32.xlu0 %v1203, 17
      %v1762 = vpop.permute.xlu0 %1761
      %1763 = vrot.lane.b32.xlu0 %v1204, 17
      %v1764 = vpop.permute.xlu0 %1763
      %1765 = vrot.lane.b32.xlu0 %v1189, 17
      %v1766 = vpop.permute.xlu0 %1765
      %1767 = vrot.lane.b32.xlu0 %v1205, 17
      %v1768 = vpop.permute.xlu0 %1767
      %1769 = vrot.lane.b32.xlu0 %v1206, 17
      %v1770 = vpop.permute.xlu0 %1769
      %1771 = vrot.lane.b32.xlu0 %v1207, 17
      %v1772 = vpop.permute.xlu0 %1771
      %1773 = vrot.lane.b32.xlu0 %v1208, 17
      %v1774 = vpop.permute.xlu0 %1773
      %1775 = vrot.lane.b32.xlu0 %v1199, 17
      %v1776 = vpop.permute.xlu0 %1775
      %1777 = vrot.lane.b32.xlu0 %v1271, 17
      %v1778 = vpop.permute.xlu0 %1777
      %1779 = vrot.lane.b32.xlu0 %v1272, 17
      %v1780 = vpop.permute.xlu0 %1779
      %1781 = vrot.lane.b32.xlu0 %v1273, 17
      %v1782 = vpop.permute.xlu0 %1781
      %1783 = vrot.lane.b32.xlu0 %v1274, 17
      %v1784 = vpop.permute.xlu0 %1783
      %1785 = vrot.lane.b32.xlu0 %v1260, 17
      %v1786 = vpop.permute.xlu0 %1785
      %1787 = vrot.lane.b32.xlu0 %v1275, 17
      %v1788 = vpop.permute.xlu0 %1787
      %1789 = vrot.lane.b32.xlu0 %v1276, 17
      %v1790 = vpop.permute.xlu0 %1789
      %1791 = vrot.lane.b32.xlu0 %v1277, 17
      %v1792 = vpop.permute.xlu0 %1791
      %1793 = vrot.lane.b32.xlu0 %v1278, 17
      %v1794 = vpop.permute.xlu0 %1793
      %1795 = vrot.lane.b32.xlu0 %v1270, 17
      %v1796 = vpop.permute.xlu0 %1795
      %1797 = vrot.lane.b32.xlu0 %v1312, 17
      %v1798 = vpop.permute.xlu0 %1797
      %1799 = vrot.lane.b32.xlu0 %v1327, 17
      %v1800 = vpop.permute.xlu0 %1799
      %1801 = vrot.lane.b32.xlu0 %v1328, 17
      %v1802 = vpop.permute.xlu0 %1801
      %1803 = vrot.lane.b32.xlu0 %v1329, 17
      %v1804 = vpop.permute.xlu0 %1803
      %1805 = vrot.lane.b32.xlu0 %v1318, 17
      %v1806 = vpop.permute.xlu0 %1805
      %1807 = vrot.lane.b32.xlu0 %v1320, 17
      %v1808 = vpop.permute.xlu0 %1807
      %1809 = vrot.lane.b32.xlu0 %v1330, 17
      %v1810 = vpop.permute.xlu0 %1809
      %1811 = vrot.lane.b32.xlu0 %v1331, 17
      %v1812 = vpop.permute.xlu0 %1811
      %1813 = vrot.lane.b32.xlu0 %v1332, 17
      %v1814 = vpop.permute.xlu0 %1813
      %1815 = vrot.lane.b32.xlu0 %v1326, 17
      %v1816 = vpop.permute.xlu0 %1815
      %1817 = vrot.lane.b32.xlu0 %v1376, 17
      %v1818 = vpop.permute.xlu0 %1817
      %1819 = vrot.lane.b32.xlu0 %v1396, 17
      %v1820 = vpop.permute.xlu0 %1819
      %1821 = vrot.lane.b32.xlu0 %v1397, 17
      %v1822 = vpop.permute.xlu0 %1821
      %1823 = vrot.lane.b32.xlu0 %v1398, 17
      %v1824 = vpop.permute.xlu0 %1823
      %1825 = vrot.lane.b32.xlu0 %v1399, 17
      %v1826 = vpop.permute.xlu0 %1825
      %1827 = vrot.lane.b32.xlu0 %v1386, 17
      %v1828 = vpop.permute.xlu0 %1827
      %1829 = vrot.lane.b32.xlu0 %v1400, 17
      %v1830 = vpop.permute.xlu0 %1829
      %1831 = vrot.lane.b32.xlu0 %v1401, 17
      %v1832 = vpop.permute.xlu0 %1831
      %1833 = vrot.lane.b32.xlu0 %v1402, 17
      %v1834 = vpop.permute.xlu0 %1833
      %1835 = vrot.lane.b32.xlu0 %v1403, 17
      %v1836 = vpop.permute.xlu0 %1835
      %1837 = vrot.lane.b32.xlu0 %v1447, 17
      %v1838 = vpop.permute.xlu0 %1837
      %1839 = vrot.lane.b32.xlu0 %v1467, 17
      %v1840 = vpop.permute.xlu0 %1839
      %1841 = vrot.lane.b32.xlu0 %v1468, 17
      %v1842 = vpop.permute.xlu0 %1841
      %1843 = vrot.lane.b32.xlu0 %v1469, 17
      %v1844 = vpop.permute.xlu0 %1843
      %1845 = vrot.lane.b32.xlu0 %v1470, 17
      %v1846 = vpop.permute.xlu0 %1845
      %1847 = vrot.lane.b32.xlu0 %v1457, 17
      %v1848 = vpop.permute.xlu0 %1847
      %1849 = vrot.lane.b32.xlu0 %v1471, 17
      %v1850 = vpop.permute.xlu0 %1849
      %1851 = vrot.lane.b32.xlu0 %v1472, 17
      %v1852 = vpop.permute.xlu0 %1851
      %1853 = vrot.lane.b32.xlu0 %v1473, 17
      %v1854 = vpop.permute.xlu0 %1853
      %1855 = vrot.lane.b32.xlu0 %v1474, 17
      %v1856 = vpop.permute.xlu0 %1855
      %1857 = vrot.lane.b32.xlu0 %v1518, 17
      %v1858 = vpop.permute.xlu0 %1857
      %1859 = vrot.lane.b32.xlu0 %v1538, 17
      %v1860 = vpop.permute.xlu0 %1859
      %1861 = vrot.lane.b32.xlu0 %v1539, 17
      %v1862 = vpop.permute.xlu0 %1861
      %1863 = vrot.lane.b32.xlu0 %v1540, 17
      %v1864 = vpop.permute.xlu0 %1863
      %1865 = vrot.lane.b32.xlu0 %v1541, 17
      %v1866 = vpop.permute.xlu0 %1865
      %1867 = vrot.lane.b32.xlu0 %v1528, 17
      %v1868 = vpop.permute.xlu0 %1867
      %1869 = vrot.lane.b32.xlu0 %v1542, 17
      %v1870 = vpop.permute.xlu0 %1869
      %1871 = vrot.lane.b32.xlu0 %v1543, 17
      %v1872 = vpop.permute.xlu0 %1871
      %1873 = vrot.lane.b32.xlu0 %v1544, 17
      %v1874 = vpop.permute.xlu0 %1873
      %1875 = vrot.lane.b32.xlu0 %v1545, 17
      %v1876 = vpop.permute.xlu0 %1875
      %1877 = vrot.lane.b32.xlu0 %v1589, 17
      %v1878 = vpop.permute.xlu0 %1877
      %1879 = vrot.lane.b32.xlu0 %v1609, 17
      %v1880 = vpop.permute.xlu0 %1879
      %1881 = vrot.lane.b32.xlu0 %v1610, 17
      %v1882 = vpop.permute.xlu0 %1881
      %1883 = vrot.lane.b32.xlu0 %v1611, 17
      %v1884 = vpop.permute.xlu0 %1883
      %1885 = vrot.lane.b32.xlu0 %v1612, 17
      %v1886 = vpop.permute.xlu0 %1885
      %1887 = vrot.lane.b32.xlu0 %v1599, 17
      %v1888 = vpop.permute.xlu0 %1887
      %1889 = vrot.lane.b32.xlu0 %v1613, 17
      %v1890 = vpop.permute.xlu0 %1889
      %1891 = vrot.lane.b32.xlu0 %v1614, 17
      %v1892 = vpop.permute.xlu0 %1891
      %1893 = vrot.lane.b32.xlu0 %v1615, 17
      %v1894 = vpop.permute.xlu0 %1893
      %1895 = vrot.lane.b32.xlu0 %v1616, 17
      %v1896 = vpop.permute.xlu0 %1895
      %v1897 = vsel %vm1007, %v1718, %v1720
      %v1898 = vsel %vm1007, %v1720, %v1722
      %v1899 = vsel %vm1007, %v1722, %v1724
      %v1900 = vsel %vm1007, %v1724, %v1726
      %v1901 = vsel %vm1007, %v1728, %v1730
      %v1902 = vsel %vm1007, %v1730, %v1732
      %v1903 = vsel %vm1007, %v1732, %v1734
      %v1904 = vsel %vm1007, %v1734, %v1736
      %v1905 = vsel %vm1007, %v1738, %v1740
      %v1906 = vsel %vm1007, %v1740, %v1742
      %v1907 = vsel %vm1007, %v1742, %v1744
      %v1908 = vsel %vm1007, %v1744, %v1746
      %v1909 = vsel %vm1007, %v1748, %v1750
      %v1910 = vsel %vm1007, %v1750, %v1752
      %v1911 = vsel %vm1007, %v1752, %v1754
      %v1912 = vsel %vm1007, %v1754, %v1756
      %v1913 = vsel %vm1007, %v1758, %v1760
      %v1914 = vsel %vm1007, %v1760, %v1762
      %v1915 = vsel %vm1007, %v1762, %v1764
      %v1916 = vsel %vm1007, %v1764, %v1766
      %v1917 = vsel %vm1007, %v1768, %v1770
      %v1918 = vsel %vm1007, %v1770, %v1772
      %v1919 = vsel %vm1007, %v1772, %v1774
      %v1920 = vsel %vm1007, %v1774, %v1776
      %v1921 = vsel %vm1007, %v1778, %v1780
      %v1922 = vsel %vm1007, %v1780, %v1782
      %v1923 = vsel %vm1007, %v1782, %v1784
      %v1924 = vsel %vm1007, %v1784, %v1786
      %v1925 = vsel %vm1007, %v1788, %v1790
      %v1926 = vsel %vm1007, %v1790, %v1792
      %v1927 = vsel %vm1007, %v1792, %v1794
      %v1928 = vsel %vm1007, %v1794, %v1796
      %v1929 = vsel %vm1007, %v1798, %v1800
      %v1930 = vsel %vm1007, %v1800, %v1802
      %v1931 = vsel %vm1007, %v1802, %v1804
      %v1932 = vsel %vm1007, %v1804, %v1806
      %v1933 = vsel %vm1007, %v1808, %v1810
      %v1934 = vsel %vm1007, %v1810, %v1812
      %v1935 = vsel %vm1007, %v1812, %v1814
      %v1936 = vsel %vm1007, %v1814, %v1816
      %v1937 = vsel %vm1007, %v1818, %v1820
      %v1938 = vsel %vm1007, %v1820, %v1822
      %v1939 = vsel %vm1007, %v1822, %v1824
      %v1940 = vsel %vm1007, %v1824, %v1826
      %v1941 = vsel %vm1007, %v1828, %v1830
      %v1942 = vsel %vm1007, %v1830, %v1832
      %v1943 = vsel %vm1007, %v1832, %v1834
      %v1944 = vsel %vm1007, %v1834, %v1836
      %v1945 = vsel %vm1007, %v1838, %v1840
      %v1946 = vsel %vm1007, %v1840, %v1842
      %v1947 = vsel %vm1007, %v1842, %v1844
      %v1948 = vsel %vm1007, %v1844, %v1846
      %v1949 = vsel %vm1007, %v1848, %v1850
      %v1950 = vsel %vm1007, %v1850, %v1852
      %v1951 = vsel %vm1007, %v1852, %v1854
      %v1952 = vsel %vm1007, %v1854, %v1856
      %v1953 = vsel %vm1007, %v1858, %v1860
      %v1954 = vsel %vm1007, %v1860, %v1862
      %v1955 = vsel %vm1007, %v1862, %v1864
      %v1956 = vsel %vm1007, %v1864, %v1866
      %v1957 = vsel %vm1007, %v1868, %v1870
      %v1958 = vsel %vm1007, %v1870, %v1872
      %v1959 = vsel %vm1007, %v1872, %v1874
      %v1960 = vsel %vm1007, %v1874, %v1876
      %v1961 = vsel %vm1007, %v1878, %v1880
      %v1962 = vsel %vm1007, %v1880, %v1882
      %v1963 = vsel %vm1007, %v1882, %v1884
      %v1964 = vsel %vm1007, %v1884, %v1886
      %v1965 = vsel %vm1007, %v1888, %v1890
      %v1966 = vsel %vm1007, %v1890, %v1892
      %v1967 = vsel %vm1007, %v1892, %v1894
      %v1968 = vsel %vm1007, %v1894, %v1896
      %vm2041 = vcmask 261120
      %v2043 = vsel %vm2041, %v1699, 0
      %v2046 = vsel %vm2041, %v1702, 0
      %v2049 = vsel %vm2041, %v1705, 0
      %v2052 = vsel %vm2041, %v1708, 0
      %2054 = vmatprep.subr.bf16.mxu0 %v1898
      %2055 = vmatpush1.bf16.msra.mxu0 %v1897
      %2056 = vmatprep.subr.bf16.mxu0 %v1902
      %2057 = vmatpush1.bf16.msra.mxu0 %v1901
      %2058 = vmatprep.subr.bf16.mxu0 %v1906
      %2059 = vmatpush1.bf16.msra.mxu0 %v1905
      %2060 = vmatprep.subr.bf16.mxu0 %v1910
      %2061 = vmatpush1.bf16.msra.mxu0 %v1909
      %2062 = vmatprep.subr.bf16.mxu0 %v1914
      %2063 = vmatpush1.bf16.msra.mxu0 %v1913
      %2064 = vmatprep.subr.bf16.mxu0 %v1918
      %2065 = vmatpush1.bf16.msra.mxu0 %v1917
      %2066 = vmatprep.subr.bf16.mxu0 %v1922
      %2067 = vmatpush1.bf16.msra.mxu0 %v1921
      %2068 = vmatprep.subr.bf16.mxu0 %v1926
      %2069 = vmatpush1.bf16.msra.mxu0 %v1925
      %2070 = vmatprep.subr.bf16.mxu0 %v1930
      %2071 = vmatpush1.bf16.msra.mxu0 %v1929
      %2072 = vmatprep.subr.bf16.mxu0 %v1934
      %2073 = vmatpush1.bf16.msra.mxu0 %v1933
      %2074 = vmatprep.subr.bf16.mxu0 %v1938
      %2075 = vmatpush1.bf16.msra.mxu0 %v1937
      %2076 = vmatprep.subr.bf16.mxu0 %v1942
      %2077 = vmatpush1.bf16.msra.mxu0 %v1941
      %2078 = vmatprep.subr.bf16.mxu0 %v1946
      %2079 = vmatpush1.bf16.msra.mxu0 %v1945
      %2080 = vmatprep.subr.bf16.mxu0 %v1950
      %2081 = vmatpush1.bf16.msra.mxu0 %v1949
      %2082 = vmatprep.subr.bf16.mxu0 %v1954
      %2083 = vmatpush1.bf16.msra.mxu0 %v1953
      %2084 = vmatprep.subr.bf16.mxu0 %v1958
      %2085 = vmatpush1.bf16.msra.mxu0 %v1957
      %2086 = vmatprep.mubr.bf16.mxu0 %v1698
      %2087 = vmatmul.mubr.bf16.gmra.mrb[0].mxu0 %v1697
      %v2088 = vpop.f32.mrb[0].mxu0
      %v2089 = vadd.f32 %v1620, %v2088
      %v2090 = vpop.f32.mrb[0].mxu0
      %v2091 = vadd.f32 %v1620, %v2090
      %v2092 = vpop.f32.mrb[0].mxu0
      %v2093 = vadd.f32 %v1625, %v2092
      %v2094 = vpop.f32.mrb[0].mxu0
      %v2095 = vadd.f32 %v1625, %v2094
      %2096 = vmatprep.mubr.bf16.mxu0 %v1701
      %2097 = vmatmul.mubr.bf16.gmra.mrb[0].mxu0 %v1700
      %v2098 = vpop.f32.mrb[0].mxu0
      %v2099 = vadd.f32 %v1630, %v2098
      %v2100 = vpop.f32.mrb[0].mxu0
      %v2101 = vadd.f32 %v1630, %v2100
      %v2102 = vpop.f32.mrb[0].mxu0
      %v2103 = vadd.f32 %v1635, %v2102
      %v2104 = vpop.f32.mrb[0].mxu0
      %v2105 = vadd.f32 %v1635, %v2104
      %2106 = vmatprep.mubr.bf16.mxu0 %v1704
      %2107 = vmatmul.mubr.bf16.gmra.mrb[0].mxu0 %v1703
      %v2108 = vpop.f32.mrb[0].mxu0
      %v2109 = vadd.f32 %v1640, %v2108
      %v2110 = vpop.f32.mrb[0].mxu0
      %v2111 = vadd.f32 %v1640, %v2110
      %v2112 = vpop.f32.mrb[0].mxu0
      %v2113 = vadd.f32 %v1645, %v2112
      %v2114 = vpop.f32.mrb[0].mxu0
      %v2115 = vadd.f32 %v1645, %v2114
      %2116 = vmatprep.mubr.bf16.mxu0 %v1707
      %2117 = vmatmul.mubr.bf16.gmra.mrb[0].mxu0 %v1706
      %v2118 = vpop.f32.mrb[0].mxu0
      %v2119 = vadd.f32 %v1650, %v2118
      %v2120 = vpop.f32.mrb[0].mxu0
      %v2121 = vadd.f32 %v1650, %v2120
      %v2122 = vpop.f32.mrb[0].mxu0
      %v2123 = vadd.f32 %v1655, %v2122
      %v2124 = vpop.f32.mrb[0].mxu0
      %v2125 = vadd.f32 %v1655, %v2124
      %2126 = vdwg.mxu0
      %2127 = vmatprep.subr.bf16.mxu0 %v1962
      %2128 = vmatpush1.bf16.msra.mxu0 %v1961
      %2129 = vmatprep.subr.bf16.mxu0 %v1966
      %2130 = vmatpush1.bf16.msra.mxu0 %v1965
      %2131 = vmatprep.subr.bf16.mxu0 0
      %2132 = vmatpush1.bf16.msra.mxu0 0
      %2133 = vmatprep.subr.bf16.mxu0 0
      %2134 = vmatpush1.bf16.msra.mxu0 0
      %2135 = vmatprep.subr.bf16.mxu0 0
      %2136 = vmatpush1.bf16.msra.mxu0 0
      %2137 = vmatprep.subr.bf16.mxu0 0
      %2138 = vmatpush1.bf16.msra.mxu0 0
      %2139 = vmatprep.subr.bf16.mxu0 0
      %2140 = vmatpush1.bf16.msra.mxu0 0
      %2141 = vmatprep.subr.bf16.mxu0 0
      %2142 = vmatpush1.bf16.msra.mxu0 0
      %2143 = vmatprep.subr.bf16.mxu0 0
      %2144 = vmatpush1.bf16.msra.mxu0 0
      %2145 = vmatprep.subr.bf16.mxu0 0
      %2146 = vmatpush1.bf16.msra.mxu0 0
      %2147 = vmatprep.subr.bf16.mxu0 0
      %2148 = vmatpush1.bf16.msra.mxu0 0
      %2149 = vmatprep.subr.bf16.mxu0 0
      %2150 = vmatpush1.bf16.msra.mxu0 0
      %2151 = vmatprep.subr.bf16.mxu0 0
      %2152 = vmatpush1.bf16.msra.mxu0 0
      %2153 = vmatprep.subr.bf16.mxu0 0
      %2154 = vmatpush1.bf16.msra.mxu0 0
      %2155 = vmatprep.subr.bf16.mxu0 0
      %2156 = vmatpush1.bf16.msra.mxu0 0
      %2157 = vmatprep.subr.bf16.mxu0 0
      %2158 = vmatpush1.bf16.msra.mxu0 0
      %2159 = vmatprep.mubr.bf16.mxu0 0
      %2160 = vmatmul.mubr.bf16.gmra.mrb[0].mxu0 %v2043
      %v2161 = vpop.f32.mrb[0].mxu0
      %v2162 = vadd.f32 %v2089, %v2161
      %v2163 = vpop.f32.mrb[0].mxu0
      %v2164 = vadd.f32 %v2091, %v2163
      %v2165 = vpop.f32.mrb[0].mxu0
      %v2166 = vadd.f32 %v2093, %v2165
      %v2167 = vpop.f32.mrb[0].mxu0
      %v2168 = vadd.f32 %v2095, %v2167
      %2169 = vmatprep.mubr.bf16.mxu0 0
      %2170 = vmatmul.mubr.bf16.gmra.mrb[0].mxu0 %v2046
      %v2171 = vpop.f32.mrb[0].mxu0
      %v2172 = vadd.f32 %v2099, %v2171
      %v2173 = vpop.f32.mrb[0].mxu0
      %v2174 = vadd.f32 %v2101, %v2173
      %v2175 = vpop.f32.mrb[0].mxu0
      %v2176 = vadd.f32 %v2103, %v2175
      %v2177 = vpop.f32.mrb[0].mxu0
      %v2178 = vadd.f32 %v2105, %v2177
      %2179 = vmatprep.mubr.bf16.mxu0 0
      %2180 = vmatmul.mubr.bf16.gmra.mrb[0].mxu0 %v2049
      %v2181 = vpop.f32.mrb[0].mxu0
      %v2182 = vadd.f32 %v2109, %v2181
      %v2183 = vpop.f32.mrb[0].mxu0
      %v2184 = vadd.f32 %v2111, %v2183
      %v2185 = vpop.f32.mrb[0].mxu0
      %v2186 = vadd.f32 %v2113, %v2185
      %v2187 = vpop.f32.mrb[0].mxu0
      %v2188 = vadd.f32 %v2115, %v2187
      %2189 = vmatprep.mubr.bf16.mxu0 0
      %2190 = vmatmul.mubr.bf16.gmra.mrb[0].mxu0 %v2052
      %v2191 = vpop.f32.mrb[0].mxu0
      %v2192 = vadd.f32 %v2119, %v2191
      %v2193 = vpop.f32.mrb[0].mxu0
      %v2194 = vadd.f32 %v2121, %v2193
      %v2195 = vpop.f32.mrb[0].mxu0
      %v2196 = vadd.f32 %v2123, %v2195
      %v2197 = vpop.f32.mrb[0].mxu0
      %v2198 = vadd.f32 %v2125, %v2197
      %2199 = vdwg.mxu0
      %2200 = vmatprep.subr.bf16.mxu0 %v1900
      %2201 = vmatpush1.bf16.msra.mxu0 %v1899
      %2202 = vmatprep.subr.bf16.mxu0 %v1904
      %2203 = vmatpush1.bf16.msra.mxu0 %v1903
      %2204 = vmatprep.subr.bf16.mxu0 %v1908
      %2205 = vmatpush1.bf16.msra.mxu0 %v1907
      %2206 = vmatprep.subr.bf16.mxu0 %v1912
      %2207 = vmatpush1.bf16.msra.mxu0 %v1911
      %2208 = vmatprep.subr.bf16.mxu0 %v1916
      %2209 = vmatpush1.bf16.msra.mxu0 %v1915
      %2210 = vmatprep.subr.bf16.mxu0 %v1920
      %2211 = vmatpush1.bf16.msra.mxu0 %v1919
      %2212 = vmatprep.subr.bf16.mxu0 %v1924
      %2213 = vmatpush1.bf16.msra.mxu0 %v1923
      %2214 = vmatprep.subr.bf16.mxu0 %v1928
      %2215 = vmatpush1.bf16.msra.mxu0 %v1927
      %2216 = vmatprep.subr.bf16.mxu0 %v1932
      %2217 = vmatpush1.bf16.msra.mxu0 %v1931
      %2218 = vmatprep.subr.bf16.mxu0 %v1936
      %2219 = vmatpush1.bf16.msra.mxu0 %v1935
      %2220 = vmatprep.subr.bf16.mxu0 %v1940
      %2221 = vmatpush1.bf16.msra.mxu0 %v1939
      %2222 = vmatprep.subr.bf16.mxu0 %v1944
      %2223 = vmatpush1.bf16.msra.mxu0 %v1943
      %2224 = vmatprep.subr.bf16.mxu0 %v1948
      %2225 = vmatpush1.bf16.msra.mxu0 %v1947
      %2226 = vmatprep.subr.bf16.mxu0 %v1952
      %2227 = vmatpush1.bf16.msra.mxu0 %v1951
      %2228 = vmatprep.subr.bf16.mxu0 %v1956
      %2229 = vmatpush1.bf16.msra.mxu0 %v1955
      %2230 = vmatprep.subr.bf16.mxu0 %v1960
      %2231 = vmatpush1.bf16.msra.mxu0 %v1959
      %2232 = vmatprep.mubr.bf16.mxu0 %v1698
      %2233 = vmatmul.mubr.bf16.gmra.mrb[0].mxu0 %v1697
      %v2234 = vpop.f32.mrb[0].mxu0
      %v2235 = vadd.f32 %v1620, %v2234
      %v2236 = vpop.f32.mrb[0].mxu0
      %v2237 = vadd.f32 %v1620, %v2236
      %v2238 = vpop.f32.mrb[0].mxu0
      %v2239 = vadd.f32 %v1625, %v2238
      %v2240 = vpop.f32.mrb[0].mxu0
      %v2241 = vadd.f32 %v1625, %v2240
      %2242 = vmatprep.mubr.bf16.mxu0 %v1701
      %2243 = vmatmul.mubr.bf16.gmra.mrb[0].mxu0 %v1700
      %v2244 = vpop.f32.mrb[0].mxu0
      %v2245 = vadd.f32 %v1630, %v2244
      %v2246 = vpop.f32.mrb[0].mxu0
      %v2247 = vadd.f32 %v1630, %v2246
      %v2248 = vpop.f32.mrb[0].mxu0
      %v2249 = vadd.f32 %v1635, %v2248
      %v2250 = vpop.f32.mrb[0].mxu0
      %v2251 = vadd.f32 %v1635, %v2250
      %2252 = vmatprep.mubr.bf16.mxu0 %v1704
      %2253 = vmatmul.mubr.bf16.gmra.mrb[0].mxu0 %v1703
      %v2254 = vpop.f32.mrb[0].mxu0
      %v2255 = vadd.f32 %v1640, %v2254
      %v2256 = vpop.f32.mrb[0].mxu0
      %v2257 = vadd.f32 %v1640, %v2256
      %v2258 = vpop.f32.mrb[0].mxu0
      %v2259 = vadd.f32 %v1645, %v2258
      %v2260 = vpop.f32.mrb[0].mxu0
      %v2261 = vadd.f32 %v1645, %v2260
      %2262 = vmatprep.mubr.bf16.mxu0 %v1707
      %2263 = vmatmul.mubr.bf16.gmra.mrb[0].mxu0 %v1706
      %v2264 = vpop.f32.mrb[0].mxu0
      %v2265 = vadd.f32 %v1650, %v2264
      %v2266 = vpop.f32.mrb[0].mxu0
      %v2267 = vadd.f32 %v1650, %v2266
      %v2268 = vpop.f32.mrb[0].mxu0
      %v2269 = vadd.f32 %v1655, %v2268
      %v2270 = vpop.f32.mrb[0].mxu0
      %v2271 = vadd.f32 %v1655, %v2270
      %2272 = vdwg.mxu0
      %2273 = vmatprep.subr.bf16.mxu0 %v1964
      %2274 = vmatpush1.bf16.msra.mxu0 %v1963
      %2275 = vmatprep.subr.bf16.mxu0 %v1968
      %2276 = vmatpush1.bf16.msra.mxu0 %v1967
      %2277 = vmatprep.subr.bf16.mxu0 0
      %2278 = vmatpush1.bf16.msra.mxu0 0
      %2279 = vmatprep.subr.bf16.mxu0 0
      %2280 = vmatpush1.bf16.msra.mxu0 0
      %2281 = vmatprep.subr.bf16.mxu0 0
      %2282 = vmatpush1.bf16.msra.mxu0 0
      %2283 = vmatprep.subr.bf16.mxu0 0
      %2284 = vmatpush1.bf16.msra.mxu0 0
      %2285 = vmatprep.subr.bf16.mxu0 0
      %2286 = vmatpush1.bf16.msra.mxu0 0
      %2287 = vmatprep.subr.bf16.mxu0 0
      %2288 = vmatpush1.bf16.msra.mxu0 0
      %2289 = vmatprep.subr.bf16.mxu0 0
      %2290 = vmatpush1.bf16.msra.mxu0 0
      %2291 = vmatprep.subr.bf16.mxu0 0
      %2292 = vmatpush1.bf16.msra.mxu0 0
      %2293 = vmatprep.subr.bf16.mxu0 0
      %2294 = vmatpush1.bf16.msra.mxu0 0
      %2295 = vmatprep.subr.bf16.mxu0 0
      %2296 = vmatpush1.bf16.msra.mxu0 0
      %2297 = vmatprep.subr.bf16.mxu0 0
      %2298 = vmatpush1.bf16.msra.mxu0 0
      %2299 = vmatprep.subr.bf16.mxu0 0
      %2300 = vmatpush1.bf16.msra.mxu0 0
      %2301 = vmatprep.subr.bf16.mxu0 0
      %2302 = vmatpush1.bf16.msra.mxu0 0
      %2303 = vmatprep.subr.bf16.mxu0 0
      %2304 = vmatpush1.bf16.msra.mxu0 0
      %2305 = vmatprep.mubr.bf16.mxu0 0
      %2306 = vmatmul.mubr.bf16.gmra.mrb[0].mxu0 %v2043
      %v2307 = vpop.f32.mrb[0].mxu0
      %v2308 = vadd.f32 %v2235, %v2307
      %v2309 = vpop.f32.mrb[0].mxu0
      %v2310 = vadd.f32 %v2237, %v2309
      %v2311 = vpop.f32.mrb[0].mxu0
      %v2312 = vadd.f32 %v2239, %v2311
      %v2313 = vpop.f32.mrb[0].mxu0
      %v2314 = vadd.f32 %v2241, %v2313
      %2315 = vmatprep.mubr.bf16.mxu0 0
      %2316 = vmatmul.mubr.bf16.gmra.mrb[0].mxu0 %v2046
      %v2317 = vpop.f32.mrb[0].mxu0
      %v2318 = vadd.f32 %v2245, %v2317
      %v2319 = vpop.f32.mrb[0].mxu0
      %v2320 = vadd.f32 %v2247, %v2319
      %v2321 = vpop.f32.mrb[0].mxu0
      %v2322 = vadd.f32 %v2249, %v2321
      %v2323 = vpop.f32.mrb[0].mxu0
      %v2324 = vadd.f32 %v2251, %v2323
      %2325 = vmatprep.mubr.bf16.mxu0 0
      %2326 = vmatmul.mubr.bf16.gmra.mrb[0].mxu0 %v2049
      %v2327 = vpop.f32.mrb[0].mxu0
      %v2328 = vadd.f32 %v2255, %v2327
      %v2329 = vpop.f32.mrb[0].mxu0
      %v2330 = vadd.f32 %v2257, %v2329
      %v2331 = vpop.f32.mrb[0].mxu0
      %v2332 = vadd.f32 %v2259, %v2331
      %v2333 = vpop.f32.mrb[0].mxu0
      %v2334 = vadd.f32 %v2261, %v2333
      %2335 = vmatprep.mubr.bf16.mxu0 0
      %2336 = vmatmul.mubr.bf16.gmra.mrb[0].mxu0 %v2052
      %v2337 = vpop.f32.mrb[0].mxu0
      %v2338 = vadd.f32 %v2265, %v2337
      %v2339 = vpop.f32.mrb[0].mxu0
      %v2340 = vadd.f32 %v2267, %v2339
      %v2341 = vpop.f32.mrb[0].mxu0
      %v2342 = vadd.f32 %v2269, %v2341
      %v2343 = vpop.f32.mrb[0].mxu0
      %v2344 = vadd.f32 %v2271, %v2343
      %2345 = vdwg.mxu0
      %v2346 = vadd.f32 %v2162, %v2164
      %v2347 = vadd.f32 %v2346, %v2308
      %v2348 = vadd.f32 %v2347, %v2310
      %2349 = vadd.xlane.f32.xlu0 %v2348
      %v2350 = vpop.xlane.xlu0 %2349
      %v2351 = vadd.f32 %v2166, %v2168
      %v2352 = vadd.f32 %v2351, %v2312
      %v2353 = vadd.f32 %v2352, %v2314
      %2354 = vadd.xlane.f32.xlu0 %v2353
      %v2355 = vpop.xlane.xlu0 %2354
      %v2356 = vadd.f32 %v2172, %v2174
      %v2357 = vadd.f32 %v2356, %v2318
      %v2358 = vadd.f32 %v2357, %v2320
      %2359 = vadd.xlane.f32.xlu0 %v2358
      %v2360 = vpop.xlane.xlu0 %2359
      %v2361 = vadd.f32 %v2176, %v2178
      %v2362 = vadd.f32 %v2361, %v2322
      %v2363 = vadd.f32 %v2362, %v2324
      %2364 = vadd.xlane.f32.xlu0 %v2363
      %v2365 = vpop.xlane.xlu0 %2364
      %v2366 = vadd.f32 %v2182, %v2184
      %v2367 = vadd.f32 %v2366, %v2328
      %v2368 = vadd.f32 %v2367, %v2330
      %2369 = vadd.xlane.f32.xlu0 %v2368
      %v2370 = vpop.xlane.xlu0 %2369
      %v2371 = vadd.f32 %v2186, %v2188
      %v2372 = vadd.f32 %v2371, %v2332
      %v2373 = vadd.f32 %v2372, %v2334
      %2374 = vadd.xlane.f32.xlu0 %v2373
      %v2375 = vpop.xlane.xlu0 %2374
      %v2376 = vadd.f32 %v2192, %v2194
      %v2377 = vadd.f32 %v2376, %v2338
      %v2378 = vadd.f32 %v2377, %v2340
      %2379 = vadd.xlane.f32.xlu0 %v2378
      %v2380 = vpop.xlane.xlu0 %2379
      %v2381 = vadd.f32 %v2196, %v2198
      %v2382 = vadd.f32 %v2381, %v2342
      %v2383 = vadd.f32 %v2382, %v2344
      %2384 = vadd.xlane.f32.xlu0 %v2383
      %v2385 = vpop.xlane.xlu0 %2384
      %v2386 = vmul.f32 %v2162, %v2162
      %v2387 = vmul.f32 %v2164, %v2164
      %v2388 = vmul.f32 %v2308, %v2308
      %v2389 = vmul.f32 %v2310, %v2310
      %v2390 = vmul.f32 %v2166, %v2166
      %v2391 = vmul.f32 %v2168, %v2168
      %v2392 = vmul.f32 %v2312, %v2312
      %v2393 = vmul.f32 %v2314, %v2314
      %v2394 = vmul.f32 %v2172, %v2172
      %v2395 = vmul.f32 %v2174, %v2174
      %v2396 = vmul.f32 %v2318, %v2318
      %v2397 = vmul.f32 %v2320, %v2320
      %v2398 = vmul.f32 %v2176, %v2176
      %v2399 = vmul.f32 %v2178, %v2178
      %v2400 = vmul.f32 %v2322, %v2322
      %v2401 = vmul.f32 %v2324, %v2324
      %v2402 = vmul.f32 %v2182, %v2182
      %v2403 = vmul.f32 %v2184, %v2184
      %v2404 = vmul.f32 %v2328, %v2328
      %v2405 = vmul.f32 %v2330, %v2330
      %v2406 = vmul.f32 %v2186, %v2186
      %v2407 = vmul.f32 %v2188, %v2188
      %v2408 = vmul.f32 %v2332, %v2332
      %v2409 = vmul.f32 %v2334, %v2334
      %v2410 = vmul.f32 %v2192, %v2192
      %v2411 = vmul.f32 %v2194, %v2194
      %v2412 = vmul.f32 %v2338, %v2338
      %v2413 = vmul.f32 %v2340, %v2340
      %v2414 = vmul.f32 %v2196, %v2196
      %v2415 = vmul.f32 %v2198, %v2198
      %v2416 = vmul.f32 %v2342, %v2342
      %v2417 = vmul.f32 %v2344, %v2344
      %v2418 = vadd.f32 %v2386, %v2387
      %v2419 = vadd.f32 %v2418, %v2388
      %v2420 = vadd.f32 %v2419, %v2389
      %2421 = vadd.xlane.f32.xlu0 %v2420
      %v2422 = vpop.xlane.xlu0 %2421
      %v2423 = vadd.f32 %v2390, %v2391
      %v2424 = vadd.f32 %v2423, %v2392
      %v2425 = vadd.f32 %v2424, %v2393
      %2426 = vadd.xlane.f32.xlu0 %v2425
      %v2427 = vpop.xlane.xlu0 %2426
      %v2428 = vadd.f32 %v2394, %v2395
      %v2429 = vadd.f32 %v2428, %v2396
      %v2430 = vadd.f32 %v2429, %v2397
      %2431 = vadd.xlane.f32.xlu0 %v2430
      %v2432 = vpop.xlane.xlu0 %2431
      %v2433 = vadd.f32 %v2398, %v2399
      %v2434 = vadd.f32 %v2433, %v2400
      %v2435 = vadd.f32 %v2434, %v2401
      %2436 = vadd.xlane.f32.xlu0 %v2435
      %v2437 = vpop.xlane.xlu0 %2436
      %v2438 = vadd.f32 %v2402, %v2403
      %v2439 = vadd.f32 %v2438, %v2404
      %v2440 = vadd.f32 %v2439, %v2405
      %2441 = vadd.xlane.f32.xlu0 %v2440
      %v2442 = vpop.xlane.xlu0 %2441
      %v2443 = vadd.f32 %v2406, %v2407
      %v2444 = vadd.f32 %v2443, %v2408
      %v2445 = vadd.f32 %v2444, %v2409
      %2446 = vadd.xlane.f32.xlu0 %v2445
      %v2447 = vpop.xlane.xlu0 %2446
      %v2448 = vadd.f32 %v2410, %v2411
      %v2449 = vadd.f32 %v2448, %v2412
      %v2450 = vadd.f32 %v2449, %v2413
      %2451 = vadd.xlane.f32.xlu0 %v2450
      %v2452 = vpop.xlane.xlu0 %2451
      %v2453 = vadd.f32 %v2414, %v2415
      %v2454 = vadd.f32 %v2453, %v2416
      %v2455 = vadd.f32 %v2454, %v2417
      %2456 = vadd.xlane.f32.xlu0 %v2455
      %v2457 = vpop.xlane.xlu0 %2456
      %v2458 = vadd.f32 %v2350, %v2360
      %v2459 = vadd.f32 %v2355, %v2365
      %v2460 = vadd.f32 %v2458, %v2370
      %v2461 = vadd.f32 %v2459, %v2375
      %v2462 = vadd.f32 %v2460, %v2380
      %v2463 = vadd.f32 %v2461, %v2385
      %v2464 = vadd.f32 %v2422, %v2432
      %v2465 = vadd.f32 %v2427, %v2437
      %v2466 = vadd.f32 %v2464, %v2442
      %v2467 = vadd.f32 %v2465, %v2447
      %v2468 = vadd.f32 %v2466, %v2452
      %v2469 = vadd.f32 %v2467, %v2457
      %v2470 = vmul.f32 %v2462, 0.00048828125
      %v2471 = vmul.f32 %v2463, 0.00048828125
      %v2472 = vmul.f32 %v2468, 0.00048828125
      %v2473 = vmul.f32 %v2469, 0.00048828125
      %v2474 = vmul.f32 %v2470, %v2470
      %v2475 = vmul.f32 %v2471, %v2471
      %v2476 = vsub.f32 %v2472, %v2474
      %v2477 = vsub.f32 %v2473, %v2475
      %v2478 = vmax.f32 %v2476, 0.0
      %v2479 = vmax.f32 %v2477, 0.0
      %v2480 = vadd.f32 %v2478, 1e-05
      %v2481 = vadd.f32 %v2479, 1e-05
      %v2482 = vrsqrt.pop %v2480
      %v2483 = vrsqrt.pop %v2481
      %v2484 = vmul.f32 %v293, %v2482
      %v2485 = vmul.f32 %v294, %v2483
      %v2486 = vmul.f32 %v2470, %v2484
      %v2487 = vmul.f32 %v2471, %v2485
      %v2488 = vsub.f32 %v295, %v2486
      %v2489 = vsub.f32 %v296, %v2487
      %2491 = vset.pattern.permute.xlu0 0
      %2492 = vperm.xlu0 %2491, %v2484
      %v2493 = vpop.permute.xlu0 %2492
      %2496 = vset.pattern.permute.xlu0 0
      %2497 = vperm.xlu0 %2496, %v2485
      %v2498 = vpop.permute.xlu0 %2497
      %v2500 = vmul.f32 %v2162, %v2493
      %v2501 = vmul.f32 %v2164, %v2493
      %v2502 = vmul.f32 %v2308, %v2493
      %v2503 = vmul.f32 %v2310, %v2493
      %v2504 = vmul.f32 %v2166, %v2498
      %v2505 = vmul.f32 %v2168, %v2498
      %v2506 = vmul.f32 %v2312, %v2498
      %v2507 = vmul.f32 %v2314, %v2498
      %2509 = vset.pattern.permute.xlu0 0
      %2510 = vperm.xlu0 %2509, %v2488
      %v2511 = vpop.permute.xlu0 %2510
      %2514 = vset.pattern.permute.xlu0 0
      %2515 = vperm.xlu0 %2514, %v2489
      %v2516 = vpop.permute.xlu0 %2515
      %v2518 = vadd.f32 %v2500, %v2511
      %v2519 = vadd.f32 %v2501, %v2511
      %v2520 = vadd.f32 %v2502, %v2511
      %v2521 = vadd.f32 %v2503, %v2511
      %v2522 = vadd.f32 %v2504, %v2516
      %v2523 = vadd.f32 %v2505, %v2516
      %v2524 = vadd.f32 %v2506, %v2516
      %v2525 = vadd.f32 %v2507, %v2516
      %v2526 = vmul.f32 %v2172, %v2493
      %v2527 = vmul.f32 %v2174, %v2493
      %v2528 = vmul.f32 %v2318, %v2493
      %v2529 = vmul.f32 %v2320, %v2493
      %v2530 = vmul.f32 %v2176, %v2498
      %v2531 = vmul.f32 %v2178, %v2498
      %v2532 = vmul.f32 %v2322, %v2498
      %v2533 = vmul.f32 %v2324, %v2498
      %v2534 = vadd.f32 %v2526, %v2511
      %v2535 = vadd.f32 %v2527, %v2511
      %v2536 = vadd.f32 %v2528, %v2511
      %v2537 = vadd.f32 %v2529, %v2511
      %v2538 = vadd.f32 %v2530, %v2516
      %v2539 = vadd.f32 %v2531, %v2516
      %v2540 = vadd.f32 %v2532, %v2516
      %v2541 = vadd.f32 %v2533, %v2516
      %v2542 = vmax.f32 %v2518, %v2534
      %v2543 = vmax.f32 %v2519, %v2535
      %v2544 = vmax.f32 %v2520, %v2536
      %v2545 = vmax.f32 %v2521, %v2537
      %v2546 = vmax.f32 %v2522, %v2538
      %v2547 = vmax.f32 %v2523, %v2539
      %v2548 = vmax.f32 %v2524, %v2540
      %v2549 = vmax.f32 %v2525, %v2541
      %v2550 = vmul.f32 %v2182, %v2493
      %v2551 = vmul.f32 %v2184, %v2493
      %v2552 = vmul.f32 %v2328, %v2493
      %v2553 = vmul.f32 %v2330, %v2493
      %v2554 = vmul.f32 %v2186, %v2498
      %v2555 = vmul.f32 %v2188, %v2498
      %v2556 = vmul.f32 %v2332, %v2498
      %v2557 = vmul.f32 %v2334, %v2498
      %v2558 = vadd.f32 %v2550, %v2511
      %v2559 = vadd.f32 %v2551, %v2511
      %v2560 = vadd.f32 %v2552, %v2511
      %v2561 = vadd.f32 %v2553, %v2511
      %v2562 = vadd.f32 %v2554, %v2516
      %v2563 = vadd.f32 %v2555, %v2516
      %v2564 = vadd.f32 %v2556, %v2516
      %v2565 = vadd.f32 %v2557, %v2516
      %v2566 = vmul.f32 %v2192, %v2493
      %v2567 = vmul.f32 %v2194, %v2493
      %v2568 = vmul.f32 %v2338, %v2493
      %v2569 = vmul.f32 %v2340, %v2493
      %v2570 = vmul.f32 %v2196, %v2498
      %v2571 = vmul.f32 %v2198, %v2498
      %v2572 = vmul.f32 %v2342, %v2498
      %v2573 = vmul.f32 %v2344, %v2498
      %v2574 = vadd.f32 %v2566, %v2511
      %v2575 = vadd.f32 %v2567, %v2511
      %v2576 = vadd.f32 %v2568, %v2511
      %v2577 = vadd.f32 %v2569, %v2511
      %v2578 = vadd.f32 %v2570, %v2516
      %v2579 = vadd.f32 %v2571, %v2516
      %v2580 = vadd.f32 %v2572, %v2516
      %v2581 = vadd.f32 %v2573, %v2516
      %v2582 = vmax.f32 %v2558, %v2574
      %v2583 = vmax.f32 %v2559, %v2575
      %v2584 = vmax.f32 %v2560, %v2576
      %v2585 = vmax.f32 %v2561, %v2577
      %v2586 = vmax.f32 %v2562, %v2578
      %v2587 = vmax.f32 %v2563, %v2579
      %v2588 = vmax.f32 %v2564, %v2580
      %v2589 = vmax.f32 %v2565, %v2581
      %v2590 = vmax.f32 %v2542, %v2582
      %v2591 = vmax.f32 %v2543, %v2583
      %v2592 = vmax.f32 %v2544, %v2584
      %v2593 = vmax.f32 %v2545, %v2585
      %v2594 = vmax.f32 %v2546, %v2586
      %v2595 = vmax.f32 %v2547, %v2587
      %v2596 = vmax.f32 %v2548, %v2588
      %v2597 = vmax.f32 %v2549, %v2589
      %v2598 = vmax.f32 %v2590, 0.0
      %v2599 = vmax.f32 %v2591, 0.0
      %v2600 = vmax.f32 %v2592, 0.0
      %v2601 = vmax.f32 %v2593, 0.0
      %v2602 = vmax.f32 %v2594, 0.0
      %v2603 = vmax.f32 %v2595, 0.0
      %v2604 = vmax.f32 %v2596, 0.0
      %v2605 = vmax.f32 %v2597, 0.0
      %2606 = vst [vmem:[%s258] sm:$0xff] %v2598
      %2607 = vst [vmem:[%s258 + $0x8] sm:$0xff] %v2599
      %2608 = vst [vmem:[%s258 + $0x10] sm:$0xff] %v2600
      %2609 = vst [vmem:[%s258 + $0x18] sm:$0xff] %v2601
      %2610 = vst [vmem:[%s258 + $0x20] sm:$0xff] %v2602
      %2611 = vst [vmem:[%s258 + $0x28] sm:$0xff] %v2603
      %2612 = vst [vmem:[%s258 + $0x30] sm:$0xff] %v2604
      %2613 = vst [vmem:[%s258 + $0x38] sm:$0xff] %v2605
      %s2614 = scalar_lea.vmem %s251, 96
      %v2615 = vld [vmem:[%s2614] sm:$0xff]
      %v2616 = vld [vmem:[%s2614 + $0x8] sm:$0xff]
      %v2617 = vld [vmem:[%s2614 + $0x10] sm:$0xf]
      %v2618 = vld [vmem:[%s2614 + $0x18] sm:$0xff]
      %v2619 = vld [vmem:[%s2614 + $0x20] sm:$0xff]
      %v2620 = vld [vmem:[%s2614 + $0x28] sm:$0xf]
      %v2621 = vld [vmem:[%s2614 + $0x30] sm:$0xff]
      %v2622 = vld [vmem:[%s2614 + $0x38] sm:$0xff]
      %v2623 = vld [vmem:[%s2614 + $0x40] sm:$0xf]
      %v2624 = vld [vmem:[%s2614 + $0x48] sm:$0xff]
      %v2625 = vld [vmem:[%s2614 + $0x50] sm:$0xff]
      %v2626 = vld [vmem:[%s2614 + $0x58] sm:$0xf]
      %v2627 = vmul.bf16 %v2615, %v379
      %v2628 = vmul.bf16 %v2616, %v382
      %v2629 = vmul.bf16 %v2617, %v377
      %v2630 = vmul.bf16 %v2618, %v379
      %v2631 = vmul.bf16 %v2619, %v382
      %v2632 = vmul.bf16 %v2620, %v377
      %v2633 = vmul.bf16 %v2621, %v379
      %v2634 = vmul.bf16 %v2622, %v382
      %v2635 = vmul.bf16 %v2623, %v377
      %v2636 = vmul.bf16 %v2624, %v379
      %v2637 = vmul.bf16 %v2625, %v382
      %v2638 = vmul.bf16 %v2626, %v377
      %v2639 = vmul.bf16 %v2615, %v468
      %v2640 = vmul.bf16 %v2616, %v470
      %v2641 = vmul.bf16 %v2617, %v466
      %v2642 = vmul.bf16 %v2618, %v468
      %v2643 = vmul.bf16 %v2619, %v470
      %v2644 = vmul.bf16 %v2620, %v466
      %v2645 = vmul.bf16 %v2621, %v468
      %v2646 = vmul.bf16 %v2622, %v470
      %v2647 = vmul.bf16 %v2623, %v466
      %v2648 = vmul.bf16 %v2624, %v468
      %v2649 = vmul.bf16 %v2625, %v470
      %v2650 = vmul.bf16 %v2626, %v466
      %v2651 = vmul.bf16 %v2615, %v556
      %v2652 = vmul.bf16 %v2616, %v558
      %v2653 = vmul.bf16 %v2617, %v554
      %v2654 = vmul.bf16 %v2618, %v556
      %v2655 = vmul.bf16 %v2619, %v558
      %v2656 = vmul.bf16 %v2620, %v554
      %v2657 = vmul.bf16 %v2621, %v556
      %v2658 = vmul.bf16 %v2622, %v558
      %v2659 = vmul.bf16 %v2623, %v554
      %v2660 = vmul.bf16 %v2624, %v556
      %v2661 = vmul.bf16 %v2625, %v558
      %v2662 = vmul.bf16 %v2626, %v554
      %v2663 = vmul.bf16 %v2615, %v644
      %v2664 = vmul.bf16 %v2616, %v646
      %v2665 = vmul.bf16 %v2617, %v642
      %v2666 = vmul.bf16 %v2618, %v644
      %v2667 = vmul.bf16 %v2619, %v646
      %v2668 = vmul.bf16 %v2620, %v642
      %v2669 = vmul.bf16 %v2621, %v644
      %v2670 = vmul.bf16 %v2622, %v646
      %v2671 = vmul.bf16 %v2623, %v642
      %v2672 = vmul.bf16 %v2624, %v644
      %v2673 = vmul.bf16 %v2625, %v646
      %v2674 = vmul.bf16 %v2626, %v642
      %v2675 = vld [vmem:[%s2614 + $0x4] sm:$0xff]
      %v2676 = vld [vmem:[%s2614 + $0xc] sm:$0xff]
      %v2677 = vld [vmem:[%s2614 + $0x1c] sm:$0xff]
      %v2678 = vld [vmem:[%s2614 + $0x24] sm:$0xff]
      %v2679 = vld [vmem:[%s2614 + $0x34] sm:$0xff]
      %v2680 = vld [vmem:[%s2614 + $0x3c] sm:$0xff]
      %v2681 = vld [vmem:[%s2614 + $0x4c] sm:$0xff]
      %v2682 = vld [vmem:[%s2614 + $0x54] sm:$0xff]
      %v2683 = vld [vmem:[%s2614 + $0x14] sm:$0xf]
      %v2684 = vld [vmem:[%s2614 + $0x2c] sm:$0xf]
      %v2685 = vld [vmem:[%s2614 + $0x44] sm:$0xf]
      %v2686 = vld [vmem:[%s2614 + $0x5c] sm:$0xf]
      %v2687 = vmul.bf16 %v2675, %v744
      %v2688 = vmul.bf16 %v2676, %v746
      %v2689 = vmul.bf16 %v2683, %v742
      %v2690 = vmul.bf16 %v2677, %v744
      %v2691 = vmul.bf16 %v2678, %v746
      %v2692 = vmul.bf16 %v2684, %v742
      %v2693 = vmul.bf16 %v2679, %v744
      %v2694 = vmul.bf16 %v2680, %v746
      %v2695 = vmul.bf16 %v2685, %v742
      %v2696 = vmul.bf16 %v2681, %v744
      %v2697 = vmul.bf16 %v2682, %v746
      %v2698 = vmul.bf16 %v2686, %v742
      %v2699 = vmul.bf16 %v2675, %v832
      %v2700 = vmul.bf16 %v2676, %v834
      %v2701 = vmul.bf16 %v2683, %v830
      %v2702 = vmul.bf16 %v2677, %v832
      %v2703 = vmul.bf16 %v2678, %v834
      %v2704 = vmul.bf16 %v2684, %v830
      %v2705 = vmul.bf16 %v2679, %v832
      %v2706 = vmul.bf16 %v2680, %v834
      %v2707 = vmul.bf16 %v2685, %v830
      %v2708 = vmul.bf16 %v2681, %v832
      %v2709 = vmul.bf16 %v2682, %v834
      %v2710 = vmul.bf16 %v2686, %v830
      %v2711 = vmul.bf16 %v2675, %v920
      %v2712 = vmul.bf16 %v2676, %v922
      %v2713 = vmul.bf16 %v2683, %v918
      %v2714 = vmul.bf16 %v2677, %v920
      %v2715 = vmul.bf16 %v2678, %v922
      %v2716 = vmul.bf16 %v2684, %v918
      %v2717 = vmul.bf16 %v2679, %v920
      %v2718 = vmul.bf16 %v2680, %v922
      %v2719 = vmul.bf16 %v2685, %v918
      %v2720 = vmul.bf16 %v2681, %v920
      %v2721 = vmul.bf16 %v2682, %v922
      %v2722 = vmul.bf16 %v2686, %v918
      %v2723 = vmul.bf16 %v2675, %v1008
      %v2724 = vmul.bf16 %v2676, %v1010
      %v2725 = vmul.bf16 %v2683, %v1006
      %v2726 = vmul.bf16 %v2677, %v1008
      %v2727 = vmul.bf16 %v2678, %v1010
      %v2728 = vmul.bf16 %v2684, %v1006
      %v2729 = vmul.bf16 %v2679, %v1008
      %v2730 = vmul.bf16 %v2680, %v1010
      %v2731 = vmul.bf16 %v2685, %v1006
      %v2732 = vmul.bf16 %v2681, %v1008
      %v2733 = vmul.bf16 %v2682, %v1010
      %v2734 = vmul.bf16 %v2686, %v1006
      %v2747 = vunpack.c.l.b16 %v2627
      %v2748 = vunpack.c.h.b16 %v2627
      %v2749 = vunpack.c.l.b16 %v2628
      %v2750 = vunpack.c.h.b16 %v2628
      %v2751 = vunpack.c.l.b16 %v2629
      %v2752 = vunpack.c.l.b16 %v2630
      %v2753 = vunpack.c.h.b16 %v2630
      %v2754 = vunpack.c.l.b16 %v2631
      %v2755 = vunpack.c.h.b16 %v2631
      %v2756 = vunpack.c.l.b16 %v2632
      %v2757 = vunpack.c.l.b16 %v2633
      %v2758 = vunpack.c.h.b16 %v2633
      %v2759 = vunpack.c.l.b16 %v2634
      %v2760 = vunpack.c.h.b16 %v2634
      %v2761 = vunpack.c.l.b16 %v2635
      %v2762 = vunpack.c.l.b16 %v2636
      %v2763 = vunpack.c.h.b16 %v2636
      %v2764 = vunpack.c.l.b16 %v2637
      %v2765 = vunpack.c.h.b16 %v2637
      %v2766 = vunpack.c.l.b16 %v2638
      %v2767 = vpack.c.b16 %v2752, %v2747
      %v2768 = vpack.c.b16 %v2753, %v2748
      %v2769 = vpack.c.b16 %v2754, %v2749
      %v2770 = vpack.c.b16 %v2755, %v2750
      %v2771 = vpack.c.b16 %v2756, %v2751
      %v2772 = vpack.c.b16 %v2762, %v2757
      %v2773 = vpack.c.b16 %v2763, %v2758
      %v2774 = vpack.c.b16 %v2764, %v2759
      %v2775 = vpack.c.b16 %v2765, %v2760
      %v2776 = vpack.c.b16 %v2766, %v2761
      %v2789 = vunpack.c.l.b16 %v2639
      %v2790 = vunpack.c.h.b16 %v2639
      %v2791 = vunpack.c.l.b16 %v2640
      %v2792 = vunpack.c.h.b16 %v2640
      %v2793 = vunpack.c.l.b16 %v2641
      %v2794 = vunpack.c.l.b16 %v2642
      %v2795 = vunpack.c.h.b16 %v2642
      %v2796 = vunpack.c.l.b16 %v2643
      %v2797 = vunpack.c.h.b16 %v2643
      %v2798 = vunpack.c.l.b16 %v2644
      %v2799 = vunpack.c.l.b16 %v2645
      %v2800 = vunpack.c.h.b16 %v2645
      %v2801 = vunpack.c.l.b16 %v2646
      %v2802 = vunpack.c.h.b16 %v2646
      %v2803 = vunpack.c.l.b16 %v2647
      %v2804 = vunpack.c.l.b16 %v2648
      %v2805 = vunpack.c.h.b16 %v2648
      %v2806 = vunpack.c.l.b16 %v2649
      %v2807 = vunpack.c.h.b16 %v2649
      %v2808 = vunpack.c.l.b16 %v2650
      %v2809 = vpack.c.b16 %v2794, %v2789
      %v2810 = vpack.c.b16 %v2795, %v2790
      %v2811 = vpack.c.b16 %v2796, %v2791
      %v2812 = vpack.c.b16 %v2797, %v2792
      %v2813 = vpack.c.b16 %v2798, %v2793
      %v2814 = vpack.c.b16 %v2804, %v2799
      %v2815 = vpack.c.b16 %v2805, %v2800
      %v2816 = vpack.c.b16 %v2806, %v2801
      %v2817 = vpack.c.b16 %v2807, %v2802
      %v2818 = vpack.c.b16 %v2808, %v2803
      %2819 = vrot.lane.b32.xlu0 %v2809, 127
      %v2820 = vpop.permute.xlu0 %2819
      %2821 = vrot.lane.b32.xlu0 %v2810, 127
      %v2822 = vpop.permute.xlu0 %2821
      %2823 = vrot.lane.b32.xlu0 %v2811, 127
      %v2824 = vpop.permute.xlu0 %2823
      %2825 = vrot.lane.b32.xlu0 %v2812, 127
      %v2826 = vpop.permute.xlu0 %2825
      %2827 = vrot.lane.b32.xlu0 %v2813, 127
      %v2828 = vpop.permute.xlu0 %2827
      %2829 = vrot.lane.b32.xlu0 %v2814, 127
      %v2830 = vpop.permute.xlu0 %2829
      %2831 = vrot.lane.b32.xlu0 %v2815, 127
      %v2832 = vpop.permute.xlu0 %2831
      %2833 = vrot.lane.b32.xlu0 %v2816, 127
      %v2834 = vpop.permute.xlu0 %2833
      %2835 = vrot.lane.b32.xlu0 %v2817, 127
      %v2836 = vpop.permute.xlu0 %2835
      %2837 = vrot.lane.b32.xlu0 %v2818, 127
      %v2838 = vpop.permute.xlu0 %2837
      %v2839 = vsel %vm643, %v2820, %v2822
      %v2840 = vsel %vm643, %v2822, %v2824
      %v2841 = vsel %vm643, %v2824, %v2826
      %v2842 = vsel %vm643, %v2826, %v2828
      %v2843 = vsel %vm643, %v2830, %v2832
      %v2844 = vsel %vm643, %v2832, %v2834
      %v2845 = vsel %vm643, %v2834, %v2836
      %v2846 = vsel %vm643, %v2836, %v2838
      %v2859 = vunpack.c.l.b16 %v2651
      %v2860 = vunpack.c.h.b16 %v2651
      %v2861 = vunpack.c.l.b16 %v2652
      %v2862 = vunpack.c.h.b16 %v2652
      %v2863 = vunpack.c.l.b16 %v2653
      %v2864 = vunpack.c.l.b16 %v2654
      %v2865 = vunpack.c.h.b16 %v2654
      %v2866 = vunpack.c.l.b16 %v2655
      %v2867 = vunpack.c.h.b16 %v2655
      %v2868 = vunpack.c.l.b16 %v2656
      %v2869 = vunpack.c.l.b16 %v2657
      %v2870 = vunpack.c.h.b16 %v2657
      %v2871 = vunpack.c.l.b16 %v2658
      %v2872 = vunpack.c.h.b16 %v2658
      %v2873 = vunpack.c.l.b16 %v2659
      %v2874 = vunpack.c.l.b16 %v2660
      %v2875 = vunpack.c.h.b16 %v2660
      %v2876 = vunpack.c.l.b16 %v2661
      %v2877 = vunpack.c.h.b16 %v2661
      %v2878 = vunpack.c.l.b16 %v2662
      %v2879 = vpack.c.b16 %v2864, %v2859
      %v2880 = vpack.c.b16 %v2865, %v2860
      %v2881 = vpack.c.b16 %v2866, %v2861
      %v2882 = vpack.c.b16 %v2867, %v2862
      %v2883 = vpack.c.b16 %v2868, %v2863
      %v2884 = vpack.c.b16 %v2874, %v2869
      %v2885 = vpack.c.b16 %v2875, %v2870
      %v2886 = vpack.c.b16 %v2876, %v2871
      %v2887 = vpack.c.b16 %v2877, %v2872
      %v2888 = vpack.c.b16 %v2878, %v2873
      %2889 = vrot.lane.b32.xlu0 %v2879, 126
      %v2890 = vpop.permute.xlu0 %2889
      %2891 = vrot.lane.b32.xlu0 %v2880, 126
      %v2892 = vpop.permute.xlu0 %2891
      %2893 = vrot.lane.b32.xlu0 %v2881, 126
      %v2894 = vpop.permute.xlu0 %2893
      %2895 = vrot.lane.b32.xlu0 %v2882, 126
      %v2896 = vpop.permute.xlu0 %2895
      %2897 = vrot.lane.b32.xlu0 %v2883, 126
      %v2898 = vpop.permute.xlu0 %2897
      %2899 = vrot.lane.b32.xlu0 %v2884, 126
      %v2900 = vpop.permute.xlu0 %2899
      %2901 = vrot.lane.b32.xlu0 %v2885, 126
      %v2902 = vpop.permute.xlu0 %2901
      %2903 = vrot.lane.b32.xlu0 %v2886, 126
      %v2904 = vpop.permute.xlu0 %2903
      %2905 = vrot.lane.b32.xlu0 %v2887, 126
      %v2906 = vpop.permute.xlu0 %2905
      %2907 = vrot.lane.b32.xlu0 %v2888, 126
      %v2908 = vpop.permute.xlu0 %2907
      %v2909 = vsel %vm1200, %v2890, %v2892
      %v2910 = vsel %vm1200, %v2892, %v2894
      %v2911 = vsel %vm1200, %v2894, %v2896
      %v2912 = vsel %vm1200, %v2896, %v2898
      %v2913 = vsel %vm1200, %v2900, %v2902
      %v2914 = vsel %vm1200, %v2902, %v2904
      %v2915 = vsel %vm1200, %v2904, %v2906
      %v2916 = vsel %vm1200, %v2906, %v2908
      %v2929 = vunpack.c.l.b16 %v2663
      %v2930 = vunpack.c.h.b16 %v2663
      %v2931 = vunpack.c.l.b16 %v2664
      %v2932 = vunpack.c.h.b16 %v2664
      %v2933 = vunpack.c.l.b16 %v2665
      %v2934 = vunpack.c.l.b16 %v2666
      %v2935 = vunpack.c.h.b16 %v2666
      %v2936 = vunpack.c.l.b16 %v2667
      %v2937 = vunpack.c.h.b16 %v2667
      %v2938 = vunpack.c.l.b16 %v2668
      %v2939 = vunpack.c.l.b16 %v2669
      %v2940 = vunpack.c.h.b16 %v2669
      %v2941 = vunpack.c.l.b16 %v2670
      %v2942 = vunpack.c.h.b16 %v2670
      %v2943 = vunpack.c.l.b16 %v2671
      %v2944 = vunpack.c.l.b16 %v2672
      %v2945 = vunpack.c.h.b16 %v2672
      %v2946 = vunpack.c.l.b16 %v2673
      %v2947 = vunpack.c.h.b16 %v2673
      %v2948 = vunpack.c.l.b16 %v2674
      %v2949 = vpack.c.b16 %v2934, %v2929
      %v2950 = vpack.c.b16 %v2935, %v2930
      %v2951 = vpack.c.b16 %v2936, %v2931
      %v2952 = vpack.c.b16 %v2937, %v2932
      %v2953 = vpack.c.b16 %v2938, %v2933
      %v2954 = vpack.c.b16 %v2944, %v2939
      %v2955 = vpack.c.b16 %v2945, %v2940
      %v2956 = vpack.c.b16 %v2946, %v2941
      %v2957 = vpack.c.b16 %v2947, %v2942
      %v2958 = vpack.c.b16 %v2948, %v2943
      %2959 = vrot.lane.b32.xlu0 %v2949, 112
      %v2960 = vpop.permute.xlu0 %2959
      %2961 = vrot.lane.b32.xlu0 %v2950, 112
      %v2962 = vpop.permute.xlu0 %2961
      %2963 = vrot.lane.b32.xlu0 %v2951, 112
      %v2964 = vpop.permute.xlu0 %2963
      %2965 = vrot.lane.b32.xlu0 %v2952, 112
      %v2966 = vpop.permute.xlu0 %2965
      %2967 = vrot.lane.b32.xlu0 %v2953, 112
      %v2968 = vpop.permute.xlu0 %2967
      %2969 = vrot.lane.b32.xlu0 %v2954, 112
      %v2970 = vpop.permute.xlu0 %2969
      %2971 = vrot.lane.b32.xlu0 %v2955, 112
      %v2972 = vpop.permute.xlu0 %2971
      %2973 = vrot.lane.b32.xlu0 %v2956, 112
      %v2974 = vpop.permute.xlu0 %2973
      %2975 = vrot.lane.b32.xlu0 %v2957, 112
      %v2976 = vpop.permute.xlu0 %2975
      %2977 = vrot.lane.b32.xlu0 %v2958, 112
      %v2978 = vpop.permute.xlu0 %2977
      %v2979 = vsel %vm467, %v2960, %v2962
      %v2980 = vsel %vm467, %v2962, %v2964
      %v2981 = vsel %vm467, %v2964, %v2966
      %v2982 = vsel %vm467, %v2966, %v2968
      %v2983 = vsel %vm467, %v2970, %v2972
      %v2984 = vsel %vm467, %v2972, %v2974
      %v2985 = vsel %vm467, %v2974, %v2976
      %v2986 = vsel %vm467, %v2976, %v2978
      %v2995 = vunpack.c.l.b16 %v2675
      %v2996 = vunpack.c.h.b16 %v2675
      %v2997 = vunpack.c.l.b16 %v2676
      %v2998 = vunpack.c.h.b16 %v2676
      %v2999 = vunpack.c.l.b16 %v2677
      %v3000 = vunpack.c.h.b16 %v2677
      %v3001 = vunpack.c.l.b16 %v2678
      %v3002 = vunpack.c.h.b16 %v2678
      %v3003 = vunpack.c.l.b16 %v2679
      %v3004 = vunpack.c.h.b16 %v2679
      %v3005 = vunpack.c.l.b16 %v2680
      %v3006 = vunpack.c.h.b16 %v2680
      %v3007 = vunpack.c.l.b16 %v2681
      %v3008 = vunpack.c.h.b16 %v2681
      %v3009 = vunpack.c.l.b16 %v2682
      %v3010 = vunpack.c.h.b16 %v2682
      %v3011 = vpack.c.b16 %v2999, %v2995
      %v3012 = vpack.c.b16 %v3000, %v2996
      %v3013 = vpack.c.b16 %v3001, %v2997
      %v3014 = vpack.c.b16 %v3002, %v2998
      %v3015 = vpack.c.b16 %v3007, %v3003
      %v3016 = vpack.c.b16 %v3008, %v3004
      %v3017 = vpack.c.b16 %v3009, %v3005
      %v3018 = vpack.c.b16 %v3010, %v3006
      %3019 = vrot.lane.b32.xlu0 %v3011, 111
      %v3020 = vpop.permute.xlu0 %3019
      %3021 = vrot.lane.b32.xlu0 %v3012, 111
      %v3022 = vpop.permute.xlu0 %3021
      %3023 = vrot.lane.b32.xlu0 %v3013, 111
      %v3024 = vpop.permute.xlu0 %3023
      %3025 = vrot.lane.b32.xlu0 %v3014, 111
      %v3026 = vpop.permute.xlu0 %3025
      %3027 = vrot.lane.b32.xlu0 %v3015, 111
      %v3028 = vpop.permute.xlu0 %3027
      %3029 = vrot.lane.b32.xlu0 %v3016, 111
      %v3030 = vpop.permute.xlu0 %3029
      %3031 = vrot.lane.b32.xlu0 %v3017, 111
      %v3032 = vpop.permute.xlu0 %3031
      %3033 = vrot.lane.b32.xlu0 %v3018, 111
      %v3034 = vpop.permute.xlu0 %3033
      %v3035 = vsel %vm378, %v3020, %v3022
      %v3036 = vsel %vm378, %v3022, %v3024
      %v3037 = vsel %vm378, %v3024, %v3026
      %v3038 = vsel %vm378, %v3028, %v3030
      %v3039 = vsel %vm378, %v3030, %v3032
      %v3040 = vsel %vm378, %v3032, %v3034
      %v3053 = vunpack.c.l.b16 %v2687
      %v3054 = vunpack.c.h.b16 %v2687
      %v3055 = vunpack.c.l.b16 %v2688
      %v3056 = vunpack.c.h.b16 %v2688
      %v3057 = vunpack.c.l.b16 %v2689
      %v3058 = vunpack.c.l.b16 %v2690
      %v3059 = vunpack.c.h.b16 %v2690
      %v3060 = vunpack.c.l.b16 %v2691
      %v3061 = vunpack.c.h.b16 %v2691
      %v3062 = vunpack.c.l.b16 %v2692
      %v3063 = vunpack.c.l.b16 %v2693
      %v3064 = vunpack.c.h.b16 %v2693
      %v3065 = vunpack.c.l.b16 %v2694
      %v3066 = vunpack.c.h.b16 %v2694
      %v3067 = vunpack.c.l.b16 %v2695
      %v3068 = vunpack.c.l.b16 %v2696
      %v3069 = vunpack.c.h.b16 %v2696
      %v3070 = vunpack.c.l.b16 %v2697
      %v3071 = vunpack.c.h.b16 %v2697
      %v3072 = vunpack.c.l.b16 %v2698
      %v3073 = vpack.c.b16 %v3058, %v3053
      %v3074 = vpack.c.b16 %v3059, %v3054
      %v3075 = vpack.c.b16 %v3060, %v3055
      %v3076 = vpack.c.b16 %v3061, %v3056
      %v3077 = vpack.c.b16 %v3062, %v3057
      %v3078 = vpack.c.b16 %v3068, %v3063
      %v3079 = vpack.c.b16 %v3069, %v3064
      %v3080 = vpack.c.b16 %v3070, %v3065
      %v3081 = vpack.c.b16 %v3071, %v3066
      %v3082 = vpack.c.b16 %v3072, %v3067
      %3083 = vrot.lane.b32.xlu0 %v3073, 110
      %v3084 = vpop.permute.xlu0 %3083
      %3085 = vrot.lane.b32.xlu0 %v3074, 110
      %v3086 = vpop.permute.xlu0 %3085
      %3087 = vrot.lane.b32.xlu0 %v3075, 110
      %v3088 = vpop.permute.xlu0 %3087
      %3089 = vrot.lane.b32.xlu0 %v3076, 110
      %v3090 = vpop.permute.xlu0 %3089
      %3091 = vrot.lane.b32.xlu0 %v3077, 110
      %v3092 = vpop.permute.xlu0 %3091
      %3093 = vrot.lane.b32.xlu0 %v3078, 110
      %v3094 = vpop.permute.xlu0 %3093
      %3095 = vrot.lane.b32.xlu0 %v3079, 110
      %v3096 = vpop.permute.xlu0 %3095
      %3097 = vrot.lane.b32.xlu0 %v3080, 110
      %v3098 = vpop.permute.xlu0 %3097
      %3099 = vrot.lane.b32.xlu0 %v3081, 110
      %v3100 = vpop.permute.xlu0 %3099
      %3101 = vrot.lane.b32.xlu0 %v3082, 110
      %v3102 = vpop.permute.xlu0 %3101
      %v3103 = vsel %vm1395, %v3084, %v3086
      %v3104 = vsel %vm1395, %v3086, %v3088
      %v3105 = vsel %vm1395, %v3088, %v3090
      %v3106 = vsel %vm1395, %v3090, %v3092
      %v3107 = vsel %vm1395, %v3094, %v3096
      %v3108 = vsel %vm1395, %v3096, %v3098
      %v3109 = vsel %vm1395, %v3098, %v3100
      %v3110 = vsel %vm1395, %v3100, %v3102
      %v3123 = vunpack.c.l.b16 %v2699
      %v3124 = vunpack.c.h.b16 %v2699
      %v3125 = vunpack.c.l.b16 %v2700
      %v3126 = vunpack.c.h.b16 %v2700
      %v3127 = vunpack.c.l.b16 %v2701
      %v3128 = vunpack.c.l.b16 %v2702
      %v3129 = vunpack.c.h.b16 %v2702
      %v3130 = vunpack.c.l.b16 %v2703
      %v3131 = vunpack.c.h.b16 %v2703
      %v3132 = vunpack.c.l.b16 %v2704
      %v3133 = vunpack.c.l.b16 %v2705
      %v3134 = vunpack.c.h.b16 %v2705
      %v3135 = vunpack.c.l.b16 %v2706
      %v3136 = vunpack.c.h.b16 %v2706
      %v3137 = vunpack.c.l.b16 %v2707
      %v3138 = vunpack.c.l.b16 %v2708
      %v3139 = vunpack.c.h.b16 %v2708
      %v3140 = vunpack.c.l.b16 %v2709
      %v3141 = vunpack.c.h.b16 %v2709
      %v3142 = vunpack.c.l.b16 %v2710
      %v3143 = vpack.c.b16 %v3128, %v3123
      %v3144 = vpack.c.b16 %v3129, %v3124
      %v3145 = vpack.c.b16 %v3130, %v3125
      %v3146 = vpack.c.b16 %v3131, %v3126
      %v3147 = vpack.c.b16 %v3132, %v3127
      %v3148 = vpack.c.b16 %v3138, %v3133
      %v3149 = vpack.c.b16 %v3139, %v3134
      %v3150 = vpack.c.b16 %v3140, %v3135
      %v3151 = vpack.c.b16 %v3141, %v3136
      %v3152 = vpack.c.b16 %v3142, %v3137
      %3153 = vrot.lane.b32.xlu0 %v3143, 96
      %v3154 = vpop.permute.xlu0 %3153
      %3155 = vrot.lane.b32.xlu0 %v3144, 96
      %v3156 = vpop.permute.xlu0 %3155
      %3157 = vrot.lane.b32.xlu0 %v3145, 96
      %v3158 = vpop.permute.xlu0 %3157
      %3159 = vrot.lane.b32.xlu0 %v3146, 96
      %v3160 = vpop.permute.xlu0 %3159
      %3161 = vrot.lane.b32.xlu0 %v3147, 96
      %v3162 = vpop.permute.xlu0 %3161
      %3163 = vrot.lane.b32.xlu0 %v3148, 96
      %v3164 = vpop.permute.xlu0 %3163
      %3165 = vrot.lane.b32.xlu0 %v3149, 96
      %v3166 = vpop.permute.xlu0 %3165
      %3167 = vrot.lane.b32.xlu0 %v3150, 96
      %v3168 = vpop.permute.xlu0 %3167
      %3169 = vrot.lane.b32.xlu0 %v3151, 96
      %v3170 = vpop.permute.xlu0 %3169
      %3171 = vrot.lane.b32.xlu0 %v3152, 96
      %v3172 = vpop.permute.xlu0 %3171
      %v3173 = vsel %vm1466, %v3154, %v3156
      %v3174 = vsel %vm1466, %v3156, %v3158
      %v3175 = vsel %vm1466, %v3158, %v3160
      %v3176 = vsel %vm1466, %v3160, %v3162
      %v3177 = vsel %vm1466, %v3164, %v3166
      %v3178 = vsel %vm1466, %v3166, %v3168
      %v3179 = vsel %vm1466, %v3168, %v3170
      %v3180 = vsel %vm1466, %v3170, %v3172
      %v3193 = vunpack.c.l.b16 %v2711
      %v3194 = vunpack.c.h.b16 %v2711
      %v3195 = vunpack.c.l.b16 %v2712
      %v3196 = vunpack.c.h.b16 %v2712
      %v3197 = vunpack.c.l.b16 %v2713
      %v3198 = vunpack.c.l.b16 %v2714
      %v3199 = vunpack.c.h.b16 %v2714
      %v3200 = vunpack.c.l.b16 %v2715
      %v3201 = vunpack.c.h.b16 %v2715
      %v3202 = vunpack.c.l.b16 %v2716
      %v3203 = vunpack.c.l.b16 %v2717
      %v3204 = vunpack.c.h.b16 %v2717
      %v3205 = vunpack.c.l.b16 %v2718
      %v3206 = vunpack.c.h.b16 %v2718
      %v3207 = vunpack.c.l.b16 %v2719
      %v3208 = vunpack.c.l.b16 %v2720
      %v3209 = vunpack.c.h.b16 %v2720
      %v3210 = vunpack.c.l.b16 %v2721
      %v3211 = vunpack.c.h.b16 %v2721
      %v3212 = vunpack.c.l.b16 %v2722
      %v3213 = vpack.c.b16 %v3198, %v3193
      %v3214 = vpack.c.b16 %v3199, %v3194
      %v3215 = vpack.c.b16 %v3200, %v3195
      %v3216 = vpack.c.b16 %v3201, %v3196
      %v3217 = vpack.c.b16 %v3202, %v3197
      %v3218 = vpack.c.b16 %v3208, %v3203
      %v3219 = vpack.c.b16 %v3209, %v3204
      %v3220 = vpack.c.b16 %v3210, %v3205
      %v3221 = vpack.c.b16 %v3211, %v3206
      %v3222 = vpack.c.b16 %v3212, %v3207
      %3223 = vrot.lane.b32.xlu0 %v3213, 95
      %v3224 = vpop.permute.xlu0 %3223
      %3225 = vrot.lane.b32.xlu0 %v3214, 95
      %v3226 = vpop.permute.xlu0 %3225
      %3227 = vrot.lane.b32.xlu0 %v3215, 95
      %v3228 = vpop.permute.xlu0 %3227
      %3229 = vrot.lane.b32.xlu0 %v3216, 95
      %v3230 = vpop.permute.xlu0 %3229
      %3231 = vrot.lane.b32.xlu0 %v3217, 95
      %v3232 = vpop.permute.xlu0 %3231
      %3233 = vrot.lane.b32.xlu0 %v3218, 95
      %v3234 = vpop.permute.xlu0 %3233
      %3235 = vrot.lane.b32.xlu0 %v3219, 95
      %v3236 = vpop.permute.xlu0 %3235
      %3237 = vrot.lane.b32.xlu0 %v3220, 95
      %v3238 = vpop.permute.xlu0 %3237
      %3239 = vrot.lane.b32.xlu0 %v3221, 95
      %v3240 = vpop.permute.xlu0 %3239
      %3241 = vrot.lane.b32.xlu0 %v3222, 95
      %v3242 = vpop.permute.xlu0 %3241
      %v3243 = vsel %vm1537, %v3224, %v3226
      %v3244 = vsel %vm1537, %v3226, %v3228
      %v3245 = vsel %vm1537, %v3228, %v3230
      %v3246 = vsel %vm1537, %v3230, %v3232
      %v3247 = vsel %vm1537, %v3234, %v3236
      %v3248 = vsel %vm1537, %v3236, %v3238
      %v3249 = vsel %vm1537, %v3238, %v3240
      %v3250 = vsel %vm1537, %v3240, %v3242
      %v3263 = vunpack.c.l.b16 %v2723
      %v3264 = vunpack.c.h.b16 %v2723
      %v3265 = vunpack.c.l.b16 %v2724
      %v3266 = vunpack.c.h.b16 %v2724
      %v3267 = vunpack.c.l.b16 %v2725
      %v3268 = vunpack.c.l.b16 %v2726
      %v3269 = vunpack.c.h.b16 %v2726
      %v3270 = vunpack.c.l.b16 %v2727
      %v3271 = vunpack.c.h.b16 %v2727
      %v3272 = vunpack.c.l.b16 %v2728
      %v3273 = vunpack.c.l.b16 %v2729
      %v3274 = vunpack.c.h.b16 %v2729
      %v3275 = vunpack.c.l.b16 %v2730
      %v3276 = vunpack.c.h.b16 %v2730
      %v3277 = vunpack.c.l.b16 %v2731
      %v3278 = vunpack.c.l.b16 %v2732
      %v3279 = vunpack.c.h.b16 %v2732
      %v3280 = vunpack.c.l.b16 %v2733
      %v3281 = vunpack.c.h.b16 %v2733
      %v3282 = vunpack.c.l.b16 %v2734
      %v3283 = vpack.c.b16 %v3268, %v3263
      %v3284 = vpack.c.b16 %v3269, %v3264
      %v3285 = vpack.c.b16 %v3270, %v3265
      %v3286 = vpack.c.b16 %v3271, %v3266
      %v3287 = vpack.c.b16 %v3272, %v3267
      %v3288 = vpack.c.b16 %v3278, %v3273
      %v3289 = vpack.c.b16 %v3279, %v3274
      %v3290 = vpack.c.b16 %v3280, %v3275
      %v3291 = vpack.c.b16 %v3281, %v3276
      %v3292 = vpack.c.b16 %v3282, %v3277
      %3293 = vrot.lane.b32.xlu0 %v3283, 94
      %v3294 = vpop.permute.xlu0 %3293
      %3295 = vrot.lane.b32.xlu0 %v3284, 94
      %v3296 = vpop.permute.xlu0 %3295
      %3297 = vrot.lane.b32.xlu0 %v3285, 94
      %v3298 = vpop.permute.xlu0 %3297
      %3299 = vrot.lane.b32.xlu0 %v3286, 94
      %v3300 = vpop.permute.xlu0 %3299
      %3301 = vrot.lane.b32.xlu0 %v3287, 94
      %v3302 = vpop.permute.xlu0 %3301
      %3303 = vrot.lane.b32.xlu0 %v3288, 94
      %v3304 = vpop.permute.xlu0 %3303
      %3305 = vrot.lane.b32.xlu0 %v3289, 94
      %v3306 = vpop.permute.xlu0 %3305
      %3307 = vrot.lane.b32.xlu0 %v3290, 94
      %v3308 = vpop.permute.xlu0 %3307
      %3309 = vrot.lane.b32.xlu0 %v3291, 94
      %v3310 = vpop.permute.xlu0 %3309
      %3311 = vrot.lane.b32.xlu0 %v3292, 94
      %v3312 = vpop.permute.xlu0 %3311
      %v3313 = vsel %vm1608, %v3294, %v3296
      %v3314 = vsel %vm1608, %v3296, %v3298
      %v3315 = vsel %vm1608, %v3298, %v3300
      %v3316 = vsel %vm1608, %v3300, %v3302
      %v3317 = vsel %vm1608, %v3304, %v3306
      %v3318 = vsel %vm1608, %v3306, %v3308
      %v3319 = vsel %vm1608, %v3308, %v3310
      %v3320 = vsel %vm1608, %v3310, %v3312
      %3321 = vrot.lane.b32.xlu0 %v2767, 17
      %v3322 = vpop.permute.xlu0 %3321
      %3323 = vrot.lane.b32.xlu0 %v2768, 17
      %v3324 = vpop.permute.xlu0 %3323
      %3325 = vrot.lane.b32.xlu0 %v2769, 17
      %v3326 = vpop.permute.xlu0 %3325
      %3327 = vrot.lane.b32.xlu0 %v2770, 17
      %v3328 = vpop.permute.xlu0 %3327
      %3329 = vrot.lane.b32.xlu0 %v2771, 17
      %v3330 = vpop.permute.xlu0 %3329
      %3331 = vrot.lane.b32.xlu0 %v2772, 17
      %v3332 = vpop.permute.xlu0 %3331
      %3333 = vrot.lane.b32.xlu0 %v2773, 17
      %v3334 = vpop.permute.xlu0 %3333
      %3335 = vrot.lane.b32.xlu0 %v2774, 17
      %v3336 = vpop.permute.xlu0 %3335
      %3337 = vrot.lane.b32.xlu0 %v2775, 17
      %v3338 = vpop.permute.xlu0 %3337
      %3339 = vrot.lane.b32.xlu0 %v2776, 17
      %v3340 = vpop.permute.xlu0 %3339
      %3341 = vrot.lane.b32.xlu0 %v2839, 17
      %v3342 = vpop.permute.xlu0 %3341
      %3343 = vrot.lane.b32.xlu0 %v2840, 17
      %v3344 = vpop.permute.xlu0 %3343
      %3345 = vrot.lane.b32.xlu0 %v2841, 17
      %v3346 = vpop.permute.xlu0 %3345
      %3347 = vrot.lane.b32.xlu0 %v2842, 17
      %v3348 = vpop.permute.xlu0 %3347
      %3349 = vrot.lane.b32.xlu0 %v2828, 17
      %v3350 = vpop.permute.xlu0 %3349
      %3351 = vrot.lane.b32.xlu0 %v2843, 17
      %v3352 = vpop.permute.xlu0 %3351
      %3353 = vrot.lane.b32.xlu0 %v2844, 17
      %v3354 = vpop.permute.xlu0 %3353
      %3355 = vrot.lane.b32.xlu0 %v2845, 17
      %v3356 = vpop.permute.xlu0 %3355
      %3357 = vrot.lane.b32.xlu0 %v2846, 17
      %v3358 = vpop.permute.xlu0 %3357
      %3359 = vrot.lane.b32.xlu0 %v2838, 17
      %v3360 = vpop.permute.xlu0 %3359
      %3361 = vrot.lane.b32.xlu0 %v2909, 17
      %v3362 = vpop.permute.xlu0 %3361
      %3363 = vrot.lane.b32.xlu0 %v2910, 17
      %v3364 = vpop.permute.xlu0 %3363
      %3365 = vrot.lane.b32.xlu0 %v2911, 17
      %v3366 = vpop.permute.xlu0 %3365
      %3367 = vrot.lane.b32.xlu0 %v2912, 17
      %v3368 = vpop.permute.xlu0 %3367
      %3369 = vrot.lane.b32.xlu0 %v2898, 17
      %v3370 = vpop.permute.xlu0 %3369
      %3371 = vrot.lane.b32.xlu0 %v2913, 17
      %v3372 = vpop.permute.xlu0 %3371
      %3373 = vrot.lane.b32.xlu0 %v2914, 17
      %v3374 = vpop.permute.xlu0 %3373
      %3375 = vrot.lane.b32.xlu0 %v2915, 17
      %v3376 = vpop.permute.xlu0 %3375
      %3377 = vrot.lane.b32.xlu0 %v2916, 17
      %v3378 = vpop.permute.xlu0 %3377
      %3379 = vrot.lane.b32.xlu0 %v2908, 17
      %v3380 = vpop.permute.xlu0 %3379
      %3381 = vrot.lane.b32.xlu0 %v2979, 17
      %v3382 = vpop.permute.xlu0 %3381
      %3383 = vrot.lane.b32.xlu0 %v2980, 17
      %v3384 = vpop.permute.xlu0 %3383
      %3385 = vrot.lane.b32.xlu0 %v2981, 17
      %v3386 = vpop.permute.xlu0 %3385
      %3387 = vrot.lane.b32.xlu0 %v2982, 17
      %v3388 = vpop.permute.xlu0 %3387
      %3389 = vrot.lane.b32.xlu0 %v2968, 17
      %v3390 = vpop.permute.xlu0 %3389
      %3391 = vrot.lane.b32.xlu0 %v2983, 17
      %v3392 = vpop.permute.xlu0 %3391
      %3393 = vrot.lane.b32.xlu0 %v2984, 17
      %v3394 = vpop.permute.xlu0 %3393
      %3395 = vrot.lane.b32.xlu0 %v2985, 17
      %v3396 = vpop.permute.xlu0 %3395
      %3397 = vrot.lane.b32.xlu0 %v2986, 17
      %v3398 = vpop.permute.xlu0 %3397
      %3399 = vrot.lane.b32.xlu0 %v2978, 17
      %v3400 = vpop.permute.xlu0 %3399
      %3401 = vrot.lane.b32.xlu0 %v3020, 17
      %v3402 = vpop.permute.xlu0 %3401
      %3403 = vrot.lane.b32.xlu0 %v3035, 17
      %v3404 = vpop.permute.xlu0 %3403
      %3405 = vrot.lane.b32.xlu0 %v3036, 17
      %v3406 = vpop.permute.xlu0 %3405
      %3407 = vrot.lane.b32.xlu0 %v3037, 17
      %v3408 = vpop.permute.xlu0 %3407
      %3409 = vrot.lane.b32.xlu0 %v3026, 17
      %v3410 = vpop.permute.xlu0 %3409
      %3411 = vrot.lane.b32.xlu0 %v3028, 17
      %v3412 = vpop.permute.xlu0 %3411
      %3413 = vrot.lane.b32.xlu0 %v3038, 17
      %v3414 = vpop.permute.xlu0 %3413
      %3415 = vrot.lane.b32.xlu0 %v3039, 17
      %v3416 = vpop.permute.xlu0 %3415
      %3417 = vrot.lane.b32.xlu0 %v3040, 17
      %v3418 = vpop.permute.xlu0 %3417
      %3419 = vrot.lane.b32.xlu0 %v3034, 17
      %v3420 = vpop.permute.xlu0 %3419
      %3421 = vrot.lane.b32.xlu0 %v3084, 17
      %v3422 = vpop.permute.xlu0 %3421
      %3423 = vrot.lane.b32.xlu0 %v3103, 17
      %v3424 = vpop.permute.xlu0 %3423
      %3425 = vrot.lane.b32.xlu0 %v3104, 17
      %v3426 = vpop.permute.xlu0 %3425
      %3427 = vrot.lane.b32.xlu0 %v3105, 17
      %v3428 = vpop.permute.xlu0 %3427
      %3429 = vrot.lane.b32.xlu0 %v3106, 17
      %v3430 = vpop.permute.xlu0 %3429
      %3431 = vrot.lane.b32.xlu0 %v3094, 17
      %v3432 = vpop.permute.xlu0 %3431
      %3433 = vrot.lane.b32.xlu0 %v3107, 17
      %v3434 = vpop.permute.xlu0 %3433
      %3435 = vrot.lane.b32.xlu0 %v3108, 17
      %v3436 = vpop.permute.xlu0 %3435
      %3437 = vrot.lane.b32.xlu0 %v3109, 17
      %v3438 = vpop.permute.xlu0 %3437
      %3439 = vrot.lane.b32.xlu0 %v3110, 17
      %v3440 = vpop.permute.xlu0 %3439
      %3441 = vrot.lane.b32.xlu0 %v3154, 17
      %v3442 = vpop.permute.xlu0 %3441
      %3443 = vrot.lane.b32.xlu0 %v3173, 17
      %v3444 = vpop.permute.xlu0 %3443
      %3445 = vrot.lane.b32.xlu0 %v3174, 17
      %v3446 = vpop.permute.xlu0 %3445
      %3447 = vrot.lane.b32.xlu0 %v3175, 17
      %v3448 = vpop.permute.xlu0 %3447
      %3449 = vrot.lane.b32.xlu0 %v3176, 17
      %v3450 = vpop.permute.xlu0 %3449
      %3451 = vrot.lane.b32.xlu0 %v3164, 17
      %v3452 = vpop.permute.xlu0 %3451
      %3453 = vrot.lane.b32.xlu0 %v3177, 17
      %v3454 = vpop.permute.xlu0 %3453
      %3455 = vrot.lane.b32.xlu0 %v3178, 17
      %v3456 = vpop.permute.xlu0 %3455
      %3457 = vrot.lane.b32.xlu0 %v3179, 17
      %v3458 = vpop.permute.xlu0 %3457
      %3459 = vrot.lane.b32.xlu0 %v3180, 17
      %v3460 = vpop.permute.xlu0 %3459
      %3461 = vrot.lane.b32.xlu0 %v3224, 17
      %v3462 = vpop.permute.xlu0 %3461
      %3463 = vrot.lane.b32.xlu0 %v3243, 17
      %v3464 = vpop.permute.xlu0 %3463
      %3465 = vrot.lane.b32.xlu0 %v3244, 17
      %v3466 = vpop.permute.xlu0 %3465
      %3467 = vrot.lane.b32.xlu0 %v3245, 17
      %v3468 = vpop.permute.xlu0 %3467
      %3469 = vrot.lane.b32.xlu0 %v3246, 17
      %v3470 = vpop.permute.xlu0 %3469
      %3471 = vrot.lane.b32.xlu0 %v3234, 17
      %v3472 = vpop.permute.xlu0 %3471
      %3473 = vrot.lane.b32.xlu0 %v3247, 17
      %v3474 = vpop.permute.xlu0 %3473
      %3475 = vrot.lane.b32.xlu0 %v3248, 17
      %v3476 = vpop.permute.xlu0 %3475
      %3477 = vrot.lane.b32.xlu0 %v3249, 17
      %v3478 = vpop.permute.xlu0 %3477
      %3479 = vrot.lane.b32.xlu0 %v3250, 17
      %v3480 = vpop.permute.xlu0 %3479
      %3481 = vrot.lane.b32.xlu0 %v3294, 17
      %v3482 = vpop.permute.xlu0 %3481
      %3483 = vrot.lane.b32.xlu0 %v3313, 17
      %v3484 = vpop.permute.xlu0 %3483
      %3485 = vrot.lane.b32.xlu0 %v3314, 17
      %v3486 = vpop.permute.xlu0 %3485
      %3487 = vrot.lane.b32.xlu0 %v3315, 17
      %v3488 = vpop.permute.xlu0 %3487
      %3489 = vrot.lane.b32.xlu0 %v3316, 17
      %v3490 = vpop.permute.xlu0 %3489
      %3491 = vrot.lane.b32.xlu0 %v3304, 17
      %v3492 = vpop.permute.xlu0 %3491
      %3493 = vrot.lane.b32.xlu0 %v3317, 17
      %v3494 = vpop.permute.xlu0 %3493
      %3495 = vrot.lane.b32.xlu0 %v3318, 17
      %v3496 = vpop.permute.xlu0 %3495
      %3497 = vrot.lane.b32.xlu0 %v3319, 17
      %v3498 = vpop.permute.xlu0 %3497
      %3499 = vrot.lane.b32.xlu0 %v3320, 17
      %v3500 = vpop.permute.xlu0 %3499
      %v3501 = vsel %vm1007, %v3322, %v3324
      %v3502 = vsel %vm1007, %v3324, %v3326
      %v3503 = vsel %vm1007, %v3326, %v3328
      %v3504 = vsel %vm1007, %v3328, %v3330
      %v3505 = vsel %vm1007, %v3332, %v3334
      %v3506 = vsel %vm1007, %v3334, %v3336
      %v3507 = vsel %vm1007, %v3336, %v3338
      %v3508 = vsel %vm1007, %v3338, %v3340
      %v3509 = vsel %vm1007, %v3342, %v3344
      %v3510 = vsel %vm1007, %v3344, %v3346
      %v3511 = vsel %vm1007, %v3346, %v3348
      %v3512 = vsel %vm1007, %v3348, %v3350
      %v3513 = vsel %vm1007, %v3352, %v3354
      %v3514 = vsel %vm1007, %v3354, %v3356
      %v3515 = vsel %vm1007, %v3356, %v3358
      %v3516 = vsel %vm1007, %v3358, %v3360
      %v3517 = vsel %vm1007, %v3362, %v3364
      %v3518 = vsel %vm1007, %v3364, %v3366
      %v3519 = vsel %vm1007, %v3366, %v3368
      %v3520 = vsel %vm1007, %v3368, %v3370
      %v3521 = vsel %vm1007, %v3372, %v3374
      %v3522 = vsel %vm1007, %v3374, %v3376
      %v3523 = vsel %vm1007, %v3376, %v3378
      %v3524 = vsel %vm1007, %v3378, %v3380
      %v3525 = vsel %vm1007, %v3382, %v3384
      %v3526 = vsel %vm1007, %v3384, %v3386
      %v3527 = vsel %vm1007, %v3386, %v3388
      %v3528 = vsel %vm1007, %v3388, %v3390
      %v3529 = vsel %vm1007, %v3392, %v3394
      %v3530 = vsel %vm1007, %v3394, %v3396
      %v3531 = vsel %vm1007, %v3396, %v3398
      %v3532 = vsel %vm1007, %v3398, %v3400
      %v3533 = vsel %vm1007, %v3402, %v3404
      %v3534 = vsel %vm1007, %v3404, %v3406
      %v3535 = vsel %vm1007, %v3406, %v3408
      %v3536 = vsel %vm1007, %v3408, %v3410
      %v3537 = vsel %vm1007, %v3412, %v3414
      %v3538 = vsel %vm1007, %v3414, %v3416
      %v3539 = vsel %vm1007, %v3416, %v3418
      %v3540 = vsel %vm1007, %v3418, %v3420
      %v3541 = vsel %vm1007, %v3422, %v3424
      %v3542 = vsel %vm1007, %v3424, %v3426
      %v3543 = vsel %vm1007, %v3426, %v3428
      %v3544 = vsel %vm1007, %v3428, %v3430
      %v3545 = vsel %vm1007, %v3432, %v3434
      %v3546 = vsel %vm1007, %v3434, %v3436
      %v3547 = vsel %vm1007, %v3436, %v3438
      %v3548 = vsel %vm1007, %v3438, %v3440
      %v3549 = vsel %vm1007, %v3442, %v3444
      %v3550 = vsel %vm1007, %v3444, %v3446
      %v3551 = vsel %vm1007, %v3446, %v3448
      %v3552 = vsel %vm1007, %v3448, %v3450
      %v3553 = vsel %vm1007, %v3452, %v3454
      %v3554 = vsel %vm1007, %v3454, %v3456
      %v3555 = vsel %vm1007, %v3456, %v3458
      %v3556 = vsel %vm1007, %v3458, %v3460
      %v3557 = vsel %vm1007, %v3462, %v3464
      %v3558 = vsel %vm1007, %v3464, %v3466
      %v3559 = vsel %vm1007, %v3466, %v3468
      %v3560 = vsel %vm1007, %v3468, %v3470
      %v3561 = vsel %vm1007, %v3472, %v3474
      %v3562 = vsel %vm1007, %v3474, %v3476
      %v3563 = vsel %vm1007, %v3476, %v3478
      %v3564 = vsel %vm1007, %v3478, %v3480
      %v3565 = vsel %vm1007, %v3482, %v3484
      %v3566 = vsel %vm1007, %v3484, %v3486
      %v3567 = vsel %vm1007, %v3486, %v3488
      %v3568 = vsel %vm1007, %v3488, %v3490
      %v3569 = vsel %vm1007, %v3492, %v3494
      %v3570 = vsel %vm1007, %v3494, %v3496
      %v3571 = vsel %vm1007, %v3496, %v3498
      %v3572 = vsel %vm1007, %v3498, %v3500
      %3645 = vmatprep.subr.bf16.mxu0 %v3502
      %3646 = vmatpush1.bf16.msra.mxu0 %v3501
      %3647 = vmatprep.subr.bf16.mxu0 %v3506
      %3648 = vmatpush1.bf16.msra.mxu0 %v3505
      %3649 = vmatprep.subr.bf16.mxu0 %v3510
      %3650 = vmatpush1.bf16.msra.mxu0 %v3509
      %3651 = vmatprep.subr.bf16.mxu0 %v3514
      %3652 = vmatpush1.bf16.msra.mxu0 %v3513
      %3653 = vmatprep.subr.bf16.mxu0 %v3518
      %3654 = vmatpush1.bf16.msra.mxu0 %v3517
      %3655 = vmatprep.subr.bf16.mxu0 %v3522
      %3656 = vmatpush1.bf16.msra.mxu0 %v3521
      %3657 = vmatprep.subr.bf16.mxu0 %v3526
      %3658 = vmatpush1.bf16.msra.mxu0 %v3525
      %3659 = vmatprep.subr.bf16.mxu0 %v3530
      %3660 = vmatpush1.bf16.msra.mxu0 %v3529
      %3661 = vmatprep.subr.bf16.mxu0 %v3534
      %3662 = vmatpush1.bf16.msra.mxu0 %v3533
      %3663 = vmatprep.subr.bf16.mxu0 %v3538
      %3664 = vmatpush1.bf16.msra.mxu0 %v3537
      %3665 = vmatprep.subr.bf16.mxu0 %v3542
      %3666 = vmatpush1.bf16.msra.mxu0 %v3541
      %3667 = vmatprep.subr.bf16.mxu0 %v3546
      %3668 = vmatpush1.bf16.msra.mxu0 %v3545
      %3669 = vmatprep.subr.bf16.mxu0 %v3550
      %3670 = vmatpush1.bf16.msra.mxu0 %v3549
      %3671 = vmatprep.subr.bf16.mxu0 %v3554
      %3672 = vmatpush1.bf16.msra.mxu0 %v3553
      %3673 = vmatprep.subr.bf16.mxu0 %v3558
      %3674 = vmatpush1.bf16.msra.mxu0 %v3557
      %3675 = vmatprep.subr.bf16.mxu0 %v3562
      %3676 = vmatpush1.bf16.msra.mxu0 %v3561
      %3677 = vmatprep.mubr.bf16.mxu0 %v1698
      %3678 = vmatmul.mubr.bf16.gmra.mrb[0].mxu0 %v1697
      %v3679 = vpop.f32.mrb[0].mxu0
      %v3680 = vadd.f32 %v1620, %v3679
      %v3681 = vpop.f32.mrb[0].mxu0
      %v3682 = vadd.f32 %v1620, %v3681
      %v3683 = vpop.f32.mrb[0].mxu0
      %v3684 = vadd.f32 %v1625, %v3683
      %v3685 = vpop.f32.mrb[0].mxu0
      %v3686 = vadd.f32 %v1625, %v3685
      %3687 = vmatprep.mubr.bf16.mxu0 %v1701
      %3688 = vmatmul.mubr.bf16.gmra.mrb[0].mxu0 %v1700
      %v3689 = vpop.f32.mrb[0].mxu0
      %v3690 = vadd.f32 %v1630, %v3689
      %v3691 = vpop.f32.mrb[0].mxu0
      %v3692 = vadd.f32 %v1630, %v3691
      %v3693 = vpop.f32.mrb[0].mxu0
      %v3694 = vadd.f32 %v1635, %v3693
      %v3695 = vpop.f32.mrb[0].mxu0
      %v3696 = vadd.f32 %v1635, %v3695
      %3697 = vmatprep.mubr.bf16.mxu0 %v1704
      %3698 = vmatmul.mubr.bf16.gmra.mrb[0].mxu0 %v1703
      %v3699 = vpop.f32.mrb[0].mxu0
      %v3700 = vadd.f32 %v1640, %v3699
      %v3701 = vpop.f32.mrb[0].mxu0
      %v3702 = vadd.f32 %v1640, %v3701
      %v3703 = vpop.f32.mrb[0].mxu0
      %v3704 = vadd.f32 %v1645, %v3703
      %v3705 = vpop.f32.mrb[0].mxu0
      %v3706 = vadd.f32 %v1645, %v3705
      %3707 = vmatprep.mubr.bf16.mxu0 %v1707
      %3708 = vmatmul.mubr.bf16.gmra.mrb[0].mxu0 %v1706
      %v3709 = vpop.f32.mrb[0].mxu0
      %v3710 = vadd.f32 %v1650, %v3709
      %v3711 = vpop.f32.mrb[0].mxu0
      %v3712 = vadd.f32 %v1650, %v3711
      %v3713 = vpop.f32.mrb[0].mxu0
      %v3714 = vadd.f32 %v1655, %v3713
      %v3715 = vpop.f32.mrb[0].mxu0
      %v3716 = vadd.f32 %v1655, %v3715
      %3717 = vdwg.mxu0
      %3718 = vmatprep.subr.bf16.mxu0 %v3566
      %3719 = vmatpush1.bf16.msra.mxu0 %v3565
      %3720 = vmatprep.subr.bf16.mxu0 %v3570
      %3721 = vmatpush1.bf16.msra.mxu0 %v3569
      %3722 = vmatprep.subr.bf16.mxu0 0
      %3723 = vmatpush1.bf16.msra.mxu0 0
      %3724 = vmatprep.subr.bf16.mxu0 0
      %3725 = vmatpush1.bf16.msra.mxu0 0
      %3726 = vmatprep.subr.bf16.mxu0 0
      %3727 = vmatpush1.bf16.msra.mxu0 0
      %3728 = vmatprep.subr.bf16.mxu0 0
      %3729 = vmatpush1.bf16.msra.mxu0 0
      %3730 = vmatprep.subr.bf16.mxu0 0
      %3731 = vmatpush1.bf16.msra.mxu0 0
      %3732 = vmatprep.subr.bf16.mxu0 0
      %3733 = vmatpush1.bf16.msra.mxu0 0
      %3734 = vmatprep.subr.bf16.mxu0 0
      %3735 = vmatpush1.bf16.msra.mxu0 0
      %3736 = vmatprep.subr.bf16.mxu0 0
      %3737 = vmatpush1.bf16.msra.mxu0 0
      %3738 = vmatprep.subr.bf16.mxu0 0
      %3739 = vmatpush1.bf16.msra.mxu0 0
      %3740 = vmatprep.subr.bf16.mxu0 0
      %3741 = vmatpush1.bf16.msra.mxu0 0
      %3742 = vmatprep.subr.bf16.mxu0 0
      %3743 = vmatpush1.bf16.msra.mxu0 0
      %3744 = vmatprep.subr.bf16.mxu0 0
      %3745 = vmatpush1.bf16.msra.mxu0 0
      %3746 = vmatprep.subr.bf16.mxu0 0
      %3747 = vmatpush1.bf16.msra.mxu0 0
      %3748 = vmatprep.subr.bf16.mxu0 0
      %3749 = vmatpush1.bf16.msra.mxu0 0
      %3750 = vmatprep.mubr.bf16.mxu0 0
      %3751 = vmatmul.mubr.bf16.gmra.mrb[0].mxu0 %v2043
      %v3752 = vpop.f32.mrb[0].mxu0
      %v3753 = vadd.f32 %v3680, %v3752
      %v3754 = vpop.f32.mrb[0].mxu0
      %v3755 = vadd.f32 %v3682, %v3754
      %v3756 = vpop.f32.mrb[0].mxu0
      %v3757 = vadd.f32 %v3684, %v3756
      %v3758 = vpop.f32.mrb[0].mxu0
      %v3759 = vadd.f32 %v3686, %v3758
      %3760 = vmatprep.mubr.bf16.mxu0 0
      %3761 = vmatmul.mubr.bf16.gmra.mrb[0].mxu0 %v2046
      %v3762 = vpop.f32.mrb[0].mxu0
      %v3763 = vadd.f32 %v3690, %v3762
      %v3764 = vpop.f32.mrb[0].mxu0
      %v3765 = vadd.f32 %v3692, %v3764
      %v3766 = vpop.f32.mrb[0].mxu0
      %v3767 = vadd.f32 %v3694, %v3766
      %v3768 = vpop.f32.mrb[0].mxu0
      %v3769 = vadd.f32 %v3696, %v3768
      %3770 = vmatprep.mubr.bf16.mxu0 0
      %3771 = vmatmul.mubr.bf16.gmra.mrb[0].mxu0 %v2049
      %v3772 = vpop.f32.mrb[0].mxu0
      %v3773 = vadd.f32 %v3700, %v3772
      %v3774 = vpop.f32.mrb[0].mxu0
      %v3775 = vadd.f32 %v3702, %v3774
      %v3776 = vpop.f32.mrb[0].mxu0
      %v3777 = vadd.f32 %v3704, %v3776
      %v3778 = vpop.f32.mrb[0].mxu0
      %v3779 = vadd.f32 %v3706, %v3778
      %3780 = vmatprep.mubr.bf16.mxu0 0
      %3781 = vmatmul.mubr.bf16.gmra.mrb[0].mxu0 %v2052
      %v3782 = vpop.f32.mrb[0].mxu0
      %v3783 = vadd.f32 %v3710, %v3782
      %v3784 = vpop.f32.mrb[0].mxu0
      %v3785 = vadd.f32 %v3712, %v3784
      %v3786 = vpop.f32.mrb[0].mxu0
      %v3787 = vadd.f32 %v3714, %v3786
      %v3788 = vpop.f32.mrb[0].mxu0
      %v3789 = vadd.f32 %v3716, %v3788
      %3790 = vdwg.mxu0
      %3791 = vmatprep.subr.bf16.mxu0 %v3504
      %3792 = vmatpush1.bf16.msra.mxu0 %v3503
      %3793 = vmatprep.subr.bf16.mxu0 %v3508
      %3794 = vmatpush1.bf16.msra.mxu0 %v3507
      %3795 = vmatprep.subr.bf16.mxu0 %v3512
      %3796 = vmatpush1.bf16.msra.mxu0 %v3511
      %3797 = vmatprep.subr.bf16.mxu0 %v3516
      %3798 = vmatpush1.bf16.msra.mxu0 %v3515
      %3799 = vmatprep.subr.bf16.mxu0 %v3520
      %3800 = vmatpush1.bf16.msra.mxu0 %v3519
      %3801 = vmatprep.subr.bf16.mxu0 %v3524
      %3802 = vmatpush1.bf16.msra.mxu0 %v3523
      %3803 = vmatprep.subr.bf16.mxu0 %v3528
      %3804 = vmatpush1.bf16.msra.mxu0 %v3527
      %3805 = vmatprep.subr.bf16.mxu0 %v3532
      %3806 = vmatpush1.bf16.msra.mxu0 %v3531
      %3807 = vmatprep.subr.bf16.mxu0 %v3536
      %3808 = vmatpush1.bf16.msra.mxu0 %v3535
      %3809 = vmatprep.subr.bf16.mxu0 %v3540
      %3810 = vmatpush1.bf16.msra.mxu0 %v3539
      %3811 = vmatprep.subr.bf16.mxu0 %v3544
      %3812 = vmatpush1.bf16.msra.mxu0 %v3543
      %3813 = vmatprep.subr.bf16.mxu0 %v3548
      %3814 = vmatpush1.bf16.msra.mxu0 %v3547
      %3815 = vmatprep.subr.bf16.mxu0 %v3552
      %3816 = vmatpush1.bf16.msra.mxu0 %v3551
      %3817 = vmatprep.subr.bf16.mxu0 %v3556
      %3818 = vmatpush1.bf16.msra.mxu0 %v3555
      %3819 = vmatprep.subr.bf16.mxu0 %v3560
      %3820 = vmatpush1.bf16.msra.mxu0 %v3559
      %3821 = vmatprep.subr.bf16.mxu0 %v3564
      %3822 = vmatpush1.bf16.msra.mxu0 %v3563
      %3823 = vmatprep.mubr.bf16.mxu0 %v1698
      %3824 = vmatmul.mubr.bf16.gmra.mrb[0].mxu0 %v1697
      %v3825 = vpop.f32.mrb[0].mxu0
      %v3826 = vadd.f32 %v1620, %v3825
      %v3827 = vpop.f32.mrb[0].mxu0
      %v3828 = vadd.f32 %v1620, %v3827
      %v3829 = vpop.f32.mrb[0].mxu0
      %v3830 = vadd.f32 %v1625, %v3829
      %v3831 = vpop.f32.mrb[0].mxu0
      %v3832 = vadd.f32 %v1625, %v3831
      %3833 = vmatprep.mubr.bf16.mxu0 %v1701
      %3834 = vmatmul.mubr.bf16.gmra.mrb[0].mxu0 %v1700
      %v3835 = vpop.f32.mrb[0].mxu0
      %v3836 = vadd.f32 %v1630, %v3835
      %v3837 = vpop.f32.mrb[0].mxu0
      %v3838 = vadd.f32 %v1630, %v3837
      %v3839 = vpop.f32.mrb[0].mxu0
      %v3840 = vadd.f32 %v1635, %v3839
      %v3841 = vpop.f32.mrb[0].mxu0
      %v3842 = vadd.f32 %v1635, %v3841
      %3843 = vmatprep.mubr.bf16.mxu0 %v1704
      %3844 = vmatmul.mubr.bf16.gmra.mrb[0].mxu0 %v1703
      %v3845 = vpop.f32.mrb[0].mxu0
      %v3846 = vadd.f32 %v1640, %v3845
      %v3847 = vpop.f32.mrb[0].mxu0
      %v3848 = vadd.f32 %v1640, %v3847
      %v3849 = vpop.f32.mrb[0].mxu0
      %v3850 = vadd.f32 %v1645, %v3849
      %v3851 = vpop.f32.mrb[0].mxu0
      %v3852 = vadd.f32 %v1645, %v3851
      %3853 = vmatprep.mubr.bf16.mxu0 %v1707
      %3854 = vmatmul.mubr.bf16.gmra.mrb[0].mxu0 %v1706
      %v3855 = vpop.f32.mrb[0].mxu0
      %v3856 = vadd.f32 %v1650, %v3855
      %v3857 = vpop.f32.mrb[0].mxu0
      %v3858 = vadd.f32 %v1650, %v3857
      %v3859 = vpop.f32.mrb[0].mxu0
      %v3860 = vadd.f32 %v1655, %v3859
      %v3861 = vpop.f32.mrb[0].mxu0
      %v3862 = vadd.f32 %v1655, %v3861
      %3863 = vdwg.mxu0
      %3864 = vmatprep.subr.bf16.mxu0 %v3568
      %3865 = vmatpush1.bf16.msra.mxu0 %v3567
      %3866 = vmatprep.subr.bf16.mxu0 %v3572
      %3867 = vmatpush1.bf16.msra.mxu0 %v3571
      %3868 = vmatprep.subr.bf16.mxu0 0
      %3869 = vmatpush1.bf16.msra.mxu0 0
      %3870 = vmatprep.subr.bf16.mxu0 0
      %3871 = vmatpush1.bf16.msra.mxu0 0
      %3872 = vmatprep.subr.bf16.mxu0 0
      %3873 = vmatpush1.bf16.msra.mxu0 0
      %3874 = vmatprep.subr.bf16.mxu0 0
      %3875 = vmatpush1.bf16.msra.mxu0 0
      %3876 = vmatprep.subr.bf16.mxu0 0
      %3877 = vmatpush1.bf16.msra.mxu0 0
      %3878 = vmatprep.subr.bf16.mxu0 0
      %3879 = vmatpush1.bf16.msra.mxu0 0
      %3880 = vmatprep.subr.bf16.mxu0 0
      %3881 = vmatpush1.bf16.msra.mxu0 0
      %3882 = vmatprep.subr.bf16.mxu0 0
      %3883 = vmatpush1.bf16.msra.mxu0 0
      %3884 = vmatprep.subr.bf16.mxu0 0
      %3885 = vmatpush1.bf16.msra.mxu0 0
      %3886 = vmatprep.subr.bf16.mxu0 0
      %3887 = vmatpush1.bf16.msra.mxu0 0
      %3888 = vmatprep.subr.bf16.mxu0 0
      %3889 = vmatpush1.bf16.msra.mxu0 0
      %3890 = vmatprep.subr.bf16.mxu0 0
      %3891 = vmatpush1.bf16.msra.mxu0 0
      %3892 = vmatprep.subr.bf16.mxu0 0
      %3893 = vmatpush1.bf16.msra.mxu0 0
      %3894 = vmatprep.subr.bf16.mxu0 0
      %3895 = vmatpush1.bf16.msra.mxu0 0
      %3896 = vmatprep.mubr.bf16.mxu0 0
      %3897 = vmatmul.mubr.bf16.gmra.mrb[0].mxu0 %v2043
      %v3898 = vpop.f32.mrb[0].mxu0
      %v3899 = vadd.f32 %v3826, %v3898
      %v3900 = vpop.f32.mrb[0].mxu0
      %v3901 = vadd.f32 %v3828, %v3900
      %v3902 = vpop.f32.mrb[0].mxu0
      %v3903 = vadd.f32 %v3830, %v3902
      %v3904 = vpop.f32.mrb[0].mxu0
      %v3905 = vadd.f32 %v3832, %v3904
      %3906 = vmatprep.mubr.bf16.mxu0 0
      %3907 = vmatmul.mubr.bf16.gmra.mrb[0].mxu0 %v2046
      %v3908 = vpop.f32.mrb[0].mxu0
      %v3909 = vadd.f32 %v3836, %v3908
      %v3910 = vpop.f32.mrb[0].mxu0
      %v3911 = vadd.f32 %v3838, %v3910
      %v3912 = vpop.f32.mrb[0].mxu0
      %v3913 = vadd.f32 %v3840, %v3912
      %v3914 = vpop.f32.mrb[0].mxu0
      %v3915 = vadd.f32 %v3842, %v3914
      %3916 = vmatprep.mubr.bf16.mxu0 0
      %3917 = vmatmul.mubr.bf16.gmra.mrb[0].mxu0 %v2049
      %v3918 = vpop.f32.mrb[0].mxu0
      %v3919 = vadd.f32 %v3846, %v3918
      %v3920 = vpop.f32.mrb[0].mxu0
      %v3921 = vadd.f32 %v3848, %v3920
      %v3922 = vpop.f32.mrb[0].mxu0
      %v3923 = vadd.f32 %v3850, %v3922
      %v3924 = vpop.f32.mrb[0].mxu0
      %v3925 = vadd.f32 %v3852, %v3924
      %3926 = vmatprep.mubr.bf16.mxu0 0
      %3927 = vmatmul.mubr.bf16.gmra.mrb[0].mxu0 %v2052
      %v3928 = vpop.f32.mrb[0].mxu0
      %v3929 = vadd.f32 %v3856, %v3928
      %v3930 = vpop.f32.mrb[0].mxu0
      %v3931 = vadd.f32 %v3858, %v3930
      %v3932 = vpop.f32.mrb[0].mxu0
      %v3933 = vadd.f32 %v3860, %v3932
      %v3934 = vpop.f32.mrb[0].mxu0
      %v3935 = vadd.f32 %v3862, %v3934
      %3936 = vdwg.mxu0
      %v3937 = vadd.f32 %v3753, %v3755
      %v3938 = vadd.f32 %v3937, %v3899
      %v3939 = vadd.f32 %v3938, %v3901
      %3940 = vadd.xlane.f32.xlu0 %v3939
      %v3941 = vpop.xlane.xlu0 %3940
      %v3942 = vadd.f32 %v3757, %v3759
      %v3943 = vadd.f32 %v3942, %v3903
      %v3944 = vadd.f32 %v3943, %v3905
      %3945 = vadd.xlane.f32.xlu0 %v3944
      %v3946 = vpop.xlane.xlu0 %3945
      %v3947 = vadd.f32 %v3763, %v3765
      %v3948 = vadd.f32 %v3947, %v3909
      %v3949 = vadd.f32 %v3948, %v3911
      %3950 = vadd.xlane.f32.xlu0 %v3949
      %v3951 = vpop.xlane.xlu0 %3950
      %v3952 = vadd.f32 %v3767, %v3769
      %v3953 = vadd.f32 %v3952, %v3913
      %v3954 = vadd.f32 %v3953, %v3915
      %3955 = vadd.xlane.f32.xlu0 %v3954
      %v3956 = vpop.xlane.xlu0 %3955
      %v3957 = vadd.f32 %v3773, %v3775
      %v3958 = vadd.f32 %v3957, %v3919
      %v3959 = vadd.f32 %v3958, %v3921
      %3960 = vadd.xlane.f32.xlu0 %v3959
      %v3961 = vpop.xlane.xlu0 %3960
      %v3962 = vadd.f32 %v3777, %v3779
      %v3963 = vadd.f32 %v3962, %v3923
      %v3964 = vadd.f32 %v3963, %v3925
      %3965 = vadd.xlane.f32.xlu0 %v3964
      %v3966 = vpop.xlane.xlu0 %3965
      %v3967 = vadd.f32 %v3783, %v3785
      %v3968 = vadd.f32 %v3967, %v3929
      %v3969 = vadd.f32 %v3968, %v3931
      %3970 = vadd.xlane.f32.xlu0 %v3969
      %v3971 = vpop.xlane.xlu0 %3970
      %v3972 = vadd.f32 %v3787, %v3789
      %v3973 = vadd.f32 %v3972, %v3933
      %v3974 = vadd.f32 %v3973, %v3935
      %3975 = vadd.xlane.f32.xlu0 %v3974
      %v3976 = vpop.xlane.xlu0 %3975
      %v3977 = vmul.f32 %v3753, %v3753
      %v3978 = vmul.f32 %v3755, %v3755
      %v3979 = vmul.f32 %v3899, %v3899
      %v3980 = vmul.f32 %v3901, %v3901
      %v3981 = vmul.f32 %v3757, %v3757
      %v3982 = vmul.f32 %v3759, %v3759
      %v3983 = vmul.f32 %v3903, %v3903
      %v3984 = vmul.f32 %v3905, %v3905
      %v3985 = vmul.f32 %v3763, %v3763
      %v3986 = vmul.f32 %v3765, %v3765
      %v3987 = vmul.f32 %v3909, %v3909
      %v3988 = vmul.f32 %v3911, %v3911
      %v3989 = vmul.f32 %v3767, %v3767
      %v3990 = vmul.f32 %v3769, %v3769
      %v3991 = vmul.f32 %v3913, %v3913
      %v3992 = vmul.f32 %v3915, %v3915
      %v3993 = vmul.f32 %v3773, %v3773
      %v3994 = vmul.f32 %v3775, %v3775
      %v3995 = vmul.f32 %v3919, %v3919
      %v3996 = vmul.f32 %v3921, %v3921
      %v3997 = vmul.f32 %v3777, %v3777
      %v3998 = vmul.f32 %v3779, %v3779
      %v3999 = vmul.f32 %v3923, %v3923
      %v4000 = vmul.f32 %v3925, %v3925
      %v4001 = vmul.f32 %v3783, %v3783
      %v4002 = vmul.f32 %v3785, %v3785
      %v4003 = vmul.f32 %v3929, %v3929
      %v4004 = vmul.f32 %v3931, %v3931
      %v4005 = vmul.f32 %v3787, %v3787
      %v4006 = vmul.f32 %v3789, %v3789
      %v4007 = vmul.f32 %v3933, %v3933
      %v4008 = vmul.f32 %v3935, %v3935
      %v4009 = vadd.f32 %v3977, %v3978
      %v4010 = vadd.f32 %v4009, %v3979
      %v4011 = vadd.f32 %v4010, %v3980
      %4012 = vadd.xlane.f32.xlu0 %v4011
      %v4013 = vpop.xlane.xlu0 %4012
      %v4014 = vadd.f32 %v3981, %v3982
      %v4015 = vadd.f32 %v4014, %v3983
      %v4016 = vadd.f32 %v4015, %v3984
      %4017 = vadd.xlane.f32.xlu0 %v4016
      %v4018 = vpop.xlane.xlu0 %4017
      %v4019 = vadd.f32 %v3985, %v3986
      %v4020 = vadd.f32 %v4019, %v3987
      %v4021 = vadd.f32 %v4020, %v3988
      %4022 = vadd.xlane.f32.xlu0 %v4021
      %v4023 = vpop.xlane.xlu0 %4022
      %v4024 = vadd.f32 %v3989, %v3990
      %v4025 = vadd.f32 %v4024, %v3991
      %v4026 = vadd.f32 %v4025, %v3992
      %4027 = vadd.xlane.f32.xlu0 %v4026
      %v4028 = vpop.xlane.xlu0 %4027
      %v4029 = vadd.f32 %v3993, %v3994
      %v4030 = vadd.f32 %v4029, %v3995
      %v4031 = vadd.f32 %v4030, %v3996
      %4032 = vadd.xlane.f32.xlu0 %v4031
      %v4033 = vpop.xlane.xlu0 %4032
      %v4034 = vadd.f32 %v3997, %v3998
      %v4035 = vadd.f32 %v4034, %v3999
      %v4036 = vadd.f32 %v4035, %v4000
      %4037 = vadd.xlane.f32.xlu0 %v4036
      %v4038 = vpop.xlane.xlu0 %4037
      %v4039 = vadd.f32 %v4001, %v4002
      %v4040 = vadd.f32 %v4039, %v4003
      %v4041 = vadd.f32 %v4040, %v4004
      %4042 = vadd.xlane.f32.xlu0 %v4041
      %v4043 = vpop.xlane.xlu0 %4042
      %v4044 = vadd.f32 %v4005, %v4006
      %v4045 = vadd.f32 %v4044, %v4007
      %v4046 = vadd.f32 %v4045, %v4008
      %4047 = vadd.xlane.f32.xlu0 %v4046
      %v4048 = vpop.xlane.xlu0 %4047
      %v4049 = vadd.f32 %v3941, %v3951
      %v4050 = vadd.f32 %v3946, %v3956
      %v4051 = vadd.f32 %v4049, %v3961
      %v4052 = vadd.f32 %v4050, %v3966
      %v4053 = vadd.f32 %v4051, %v3971
      %v4054 = vadd.f32 %v4052, %v3976
      %v4055 = vadd.f32 %v4013, %v4023
      %v4056 = vadd.f32 %v4018, %v4028
      %v4057 = vadd.f32 %v4055, %v4033
      %v4058 = vadd.f32 %v4056, %v4038
      %v4059 = vadd.f32 %v4057, %v4043
      %v4060 = vadd.f32 %v4058, %v4048
      %v4061 = vmul.f32 %v4053, 0.00048828125
      %v4062 = vmul.f32 %v4054, 0.00048828125
      %v4063 = vmul.f32 %v4059, 0.00048828125
      %v4064 = vmul.f32 %v4060, 0.00048828125
      %v4065 = vmul.f32 %v4061, %v4061
      %v4066 = vmul.f32 %v4062, %v4062
      %v4067 = vsub.f32 %v4063, %v4065
      %v4068 = vsub.f32 %v4064, %v4066
      %v4069 = vmax.f32 %v4067, 0.0
      %v4070 = vmax.f32 %v4068, 0.0
      %v4071 = vadd.f32 %v4069, 1e-05
      %v4072 = vadd.f32 %v4070, 1e-05
      %v4073 = vrsqrt.pop %v4071
      %v4074 = vrsqrt.pop %v4072
      %v4075 = vmul.f32 %v293, %v4073
      %v4076 = vmul.f32 %v294, %v4074
      %v4077 = vmul.f32 %v4061, %v4075
      %v4078 = vmul.f32 %v4062, %v4076
      %v4079 = vsub.f32 %v295, %v4077
      %v4080 = vsub.f32 %v296, %v4078
      %4082 = vset.pattern.permute.xlu0 0
      %4083 = vperm.xlu0 %4082, %v4075
      %v4084 = vpop.permute.xlu0 %4083
      %4087 = vset.pattern.permute.xlu0 0
      %4088 = vperm.xlu0 %4087, %v4076
      %v4089 = vpop.permute.xlu0 %4088
      %v4091 = vmul.f32 %v3753, %v4084
      %v4092 = vmul.f32 %v3755, %v4084
      %v4093 = vmul.f32 %v3899, %v4084
      %v4094 = vmul.f32 %v3901, %v4084
      %v4095 = vmul.f32 %v3757, %v4089
      %v4096 = vmul.f32 %v3759, %v4089
      %v4097 = vmul.f32 %v3903, %v4089
      %v4098 = vmul.f32 %v3905, %v4089
      %4100 = vset.pattern.permute.xlu0 0
      %4101 = vperm.xlu0 %4100, %v4079
      %v4102 = vpop.permute.xlu0 %4101
      %4105 = vset.pattern.permute.xlu0 0
      %4106 = vperm.xlu0 %4105, %v4080
      %v4107 = vpop.permute.xlu0 %4106
      %v4109 = vadd.f32 %v4091, %v4102
      %v4110 = vadd.f32 %v4092, %v4102
      %v4111 = vadd.f32 %v4093, %v4102
      %v4112 = vadd.f32 %v4094, %v4102
      %v4113 = vadd.f32 %v4095, %v4107
      %v4114 = vadd.f32 %v4096, %v4107
      %v4115 = vadd.f32 %v4097, %v4107
      %v4116 = vadd.f32 %v4098, %v4107
      %v4117 = vmul.f32 %v3763, %v4084
      %v4118 = vmul.f32 %v3765, %v4084
      %v4119 = vmul.f32 %v3909, %v4084
      %v4120 = vmul.f32 %v3911, %v4084
      %v4121 = vmul.f32 %v3767, %v4089
      %v4122 = vmul.f32 %v3769, %v4089
      %v4123 = vmul.f32 %v3913, %v4089
      %v4124 = vmul.f32 %v3915, %v4089
      %v4125 = vadd.f32 %v4117, %v4102
      %v4126 = vadd.f32 %v4118, %v4102
      %v4127 = vadd.f32 %v4119, %v4102
      %v4128 = vadd.f32 %v4120, %v4102
      %v4129 = vadd.f32 %v4121, %v4107
      %v4130 = vadd.f32 %v4122, %v4107
      %v4131 = vadd.f32 %v4123, %v4107
      %v4132 = vadd.f32 %v4124, %v4107
      %v4133 = vmax.f32 %v4109, %v4125
      %v4134 = vmax.f32 %v4110, %v4126
      %v4135 = vmax.f32 %v4111, %v4127
      %v4136 = vmax.f32 %v4112, %v4128
      %v4137 = vmax.f32 %v4113, %v4129
      %v4138 = vmax.f32 %v4114, %v4130
      %v4139 = vmax.f32 %v4115, %v4131
      %v4140 = vmax.f32 %v4116, %v4132
      %v4141 = vmul.f32 %v3773, %v4084
      %v4142 = vmul.f32 %v3775, %v4084
      %v4143 = vmul.f32 %v3919, %v4084
      %v4144 = vmul.f32 %v3921, %v4084
      %v4145 = vmul.f32 %v3777, %v4089
      %v4146 = vmul.f32 %v3779, %v4089
      %v4147 = vmul.f32 %v3923, %v4089
      %v4148 = vmul.f32 %v3925, %v4089
      %v4149 = vadd.f32 %v4141, %v4102
      %v4150 = vadd.f32 %v4142, %v4102
      %v4151 = vadd.f32 %v4143, %v4102
      %v4152 = vadd.f32 %v4144, %v4102
      %v4153 = vadd.f32 %v4145, %v4107
      %v4154 = vadd.f32 %v4146, %v4107
      %v4155 = vadd.f32 %v4147, %v4107
      %v4156 = vadd.f32 %v4148, %v4107
      %v4157 = vmul.f32 %v3783, %v4084
      %v4158 = vmul.f32 %v3785, %v4084
      %v4159 = vmul.f32 %v3929, %v4084
      %v4160 = vmul.f32 %v3931, %v4084
      %v4161 = vmul.f32 %v3787, %v4089
      %v4162 = vmul.f32 %v3789, %v4089
      %v4163 = vmul.f32 %v3933, %v4089
      %v4164 = vmul.f32 %v3935, %v4089
      %v4165 = vadd.f32 %v4157, %v4102
      %v4166 = vadd.f32 %v4158, %v4102
      %v4167 = vadd.f32 %v4159, %v4102
      %v4168 = vadd.f32 %v4160, %v4102
      %v4169 = vadd.f32 %v4161, %v4107
      %v4170 = vadd.f32 %v4162, %v4107
      %v4171 = vadd.f32 %v4163, %v4107
      %v4172 = vadd.f32 %v4164, %v4107
      %v4173 = vmax.f32 %v4149, %v4165
      %v4174 = vmax.f32 %v4150, %v4166
      %v4175 = vmax.f32 %v4151, %v4167
      %v4176 = vmax.f32 %v4152, %v4168
      %v4177 = vmax.f32 %v4153, %v4169
      %v4178 = vmax.f32 %v4154, %v4170
      %v4179 = vmax.f32 %v4155, %v4171
      %v4180 = vmax.f32 %v4156, %v4172
      %v4181 = vmax.f32 %v4133, %v4173
      %v4182 = vmax.f32 %v4134, %v4174
      %v4183 = vmax.f32 %v4135, %v4175
      %v4184 = vmax.f32 %v4136, %v4176
      %v4185 = vmax.f32 %v4137, %v4177
      %v4186 = vmax.f32 %v4138, %v4178
      %v4187 = vmax.f32 %v4139, %v4179
      %v4188 = vmax.f32 %v4140, %v4180
      %v4189 = vmax.f32 %v4181, 0.0
      %v4190 = vmax.f32 %v4182, 0.0
      %v4191 = vmax.f32 %v4183, 0.0
      %v4192 = vmax.f32 %v4184, 0.0
      %v4193 = vmax.f32 %v4185, 0.0
      %v4194 = vmax.f32 %v4186, 0.0
      %v4195 = vmax.f32 %v4187, 0.0
      %v4196 = vmax.f32 %v4188, 0.0
      %4197 = vst [vmem:[%s258 + $0x40] sm:$0xff] %v4189
      %4198 = vst [vmem:[%s258 + $0x48] sm:$0xff] %v4190
      %4199 = vst [vmem:[%s258 + $0x50] sm:$0xff] %v4191
      %4200 = vst [vmem:[%s258 + $0x58] sm:$0xff] %v4192
      %4201 = vst [vmem:[%s258 + $0x60] sm:$0xff] %v4193
      %4202 = vst [vmem:[%s258 + $0x68] sm:$0xff] %v4194
      %4203 = vst [vmem:[%s258 + $0x70] sm:$0xff] %v4195
      %4204 = vst [vmem:[%s258 + $0x78] sm:$0xff] %v4196
      %s4205 = smul.u32 4, %s17
      %p4206 = scmp.lt.s32.totalorder %s4205, 7
      %s4207 = scalar_select %p4206, %s4205, 7
      %s4208 = smul.addr %s4207, 4
      %s4209 = smul.addr %s4208, 8
      %s4210 = scalar_lea.vmem %s6, %s4209
      // Predicated region
      $region45: #{ournet_forward.3} parent=43 // pred_check
        %p4211 = pneg %p166
      $region46: #{ournet_forward.3} parent=43 // pred_check_branch
        %4213 = sbr.rel (%p4211) target = $region48
      $region47: #{ournet_forward.3} parent=43 // pred_region
        %s4214 = smul.u32 4, %s17
      $region48: #{ournet_forward.3} parent=43 // pred_fallthru
        _
    $region44: #{ournet_forward.3} parent=5 // pred_fallthru
      _
    %p4215 = scmp.le.s32.totalorder 2, %s12
    // Predicated region
    $region49: #{ournet_forward.3} parent=5 // pred_check
      %p4216 = pneg %p4215
    $region50: #{ournet_forward.3} parent=5 // pred_check_branch
      %4218 = sbr.rel (%p4216) target = $region52
    $region51: #{ournet_forward.3} parent=5 // pred_region
      %s4219 = ssub.s32 %s12, 2
      // Predicated region
      $region53: #{ournet_forward.3} parent=51 // pred_check
        %p4220 = pneg %p172
      $region54: #{ournet_forward.3} parent=51 // pred_check_branch
        %4222 = sbr.rel (%p4220) target = $region56
      $region55: #{ournet_forward.3} parent=51 // pred_region
        %s4223 = smul.u32 4, %s18
        %p4224 = scmp.lt.s32.totalorder %s4223, 7
        %s4225 = scalar_select %p4224, %s4223, 7
        %s4226 = smul.addr %s4225, 4
        %s4227 = smul.addr %s4226, 8
        %s4228 = scalar_lea.vmem %s6, %s4227
      $region56: #{ournet_forward.3} parent=51 // pred_fallthru
        _
    $region52: #{ournet_forward.3} parent=5 // pred_fallthru
      _
  $region6: #{ournet_forward.3} parent=0 // loop_footer
    %s16 = sadd.s32 1, %s12
  $region7: #{ournet_forward.3} parent=0 // loop_footer_branch
    %11 = sbr.rel target = $region3
  $region8: #{ournet_forward.3} parent=0 // loop_exit
    _

// kernel: ournet_forward.5
$region0: #{ournet_forward.5}
  #allocation0 [shape = 'u32[]', space=smem, size = 0x4, offset = 0x4, fixed_abs, tag = 'smem constant byte address 0x4 - core index']
  #allocation1 [shape = 'u32[144,128]{1,0:T(1,128)}', space=vmem, size = 0x12000, scoped, tag = 'internal scratch']
  %s0 = inlined_call_operand.vmem [shape: f32[8,2048], index: 0, kind: input, shape index: {}]
  %s1 = inlined_call_operand.vmem [shape: f32[2048,128], index: 1, kind: input, shape index: {}]
  %s2 = inlined_call_operand.vmem [shape: f32[1,128], index: 2, kind: input, shape index: {}]
  %s3 = inlined_call_operand.vmem [shape: f32[8,128], index: 3, kind: output, shape index: {}]
  %s4 = sld [smem:[#allocation0]]
  $region22: #{ournet_forward.5} parent=0
    _
  %s6 = ssub.s32 1, %s4
  %s7 = scalar_select 0, %s6, %s4
  // Predicated region
  $region2: #{ournet_forward.5} parent=0 // pred_check
    _
  $region3: #{ournet_forward.5} parent=0 // pred_check_branch
    %9 = sbr.rel (0) target = $region5
  $region4: #{ournet_forward.5} parent=0 // pred_region
    _
  $region5: #{ournet_forward.5} parent=0 // pred_fallthru
    _
  // Predicated region
  $region6: #{ournet_forward.5} parent=0 // pred_check
    _
  $region7: #{ournet_forward.5} parent=0 // pred_check_branch
    %11 = sbr.rel (0) target = $region9
  $region8: #{ournet_forward.5} parent=0 // pred_region
    _
  $region9: #{ournet_forward.5} parent=0 // pred_fallthru
    _
  // Predicated region
  $region10: #{ournet_forward.5} parent=0 // pred_check
    _
  $region11: #{ournet_forward.5} parent=0 // pred_check_branch
    %13 = sbr.rel (0) target = $region13
  $region12: #{ournet_forward.5} parent=0 // pred_region
    _
  $region13: #{ournet_forward.5} parent=0 // pred_fallthru
    _
  %v14 = vld [vmem:[%s0] sm:$0xff]
  %v15 = vld [vmem:[%s0 + $0x8] sm:$0xff]
  %v16 = vld [vmem:[%s0 + $0x10] sm:$0xff]
  %v17 = vld [vmem:[%s0 + $0x18] sm:$0xff]
  %v18 = vld [vmem:[%s0 + $0x20] sm:$0xff]
  %v19 = vld [vmem:[%s0 + $0x28] sm:$0xff]
  %v20 = vld [vmem:[%s0 + $0x30] sm:$0xff]
  %v21 = vld [vmem:[%s0 + $0x38] sm:$0xff]
  %v22 = vld [vmem:[%s0 + $0x40] sm:$0xff]
  %v23 = vld [vmem:[%s0 + $0x48] sm:$0xff]
  %v24 = vld [vmem:[%s0 + $0x50] sm:$0xff]
  %v25 = vld [vmem:[%s0 + $0x58] sm:$0xff]
  %v26 = vld [vmem:[%s0 + $0x60] sm:$0xff]
  %v27 = vld [vmem:[%s0 + $0x68] sm:$0xff]
  %v28 = vld [vmem:[%s0 + $0x70] sm:$0xff]
  %v29 = vld [vmem:[%s0 + $0x78] sm:$0xff]
  %v30 = vld [vmem:[%s1] sm:$0xff]
  %v31 = vld [vmem:[%s1 + $0x8] sm:$0xff]
  %v32 = vld [vmem:[%s1 + $0x10] sm:$0xff]
  %v33 = vld [vmem:[%s1 + $0x18] sm:$0xff]
  %v34 = vld [vmem:[%s1 + $0x20] sm:$0xff]
  %v35 = vld [vmem:[%s1 + $0x28] sm:$0xff]
  %v36 = vld [vmem:[%s1 + $0x30] sm:$0xff]
  %v37 = vld [vmem:[%s1 + $0x38] sm:$0xff]
  %v38 = vld [vmem:[%s1 + $0x40] sm:$0xff]
  %v39 = vld [vmem:[%s1 + $0x48] sm:$0xff]
  %v40 = vld [vmem:[%s1 + $0x50] sm:$0xff]
  %v41 = vld [vmem:[%s1 + $0x58] sm:$0xff]
  %v42 = vld [vmem:[%s1 + $0x60] sm:$0xff]
  %v43 = vld [vmem:[%s1 + $0x68] sm:$0xff]
  %v44 = vld [vmem:[%s1 + $0x70] sm:$0xff]
  %v45 = vld [vmem:[%s1 + $0x78] sm:$0xff]
  %v46 = vld [vmem:[%s1 + $0x80] sm:$0xff]
  %v47 = vld [vmem:[%s1 + $0x88] sm:$0xff]
  %v48 = vld [vmem:[%s1 + $0x90] sm:$0xff]
  %v49 = vld [vmem:[%s1 + $0x98] sm:$0xff]
  %v50 = vld [vmem:[%s1 + $0xa0] sm:$0xff]
  %v51 = vld [vmem:[%s1 + $0xa8] sm:$0xff]
  %v52 = vld [vmem:[%s1 + $0xb0] sm:$0xff]
  %v53 = vld [vmem:[%s1 + $0xb8] sm:$0xff]
  %v54 = vld [vmem:[%s1 + $0xc0] sm:$0xff]
  %v55 = vld [vmem:[%s1 + $0xc8] sm:$0xff]
  %v56 = vld [vmem:[%s1 + $0xd0] sm:$0xff]
  %v57 = vld [vmem:[%s1 + $0xd8] sm:$0xff]
  %v58 = vld [vmem:[%s1 + $0xe0] sm:$0xff]
  %v59 = vld [vmem:[%s1 + $0xe8] sm:$0xff]
  %v60 = vld [vmem:[%s1 + $0xf0] sm:$0xff]
  %v61 = vld [vmem:[%s1 + $0xf8] sm:$0xff]
  %v62 = vld [vmem:[%s1 + $0x100] sm:$0xff]
  %v63 = vld [vmem:[%s1 + $0x108] sm:$0xff]
  %v64 = vld [vmem:[%s1 + $0x110] sm:$0xff]
  %v65 = vld [vmem:[%s1 + $0x118] sm:$0xff]
  %v66 = vld [vmem:[%s1 + $0x120] sm:$0xff]
  %v67 = vld [vmem:[%s1 + $0x128] sm:$0xff]
  %v68 = vld [vmem:[%s1 + $0x130] sm:$0xff]
  %v69 = vld [vmem:[%s1 + $0x138] sm:$0xff]
  %v70 = vld [vmem:[%s1 + $0x140] sm:$0xff]
  %v71 = vld [vmem:[%s1 + $0x148] sm:$0xff]
  %v72 = vld [vmem:[%s1 + $0x150] sm:$0xff]
  %v73 = vld [vmem:[%s1 + $0x158] sm:$0xff]
  %v74 = vld [vmem:[%s1 + $0x160] sm:$0xff]
  %v75 = vld [vmem:[%s1 + $0x168] sm:$0xff]
  %v76 = vld [vmem:[%s1 + $0x170] sm:$0xff]
  %v77 = vld [vmem:[%s1 + $0x178] sm:$0xff]
  %v78 = vld [vmem:[%s1 + $0x180] sm:$0xff]
  %v79 = vld [vmem:[%s1 + $0x188] sm:$0xff]
  %v80 = vld [vmem:[%s1 + $0x190] sm:$0xff]
  %v81 = vld [vmem:[%s1 + $0x198] sm:$0xff]
  %v82 = vld [vmem:[%s1 + $0x1a0] sm:$0xff]
  %v83 = vld [vmem:[%s1 + $0x1a8] sm:$0xff]
  %v84 = vld [vmem:[%s1 + $0x1b0] sm:$0xff]
  %v85 = vld [vmem:[%s1 + $0x1b8] sm:$0xff]
  %v86 = vld [vmem:[%s1 + $0x1c0] sm:$0xff]
  %v87 = vld [vmem:[%s1 + $0x1c8] sm:$0xff]
  %v88 = vld [vmem:[%s1 + $0x1d0] sm:$0xff]
  %v89 = vld [vmem:[%s1 + $0x1d8] sm:$0xff]
  %v90 = vld [vmem:[%s1 + $0x1e0] sm:$0xff]
  %v91 = vld [vmem:[%s1 + $0x1e8] sm:$0xff]
  %v92 = vld [vmem:[%s1 + $0x1f0] sm:$0xff]
  %v93 = vld [vmem:[%s1 + $0x1f8] sm:$0xff]
  %v94 = vld [vmem:[%s1 + $0x200] sm:$0xff]
  %v95 = vld [vmem:[%s1 + $0x208] sm:$0xff]
  %v96 = vld [vmem:[%s1 + $0x210] sm:$0xff]
  %v97 = vld [vmem:[%s1 + $0x218] sm:$0xff]
  %v98 = vld [vmem:[%s1 + $0x220] sm:$0xff]
  %v99 = vld [vmem:[%s1 + $0x228] sm:$0xff]
  %v100 = vld [vmem:[%s1 + $0x230] sm:$0xff]
  %v101 = vld [vmem:[%s1 + $0x238] sm:$0xff]
  %v102 = vld [vmem:[%s1 + $0x240] sm:$0xff]
  %v103 = vld [vmem:[%s1 + $0x248] sm:$0xff]
  %v104 = vld [vmem:[%s1 + $0x250] sm:$0xff]
  %v105 = vld [vmem:[%s1 + $0x258] sm:$0xff]
  %v106 = vld [vmem:[%s1 + $0x260] sm:$0xff]
  %v107 = vld [vmem:[%s1 + $0x268] sm:$0xff]
  %v108 = vld [vmem:[%s1 + $0x270] sm:$0xff]
  %v109 = vld [vmem:[%s1 + $0x278] sm:$0xff]
  %v110 = vld [vmem:[%s1 + $0x280] sm:$0xff]
  %v111 = vld [vmem:[%s1 + $0x288] sm:$0xff]
  %v112 = vld [vmem:[%s1 + $0x290] sm:$0xff]
  %v113 = vld [vmem:[%s1 + $0x298] sm:$0xff]
  %v114 = vld [vmem:[%s1 + $0x2a0] sm:$0xff]
  %v115 = vld [vmem:[%s1 + $0x2a8] sm:$0xff]
  %v116 = vld [vmem:[%s1 + $0x2b0] sm:$0xff]
  %v117 = vld [vmem:[%s1 + $0x2b8] sm:$0xff]
  %v118 = vld [vmem:[%s1 + $0x2c0] sm:$0xff]
  %v119 = vld [vmem:[%s1 + $0x2c8] sm:$0xff]
  %v120 = vld [vmem:[%s1 + $0x2d0] sm:$0xff]
  %v121 = vld [vmem:[%s1 + $0x2d8] sm:$0xff]
  %v122 = vld [vmem:[%s1 + $0x2e0] sm:$0xff]
  %v123 = vld [vmem:[%s1 + $0x2e8] sm:$0xff]
  %v124 = vld [vmem:[%s1 + $0x2f0] sm:$0xff]
  %v125 = vld [vmem:[%s1 + $0x2f8] sm:$0xff]
  %v126 = vld [vmem:[%s1 + $0x300] sm:$0xff]
  %v127 = vld [vmem:[%s1 + $0x308] sm:$0xff]
  %v128 = vld [vmem:[%s1 + $0x310] sm:$0xff]
  %v129 = vld [vmem:[%s1 + $0x318] sm:$0xff]
  %v130 = vld [vmem:[%s1 + $0x320] sm:$0xff]
  %v131 = vld [vmem:[%s1 + $0x328] sm:$0xff]
  %v132 = vld [vmem:[%s1 + $0x330] sm:$0xff]
  %v133 = vld [vmem:[%s1 + $0x338] sm:$0xff]
  %v134 = vld [vmem:[%s1 + $0x340] sm:$0xff]
  %v135 = vld [vmem:[%s1 + $0x348] sm:$0xff]
  %v136 = vld [vmem:[%s1 + $0x350] sm:$0xff]
  %v137 = vld [vmem:[%s1 + $0x358] sm:$0xff]
  %v138 = vld [vmem:[%s1 + $0x360] sm:$0xff]
  %v139 = vld [vmem:[%s1 + $0x368] sm:$0xff]
  %v140 = vld [vmem:[%s1 + $0x370] sm:$0xff]
  %v141 = vld [vmem:[%s1 + $0x378] sm:$0xff]
  %v142 = vld [vmem:[%s1 + $0x380] sm:$0xff]
  %v143 = vld [vmem:[%s1 + $0x388] sm:$0xff]
  %v144 = vld [vmem:[%s1 + $0x390] sm:$0xff]
  %v145 = vld [vmem:[%s1 + $0x398] sm:$0xff]
  %v146 = vld [vmem:[%s1 + $0x3a0] sm:$0xff]
  %v147 = vld [vmem:[%s1 + $0x3a8] sm:$0xff]
  %v148 = vld [vmem:[%s1 + $0x3b0] sm:$0xff]
  %v149 = vld [vmem:[%s1 + $0x3b8] sm:$0xff]
  %v150 = vld [vmem:[%s1 + $0x3c0] sm:$0xff]
  %v151 = vld [vmem:[%s1 + $0x3c8] sm:$0xff]
  %v152 = vld [vmem:[%s1 + $0x3d0] sm:$0xff]
  %v153 = vld [vmem:[%s1 + $0x3d8] sm:$0xff]
  %v154 = vld [vmem:[%s1 + $0x3e0] sm:$0xff]
  %v155 = vld [vmem:[%s1 + $0x3e8] sm:$0xff]
  %v156 = vld [vmem:[%s1 + $0x3f0] sm:$0xff]
  %v157 = vld [vmem:[%s1 + $0x3f8] sm:$0xff]
  %v158 = vld [vmem:[%s1 + $0x400] sm:$0xff]
  %v159 = vld [vmem:[%s1 + $0x408] sm:$0xff]
  %v160 = vld [vmem:[%s1 + $0x410] sm:$0xff]
  %v161 = vld [vmem:[%s1 + $0x418] sm:$0xff]
  %v162 = vld [vmem:[%s1 + $0x420] sm:$0xff]
  %v163 = vld [vmem:[%s1 + $0x428] sm:$0xff]
  %v164 = vld [vmem:[%s1 + $0x430] sm:$0xff]
  %v165 = vld [vmem:[%s1 + $0x438] sm:$0xff]
  %v166 = vld [vmem:[%s1 + $0x440] sm:$0xff]
  %v167 = vld [vmem:[%s1 + $0x448] sm:$0xff]
  %v168 = vld [vmem:[%s1 + $0x450] sm:$0xff]
  %v169 = vld [vmem:[%s1 + $0x458] sm:$0xff]
  %v170 = vld [vmem:[%s1 + $0x460] sm:$0xff]
  %v171 = vld [vmem:[%s1 + $0x468] sm:$0xff]
  %v172 = vld [vmem:[%s1 + $0x470] sm:$0xff]
  %v173 = vld [vmem:[%s1 + $0x478] sm:$0xff]
  %v174 = vld [vmem:[%s1 + $0x480] sm:$0xff]
  %v175 = vld [vmem:[%s1 + $0x488] sm:$0xff]
  %v176 = vld [vmem:[%s1 + $0x490] sm:$0xff]
  %v177 = vld [vmem:[%s1 + $0x498] sm:$0xff]
  %v178 = vld [vmem:[%s1 + $0x4a0] sm:$0xff]
  %v179 = vld [vmem:[%s1 + $0x4a8] sm:$0xff]
  %v180 = vld [vmem:[%s1 + $0x4b0] sm:$0xff]
  %v181 = vld [vmem:[%s1 + $0x4b8] sm:$0xff]
  %v182 = vld [vmem:[%s1 + $0x4c0] sm:$0xff]
  %v183 = vld [vmem:[%s1 + $0x4c8] sm:$0xff]
  %v184 = vld [vmem:[%s1 + $0x4d0] sm:$0xff]
  %v185 = vld [vmem:[%s1 + $0x4d8] sm:$0xff]
  %v186 = vld [vmem:[%s1 + $0x4e0] sm:$0xff]
  %v187 = vld [vmem:[%s1 + $0x4e8] sm:$0xff]
  %v188 = vld [vmem:[%s1 + $0x4f0] sm:$0xff]
  %v189 = vld [vmem:[%s1 + $0x4f8] sm:$0xff]
  %v190 = vld [vmem:[%s1 + $0x500] sm:$0xff]
  %v191 = vld [vmem:[%s1 + $0x508] sm:$0xff]
  %v192 = vld [vmem:[%s1 + $0x510] sm:$0xff]
  %v193 = vld [vmem:[%s1 + $0x518] sm:$0xff]
  %v194 = vld [vmem:[%s1 + $0x520] sm:$0xff]
  %v195 = vld [vmem:[%s1 + $0x528] sm:$0xff]
  %v196 = vld [vmem:[%s1 + $0x530] sm:$0xff]
  %v197 = vld [vmem:[%s1 + $0x538] sm:$0xff]
  %v198 = vld [vmem:[%s1 + $0x540] sm:$0xff]
  %v199 = vld [vmem:[%s1 + $0x548] sm:$0xff]
  %v200 = vld [vmem:[%s1 + $0x550] sm:$0xff]
  %v201 = vld [vmem:[%s1 + $0x558] sm:$0xff]
  %v202 = vld [vmem:[%s1 + $0x560] sm:$0xff]
  %v203 = vld [vmem:[%s1 + $0x568] sm:$0xff]
  %v204 = vld [vmem:[%s1 + $0x570] sm:$0xff]
  %v205 = vld [vmem:[%s1 + $0x578] sm:$0xff]
  %v206 = vld [vmem:[%s1 + $0x580] sm:$0xff]
  %v207 = vld [vmem:[%s1 + $0x588] sm:$0xff]
  %v208 = vld [vmem:[%s1 + $0x590] sm:$0xff]
  %v209 = vld [vmem:[%s1 + $0x598] sm:$0xff]
  %v210 = vld [vmem:[%s1 + $0x5a0] sm:$0xff]
  %v211 = vld [vmem:[%s1 + $0x5a8] sm:$0xff]
  %v212 = vld [vmem:[%s1 + $0x5b0] sm:$0xff]
  %v213 = vld [vmem:[%s1 + $0x5b8] sm:$0xff]
  %v214 = vld [vmem:[%s1 + $0x5c0] sm:$0xff]
  %v215 = vld [vmem:[%s1 + $0x5c8] sm:$0xff]
  %v216 = vld [vmem:[%s1 + $0x5d0] sm:$0xff]
  %v217 = vld [vmem:[%s1 + $0x5d8] sm:$0xff]
  %v218 = vld [vmem:[%s1 + $0x5e0] sm:$0xff]
  %v219 = vld [vmem:[%s1 + $0x5e8] sm:$0xff]
  %v220 = vld [vmem:[%s1 + $0x5f0] sm:$0xff]
  %v221 = vld [vmem:[%s1 + $0x5f8] sm:$0xff]
  %v222 = vld [vmem:[%s1 + $0x600] sm:$0xff]
  %v223 = vld [vmem:[%s1 + $0x608] sm:$0xff]
  %v224 = vld [vmem:[%s1 + $0x610] sm:$0xff]
  %v225 = vld [vmem:[%s1 + $0x618] sm:$0xff]
  %v226 = vld [vmem:[%s1 + $0x620] sm:$0xff]
  %v227 = vld [vmem:[%s1 + $0x628] sm:$0xff]
  %v228 = vld [vmem:[%s1 + $0x630] sm:$0xff]
  %v229 = vld [vmem:[%s1 + $0x638] sm:$0xff]
  %v230 = vld [vmem:[%s1 + $0x640] sm:$0xff]
  %v231 = vld [vmem:[%s1 + $0x648] sm:$0xff]
  %v232 = vld [vmem:[%s1 + $0x650] sm:$0xff]
  %v233 = vld [vmem:[%s1 + $0x658] sm:$0xff]
  %v234 = vld [vmem:[%s1 + $0x660] sm:$0xff]
  %v235 = vld [vmem:[%s1 + $0x668] sm:$0xff]
  %v236 = vld [vmem:[%s1 + $0x670] sm:$0xff]
  %v237 = vld [vmem:[%s1 + $0x678] sm:$0xff]
  %v238 = vld [vmem:[%s1 + $0x680] sm:$0xff]
  %v239 = vld [vmem:[%s1 + $0x688] sm:$0xff]
  %v240 = vld [vmem:[%s1 + $0x690] sm:$0xff]
  %v241 = vld [vmem:[%s1 + $0x698] sm:$0xff]
  %v242 = vld [vmem:[%s1 + $0x6a0] sm:$0xff]
  %v243 = vld [vmem:[%s1 + $0x6a8] sm:$0xff]
  %v244 = vld [vmem:[%s1 + $0x6b0] sm:$0xff]
  %v245 = vld [vmem:[%s1 + $0x6b8] sm:$0xff]
  %v246 = vld [vmem:[%s1 + $0x6c0] sm:$0xff]
  %v247 = vld [vmem:[%s1 + $0x6c8] sm:$0xff]
  %v248 = vld [vmem:[%s1 + $0x6d0] sm:$0xff]
  %v249 = vld [vmem:[%s1 + $0x6d8] sm:$0xff]
  %v250 = vld [vmem:[%s1 + $0x6e0] sm:$0xff]
  %v251 = vld [vmem:[%s1 + $0x6e8] sm:$0xff]
  %v252 = vld [vmem:[%s1 + $0x6f0] sm:$0xff]
  %v253 = vld [vmem:[%s1 + $0x6f8] sm:$0xff]
  %v254 = vld [vmem:[%s1 + $0x700] sm:$0xff]
  %v255 = vld [vmem:[%s1 + $0x708] sm:$0xff]
  %v256 = vld [vmem:[%s1 + $0x710] sm:$0xff]
  %v257 = vld [vmem:[%s1 + $0x718] sm:$0xff]
  %v258 = vld [vmem:[%s1 + $0x720] sm:$0xff]
  %v259 = vld [vmem:[%s1 + $0x728] sm:$0xff]
  %v260 = vld [vmem:[%s1 + $0x730] sm:$0xff]
  %v261 = vld [vmem:[%s1 + $0x738] sm:$0xff]
  %v262 = vld [vmem:[%s1 + $0x740] sm:$0xff]
  %v263 = vld [vmem:[%s1 + $0x748] sm:$0xff]
  %v264 = vld [vmem:[%s1 + $0x750] sm:$0xff]
  %v265 = vld [vmem:[%s1 + $0x758] sm:$0xff]
  %v266 = vld [vmem:[%s1 + $0x760] sm:$0xff]
  %v267 = vld [vmem:[%s1 + $0x768] sm:$0xff]
  %v268 = vld [vmem:[%s1 + $0x770] sm:$0xff]
  %v269 = vld [vmem:[%s1 + $0x778] sm:$0xff]
  %v270 = vld [vmem:[%s1 + $0x780] sm:$0xff]
  %v271 = vld [vmem:[%s1 + $0x788] sm:$0xff]
  %v272 = vld [vmem:[%s1 + $0x790] sm:$0xff]
  %v273 = vld [vmem:[%s1 + $0x798] sm:$0xff]
  %v274 = vld [vmem:[%s1 + $0x7a0] sm:$0xff]
  %v275 = vld [vmem:[%s1 + $0x7a8] sm:$0xff]
  %v276 = vld [vmem:[%s1 + $0x7b0] sm:$0xff]
  %v277 = vld [vmem:[%s1 + $0x7b8] sm:$0xff]
  %v278 = vld [vmem:[%s1 + $0x7c0] sm:$0xff]
  %v279 = vld [vmem:[%s1 + $0x7c8] sm:$0xff]
  %v280 = vld [vmem:[%s1 + $0x7d0] sm:$0xff]
  %v281 = vld [vmem:[%s1 + $0x7d8] sm:$0xff]
  %v282 = vld [vmem:[%s1 + $0x7e0] sm:$0xff]
  %v283 = vld [vmem:[%s1 + $0x7e8] sm:$0xff]
  %v284 = vld [vmem:[%s1 + $0x7f0] sm:$0xff]
  %v285 = vld [vmem:[%s1 + $0x7f8] sm:$0xff]
  %v286 = vld [vmem:[%s2] sm:$0x1]
  %v288 = vlaneseq
  %v289 = vshrl.u32 %v288, 7
  %v290 = vsub.s32 0, %v289
  %v291 = vrot.slane %v286, %v290
  %293 = vmatprep.subr.mxu0 0.0
  %294 = vmatpush1.msra.mxu0 %v30
  %295 = vmatprep.subr.mxu0 0.0
  %296 = vmatpush1.msra.mxu0 %v31
  %297 = vmatprep.subr.mxu0 0.0
  %298 = vmatpush1.msra.mxu0 %v32
  %299 = vmatprep.subr.mxu0 0.0
  %300 = vmatpush1.msra.mxu0 %v33
  %301 = vmatprep.subr.mxu0 0.0
  %302 = vmatpush1.msra.mxu0 %v34
  %303 = vmatprep.subr.mxu0 0.0
  %304 = vmatpush1.msra.mxu0 %v35
  %305 = vmatprep.subr.mxu0 0.0
  %306 = vmatpush1.msra.mxu0 %v36
  %307 = vmatprep.subr.mxu0 0.0
  %308 = vmatpush1.msra.mxu0 %v37
  %309 = vmatprep.subr.mxu0 0.0
  %310 = vmatpush1.msra.mxu0 %v38
  %311 = vmatprep.subr.mxu0 0.0
  %312 = vmatpush1.msra.mxu0 %v39
  %313 = vmatprep.subr.mxu0 0.0
  %314 = vmatpush1.msra.mxu0 %v40
  %315 = vmatprep.subr.mxu0 0.0
  %316 = vmatpush1.msra.mxu0 %v41
  %317 = vmatprep.subr.mxu0 0.0
  %318 = vmatpush1.msra.mxu0 %v42
  %319 = vmatprep.subr.mxu0 0.0
  %320 = vmatpush1.msra.mxu0 %v43
  %321 = vmatprep.subr.mxu0 0.0
  %322 = vmatpush1.msra.mxu0 %v44
  %323 = vmatprep.subr.mxu0 0.0
  %324 = vmatpush1.msra.mxu0 %v45
  %325 = vmatprep.subr.mxu0 0.0
  %326 = vmatpush1.msra.mxu0 %v46
  %327 = vmatprep.subr.mxu0 0.0
  %328 = vmatpush1.msra.mxu0 %v47
  %329 = vmatprep.subr.mxu0 0.0
  %330 = vmatpush1.msra.mxu0 %v48
  %331 = vmatprep.subr.mxu0 0.0
  %332 = vmatpush1.msra.mxu0 %v49
  %333 = vmatprep.subr.mxu0 0.0
  %334 = vmatpush1.msra.mxu0 %v50
  %335 = vmatprep.subr.mxu0 0.0
  %336 = vmatpush1.msra.mxu0 %v51
  %337 = vmatprep.subr.mxu0 0.0
  %338 = vmatpush1.msra.mxu0 %v52
  %339 = vmatprep.subr.mxu0 0.0
  %340 = vmatpush1.msra.mxu0 %v53
  %341 = vmatprep.subr.mxu0 0.0
  %342 = vmatpush1.msra.mxu0 %v54
  %343 = vmatprep.subr.mxu0 0.0
  %344 = vmatpush1.msra.mxu0 %v55
  %345 = vmatprep.subr.mxu0 0.0
  %346 = vmatpush1.msra.mxu0 %v56
  %347 = vmatprep.subr.mxu0 0.0
  %348 = vmatpush1.msra.mxu0 %v57
  %349 = vmatprep.subr.mxu0 0.0
  %350 = vmatpush1.msra.mxu0 %v58
  %351 = vmatprep.subr.mxu0 0.0
  %352 = vmatpush1.msra.mxu0 %v59
  %353 = vmatprep.subr.mxu0 0.0
  %354 = vmatpush1.msra.mxu0 %v60
  %355 = vmatprep.subr.mxu0 0.0
  %356 = vmatpush1.msra.mxu0 %v61
  %357 = vmatprep.mubr.f32.mxu0 %v15
  %358 = vmatmul.mubr.f32.gmra.mrb[0].mxu0 %v14
  %v359 = vpop.f32.mrb[0].mxu0
  %v360 = vadd.f32 %v291, %v359
  %v361 = vpop.f32.mrb[0].mxu0
  %362 = vdwg.mxu0
  %363 = vmatprep.subr.mxu0 0.0
  %364 = vmatpush1.msra.mxu0 %v62
  %365 = vmatprep.subr.mxu0 0.0
  %366 = vmatpush1.msra.mxu0 %v63
  %367 = vmatprep.subr.mxu0 0.0
  %368 = vmatpush1.msra.mxu0 %v64
  %369 = vmatprep.subr.mxu0 0.0
  %370 = vmatpush1.msra.mxu0 %v65
  %371 = vmatprep.subr.mxu0 0.0
  %372 = vmatpush1.msra.mxu0 %v66
  %373 = vmatprep.subr.mxu0 0.0
  %374 = vmatpush1.msra.mxu0 %v67
  %375 = vmatprep.subr.mxu0 0.0
  %376 = vmatpush1.msra.mxu0 %v68
  %377 = vmatprep.subr.mxu0 0.0
  %378 = vmatpush1.msra.mxu0 %v69
  %379 = vmatprep.subr.mxu0 0.0
  %380 = vmatpush1.msra.mxu0 %v70
  %381 = vmatprep.subr.mxu0 0.0
  %382 = vmatpush1.msra.mxu0 %v71
  %383 = vmatprep.subr.mxu0 0.0
  %384 = vmatpush1.msra.mxu0 %v72
  %385 = vmatprep.subr.mxu0 0.0
  %386 = vmatpush1.msra.mxu0 %v73
  %387 = vmatprep.subr.mxu0 0.0
  %388 = vmatpush1.msra.mxu0 %v74
  %389 = vmatprep.subr.mxu0 0.0
  %390 = vmatpush1.msra.mxu0 %v75
  %391 = vmatprep.subr.mxu0 0.0
  %392 = vmatpush1.msra.mxu0 %v76
  %393 = vmatprep.subr.mxu0 0.0
  %394 = vmatpush1.msra.mxu0 %v77
  %395 = vmatprep.subr.mxu0 0.0
  %396 = vmatpush1.msra.mxu0 %v78
  %397 = vmatprep.subr.mxu0 0.0
  %398 = vmatpush1.msra.mxu0 %v79
  %399 = vmatprep.subr.mxu0 0.0
  %400 = vmatpush1.msra.mxu0 %v80
  %401 = vmatprep.subr.mxu0 0.0
  %402 = vmatpush1.msra.mxu0 %v81
  %403 = vmatprep.subr.mxu0 0.0
  %404 = vmatpush1.msra.mxu0 %v82
  %405 = vmatprep.subr.mxu0 0.0
  %406 = vmatpush1.msra.mxu0 %v83
  %407 = vmatprep.subr.mxu0 0.0
  %408 = vmatpush1.msra.mxu0 %v84
  %409 = vmatprep.subr.mxu0 0.0
  %410 = vmatpush1.msra.mxu0 %v85
  %411 = vmatprep.subr.mxu0 0.0
  %412 = vmatpush1.msra.mxu0 %v86
  %413 = vmatprep.subr.mxu0 0.0
  %414 = vmatpush1.msra.mxu0 %v87
  %415 = vmatprep.subr.mxu0 0.0
  %416 = vmatpush1.msra.mxu0 %v88
  %417 = vmatprep.subr.mxu0 0.0
  %418 = vmatpush1.msra.mxu0 %v89
  %419 = vmatprep.subr.mxu0 0.0
  %420 = vmatpush1.msra.mxu0 %v90
  %421 = vmatprep.subr.mxu0 0.0
  %422 = vmatpush1.msra.mxu0 %v91
  %423 = vmatprep.subr.mxu0 0.0
  %424 = vmatpush1.msra.mxu0 %v92
  %425 = vmatprep.subr.mxu0 0.0
  %426 = vmatpush1.msra.mxu0 %v93
  %427 = vmatprep.mubr.f32.mxu0 %v17
  %428 = vmatmul.mubr.f32.gmra.mrb[0].mxu0 %v16
  %v429 = vpop.f32.mrb[0].mxu0
  %v430 = vadd.f32 %v360, %v429
  %v431 = vpop.f32.mrb[0].mxu0
  %432 = vdwg.mxu0
  %433 = vmatprep.subr.mxu0 0.0
  %434 = vmatpush1.msra.mxu0 %v94
  %435 = vmatprep.subr.mxu0 0.0
  %436 = vmatpush1.msra.mxu0 %v95
  %437 = vmatprep.subr.mxu0 0.0
  %438 = vmatpush1.msra.mxu0 %v96
  %439 = vmatprep.subr.mxu0 0.0
  %440 = vmatpush1.msra.mxu0 %v97
  %441 = vmatprep.subr.mxu0 0.0
  %442 = vmatpush1.msra.mxu0 %v98
  %443 = vmatprep.subr.mxu0 0.0
  %444 = vmatpush1.msra.mxu0 %v99
  %445 = vmatprep.subr.mxu0 0.0
  %446 = vmatpush1.msra.mxu0 %v100
  %447 = vmatprep.subr.mxu0 0.0
  %448 = vmatpush1.msra.mxu0 %v101
  %449 = vmatprep.subr.mxu0 0.0
  %450 = vmatpush1.msra.mxu0 %v102
  %451 = vmatprep.subr.mxu0 0.0
  %452 = vmatpush1.msra.mxu0 %v103
  %453 = vmatprep.subr.mxu0 0.0
  %454 = vmatpush1.msra.mxu0 %v104
  %455 = vmatprep.subr.mxu0 0.0
  %456 = vmatpush1.msra.mxu0 %v105
  %457 = vmatprep.subr.mxu0 0.0
  %458 = vmatpush1.msra.mxu0 %v106
  %459 = vmatprep.subr.mxu0 0.0
  %460 = vmatpush1.msra.mxu0 %v107
  %461 = vmatprep.subr.mxu0 0.0
  %462 = vmatpush1.msra.mxu0 %v108
  %463 = vmatprep.subr.mxu0 0.0
  %464 = vmatpush1.msra.mxu0 %v109
  %465 = vmatprep.subr.mxu0 0.0
  %466 = vmatpush1.msra.mxu0 %v110
  %467 = vmatprep.subr.mxu0 0.0
  %468 = vmatpush1.msra.mxu0 %v111
  %469 = vmatprep.subr.mxu0 0.0
  %470 = vmatpush1.msra.mxu0 %v112
  %471 = vmatprep.subr.mxu0 0.0
  %472 = vmatpush1.msra.mxu0 %v113
  %473 = vmatprep.subr.mxu0 0.0
  %474 = vmatpush1.msra.mxu0 %v114
  %475 = vmatprep.subr.mxu0 0.0
  %476 = vmatpush1.msra.mxu0 %v115
  %477 = vmatprep.subr.mxu0 0.0
  %478 = vmatpush1.msra.mxu0 %v116
  %479 = vmatprep.subr.mxu0 0.0
  %480 = vmatpush1.msra.mxu0 %v117
  %481 = vmatprep.subr.mxu0 0.0
  %482 = vmatpush1.msra.mxu0 %v118
  %483 = vmatprep.subr.mxu0 0.0
  %484 = vmatpush1.msra.mxu0 %v119
  %485 = vmatprep.subr.mxu0 0.0
  %486 = vmatpush1.msra.mxu0 %v120
  %487 = vmatprep.subr.mxu0 0.0
  %488 = vmatpush1.msra.mxu0 %v121
  %489 = vmatprep.subr.mxu0 0.0
  %490 = vmatpush1.msra.mxu0 %v122
  %491 = vmatprep.subr.mxu0 0.0
  %492 = vmatpush1.msra.mxu0 %v123
  %493 = vmatprep.subr.mxu0 0.0
  %494 = vmatpush1.msra.mxu0 %v124
  %495 = vmatprep.subr.mxu0 0.0
  %496 = vmatpush1.msra.mxu0 %v125
  %497 = vmatprep.mubr.f32.mxu0 %v19
  %498 = vmatmul.mubr.f32.gmra.mrb[0].mxu0 %v18
  %v499 = vpop.f32.mrb[0].mxu0
  %v500 = vadd.f32 %v430, %v499
  %v501 = vpop.f32.mrb[0].mxu0
  %502 = vdwg.mxu0
  %503 = vmatprep.subr.mxu0 0.0
  %504 = vmatpush1.msra.mxu0 %v126
  %505 = vmatprep.subr.mxu0 0.0
  %506 = vmatpush1.msra.mxu0 %v127
  %507 = vmatprep.subr.mxu0 0.0
  %508 = vmatpush1.msra.mxu0 %v128
  %509 = vmatprep.subr.mxu0 0.0
  %510 = vmatpush1.msra.mxu0 %v129
  %511 = vmatprep.subr.mxu0 0.0
  %512 = vmatpush1.msra.mxu0 %v130
  %513 = vmatprep.subr.mxu0 0.0
  %514 = vmatpush1.msra.mxu0 %v131
  %515 = vmatprep.subr.mxu0 0.0
  %516 = vmatpush1.msra.mxu0 %v132
  %517 = vmatprep.subr.mxu0 0.0
  %518 = vmatpush1.msra.mxu0 %v133
  %519 = vmatprep.subr.mxu0 0.0
  %520 = vmatpush1.msra.mxu0 %v134
  %521 = vmatprep.subr.mxu0 0.0
  %522 = vmatpush1.msra.mxu0 %v135
  %523 = vmatprep.subr.mxu0 0.0
  %524 = vmatpush1.msra.mxu0 %v136
  %525 = vmatprep.subr.mxu0 0.0
  %526 = vmatpush1.msra.mxu0 %v137
  %527 = vmatprep.subr.mxu0 0.0
  %528 = vmatpush1.msra.mxu0 %v138
  %529 = vmatprep.subr.mxu0 0.0
  %530 = vmatpush1.msra.mxu0 %v139
  %531 = vmatprep.subr.mxu0 0.0
  %532 = vmatpush1.msra.mxu0 %v140
  %533 = vmatprep.subr.mxu0 0.0
  %534 = vmatpush1.msra.mxu0 %v141
  %535 = vmatprep.subr.mxu0 0.0
  %536 = vmatpush1.msra.mxu0 %v142
  %537 = vmatprep.subr.mxu0 0.0
  %538 = vmatpush1.msra.mxu0 %v143
  %539 = vmatprep.subr.mxu0 0.0
  %540 = vmatpush1.msra.mxu0 %v144
  %541 = vmatprep.subr.mxu0 0.0
  %542 = vmatpush1.msra.mxu0 %v145
  %543 = vmatprep.subr.mxu0 0.0
  %544 = vmatpush1.msra.mxu0 %v146
  %545 = vmatprep.subr.mxu0 0.0
  %546 = vmatpush1.msra.mxu0 %v147
  %547 = vmatprep.subr.mxu0 0.0
  %548 = vmatpush1.msra.mxu0 %v148
  %549 = vmatprep.subr.mxu0 0.0
  %550 = vmatpush1.msra.mxu0 %v149
  %551 = vmatprep.subr.mxu0 0.0
  %552 = vmatpush1.msra.mxu0 %v150
  %553 = vmatprep.subr.mxu0 0.0
  %554 = vmatpush1.msra.mxu0 %v151
  %555 = vmatprep.subr.mxu0 0.0
  %556 = vmatpush1.msra.mxu0 %v152
  %557 = vmatprep.subr.mxu0 0.0
  %558 = vmatpush1.msra.mxu0 %v153
  %559 = vmatprep.subr.mxu0 0.0
  %560 = vmatpush1.msra.mxu0 %v154
  %561 = vmatprep.subr.mxu0 0.0
  %562 = vmatpush1.msra.mxu0 %v155
  %563 = vmatprep.subr.mxu0 0.0
  %564 = vmatpush1.msra.mxu0 %v156
  %565 = vmatprep.subr.mxu0 0.0
  %566 = vmatpush1.msra.mxu0 %v157
  %567 = vmatprep.mubr.f32.mxu0 %v21
  %568 = vmatmul.mubr.f32.gmra.mrb[0].mxu0 %v20
  %v569 = vpop.f32.mrb[0].mxu0
  %v570 = vadd.f32 %v500, %v569
  %v571 = vpop.f32.mrb[0].mxu0
  %572 = vdwg.mxu0
  %573 = vmatprep.subr.mxu0 0.0
  %574 = vmatpush1.msra.mxu0 %v158
  %575 = vmatprep.subr.mxu0 0.0
  %576 = vmatpush1.msra.mxu0 %v159
  %577 = vmatprep.subr.mxu0 0.0
  %578 = vmatpush1.msra.mxu0 %v160
  %579 = vmatprep.subr.mxu0 0.0
  %580 = vmatpush1.msra.mxu0 %v161
  %581 = vmatprep.subr.mxu0 0.0
  %582 = vmatpush1.msra.mxu0 %v162
  %583 = vmatprep.subr.mxu0 0.0
  %584 = vmatpush1.msra.mxu0 %v163
  %585 = vmatprep.subr.mxu0 0.0
  %586 = vmatpush1.msra.mxu0 %v164
  %587 = vmatprep.subr.mxu0 0.0
  %588 = vmatpush1.msra.mxu0 %v165
  %589 = vmatprep.subr.mxu0 0.0
  %590 = vmatpush1.msra.mxu0 %v166
  %591 = vmatprep.subr.mxu0 0.0
  %592 = vmatpush1.msra.mxu0 %v167
  %593 = vmatprep.subr.mxu0 0.0
  %594 = vmatpush1.msra.mxu0 %v168
  %595 = vmatprep.subr.mxu0 0.0
  %596 = vmatpush1.msra.mxu0 %v169
  %597 = vmatprep.subr.mxu0 0.0
  %598 = vmatpush1.msra.mxu0 %v170
  %599 = vmatprep.subr.mxu0 0.0
  %600 = vmatpush1.msra.mxu0 %v171
  %601 = vmatprep.subr.mxu0 0.0
  %602 = vmatpush1.msra.mxu0 %v172
  %603 = vmatprep.subr.mxu0 0.0
  %604 = vmatpush1.msra.mxu0 %v173
  %605 = vmatprep.subr.mxu0 0.0
  %606 = vmatpush1.msra.mxu0 %v174
  %607 = vmatprep.subr.mxu0 0.0
  %608 = vmatpush1.msra.mxu0 %v175
  %609 = vmatprep.subr.mxu0 0.0
  %610 = vmatpush1.msra.mxu0 %v176
  %611 = vmatprep.subr.mxu0 0.0
  %612 = vmatpush1.msra.mxu0 %v177
  %613 = vmatprep.subr.mxu0 0.0
  %614 = vmatpush1.msra.mxu0 %v178
  %615 = vmatprep.subr.mxu0 0.0
  %616 = vmatpush1.msra.mxu0 %v179
  %617 = vmatprep.subr.mxu0 0.0
  %618 = vmatpush1.msra.mxu0 %v180
  %619 = vmatprep.subr.mxu0 0.0
  %620 = vmatpush1.msra.mxu0 %v181
  %621 = vmatprep.subr.mxu0 0.0
  %622 = vmatpush1.msra.mxu0 %v182
  %623 = vmatprep.subr.mxu0 0.0
  %624 = vmatpush1.msra.mxu0 %v183
  %625 = vmatprep.subr.mxu0 0.0
  %626 = vmatpush1.msra.mxu0 %v184
  %627 = vmatprep.subr.mxu0 0.0
  %628 = vmatpush1.msra.mxu0 %v185
  %629 = vmatprep.subr.mxu0 0.0
  %630 = vmatpush1.msra.mxu0 %v186
  %631 = vmatprep.subr.mxu0 0.0
  %632 = vmatpush1.msra.mxu0 %v187
  %633 = vmatprep.subr.mxu0 0.0
  %634 = vmatpush1.msra.mxu0 %v188
  %635 = vmatprep.subr.mxu0 0.0
  %636 = vmatpush1.msra.mxu0 %v189
  %637 = vmatprep.mubr.f32.mxu0 %v23
  %638 = vmatmul.mubr.f32.gmra.mrb[0].mxu0 %v22
  %v639 = vpop.f32.mrb[0].mxu0
  %v640 = vadd.f32 %v570, %v639
  %v641 = vpop.f32.mrb[0].mxu0
  %642 = vdwg.mxu0
  %643 = vmatprep.subr.mxu0 0.0
  %644 = vmatpush1.msra.mxu0 %v190
  %645 = vmatprep.subr.mxu0 0.0
  %646 = vmatpush1.msra.mxu0 %v191
  %647 = vmatprep.subr.mxu0 0.0
  %648 = vmatpush1.msra.mxu0 %v192
  %649 = vmatprep.subr.mxu0 0.0
  %650 = vmatpush1.msra.mxu0 %v193
  %651 = vmatprep.subr.mxu0 0.0
  %652 = vmatpush1.msra.mxu0 %v194
  %653 = vmatprep.subr.mxu0 0.0
  %654 = vmatpush1.msra.mxu0 %v195
  %655 = vmatprep.subr.mxu0 0.0
  %656 = vmatpush1.msra.mxu0 %v196
  %657 = vmatprep.subr.mxu0 0.0
  %658 = vmatpush1.msra.mxu0 %v197
  %659 = vmatprep.subr.mxu0 0.0
  %660 = vmatpush1.msra.mxu0 %v198
  %661 = vmatprep.subr.mxu0 0.0
  %662 = vmatpush1.msra.mxu0 %v199
  %663 = vmatprep.subr.mxu0 0.0
  %664 = vmatpush1.msra.mxu0 %v200
  %665 = vmatprep.subr.mxu0 0.0
  %666 = vmatpush1.msra.mxu0 %v201
  %667 = vmatprep.subr.mxu0 0.0
  %668 = vmatpush1.msra.mxu0 %v202
  %669 = vmatprep.subr.mxu0 0.0
  %670 = vmatpush1.msra.mxu0 %v203
  %671 = vmatprep.subr.mxu0 0.0
  %672 = vmatpush1.msra.mxu0 %v204
  %673 = vmatprep.subr.mxu0 0.0
  %674 = vmatpush1.msra.mxu0 %v205
  %675 = vmatprep.subr.mxu0 0.0
  %676 = vmatpush1.msra.mxu0 %v206
  %677 = vmatprep.subr.mxu0 0.0
  %678 = vmatpush1.msra.mxu0 %v207
  %679 = vmatprep.subr.mxu0 0.0
  %680 = vmatpush1.msra.mxu0 %v208
  %681 = vmatprep.subr.mxu0 0.0
  %682 = vmatpush1.msra.mxu0 %v209
  %683 = vmatprep.subr.mxu0 0.0
  %684 = vmatpush1.msra.mxu0 %v210
  %685 = vmatprep.subr.mxu0 0.0
  %686 = vmatpush1.msra.mxu0 %v211
  %687 = vmatprep.subr.mxu0 0.0
  %688 = vmatpush1.msra.mxu0 %v212
  %689 = vmatprep.subr.mxu0 0.0
  %690 = vmatpush1.msra.mxu0 %v213
  %691 = vmatprep.subr.mxu0 0.0
  %692 = vmatpush1.msra.mxu0 %v214
  %693 = vmatprep.subr.mxu0 0.0
  %694 = vmatpush1.msra.mxu0 %v215
  %695 = vmatprep.subr.mxu0 0.0
  %696 = vmatpush1.msra.mxu0 %v216
  %697 = vmatprep.subr.mxu0 0.0
  %698 = vmatpush1.msra.mxu0 %v217
  %699 = vmatprep.subr.mxu0 0.0
  %700 = vmatpush1.msra.mxu0 %v218
  %701 = vmatprep.subr.mxu0 0.0
  %702 = vmatpush1.msra.mxu0 %v219
  %703 = vmatprep.subr.mxu0 0.0
  %704 = vmatpush1.msra.mxu0 %v220
  %705 = vmatprep.subr.mxu0 0.0
  %706 = vmatpush1.msra.mxu0 %v221
  %707 = vmatprep.mubr.f32.mxu0 %v25
  %708 = vmatmul.mubr.f32.gmra.mrb[0].mxu0 %v24
  %v709 = vpop.f32.mrb[0].mxu0
  %v710 = vadd.f32 %v640, %v709
  %v711 = vpop.f32.mrb[0].mxu0
  %712 = vdwg.mxu0
  %713 = vmatprep.subr.mxu0 0.0
  %714 = vmatpush1.msra.mxu0 %v222
  %715 = vmatprep.subr.mxu0 0.0
  %716 = vmatpush1.msra.mxu0 %v223
  %717 = vmatprep.subr.mxu0 0.0
  %718 = vmatpush1.msra.mxu0 %v224
  %719 = vmatprep.subr.mxu0 0.0
  %720 = vmatpush1.msra.mxu0 %v225
  %721 = vmatprep.subr.mxu0 0.0
  %722 = vmatpush1.msra.mxu0 %v226
  %723 = vmatprep.subr.mxu0 0.0
  %724 = vmatpush1.msra.mxu0 %v227
  %725 = vmatprep.subr.mxu0 0.0
  %726 = vmatpush1.msra.mxu0 %v228
  %727 = vmatprep.subr.mxu0 0.0
  %728 = vmatpush1.msra.mxu0 %v229
  %729 = vmatprep.subr.mxu0 0.0
  %730 = vmatpush1.msra.mxu0 %v230
  %731 = vmatprep.subr.mxu0 0.0
  %732 = vmatpush1.msra.mxu0 %v231
  %733 = vmatprep.subr.mxu0 0.0
  %734 = vmatpush1.msra.mxu0 %v232
  %735 = vmatprep.subr.mxu0 0.0
  %736 = vmatpush1.msra.mxu0 %v233
  %737 = vmatprep.subr.mxu0 0.0
  %738 = vmatpush1.msra.mxu0 %v234
  %739 = vmatprep.subr.mxu0 0.0
  %740 = vmatpush1.msra.mxu0 %v235
  %741 = vmatprep.subr.mxu0 0.0
  %742 = vmatpush1.msra.mxu0 %v236
  %743 = vmatprep.subr.mxu0 0.0
  %744 = vmatpush1.msra.mxu0 %v237
  %745 = vmatprep.subr.mxu0 0.0
  %746 = vmatpush1.msra.mxu0 %v238
  %747 = vmatprep.subr.mxu0 0.0
  %748 = vmatpush1.msra.mxu0 %v239
  %749 = vmatprep.subr.mxu0 0.0
  %750 = vmatpush1.msra.mxu0 %v240
  %751 = vmatprep.subr.mxu0 0.0
  %752 = vmatpush1.msra.mxu0 %v241
  %753 = vmatprep.subr.mxu0 0.0
  %754 = vmatpush1.msra.mxu0 %v242
  %755 = vmatprep.subr.mxu0 0.0
  %756 = vmatpush1.msra.mxu0 %v243
  %757 = vmatprep.subr.mxu0 0.0
  %758 = vmatpush1.msra.mxu0 %v244
  %759 = vmatprep.subr.mxu0 0.0
  %760 = vmatpush1.msra.mxu0 %v245
  %761 = vmatprep.subr.mxu0 0.0
  %762 = vmatpush1.msra.mxu0 %v246
  %763 = vmatprep.subr.mxu0 0.0
  %764 = vmatpush1.msra.mxu0 %v247
  %765 = vmatprep.subr.mxu0 0.0
  %766 = vmatpush1.msra.mxu0 %v248
  %767 = vmatprep.subr.mxu0 0.0
  %768 = vmatpush1.msra.mxu0 %v249
  %769 = vmatprep.subr.mxu0 0.0
  %770 = vmatpush1.msra.mxu0 %v250
  %771 = vmatprep.subr.mxu0 0.0
  %772 = vmatpush1.msra.mxu0 %v251
  %773 = vmatprep.subr.mxu0 0.0
  %774 = vmatpush1.msra.mxu0 %v252
  %775 = vmatprep.subr.mxu0 0.0
  %776 = vmatpush1.msra.mxu0 %v253
  %777 = vmatprep.mubr.f32.mxu0 %v27
  %778 = vmatmul.mubr.f32.gmra.mrb[0].mxu0 %v26
  %v779 = vpop.f32.mrb[0].mxu0
  %v780 = vadd.f32 %v710, %v779
  %v781 = vpop.f32.mrb[0].mxu0
  %782 = vdwg.mxu0
  %783 = vmatprep.subr.mxu0 0.0
  %784 = vmatpush1.msra.mxu0 %v254
  %785 = vmatprep.subr.mxu0 0.0
  %786 = vmatpush1.msra.mxu0 %v255
  %787 = vmatprep.subr.mxu0 0.0
  %788 = vmatpush1.msra.mxu0 %v256
  %789 = vmatprep.subr.mxu0 0.0
  %790 = vmatpush1.msra.mxu0 %v257
  %791 = vmatprep.subr.mxu0 0.0
  %792 = vmatpush1.msra.mxu0 %v258
  %793 = vmatprep.subr.mxu0 0.0
  %794 = vmatpush1.msra.mxu0 %v259
  %795 = vmatprep.subr.mxu0 0.0
  %796 = vmatpush1.msra.mxu0 %v260
  %797 = vmatprep.subr.mxu0 0.0
  %798 = vmatpush1.msra.mxu0 %v261
  %799 = vmatprep.subr.mxu0 0.0
  %800 = vmatpush1.msra.mxu0 %v262
  %801 = vmatprep.subr.mxu0 0.0
  %802 = vmatpush1.msra.mxu0 %v263
  %803 = vmatprep.subr.mxu0 0.0
  %804 = vmatpush1.msra.mxu0 %v264
  %805 = vmatprep.subr.mxu0 0.0
  %806 = vmatpush1.msra.mxu0 %v265
  %807 = vmatprep.subr.mxu0 0.0
  %808 = vmatpush1.msra.mxu0 %v266
  %809 = vmatprep.subr.mxu0 0.0
  %810 = vmatpush1.msra.mxu0 %v267
  %811 = vmatprep.subr.mxu0 0.0
  %812 = vmatpush1.msra.mxu0 %v268
  %813 = vmatprep.subr.mxu0 0.0
  %814 = vmatpush1.msra.mxu0 %v269
  %815 = vmatprep.subr.mxu0 0.0
  %816 = vmatpush1.msra.mxu0 %v270
  %817 = vmatprep.subr.mxu0 0.0
  %818 = vmatpush1.msra.mxu0 %v271
  %819 = vmatprep.subr.mxu0 0.0
  %820 = vmatpush1.msra.mxu0 %v272
  %821 = vmatprep.subr.mxu0 0.0
  %822 = vmatpush1.msra.mxu0 %v273
  %823 = vmatprep.subr.mxu0 0.0
  %824 = vmatpush1.msra.mxu0 %v274
  %825 = vmatprep.subr.mxu0 0.0
  %826 = vmatpush1.msra.mxu0 %v275
  %827 = vmatprep.subr.mxu0 0.0
  %828 = vmatpush1.msra.mxu0 %v276
  %829 = vmatprep.subr.mxu0 0.0
  %830 = vmatpush1.msra.mxu0 %v277
  %831 = vmatprep.subr.mxu0 0.0
  %832 = vmatpush1.msra.mxu0 %v278
  %833 = vmatprep.subr.mxu0 0.0
  %834 = vmatpush1.msra.mxu0 %v279
  %835 = vmatprep.subr.mxu0 0.0
  %836 = vmatpush1.msra.mxu0 %v280
  %837 = vmatprep.subr.mxu0 0.0
  %838 = vmatpush1.msra.mxu0 %v281
  %839 = vmatprep.subr.mxu0 0.0
  %840 = vmatpush1.msra.mxu0 %v282
  %841 = vmatprep.subr.mxu0 0.0
  %842 = vmatpush1.msra.mxu0 %v283
  %843 = vmatprep.subr.mxu0 0.0
  %844 = vmatpush1.msra.mxu0 %v284
  %845 = vmatprep.subr.mxu0 0.0
  %846 = vmatpush1.msra.mxu0 %v285
  %847 = vmatprep.mubr.f32.mxu0 %v29
  %848 = vmatmul.mubr.f32.gmra.mrb[0].mxu0 %v28
  %v849 = vpop.f32.mrb[0].mxu0
  %v850 = vadd.f32 %v780, %v849
  %v851 = vpop.f32.mrb[0].mxu0
  %852 = vdwg.mxu0
  %v853 = vlaneseq
  %v854 = vand.u32 %v853, 127
  %vm855 = vcmp.ge.s32.totalorder %v854, 0
  %vm856 = vcmp.lt.s32.totalorder %v854, 10
  %vm857 = vmand %vm855, %vm856
  %v858 = vsel %vm857, %v850, -inf
  %859 = vmax.xlane.f32.xlu0 %v858
  %v860 = vpop.xlane.xlu0 %859
  %v861 = vsub.f32 %v858, %v860
  %v862 = vmul.f32 %v861, 1.442695
  %v863 = vpow.pop %v862
  %864 = vadd.xlane.f32.xlu0 %v863
  %v865 = vpop.xlane.xlu0 %864
  %v866 = vlog2.pop %v865
  %v867 = vmul.f32 %v866, 0.6931472
  %v868 = vsub.f32 %v861, %v867
  %v869 = vsel %vm857, %v868, 0.0
  %vm870 = vcmp.ge.s32.totalorder %v854, 10
  %vm871 = vcmp.lt.s32.totalorder %v854, 12
  %vm872 = vmand %vm870, %vm871
  %v873 = vsel %vm872, %v850, -inf
  %874 = vmax.xlane.f32.xlu0 %v873
  %v875 = vpop.xlane.xlu0 %874
  %v876 = vsub.f32 %v873, %v875
  %v877 = vmul.f32 %v876, 1.442695
  %v878 = vpow.pop %v877
  %879 = vadd.xlane.f32.xlu0 %v878
  %v880 = vpop.xlane.xlu0 %879
  %v881 = vlog2.pop %v880
  %v882 = vmul.f32 %v881, 0.6931472
  %v883 = vsub.f32 %v876, %v882
  %v884 = vsel %vm872, %v883, %v869
  %vm885 = vcmp.ge.s32.totalorder %v854, 12
  %vm886 = vcmp.lt.s32.totalorder %v854, 14
  %vm887 = vmand %vm885, %vm886
  %v888 = vsel %vm887, %v850, -inf
  %889 = vmax.xlane.f32.xlu0 %v888
  %v890 = vpop.xlane.xlu0 %889
  %v891 = vsub.f32 %v888, %v890
  %v892 = vmul.f32 %v891, 1.442695
  %v893 = vpow.pop %v892
  %894 = vadd.xlane.f32.xlu0 %v893
  %v895 = vpop.xlane.xlu0 %894
  %v896 = vlog2.pop %v895
  %v897 = vmul.f32 %v896, 0.6931472
  %v898 = vsub.f32 %v891, %v897
  %v899 = vsel %vm887, %v898, %v884
  %vm900 = vcmp.ge.s32.totalorder %v854, 14
  %vm901 = vcmp.lt.s32.totalorder %v854, 16
  %vm902 = vmand %vm900, %vm901
  %v903 = vsel %vm902, %v850, -inf
  %904 = vmax.xlane.f32.xlu0 %v903
  %v905 = vpop.xlane.xlu0 %904
  %v906 = vsub.f32 %v903, %v905
  %v907 = vmul.f32 %v906, 1.442695
  %v908 = vpow.pop %v907
  %909 = vadd.xlane.f32.xlu0 %v908
  %v910 = vpop.xlane.xlu0 %909
  %v911 = vlog2.pop %v910
  %v912 = vmul.f32 %v911, 0.6931472
  %v913 = vsub.f32 %v906, %v912
  %v914 = vsel %vm902, %v913, %v899
  %915 = vst [vmem:[%s3] sm:$0xff] %v914
  // Predicated region
  $region14: #{ournet_forward.5} parent=0 // pred_check
    _
  $region15: #{ournet_forward.5} parent=0 // pred_check_branch
    %917 = sbr.rel (0) target = $region17
  $region16: #{ournet_forward.5} parent=0 // pred_region
    _
  $region17: #{ournet_forward.5} parent=0 // pred_fallthru
    _
  // Predicated region
  $region18: #{ournet_forward.5} parent=0 // pred_check
    _
  $region19: #{ournet_forward.5} parent=0 // pred_check_branch
    %919 = sbr.rel (0) target = $region21
  $region20: #{ournet_forward.5} parent=0 // pred_region
    _
  $region21: #{ournet_forward.5} parent=0 // pred_fallthru
    _

// kernel: ournet_forward.4
$region0: #{ournet_forward.4}
  #allocation0 [shape = 'u32[]', space=smem, size = 0x4, offset = 0x4, fixed_abs, tag = 'smem constant byte address 0x4 - core index']
  #allocation1 [shape = 'u32[144,128]{1,0:T(1,128)}', space=vmem, size = 0x12000, scoped, tag = 'internal scratch']
  %s0 = inlined_call_operand.vmem [shape: bf16[4,64,384], index: 0, kind: input, shape index: {}]
  %s1 = inlined_call_operand.vmem [shape: bf16[9,1,128], index: 1, kind: input, shape index: {}]
  %s2 = inlined_call_operand.vmem [shape: bf16[128,576], index: 2, kind: input, shape index: {}]
  %s3 = inlined_call_operand.vmem [shape: f32[128,1], index: 3, kind: input, shape index: {}]
  %s4 = inlined_call_operand.vmem [shape: f32[32,1], index: 4, kind: input, shape index: {}]
  %s5 = inlined_call_operand.vmem [shape: f32[32,1], index: 5, kind: input, shape index: {}]
  %s6 = inlined_call_operand.vmem [shape: f32[128,128], index: 6, kind: output, shape index: {}]
  %s7 = sld [smem:[#allocation0]]
  $region57: #{ournet_forward.4} parent=0
    _
  %s9 = ssub.s32 1, %s7
  %s10 = scalar_select 0, %s9, %s7
  loop: start=0, step=1, limit=4
  $region2: #{ournet_forward.4} parent=0 // loop_pre_header
    _
  $region3: #{ournet_forward.4} parent=0 // loop_header
    %s12 = sphi 0, %s16
    %p13 = scmp.ge.s32.totalorder %s12, 4
    %s22 = sphi 0, %s24
    %s25 = sphi 0, %s22
    %s26 = sphi 0, %s25
    %s42 = sphi 0, %s26
    %s46 = sphi 0, %s46
    %s48 = sphi 0, %s46
    %s49 = sphi 0, %s48
    %s63 = sphi 0, %s49
    %s67 = sphi 0, %s67
    %s69 = sphi 0, %s67
    %s70 = sphi 0, %s69
    %s84 = sphi 0, %s70
    %s88 = sphi 0, %s88
    %s90 = sphi 0, %s88
    %s91 = sphi 0, %s90
    %s105 = sphi 0, %s91
    %s109 = sphi 0, %s109
    %s111 = sphi 0, %s109
    %s112 = sphi 0, %s111
    %s126 = sphi 0, %s112
    %s130 = sphi 0, %s130
    %s132 = sphi 0, %s130
    %s133 = sphi 0, %s132
    %s147 = sphi 0, %s133
    %s153 = sphi 0, %s155
    %s156 = sphi 0, %s153
    %s157 = sphi 0, %s156
    %s173 = sphi 0, %s157
  $region4: #{ournet_forward.4} parent=0 // loop_header_branch
    %15 = sbr.rel (%p13) target = $region8
  $region5: #{ournet_forward.4} parent=0 // loop_body
    %s17 = ssub.s32 %s12, 1
    %s18 = ssub.s32 %s12, 2
    %s19 = sadd.s32 %s12, 1
    %s20 = ssub.s32 %s12, %s19
    %p21 = scmp.eq.s32.totalorder %s20, 0
    %s23 = sadd.s32 %s22, 1
    %s24 = scalar_select %p21, %s22, %s23
    %p27 = pneg %p21
    %p28 = scmp.eq.s32.totalorder %s12, 1
    %p29 = por %p27, %p28
    %p30 = scmp.ne.s32.totalorder %s22, %s25
    %p31 = scmp.eq.s32.totalorder %s12, 0
    %p32 = por %p30, %p31
    %p33 = scmp.ne.s32.totalorder %s22, %s25
    %p34 = scmp.eq.s32.totalorder %s17, 1
    %p35 = por %p33, %p34
    %p36 = scmp.ne.s32.totalorder %s25, %s26
    %p37 = scmp.eq.s32.totalorder %s17, 0
    %p38 = por %p36, %p37
    %p39 = scmp.ne.s32.totalorder %s25, %s26
    %p40 = scmp.eq.s32.totalorder %s18, 1
    %p41 = por %p39, %p40
    %p43 = scmp.ne.s32.totalorder %s26, %s42
    %p44 = scmp.eq.s32.totalorder %s18, 0
    %p45 = por %p43, %p44
    %s47 = sadd.s32 %s46, 1
    %p50 = scmp.eq.s32.totalorder %s12, 1
    %p51 = scmp.ne.s32.totalorder %s46, %s48
    %p52 = scmp.eq.s32.totalorder %s12, 0
    %p53 = por %p51, %p52
    %p54 = scmp.ne.s32.totalorder %s46, %s48
    %p55 = scmp.eq.s32.totalorder %s17, 1
    %p56 = por %p54, %p55
    %p57 = scmp.ne.s32.totalorder %s48, %s49
    %p58 = scmp.eq.s32.totalorder %s17, 0
    %p59 = por %p57, %p58
    %p60 = scmp.ne.s32.totalorder %s48, %s49
    %p61 = scmp.eq.s32.totalorder %s18, 1
    %p62 = por %p60, %p61
    %p64 = scmp.ne.s32.totalorder %s49, %s63
    %p65 = scmp.eq.s32.totalorder %s18, 0
    %p66 = por %p64, %p65
    %s68 = sadd.s32 %s67, 1
    %p71 = scmp.eq.s32.totalorder %s12, 1
    %p72 = scmp.ne.s32.totalorder %s67, %s69
    %p73 = scmp.eq.s32.totalorder %s12, 0
    %p74 = por %p72, %p73
    %p75 = scmp.ne.s32.totalorder %s67, %s69
    %p76 = scmp.eq.s32.totalorder %s17, 1
    %p77 = por %p75, %p76
    %p78 = scmp.ne.s32.totalorder %s69, %s70
    %p79 = scmp.eq.s32.totalorder %s17, 0
    %p80 = por %p78, %p79
    %p81 = scmp.ne.s32.totalorder %s69, %s70
    %p82 = scmp.eq.s32.totalorder %s18, 1
    %p83 = por %p81, %p82
    %p85 = scmp.ne.s32.totalorder %s70, %s84
    %p86 = scmp.eq.s32.totalorder %s18, 0
    %p87 = por %p85, %p86
    %s89 = sadd.s32 %s88, 1
    %p92 = scmp.eq.s32.totalorder %s12, 1
    %p93 = scmp.ne.s32.totalorder %s88, %s90
    %p94 = scmp.eq.s32.totalorder %s12, 0
    %p95 = por %p93, %p94
    %p96 = scmp.ne.s32.totalorder %s88, %s90
    %p97 = scmp.eq.s32.totalorder %s17, 1
    %p98 = por %p96, %p97
    %p99 = scmp.ne.s32.totalorder %s90, %s91
    %p100 = scmp.eq.s32.totalorder %s17, 0
    %p101 = por %p99, %p100
    %p102 = scmp.ne.s32.totalorder %s90, %s91
    %p103 = scmp.eq.s32.totalorder %s18, 1
    %p104 = por %p102, %p103
    %p106 = scmp.ne.s32.totalorder %s91, %s105
    %p107 = scmp.eq.s32.totalorder %s18, 0
    %p108 = por %p106, %p107
    %s110 = sadd.s32 %s109, 1
    %p113 = scmp.eq.s32.totalorder %s12, 1
    %p114 = scmp.ne.s32.totalorder %s109, %s111
    %p115 = scmp.eq.s32.totalorder %s12, 0
    %p116 = por %p114, %p115
    %p117 = scmp.ne.s32.totalorder %s109, %s111
    %p118 = scmp.eq.s32.totalorder %s17, 1
    %p119 = por %p117, %p118
    %p120 = scmp.ne.s32.totalorder %s111, %s112
    %p121 = scmp.eq.s32.totalorder %s17, 0
    %p122 = por %p120, %p121
    %p123 = scmp.ne.s32.totalorder %s111, %s112
    %p124 = scmp.eq.s32.totalorder %s18, 1
    %p125 = por %p123, %p124
    %p127 = scmp.ne.s32.totalorder %s112, %s126
    %p128 = scmp.eq.s32.totalorder %s18, 0
    %p129 = por %p127, %p128
    %s131 = sadd.s32 %s130, 1
    %p134 = scmp.eq.s32.totalorder %s12, 1
    %p135 = scmp.ne.s32.totalorder %s130, %s132
    %p136 = scmp.eq.s32.totalorder %s12, 0
    %p137 = por %p135, %p136
    %p138 = scmp.ne.s32.totalorder %s130, %s132
    %p139 = scmp.eq.s32.totalorder %s17, 1
    %p140 = por %p138, %p139
    %p141 = scmp.ne.s32.totalorder %s132, %s133
    %p142 = scmp.eq.s32.totalorder %s17, 0
    %p143 = por %p141, %p142
    %p144 = scmp.ne.s32.totalorder %s132, %s133
    %p145 = scmp.eq.s32.totalorder %s18, 1
    %p146 = por %p144, %p145
    %p148 = scmp.ne.s32.totalorder %s133, %s147
    %p149 = scmp.eq.s32.totalorder %s18, 0
    %p150 = por %p148, %p149
    %s151 = ssub.s32 %s12, %s19
    %p152 = scmp.eq.s32.totalorder %s151, 0
    %s154 = sadd.s32 %s153, 1
    %s155 = scalar_select %p152, %s153, %s154
    %p158 = pneg %p152
    %p159 = scmp.eq.s32.totalorder %s12, 1
    %p160 = por %p158, %p159
    %p161 = scmp.ne.s32.totalorder %s153, %s156
    %p162 = scmp.eq.s32.totalorder %s12, 0
    %p163 = por %p161, %p162
    %p164 = scmp.ne.s32.totalorder %s153, %s156
    %p165 = scmp.eq.s32.totalorder %s17, 1
    %p166 = por %p164, %p165
    %p167 = scmp.ne.s32.totalorder %s156, %s157
    %p168 = scmp.eq.s32.totalorder %s17, 0
    %p169 = por %p167, %p168
    %p170 = scmp.ne.s32.totalorder %s156, %s157
    %p171 = scmp.eq.s32.totalorder %s18, 1
    %p172 = por %p170, %p171
    %p174 = scmp.ne.s32.totalorder %s157, %s173
    %p175 = scmp.eq.s32.totalorder %s18, 0
    %p176 = por %p174, %p175
    %p177 = scmp.le.s32.totalorder 1, %s12
    %p178 = scmp.lt.s32.totalorder %s12, 3
    %p179 = pnand %p177, %p178
    %p180 = pneg %p179
    // Predicated region
    $region9: #{ournet_forward.4} parent=5 // pred_check
      _
    $region10: #{ournet_forward.4} parent=5 // pred_check_branch
      %182 = sbr.rel (%p179) target = $region12
    $region11: #{ournet_forward.4} parent=5 // pred_region
      %s183 = ssub.s32 %s12, 1
      // Predicated region
      $region13: #{ournet_forward.4} parent=11 // pred_check
        %p184 = pneg %p59
      $region14: #{ournet_forward.4} parent=11 // pred_check_branch
        %186 = sbr.rel (%p184) target = $region16
      $region15: #{ournet_forward.4} parent=11 // pred_region
        _
      $region16: #{ournet_forward.4} parent=11 // pred_fallthru
        _
      // Predicated region
      $region17: #{ournet_forward.4} parent=11 // pred_check
        %p187 = pneg %p80
      $region18: #{ournet_forward.4} parent=11 // pred_check_branch
        %189 = sbr.rel (%p187) target = $region20
      $region19: #{ournet_forward.4} parent=11 // pred_region
        _
      $region20: #{ournet_forward.4} parent=11 // pred_fallthru
        _
      // Predicated region
      $region21: #{ournet_forward.4} parent=11 // pred_check
        %p190 = pneg %p101
      $region22: #{ournet_forward.4} parent=11 // pred_check_branch
        %192 = sbr.rel (%p190) target = $region24
      $region23: #{ournet_forward.4} parent=11 // pred_region
        _
      $region24: #{ournet_forward.4} parent=11 // pred_fallthru
        _
      // Predicated region
      $region25: #{ournet_forward.4} parent=11 // pred_check
        %p193 = pneg %p122
      $region26: #{ournet_forward.4} parent=11 // pred_check_branch
        %195 = sbr.rel (%p193) target = $region28
      $region27: #{ournet_forward.4} parent=11 // pred_region
        _
      $region28: #{ournet_forward.4} parent=11 // pred_fallthru
        _
      // Predicated region
      $region29: #{ournet_forward.4} parent=11 // pred_check
        %p196 = pneg %p143
      $region30: #{ournet_forward.4} parent=11 // pred_check_branch
        %198 = sbr.rel (%p196) target = $region32
      $region31: #{ournet_forward.4} parent=11 // pred_region
        _
      $region32: #{ournet_forward.4} parent=11 // pred_fallthru
        _
    $region12: #{ournet_forward.4} parent=5 // pred_fallthru
      _
    %p199 = scmp.lt.s32.totalorder %s12, 2
    // Predicated region
    $region33: #{ournet_forward.4} parent=5 // pred_check
      %p200 = pneg %p199
    $region34: #{ournet_forward.4} parent=5 // pred_check_branch
      %202 = sbr.rel (%p200) target = $region36
    $region35: #{ournet_forward.4} parent=5 // pred_region
      // Predicated region
      $region37: #{ournet_forward.4} parent=35 // pred_check
        %p203 = pneg %p32
      $region38: #{ournet_forward.4} parent=35 // pred_check_branch
        %205 = sbr.rel (%p203) target = $region40
      $region39: #{ournet_forward.4} parent=35 // pred_region
        %s206 = smul.u32 2, %s12
        %p207 = scmp.lt.s32.totalorder %s206, 3
        %s208 = scalar_select %p207, %s206, 3
        %s209 = smul.addr %s208, 24
        %s210 = smul.addr %s209, 4
        %s211 = scalar_lea.vmem %s0, %s210
        %s212 = smul.u32 2, %s12
      $region40: #{ournet_forward.4} parent=35 // pred_fallthru
        _
    $region36: #{ournet_forward.4} parent=5 // pred_fallthru
      _
    %p213 = scmp.le.s32.totalorder 1, %s12
    %p214 = scmp.lt.s32.totalorder %s12, 3
    %p215 = pnand %p213, %p214
    %p216 = pneg %p215
    // Predicated region
    $region41: #{ournet_forward.4} parent=5 // pred_check
      _
    $region42: #{ournet_forward.4} parent=5 // pred_check_branch
      %218 = sbr.rel (%p215) target = $region44
    $region43: #{ournet_forward.4} parent=5 // pred_region
      %s219 = ssub.s32 %s12, 1
      %s220 = smul.u32 2, %s17
      %p221 = scmp.lt.s32.totalorder %s220, 3
      %s222 = scalar_select %p221, %s220, 3
      %s223 = smul.addr %s222, 24
      %s224 = smul.addr %s223, 4
      %s225 = scalar_lea.vmem %s0, %s224
      %p226 = pneg %p38
      %p227 = pneg %p35
      %p228 = pneg %p59
      %p229 = pneg %p56
      %p230 = pneg %p80
      %p231 = pneg %p77
      %p232 = pneg %p101
      %p233 = pneg %p98
      %p234 = pneg %p122
      %p235 = pneg %p119
      %p236 = pneg %p143
      %p237 = pneg %p140
      %p238 = pneg %p169
      %p239 = pneg %p166
      %s240 = smul.u32 8, %s17
      %p241 = scmp.lt.s32.totalorder %s240, 15
      %s242 = scalar_select %p241, %s240, 15
      %s243 = smul.addr %s242, 8
      %s244 = scalar_lea.vmem %s6, %s243
      %s245 = smul.u32 2, %s17
      %p246 = scmp.lt.s32.totalorder %s245, 3
      %s247 = scalar_select %p246, %s245, 3
      %s248 = smul.addr %s247, 24
      %s249 = smul.addr %s248, 4
      %s250 = scalar_lea.vmem %s0, %s249
      %s251 = smul.u32 2, %s17
      %s252 = smul.u32 8, %s17
      %p253 = scmp.lt.s32.totalorder %s252, 15
      %s254 = scalar_select %p253, %s252, 15
      %s255 = smul.addr %s254, 8
      %s256 = scalar_lea.vmem %s6, %s255
      %s257 = smul.u32 8, %s17
      %v259 = vld [vmem:[%s2] sm:$0xff]
      %v260 = vld [vmem:[%s2 + $0x8] sm:$0xff]
      %v261 = vld [vmem:[%s2 + $0x10] sm:$0xf]
      %v262 = vld [vmem:[%s2 + $0x14] sm:$0xff]
      %v263 = vld [vmem:[%s2 + $0x1c] sm:$0xff]
      %v264 = vld [vmem:[%s2 + $0x24] sm:$0xf]
      %v265 = vld [vmem:[%s2 + $0x28] sm:$0xff]
      %v266 = vld [vmem:[%s2 + $0x30] sm:$0xff]
      %v267 = vld [vmem:[%s2 + $0x38] sm:$0xf]
      %v268 = vld [vmem:[%s2 + $0x3c] sm:$0xff]
      %v269 = vld [vmem:[%s2 + $0x44] sm:$0xff]
      %v270 = vld [vmem:[%s2 + $0x4c] sm:$0xf]
      %v271 = vld [vmem:[%s2 + $0x50] sm:$0xff]
      %v272 = vld [vmem:[%s2 + $0x58] sm:$0xff]
      %v273 = vld [vmem:[%s2 + $0x60] sm:$0xf]
      %v274 = vld [vmem:[%s2 + $0x64] sm:$0xff]
      %v275 = vld [vmem:[%s2 + $0x6c] sm:$0xff]
      %v276 = vld [vmem:[%s2 + $0x74] sm:$0xf]
      %v277 = vld [vmem:[%s2 + $0x78] sm:$0xff]
      %v278 = vld [vmem:[%s2 + $0x80] sm:$0xff]
      %v279 = vld [vmem:[%s2 + $0x88] sm:$0xf]
      %v280 = vld [vmem:[%s2 + $0x8c] sm:$0xff]
      %v281 = vld [vmem:[%s2 + $0x94] sm:$0xff]
      %v282 = vld [vmem:[%s2 + $0x9c] sm:$0xf]
      %v283 = vld [vmem:[%s2 + $0xa0] sm:$0xff]
      %v284 = vld [vmem:[%s2 + $0xa8] sm:$0xff]
      %v285 = vld [vmem:[%s2 + $0xb0] sm:$0xf]
      %v286 = vld [vmem:[%s2 + $0xb4] sm:$0xff]
      %v287 = vld [vmem:[%s2 + $0xbc] sm:$0xff]
      %v288 = vld [vmem:[%s2 + $0xc4] sm:$0xf]
      %v289 = vld [vmem:[%s2 + $0xc8] sm:$0xff]
      %v290 = vld [vmem:[%s2 + $0xd0] sm:$0xff]
      %v291 = vld [vmem:[%s2 + $0xd8] sm:$0xf]
      %v292 = vld [vmem:[%s2 + $0xdc] sm:$0xff]
      %v293 = vld [vmem:[%s2 + $0xe4] sm:$0xff]
      %v294 = vld [vmem:[%s2 + $0xec] sm:$0xf]
      %v295 = vld [vmem:[%s2 + $0xf0] sm:$0xff]
      %v296 = vld [vmem:[%s2 + $0xf8] sm:$0xff]
      %v297 = vld [vmem:[%s2 + $0x100] sm:$0xf]
      %v298 = vld [vmem:[%s2 + $0x104] sm:$0xff]
      %v299 = vld [vmem:[%s2 + $0x10c] sm:$0xff]
      %v300 = vld [vmem:[%s2 + $0x114] sm:$0xf]
      %v301 = vld [vmem:[%s2 + $0x118] sm:$0xff]
      %v302 = vld [vmem:[%s2 + $0x120] sm:$0xff]
      %v303 = vld [vmem:[%s2 + $0x128] sm:$0xf]
      %v304 = vld [vmem:[%s2 + $0x12c] sm:$0xff]
      %v305 = vld [vmem:[%s2 + $0x134] sm:$0xff]
      %v306 = vld [vmem:[%s2 + $0x13c] sm:$0xf]
      %v307 = vld [vmem:[%s1] sm:$0x1]
      %v308 = vld [vmem:[%s1 + $0x1] sm:$0x1]
      %v309 = vld [vmem:[%s1 + $0x2] sm:$0x1]
      %v310 = vld [vmem:[%s1 + $0x3] sm:$0x1]
      %v311 = vld [vmem:[%s1 + $0x5] sm:$0x1]
      %v312 = vld [vmem:[%s1 + $0x6] sm:$0x1]
      %v313 = vld [vmem:[%s1 + $0x7] sm:$0x1]
      %v314 = vld [vmem:[%s1 + $0x8] sm:$0x1]
      %v315 = vld [vmem:[%s3] sm:$0xff]
      %v316 = vld [vmem:[%s3 + $0x8] sm:$0xff]
      %v317 = vld [vmem:[%s3 + $0x10] sm:$0xff]
      %v318 = vld [vmem:[%s3 + $0x18] sm:$0xff]
      %v319 = vld [vmem:[%s3 + $0x20] sm:$0xff]
      %v320 = vld [vmem:[%s3 + $0x28] sm:$0xff]
      %v321 = vld [vmem:[%s3 + $0x30] sm:$0xff]
      %v322 = vld [vmem:[%s3 + $0x38] sm:$0xff]
      %v323 = vld [vmem:[%s3 + $0x40] sm:$0xff]
      %v324 = vld [vmem:[%s3 + $0x48] sm:$0xff]
      %v325 = vld [vmem:[%s3 + $0x50] sm:$0xff]
      %v326 = vld [vmem:[%s3 + $0x58] sm:$0xff]
      %v327 = vld [vmem:[%s3 + $0x60] sm:$0xff]
      %v328 = vld [vmem:[%s3 + $0x68] sm:$0xff]
      %v329 = vld [vmem:[%s3 + $0x70] sm:$0xff]
      %v330 = vld [vmem:[%s3 + $0x78] sm:$0xff]
      %v331 = vld [vmem:[%s4] sm:$0xff]
      %v332 = vld [vmem:[%s4 + $0x8] sm:$0xff]
      %v333 = vld [vmem:[%s4 + $0x10] sm:$0xff]
      %v334 = vld [vmem:[%s4 + $0x18] sm:$0xff]
      %v335 = vld [vmem:[%s5] sm:$0xff]
      %v336 = vld [vmem:[%s5 + $0x8] sm:$0xff]
      %v337 = vld [vmem:[%s5 + $0x10] sm:$0xff]
      %v338 = vld [vmem:[%s5 + $0x18] sm:$0xff]
      %v339 = vld [vmem:[%s250] sm:$0xff]
      %v340 = vld [vmem:[%s250 + $0xc] sm:$0xff]
      %v341 = vld [vmem:[%s250 + $0x18] sm:$0xff]
      %v342 = vld [vmem:[%s250 + $0x24] sm:$0xff]
      %v343 = vld [vmem:[%s250 + $0x30] sm:$0xff]
      %v344 = vld [vmem:[%s250 + $0x3c] sm:$0xff]
      %v345 = vld [vmem:[%s250 + $0x48] sm:$0xff]
      %v346 = vld [vmem:[%s250 + $0x54] sm:$0xff]
      %v348 = vpack.i.b16 %v307, %v307
      %v350 = vlaneseq
      %v351 = vshrl.u32 %v350, 7
      %v352 = vsub.s32 0, %v351
      %v353 = vrot.slane %v348, %v352
      %v355 = vunpack.c.l.b16 %v353
      %v356 = vpack.c.b16 %v355, %v355
      %357 = vrot.lane.b32.xlu0 %v356, 119
      %v358 = vpop.permute.xlu0 %357
      %v359 = vrot.slane %v358, 4
      %vm360 = vcmask 973824
      %v361 = vsel %vm360, %v359, %v358
      %v363 = vmul.bf16 %v339, %v361
      %v364 = vmul.bf16 %v340, %v361
      %v365 = vmul.bf16 %v341, %v361
      %v366 = vmul.bf16 %v342, %v361
      %v367 = vmul.bf16 %v343, %v361
      %v368 = vmul.bf16 %v344, %v361
      %v369 = vmul.bf16 %v345, %v361
      %v370 = vmul.bf16 %v346, %v361
      %v372 = vpack.i.b16 %v308, %v308
      %v374 = vlaneseq
      %v375 = vshrl.u32 %v374, 7
      %v376 = vsub.s32 0, %v375
      %v377 = vrot.slane %v372, %v376
      %v379 = vunpack.c.l.b16 %v377
      %v380 = vpack.c.b16 %v379, %v379
      %381 = vrot.lane.b32.xlu0 %v380, 120
      %v382 = vpop.permute.xlu0 %381
      %v383 = vrot.slane %v382, 4
      %vm384 = vcmask 982016
      %v385 = vsel %vm384, %v383, %v382
      %v387 = vmul.bf16 %v339, %v385
      %v388 = vmul.bf16 %v340, %v385
      %v389 = vmul.bf16 %v341, %v385
      %v390 = vmul.bf16 %v342, %v385
      %v391 = vmul.bf16 %v343, %v385
      %v392 = vmul.bf16 %v344, %v385
      %v393 = vmul.bf16 %v345, %v385
      %v394 = vmul.bf16 %v346, %v385
      %v396 = vpack.i.b16 %v309, %v309
      %v398 = vlaneseq
      %v399 = vshrl.u32 %v398, 7
      %v400 = vsub.s32 0, %v399
      %v401 = vrot.slane %v396, %v400
      %v403 = vunpack.c.l.b16 %v401
      %v404 = vpack.c.b16 %v403, %v403
      %405 = vrot.lane.b32.xlu0 %v404, 121
      %v406 = vpop.permute.xlu0 %405
      %v407 = vrot.slane %v406, 4
      %vm408 = vcmask 990208
      %v409 = vsel %vm408, %v407, %v406
      %v411 = vmul.bf16 %v339, %v409
      %v412 = vmul.bf16 %v340, %v409
      %v413 = vmul.bf16 %v341, %v409
      %v414 = vmul.bf16 %v342, %v409
      %v415 = vmul.bf16 %v343, %v409
      %v416 = vmul.bf16 %v344, %v409
      %v417 = vmul.bf16 %v345, %v409
      %v418 = vmul.bf16 %v346, %v409
      %v420 = vpack.i.b16 %v310, %v310
      %v422 = vlaneseq
      %v423 = vshrl.u32 %v422, 7
      %v424 = vsub.s32 0, %v423
      %v425 = vrot.slane %v420, %v424
      %v427 = vunpack.c.l.b16 %v425
      %v428 = vpack.c.b16 %v427, %v427
      %429 = vrot.lane.b32.xlu0 %v428, 127
      %v430 = vpop.permute.xlu0 %429
      %v431 = vrot.slane %v430, 4
      %vm432 = vcmask 1039360
      %v433 = vsel %vm432, %v431, %v430
      %v435 = vmul.bf16 %v339, %v433
      %v436 = vmul.bf16 %v340, %v433
      %v437 = vmul.bf16 %v341, %v433
      %v438 = vmul.bf16 %v342, %v433
      %v439 = vmul.bf16 %v343, %v433
      %v440 = vmul.bf16 %v344, %v433
      %v441 = vmul.bf16 %v345, %v433
      %v442 = vmul.bf16 %v346, %v433
      %v443 = vld [vmem:[%s250 + $0x4] sm:$0xf]
      %v444 = vld [vmem:[%s250 + $0x10] sm:$0xf]
      %v445 = vld [vmem:[%s250 + $0x1c] sm:$0xf]
      %v446 = vld [vmem:[%s250 + $0x28] sm:$0xf]
      %v447 = vld [vmem:[%s250 + $0x34] sm:$0xf]
      %v448 = vld [vmem:[%s250 + $0x40] sm:$0xf]
      %v449 = vld [vmem:[%s250 + $0x4c] sm:$0xf]
      %v450 = vld [vmem:[%s250 + $0x58] sm:$0xf]
      %v451 = vld [vmem:[%s250 + $0x4] sm:$0xff]
      %v452 = vld [vmem:[%s250 + $0x10] sm:$0xff]
      %v453 = vld [vmem:[%s250 + $0x1c] sm:$0xff]
      %v454 = vld [vmem:[%s250 + $0x28] sm:$0xff]
      %v455 = vld [vmem:[%s250 + $0x34] sm:$0xff]
      %v456 = vld [vmem:[%s250 + $0x40] sm:$0xff]
      %v457 = vld [vmem:[%s250 + $0x4c] sm:$0xff]
      %v458 = vld [vmem:[%s250 + $0x58] sm:$0xff]
      %v460 = vpack.i.b16 %v311, %v311
      %v462 = vlaneseq
      %v463 = vshrl.u32 %v462, 7
      %v464 = vsub.s32 0, %v463
      %v465 = vrot.slane %v460, %v464
      %v467 = vunpack.c.l.b16 %v465
      %v468 = vpack.c.b16 %v467, %v467
      %469 = vrot.lane.b32.xlu0 %v468, 1
      %v470 = vpop.permute.xlu0 %469
      %v471 = vrot.slane %v470, 4
      %vm472 = vcmask 7168
      %v473 = vsel %vm472, %v471, %v470
      %v475 = vmul.bf16 %v451, %v473
      %v476 = vmul.bf16 %v452, %v473
      %v477 = vmul.bf16 %v453, %v473
      %v478 = vmul.bf16 %v454, %v473
      %v479 = vmul.bf16 %v455, %v473
      %v480 = vmul.bf16 %v456, %v473
      %v481 = vmul.bf16 %v457, %v473
      %v482 = vmul.bf16 %v458, %v473
      %v484 = vpack.i.b16 %v312, %v312
      %v486 = vlaneseq
      %v487 = vshrl.u32 %v486, 7
      %v488 = vsub.s32 0, %v487
      %v489 = vrot.slane %v484, %v488
      %v491 = vunpack.c.l.b16 %v489
      %v492 = vpack.c.b16 %v491, %v491
      %493 = vrot.lane.b32.xlu0 %v492, 7
      %v494 = vpop.permute.xlu0 %493
      %v495 = vrot.slane %v494, 4
      %vm496 = vcmask 56320
      %v497 = vsel %vm496, %v495, %v494
      %v499 = vmul.bf16 %v451, %v497
      %v500 = vmul.bf16 %v452, %v497
      %v501 = vmul.bf16 %v453, %v497
      %v502 = vmul.bf16 %v454, %v497
      %v503 = vmul.bf16 %v455, %v497
      %v504 = vmul.bf16 %v456, %v497
      %v505 = vmul.bf16 %v457, %v497
      %v506 = vmul.bf16 %v458, %v497
      %v508 = vpack.i.b16 %v313, %v313
      %v510 = vlaneseq
      %v511 = vshrl.u32 %v510, 7
      %v512 = vsub.s32 0, %v511
      %v513 = vrot.slane %v508, %v512
      %v515 = vunpack.c.l.b16 %v513
      %v516 = vpack.c.b16 %v515, %v515
      %517 = vrot.lane.b32.xlu0 %v516, 8
      %v518 = vpop.permute.xlu0 %517
      %v519 = vrot.slane %v518, 4
      %vm520 = vcmask 64512
      %v521 = vsel %vm520, %v519, %v518
      %v523 = vmul.bf16 %v451, %v521
      %v524 = vmul.bf16 %v452, %v521
      %v525 = vmul.bf16 %v453, %v521
      %v526 = vmul.bf16 %v454, %v521
      %v527 = vmul.bf16 %v455, %v521
      %v528 = vmul.bf16 %v456, %v521
      %v529 = vmul.bf16 %v457, %v521
      %v530 = vmul.bf16 %v458, %v521
      %v532 = vpack.i.b16 %v314, %v314
      %v534 = vlaneseq
      %v535 = vshrl.u32 %v534, 7
      %v536 = vsub.s32 0, %v535
      %v537 = vrot.slane %v532, %v536
      %v539 = vunpack.c.l.b16 %v537
      %v540 = vpack.c.b16 %v539, %v539
      %541 = vrot.lane.b32.xlu0 %v540, 9
      %v542 = vpop.permute.xlu0 %541
      %v543 = vrot.slane %v542, 4
      %vm544 = vcmask 72704
      %v545 = vsel %vm544, %v543, %v542
      %v547 = vmul.bf16 %v451, %v545
      %v548 = vmul.bf16 %v452, %v545
      %v549 = vmul.bf16 %v453, %v545
      %v550 = vmul.bf16 %v454, %v545
      %v551 = vmul.bf16 %v455, %v545
      %v552 = vmul.bf16 %v456, %v545
      %v553 = vmul.bf16 %v457, %v545
      %v554 = vmul.bf16 %v458, %v545
      %v563 = vunpack.c.l.b16 %v363
      %v564 = vunpack.c.h.b16 %v363
      %v565 = vunpack.c.l.b16 %v364
      %v566 = vunpack.c.h.b16 %v364
      %v567 = vunpack.c.l.b16 %v365
      %v568 = vunpack.c.h.b16 %v365
      %v569 = vunpack.c.l.b16 %v366
      %v570 = vunpack.c.h.b16 %v366
      %v571 = vunpack.c.l.b16 %v367
      %v572 = vunpack.c.h.b16 %v367
      %v573 = vunpack.c.l.b16 %v368
      %v574 = vunpack.c.h.b16 %v368
      %v575 = vunpack.c.l.b16 %v369
      %v576 = vunpack.c.h.b16 %v369
      %v577 = vunpack.c.l.b16 %v370
      %v578 = vunpack.c.h.b16 %v370
      %v579 = vpack.c.b16 %v565, %v563
      %v580 = vpack.c.b16 %v566, %v564
      %v581 = vpack.c.b16 %v569, %v567
      %v582 = vpack.c.b16 %v570, %v568
      %v583 = vpack.c.b16 %v573, %v571
      %v584 = vpack.c.b16 %v574, %v572
      %v585 = vpack.c.b16 %v577, %v575
      %v586 = vpack.c.b16 %v578, %v576
      %v595 = vunpack.c.l.b16 %v387
      %v596 = vunpack.c.h.b16 %v387
      %v597 = vunpack.c.l.b16 %v388
      %v598 = vunpack.c.h.b16 %v388
      %v599 = vunpack.c.l.b16 %v389
      %v600 = vunpack.c.h.b16 %v389
      %v601 = vunpack.c.l.b16 %v390
      %v602 = vunpack.c.h.b16 %v390
      %v603 = vunpack.c.l.b16 %v391
      %v604 = vunpack.c.h.b16 %v391
      %v605 = vunpack.c.l.b16 %v392
      %v606 = vunpack.c.h.b16 %v392
      %v607 = vunpack.c.l.b16 %v393
      %v608 = vunpack.c.h.b16 %v393
      %v609 = vunpack.c.l.b16 %v394
      %v610 = vunpack.c.h.b16 %v394
      %v611 = vpack.c.b16 %v597, %v595
      %v612 = vpack.c.b16 %v598, %v596
      %v613 = vpack.c.b16 %v601, %v599
      %v614 = vpack.c.b16 %v602, %v600
      %v615 = vpack.c.b16 %v605, %v603
      %v616 = vpack.c.b16 %v606, %v604
      %v617 = vpack.c.b16 %v609, %v607
      %v618 = vpack.c.b16 %v610, %v608
      %619 = vrot.lane.b32.xlu0 %v611, 127
      %v620 = vpop.permute.xlu0 %619
      %621 = vrot.lane.b32.xlu0 %v612, 127
      %v622 = vpop.permute.xlu0 %621
      %623 = vrot.lane.b32.xlu0 %v613, 127
      %v624 = vpop.permute.xlu0 %623
      %625 = vrot.lane.b32.xlu0 %v614, 127
      %v626 = vpop.permute.xlu0 %625
      %627 = vrot.lane.b32.xlu0 %v615, 127
      %v628 = vpop.permute.xlu0 %627
      %629 = vrot.lane.b32.xlu0 %v616, 127
      %v630 = vpop.permute.xlu0 %629
      %631 = vrot.lane.b32.xlu0 %v617, 127
      %v632 = vpop.permute.xlu0 %631
      %633 = vrot.lane.b32.xlu0 %v618, 127
      %v634 = vpop.permute.xlu0 %633
      %v635 = vsel %vm432, %v620, %v622
      %v636 = vsel %vm432, %v624, %v626
      %v637 = vsel %vm432, %v628, %v630
      %v638 = vsel %vm432, %v632, %v634
      %v647 = vunpack.c.l.b16 %v411
      %v648 = vunpack.c.h.b16 %v411
      %v649 = vunpack.c.l.b16 %v412
      %v650 = vunpack.c.h.b16 %v412
      %v651 = vunpack.c.l.b16 %v413
      %v652 = vunpack.c.h.b16 %v413
      %v653 = vunpack.c.l.b16 %v414
      %v654 = vunpack.c.h.b16 %v414
      %v655 = vunpack.c.l.b16 %v415
      %v656 = vunpack.c.h.b16 %v415
      %v657 = vunpack.c.l.b16 %v416
      %v658 = vunpack.c.h.b16 %v416
      %v659 = vunpack.c.l.b16 %v417
      %v660 = vunpack.c.h.b16 %v417
      %v661 = vunpack.c.l.b16 %v418
      %v662 = vunpack.c.h.b16 %v418
      %v663 = vpack.c.b16 %v649, %v647
      %v664 = vpack.c.b16 %v650, %v648
      %v665 = vpack.c.b16 %v653, %v651
      %v666 = vpack.c.b16 %v654, %v652
      %v667 = vpack.c.b16 %v657, %v655
      %v668 = vpack.c.b16 %v658, %v656
      %v669 = vpack.c.b16 %v661, %v659
      %v670 = vpack.c.b16 %v662, %v660
      %671 = vrot.lane.b32.xlu0 %v663, 126
      %v672 = vpop.permute.xlu0 %671
      %673 = vrot.lane.b32.xlu0 %v664, 126
      %v674 = vpop.permute.xlu0 %673
      %675 = vrot.lane.b32.xlu0 %v665, 126
      %v676 = vpop.permute.xlu0 %675
      %677 = vrot.lane.b32.xlu0 %v666, 126
      %v678 = vpop.permute.xlu0 %677
      %679 = vrot.lane.b32.xlu0 %v667, 126
      %v680 = vpop.permute.xlu0 %679
      %681 = vrot.lane.b32.xlu0 %v668, 126
      %v682 = vpop.permute.xlu0 %681
      %683 = vrot.lane.b32.xlu0 %v669, 126
      %v684 = vpop.permute.xlu0 %683
      %685 = vrot.lane.b32.xlu0 %v670, 126
      %v686 = vpop.permute.xlu0 %685
      %vm687 = vcmask 1031168
      %v688 = vsel %vm687, %v672, %v674
      %v689 = vsel %vm687, %v676, %v678
      %v690 = vsel %vm687, %v680, %v682
      %v691 = vsel %vm687, %v684, %v686
      %v700 = vunpack.c.l.b16 %v435
      %v701 = vunpack.c.h.b16 %v435
      %v702 = vunpack.c.l.b16 %v436
      %v703 = vunpack.c.h.b16 %v436
      %v704 = vunpack.c.l.b16 %v437
      %v705 = vunpack.c.h.b16 %v437
      %v706 = vunpack.c.l.b16 %v438
      %v707 = vunpack.c.h.b16 %v438
      %v708 = vunpack.c.l.b16 %v439
      %v709 = vunpack.c.h.b16 %v439
      %v710 = vunpack.c.l.b16 %v440
      %v711 = vunpack.c.h.b16 %v440
      %v712 = vunpack.c.l.b16 %v441
      %v713 = vunpack.c.h.b16 %v441
      %v714 = vunpack.c.l.b16 %v442
      %v715 = vunpack.c.h.b16 %v442
      %v716 = vpack.c.b16 %v702, %v700
      %v717 = vpack.c.b16 %v703, %v701
      %v718 = vpack.c.b16 %v706, %v704
      %v719 = vpack.c.b16 %v707, %v705
      %v720 = vpack.c.b16 %v710, %v708
      %v721 = vpack.c.b16 %v711, %v709
      %v722 = vpack.c.b16 %v714, %v712
      %v723 = vpack.c.b16 %v715, %v713
      %724 = vrot.lane.b32.xlu0 %v716, 120
      %v725 = vpop.permute.xlu0 %724
      %726 = vrot.lane.b32.xlu0 %v717, 120
      %v727 = vpop.permute.xlu0 %726
      %728 = vrot.lane.b32.xlu0 %v718, 120
      %v729 = vpop.permute.xlu0 %728
      %730 = vrot.lane.b32.xlu0 %v719, 120
      %v731 = vpop.permute.xlu0 %730
      %732 = vrot.lane.b32.xlu0 %v720, 120
      %v733 = vpop.permute.xlu0 %732
      %734 = vrot.lane.b32.xlu0 %v721, 120
      %v735 = vpop.permute.xlu0 %734
      %736 = vrot.lane.b32.xlu0 %v722, 120
      %v737 = vpop.permute.xlu0 %736
      %738 = vrot.lane.b32.xlu0 %v723, 120
      %v739 = vpop.permute.xlu0 %738
      %v740 = vsel %vm384, %v725, %v727
      %v741 = vsel %vm384, %v729, %v731
      %v742 = vsel %vm384, %v733, %v735
      %v743 = vsel %vm384, %v737, %v739
      %v752 = vunpack.c.l.b16 %v443
      %v753 = vunpack.c.l.b16 %v444
      %v754 = vunpack.c.l.b16 %v445
      %v755 = vunpack.c.l.b16 %v446
      %v756 = vunpack.c.l.b16 %v447
      %v757 = vunpack.c.l.b16 %v448
      %v758 = vunpack.c.l.b16 %v449
      %v759 = vunpack.c.l.b16 %v450
      %v760 = vpack.c.b16 %v753, %v752
      %v761 = vpack.c.b16 %v755, %v754
      %v762 = vpack.c.b16 %v757, %v756
      %v763 = vpack.c.b16 %v759, %v758
      %764 = vrot.lane.b32.xlu0 %v760, 119
      %v765 = vpop.permute.xlu0 %764
      %766 = vrot.lane.b32.xlu0 %v761, 119
      %v767 = vpop.permute.xlu0 %766
      %768 = vrot.lane.b32.xlu0 %v762, 119
      %v769 = vpop.permute.xlu0 %768
      %770 = vrot.lane.b32.xlu0 %v763, 119
      %v771 = vpop.permute.xlu0 %770
      %v780 = vunpack.c.l.b16 %v475
      %v781 = vunpack.c.h.b16 %v475
      %v782 = vunpack.c.l.b16 %v476
      %v783 = vunpack.c.h.b16 %v476
      %v784 = vunpack.c.l.b16 %v477
      %v785 = vunpack.c.h.b16 %v477
      %v786 = vunpack.c.l.b16 %v478
      %v787 = vunpack.c.h.b16 %v478
      %v788 = vunpack.c.l.b16 %v479
      %v789 = vunpack.c.h.b16 %v479
      %v790 = vunpack.c.l.b16 %v480
      %v791 = vunpack.c.h.b16 %v480
      %v792 = vunpack.c.l.b16 %v481
      %v793 = vunpack.c.h.b16 %v481
      %v794 = vunpack.c.l.b16 %v482
      %v795 = vunpack.c.h.b16 %v482
      %v796 = vpack.c.b16 %v782, %v780
      %v797 = vpack.c.b16 %v783, %v781
      %v798 = vpack.c.b16 %v786, %v784
      %v799 = vpack.c.b16 %v787, %v785
      %v800 = vpack.c.b16 %v790, %v788
      %v801 = vpack.c.b16 %v791, %v789
      %v802 = vpack.c.b16 %v794, %v792
      %v803 = vpack.c.b16 %v795, %v793
      %804 = vrot.lane.b32.xlu0 %v796, 118
      %v805 = vpop.permute.xlu0 %804
      %806 = vrot.lane.b32.xlu0 %v797, 118
      %v807 = vpop.permute.xlu0 %806
      %808 = vrot.lane.b32.xlu0 %v798, 118
      %v809 = vpop.permute.xlu0 %808
      %810 = vrot.lane.b32.xlu0 %v799, 118
      %v811 = vpop.permute.xlu0 %810
      %812 = vrot.lane.b32.xlu0 %v800, 118
      %v813 = vpop.permute.xlu0 %812
      %814 = vrot.lane.b32.xlu0 %v801, 118
      %v815 = vpop.permute.xlu0 %814
      %816 = vrot.lane.b32.xlu0 %v802, 118
      %v817 = vpop.permute.xlu0 %816
      %818 = vrot.lane.b32.xlu0 %v803, 118
      %v819 = vpop.permute.xlu0 %818
      %vm820 = vcmask 965632
      %v821 = vsel %vm820, %v805, %v807
      %v822 = vsel %vm820, %v809, %v811
      %v823 = vsel %vm820, %v813, %v815
      %v824 = vsel %vm820, %v817, %v819
      %v833 = vunpack.c.l.b16 %v499
      %v834 = vunpack.c.h.b16 %v499
      %v835 = vunpack.c.l.b16 %v500
      %v836 = vunpack.c.h.b16 %v500
      %v837 = vunpack.c.l.b16 %v501
      %v838 = vunpack.c.h.b16 %v501
      %v839 = vunpack.c.l.b16 %v502
      %v840 = vunpack.c.h.b16 %v502
      %v841 = vunpack.c.l.b16 %v503
      %v842 = vunpack.c.h.b16 %v503
      %v843 = vunpack.c.l.b16 %v504
      %v844 = vunpack.c.h.b16 %v504
      %v845 = vunpack.c.l.b16 %v505
      %v846 = vunpack.c.h.b16 %v505
      %v847 = vunpack.c.l.b16 %v506
      %v848 = vunpack.c.h.b16 %v506
      %v849 = vpack.c.b16 %v835, %v833
      %v850 = vpack.c.b16 %v836, %v834
      %v851 = vpack.c.b16 %v839, %v837
      %v852 = vpack.c.b16 %v840, %v838
      %v853 = vpack.c.b16 %v843, %v841
      %v854 = vpack.c.b16 %v844, %v842
      %v855 = vpack.c.b16 %v847, %v845
      %v856 = vpack.c.b16 %v848, %v846
      %857 = vrot.lane.b32.xlu0 %v849, 112
      %v858 = vpop.permute.xlu0 %857
      %859 = vrot.lane.b32.xlu0 %v850, 112
      %v860 = vpop.permute.xlu0 %859
      %861 = vrot.lane.b32.xlu0 %v851, 112
      %v862 = vpop.permute.xlu0 %861
      %863 = vrot.lane.b32.xlu0 %v852, 112
      %v864 = vpop.permute.xlu0 %863
      %865 = vrot.lane.b32.xlu0 %v853, 112
      %v866 = vpop.permute.xlu0 %865
      %867 = vrot.lane.b32.xlu0 %v854, 112
      %v868 = vpop.permute.xlu0 %867
      %869 = vrot.lane.b32.xlu0 %v855, 112
      %v870 = vpop.permute.xlu0 %869
      %871 = vrot.lane.b32.xlu0 %v856, 112
      %v872 = vpop.permute.xlu0 %871
      %vm873 = vcmask 916480
      %v874 = vsel %vm873, %v858, %v860
      %v875 = vsel %vm873, %v862, %v864
      %v876 = vsel %vm873, %v866, %v868
      %v877 = vsel %vm873, %v870, %v872
      %v886 = vunpack.c.l.b16 %v523
      %v887 = vunpack.c.h.b16 %v523
      %v888 = vunpack.c.l.b16 %v524
      %v889 = vunpack.c.h.b16 %v524
      %v890 = vunpack.c.l.b16 %v525
      %v891 = vunpack.c.h.b16 %v525
      %v892 = vunpack.c.l.b16 %v526
      %v893 = vunpack.c.h.b16 %v526
      %v894 = vunpack.c.l.b16 %v527
      %v895 = vunpack.c.h.b16 %v527
      %v896 = vunpack.c.l.b16 %v528
      %v897 = vunpack.c.h.b16 %v528
      %v898 = vunpack.c.l.b16 %v529
      %v899 = vunpack.c.h.b16 %v529
      %v900 = vunpack.c.l.b16 %v530
      %v901 = vunpack.c.h.b16 %v530
      %v902 = vpack.c.b16 %v888, %v886
      %v903 = vpack.c.b16 %v889, %v887
      %v904 = vpack.c.b16 %v892, %v890
      %v905 = vpack.c.b16 %v893, %v891
      %v906 = vpack.c.b16 %v896, %v894
      %v907 = vpack.c.b16 %v897, %v895
      %v908 = vpack.c.b16 %v900, %v898
      %v909 = vpack.c.b16 %v901, %v899
      %910 = vrot.lane.b32.xlu0 %v902, 111
      %v911 = vpop.permute.xlu0 %910
      %912 = vrot.lane.b32.xlu0 %v903, 111
      %v913 = vpop.permute.xlu0 %912
      %914 = vrot.lane.b32.xlu0 %v904, 111
      %v915 = vpop.permute.xlu0 %914
      %916 = vrot.lane.b32.xlu0 %v905, 111
      %v917 = vpop.permute.xlu0 %916
      %918 = vrot.lane.b32.xlu0 %v906, 111
      %v919 = vpop.permute.xlu0 %918
      %920 = vrot.lane.b32.xlu0 %v907, 111
      %v921 = vpop.permute.xlu0 %920
      %922 = vrot.lane.b32.xlu0 %v908, 111
      %v923 = vpop.permute.xlu0 %922
      %924 = vrot.lane.b32.xlu0 %v909, 111
      %v925 = vpop.permute.xlu0 %924
      %vm926 = vcmask 908288
      %v927 = vsel %vm926, %v911, %v913
      %v928 = vsel %vm926, %v915, %v917
      %v929 = vsel %vm926, %v919, %v921
      %v930 = vsel %vm926, %v923, %v925
      %v939 = vunpack.c.l.b16 %v547
      %v940 = vunpack.c.h.b16 %v547
      %v941 = vunpack.c.l.b16 %v548
      %v942 = vunpack.c.h.b16 %v548
      %v943 = vunpack.c.l.b16 %v549
      %v944 = vunpack.c.h.b16 %v549
      %v945 = vunpack.c.l.b16 %v550
      %v946 = vunpack.c.h.b16 %v550
      %v947 = vunpack.c.l.b16 %v551
      %v948 = vunpack.c.h.b16 %v551
      %v949 = vunpack.c.l.b16 %v552
      %v950 = vunpack.c.h.b16 %v552
      %v951 = vunpack.c.l.b16 %v553
      %v952 = vunpack.c.h.b16 %v553
      %v953 = vunpack.c.l.b16 %v554
      %v954 = vunpack.c.h.b16 %v554
      %v955 = vpack.c.b16 %v941, %v939
      %v956 = vpack.c.b16 %v942, %v940
      %v957 = vpack.c.b16 %v945, %v943
      %v958 = vpack.c.b16 %v946, %v944
      %v959 = vpack.c.b16 %v949, %v947
      %v960 = vpack.c.b16 %v950, %v948
      %v961 = vpack.c.b16 %v953, %v951
      %v962 = vpack.c.b16 %v954, %v952
      %963 = vrot.lane.b32.xlu0 %v955, 110
      %v964 = vpop.permute.xlu0 %963
      %965 = vrot.lane.b32.xlu0 %v956, 110
      %v966 = vpop.permute.xlu0 %965
      %967 = vrot.lane.b32.xlu0 %v957, 110
      %v968 = vpop.permute.xlu0 %967
      %969 = vrot.lane.b32.xlu0 %v958, 110
      %v970 = vpop.permute.xlu0 %969
      %971 = vrot.lane.b32.xlu0 %v959, 110
      %v972 = vpop.permute.xlu0 %971
      %973 = vrot.lane.b32.xlu0 %v960, 110
      %v974 = vpop.permute.xlu0 %973
      %975 = vrot.lane.b32.xlu0 %v961, 110
      %v976 = vpop.permute.xlu0 %975
      %977 = vrot.lane.b32.xlu0 %v962, 110
      %v978 = vpop.permute.xlu0 %977
      %vm979 = vcmask 900096
      %v980 = vsel %vm979, %v964, %v966
      %v981 = vsel %vm979, %v968, %v970
      %v982 = vsel %vm979, %v972, %v974
      %v983 = vsel %vm979, %v976, %v978
      %985 = vset.pattern.permute.xlu0 0
      %986 = vperm.xlu0 %985, %v315
      %v987 = vpop.permute.xlu0 %986
      %990 = vset.pattern.permute.xlu0 0
      %991 = vperm.xlu0 %990, %v316
      %v992 = vpop.permute.xlu0 %991
      %995 = vset.pattern.permute.xlu0 0
      %996 = vperm.xlu0 %995, %v317
      %v997 = vpop.permute.xlu0 %996
      %1000 = vset.pattern.permute.xlu0 0
      %1001 = vperm.xlu0 %1000, %v318
      %v1002 = vpop.permute.xlu0 %1001
      %1005 = vset.pattern.permute.xlu0 0
      %1006 = vperm.xlu0 %1005, %v319
      %v1007 = vpop.permute.xlu0 %1006
      %1010 = vset.pattern.permute.xlu0 0
      %1011 = vperm.xlu0 %1010, %v320
      %v1012 = vpop.permute.xlu0 %1011
      %1015 = vset.pattern.permute.xlu0 0
      %1016 = vperm.xlu0 %1015, %v321
      %v1017 = vpop.permute.xlu0 %1016
      %1020 = vset.pattern.permute.xlu0 0
      %1021 = vperm.xlu0 %1020, %v322
      %v1022 = vpop.permute.xlu0 %1021
      %1025 = vset.pattern.permute.xlu0 0
      %1026 = vperm.xlu0 %1025, %v323
      %v1027 = vpop.permute.xlu0 %1026
      %1030 = vset.pattern.permute.xlu0 0
      %1031 = vperm.xlu0 %1030, %v324
      %v1032 = vpop.permute.xlu0 %1031
      %1035 = vset.pattern.permute.xlu0 0
      %1036 = vperm.xlu0 %1035, %v325
      %v1037 = vpop.permute.xlu0 %1036
      %1040 = vset.pattern.permute.xlu0 0
      %1041 = vperm.xlu0 %1040, %v326
      %v1042 = vpop.permute.xlu0 %1041
      %1045 = vset.pattern.permute.xlu0 0
      %1046 = vperm.xlu0 %1045, %v327
      %v1047 = vpop.permute.xlu0 %1046
      %1050 = vset.pattern.permute.xlu0 0
      %1051 = vperm.xlu0 %1050, %v328
      %v1052 = vpop.permute.xlu0 %1051
      %1055 = vset.pattern.permute.xlu0 0
      %1056 = vperm.xlu0 %1055, %v329
      %v1057 = vpop.permute.xlu0 %1056
      %1060 = vset.pattern.permute.xlu0 0
      %1061 = vperm.xlu0 %1060, %v330
      %v1062 = vpop.permute.xlu0 %1061
      %v1112 = vunpack.c.l.b16 %v259
      %v1113 = vunpack.c.h.b16 %v259
      %v1114 = vunpack.c.l.b16 %v260
      %v1115 = vunpack.c.h.b16 %v260
      %v1116 = vunpack.c.l.b16 %v261
      %v1117 = vunpack.c.l.b16 %v262
      %v1118 = vunpack.c.h.b16 %v262
      %v1119 = vunpack.c.l.b16 %v263
      %v1120 = vunpack.c.h.b16 %v263
      %v1121 = vunpack.c.l.b16 %v264
      %v1122 = vunpack.c.l.b16 %v265
      %v1123 = vunpack.c.h.b16 %v265
      %v1124 = vunpack.c.l.b16 %v266
      %v1125 = vunpack.c.h.b16 %v266
      %v1126 = vunpack.c.l.b16 %v267
      %v1127 = vunpack.c.l.b16 %v268
      %v1128 = vunpack.c.h.b16 %v268
      %v1129 = vunpack.c.l.b16 %v269
      %v1130 = vunpack.c.h.b16 %v269
      %v1131 = vunpack.c.l.b16 %v270
      %v1132 = vunpack.c.l.b16 %v271
      %v1133 = vunpack.c.h.b16 %v271
      %v1134 = vunpack.c.l.b16 %v272
      %v1135 = vunpack.c.h.b16 %v272
      %v1136 = vunpack.c.l.b16 %v273
      %v1137 = vunpack.c.l.b16 %v274
      %v1138 = vunpack.c.h.b16 %v274
      %v1139 = vunpack.c.l.b16 %v275
      %v1140 = vunpack.c.h.b16 %v275
      %v1141 = vunpack.c.l.b16 %v276
      %v1142 = vunpack.c.l.b16 %v277
      %v1143 = vunpack.c.h.b16 %v277
      %v1144 = vunpack.c.l.b16 %v278
      %v1145 = vunpack.c.h.b16 %v278
      %v1146 = vunpack.c.l.b16 %v279
      %v1147 = vunpack.c.l.b16 %v280
      %v1148 = vunpack.c.h.b16 %v280
      %v1149 = vunpack.c.l.b16 %v281
      %v1150 = vunpack.c.h.b16 %v281
      %v1151 = vunpack.c.l.b16 %v282
      %v1152 = vunpack.c.l.b16 %v283
      %v1153 = vunpack.c.h.b16 %v283
      %v1154 = vunpack.c.l.b16 %v284
      %v1155 = vunpack.c.h.b16 %v284
      %v1156 = vunpack.c.l.b16 %v285
      %v1157 = vunpack.c.l.b16 %v286
      %v1158 = vunpack.c.h.b16 %v286
      %v1159 = vunpack.c.l.b16 %v287
      %v1160 = vunpack.c.h.b16 %v287
      %v1161 = vunpack.c.l.b16 %v288
      %v1162 = vunpack.c.l.b16 %v289
      %v1163 = vunpack.c.h.b16 %v289
      %v1164 = vunpack.c.l.b16 %v290
      %v1165 = vunpack.c.h.b16 %v290
      %v1166 = vunpack.c.l.b16 %v291
      %v1167 = vunpack.c.l.b16 %v292
      %v1168 = vunpack.c.h.b16 %v292
      %v1169 = vunpack.c.l.b16 %v293
      %v1170 = vunpack.c.h.b16 %v293
      %v1171 = vunpack.c.l.b16 %v294
      %v1172 = vunpack.c.l.b16 %v295
      %v1173 = vunpack.c.h.b16 %v295
      %v1174 = vunpack.c.l.b16 %v296
      %v1175 = vunpack.c.h.b16 %v296
      %v1176 = vunpack.c.l.b16 %v297
      %v1177 = vunpack.c.l.b16 %v298
      %v1178 = vunpack.c.h.b16 %v298
      %v1179 = vunpack.c.l.b16 %v299
      %v1180 = vunpack.c.h.b16 %v299
      %v1181 = vunpack.c.l.b16 %v300
      %v1182 = vunpack.c.l.b16 %v301
      %v1183 = vunpack.c.h.b16 %v301
      %v1184 = vunpack.c.l.b16 %v302
      %v1185 = vunpack.c.h.b16 %v302
      %v1186 = vunpack.c.l.b16 %v303
      %v1187 = vunpack.c.l.b16 %v304
      %v1188 = vunpack.c.h.b16 %v304
      %v1189 = vunpack.c.l.b16 %v305
      %v1190 = vunpack.c.h.b16 %v305
      %v1191 = vunpack.c.l.b16 %v306
      %v1192 = vpack.c.b16 %v1117, %v1112
      %v1193 = vpack.c.b16 %v1118, %v1113
      %v1194 = vpack.c.b16 %v1119, %v1114
      %v1195 = vpack.c.b16 %v1120, %v1115
      %v1196 = vpack.c.b16 %v1121, %v1116
      %v1197 = vpack.c.b16 %v1127, %v1122
      %v1198 = vpack.c.b16 %v1128, %v1123
      %v1199 = vpack.c.b16 %v1129, %v1124
      %v1200 = vpack.c.b16 %v1130, %v1125
      %v1201 = vpack.c.b16 %v1131, %v1126
      %v1202 = vpack.c.b16 %v1137, %v1132
      %v1203 = vpack.c.b16 %v1138, %v1133
      %v1204 = vpack.c.b16 %v1139, %v1134
      %v1205 = vpack.c.b16 %v1140, %v1135
      %v1206 = vpack.c.b16 %v1141, %v1136
      %v1207 = vpack.c.b16 %v1147, %v1142
      %v1208 = vpack.c.b16 %v1148, %v1143
      %v1209 = vpack.c.b16 %v1149, %v1144
      %v1210 = vpack.c.b16 %v1150, %v1145
      %v1211 = vpack.c.b16 %v1151, %v1146
      %v1212 = vpack.c.b16 %v1157, %v1152
      %v1213 = vpack.c.b16 %v1158, %v1153
      %v1214 = vpack.c.b16 %v1159, %v1154
      %v1215 = vpack.c.b16 %v1160, %v1155
      %v1216 = vpack.c.b16 %v1161, %v1156
      %v1217 = vpack.c.b16 %v1167, %v1162
      %v1218 = vpack.c.b16 %v1168, %v1163
      %v1219 = vpack.c.b16 %v1169, %v1164
      %v1220 = vpack.c.b16 %v1170, %v1165
      %v1221 = vpack.c.b16 %v1171, %v1166
      %v1222 = vpack.c.b16 %v1177, %v1172
      %v1223 = vpack.c.b16 %v1178, %v1173
      %v1224 = vpack.c.b16 %v1179, %v1174
      %v1225 = vpack.c.b16 %v1180, %v1175
      %v1226 = vpack.c.b16 %v1181, %v1176
      %v1227 = vpack.c.b16 %v1187, %v1182
      %v1228 = vpack.c.b16 %v1188, %v1183
      %v1229 = vpack.c.b16 %v1189, %v1184
      %v1230 = vpack.c.b16 %v1190, %v1185
      %v1231 = vpack.c.b16 %v1191, %v1186
      %1264 = vrot.lane.b32.xlu0 %v579, 9
      %v1265 = vpop.permute.xlu0 %1264
      %1266 = vrot.lane.b32.xlu0 %v580, 9
      %v1267 = vpop.permute.xlu0 %1266
      %1268 = vrot.lane.b32.xlu0 %v581, 9
      %v1269 = vpop.permute.xlu0 %1268
      %1270 = vrot.lane.b32.xlu0 %v582, 9
      %v1271 = vpop.permute.xlu0 %1270
      %1272 = vrot.lane.b32.xlu0 %v583, 9
      %v1273 = vpop.permute.xlu0 %1272
      %1274 = vrot.lane.b32.xlu0 %v584, 9
      %v1275 = vpop.permute.xlu0 %1274
      %1276 = vrot.lane.b32.xlu0 %v585, 9
      %v1277 = vpop.permute.xlu0 %1276
      %1278 = vrot.lane.b32.xlu0 %v586, 9
      %v1279 = vpop.permute.xlu0 %1278
      %1280 = vrot.lane.b32.xlu0 %v635, 9
      %v1281 = vpop.permute.xlu0 %1280
      %1282 = vrot.lane.b32.xlu0 %v622, 9
      %v1283 = vpop.permute.xlu0 %1282
      %1284 = vrot.lane.b32.xlu0 %v636, 9
      %v1285 = vpop.permute.xlu0 %1284
      %1286 = vrot.lane.b32.xlu0 %v626, 9
      %v1287 = vpop.permute.xlu0 %1286
      %1288 = vrot.lane.b32.xlu0 %v637, 9
      %v1289 = vpop.permute.xlu0 %1288
      %1290 = vrot.lane.b32.xlu0 %v630, 9
      %v1291 = vpop.permute.xlu0 %1290
      %1292 = vrot.lane.b32.xlu0 %v638, 9
      %v1293 = vpop.permute.xlu0 %1292
      %1294 = vrot.lane.b32.xlu0 %v634, 9
      %v1295 = vpop.permute.xlu0 %1294
      %1296 = vrot.lane.b32.xlu0 %v688, 9
      %v1297 = vpop.permute.xlu0 %1296
      %1298 = vrot.lane.b32.xlu0 %v674, 9
      %v1299 = vpop.permute.xlu0 %1298
      %1300 = vrot.lane.b32.xlu0 %v689, 9
      %v1301 = vpop.permute.xlu0 %1300
      %1302 = vrot.lane.b32.xlu0 %v678, 9
      %v1303 = vpop.permute.xlu0 %1302
      %1304 = vrot.lane.b32.xlu0 %v690, 9
      %v1305 = vpop.permute.xlu0 %1304
      %1306 = vrot.lane.b32.xlu0 %v682, 9
      %v1307 = vpop.permute.xlu0 %1306
      %1308 = vrot.lane.b32.xlu0 %v691, 9
      %v1309 = vpop.permute.xlu0 %1308
      %1310 = vrot.lane.b32.xlu0 %v686, 9
      %v1311 = vpop.permute.xlu0 %1310
      %1312 = vrot.lane.b32.xlu0 %v740, 9
      %v1313 = vpop.permute.xlu0 %1312
      %1314 = vrot.lane.b32.xlu0 %v727, 9
      %v1315 = vpop.permute.xlu0 %1314
      %1316 = vrot.lane.b32.xlu0 %v741, 9
      %v1317 = vpop.permute.xlu0 %1316
      %1318 = vrot.lane.b32.xlu0 %v731, 9
      %v1319 = vpop.permute.xlu0 %1318
      %1320 = vrot.lane.b32.xlu0 %v742, 9
      %v1321 = vpop.permute.xlu0 %1320
      %1322 = vrot.lane.b32.xlu0 %v735, 9
      %v1323 = vpop.permute.xlu0 %1322
      %1324 = vrot.lane.b32.xlu0 %v743, 9
      %v1325 = vpop.permute.xlu0 %1324
      %1326 = vrot.lane.b32.xlu0 %v739, 9
      %v1327 = vpop.permute.xlu0 %1326
      %1328 = vrot.lane.b32.xlu0 %v765, 9
      %v1329 = vpop.permute.xlu0 %1328
      %1330 = vrot.lane.b32.xlu0 %v767, 9
      %v1331 = vpop.permute.xlu0 %1330
      %1332 = vrot.lane.b32.xlu0 %v769, 9
      %v1333 = vpop.permute.xlu0 %1332
      %1334 = vrot.lane.b32.xlu0 %v771, 9
      %v1335 = vpop.permute.xlu0 %1334
      %1336 = vrot.lane.b32.xlu0 %v805, 9
      %v1337 = vpop.permute.xlu0 %1336
      %1338 = vrot.lane.b32.xlu0 %v821, 9
      %v1339 = vpop.permute.xlu0 %1338
      %1340 = vrot.lane.b32.xlu0 %v809, 9
      %v1341 = vpop.permute.xlu0 %1340
      %1342 = vrot.lane.b32.xlu0 %v822, 9
      %v1343 = vpop.permute.xlu0 %1342
      %1344 = vrot.lane.b32.xlu0 %v813, 9
      %v1345 = vpop.permute.xlu0 %1344
      %1346 = vrot.lane.b32.xlu0 %v823, 9
      %v1347 = vpop.permute.xlu0 %1346
      %1348 = vrot.lane.b32.xlu0 %v817, 9
      %v1349 = vpop.permute.xlu0 %1348
      %1350 = vrot.lane.b32.xlu0 %v824, 9
      %v1351 = vpop.permute.xlu0 %1350
      %1352 = vrot.lane.b32.xlu0 %v858, 9
      %v1353 = vpop.permute.xlu0 %1352
      %1354 = vrot.lane.b32.xlu0 %v874, 9
      %v1355 = vpop.permute.xlu0 %1354
      %1356 = vrot.lane.b32.xlu0 %v862, 9
      %v1357 = vpop.permute.xlu0 %1356
      %1358 = vrot.lane.b32.xlu0 %v875, 9
      %v1359 = vpop.permute.xlu0 %1358
      %1360 = vrot.lane.b32.xlu0 %v866, 9
      %v1361 = vpop.permute.xlu0 %1360
      %1362 = vrot.lane.b32.xlu0 %v876, 9
      %v1363 = vpop.permute.xlu0 %1362
      %1364 = vrot.lane.b32.xlu0 %v870, 9
      %v1365 = vpop.permute.xlu0 %1364
      %1366 = vrot.lane.b32.xlu0 %v877, 9
      %v1367 = vpop.permute.xlu0 %1366
      %1368 = vrot.lane.b32.xlu0 %v911, 9
      %v1369 = vpop.permute.xlu0 %1368
      %1370 = vrot.lane.b32.xlu0 %v927, 9
      %v1371 = vpop.permute.xlu0 %1370
      %1372 = vrot.lane.b32.xlu0 %v915, 9
      %v1373 = vpop.permute.xlu0 %1372
      %1374 = vrot.lane.b32.xlu0 %v928, 9
      %v1375 = vpop.permute.xlu0 %1374
      %1376 = vrot.lane.b32.xlu0 %v919, 9
      %v1377 = vpop.permute.xlu0 %1376
      %1378 = vrot.lane.b32.xlu0 %v929, 9
      %v1379 = vpop.permute.xlu0 %1378
      %1380 = vrot.lane.b32.xlu0 %v923, 9
      %v1381 = vpop.permute.xlu0 %1380
      %1382 = vrot.lane.b32.xlu0 %v930, 9
      %v1383 = vpop.permute.xlu0 %1382
      %1384 = vrot.lane.b32.xlu0 %v964, 9
      %v1385 = vpop.permute.xlu0 %1384
      %1386 = vrot.lane.b32.xlu0 %v980, 9
      %v1387 = vpop.permute.xlu0 %1386
      %1388 = vrot.lane.b32.xlu0 %v968, 9
      %v1389 = vpop.permute.xlu0 %1388
      %1390 = vrot.lane.b32.xlu0 %v981, 9
      %v1391 = vpop.permute.xlu0 %1390
      %1392 = vrot.lane.b32.xlu0 %v972, 9
      %v1393 = vpop.permute.xlu0 %1392
      %1394 = vrot.lane.b32.xlu0 %v982, 9
      %v1395 = vpop.permute.xlu0 %1394
      %1396 = vrot.lane.b32.xlu0 %v976, 9
      %v1397 = vpop.permute.xlu0 %1396
      %1398 = vrot.lane.b32.xlu0 %v983, 9
      %v1399 = vpop.permute.xlu0 %1398
      %v1400 = vsel %vm544, %v1265, %v1267
      %v1401 = vsel %vm544, %v1269, %v1271
      %v1402 = vsel %vm544, %v1273, %v1275
      %v1403 = vsel %vm544, %v1277, %v1279
      %v1404 = vsel %vm544, %v1281, %v1283
      %v1405 = vsel %vm544, %v1285, %v1287
      %v1406 = vsel %vm544, %v1289, %v1291
      %v1407 = vsel %vm544, %v1293, %v1295
      %v1408 = vsel %vm544, %v1297, %v1299
      %v1409 = vsel %vm544, %v1301, %v1303
      %v1410 = vsel %vm544, %v1305, %v1307
      %v1411 = vsel %vm544, %v1309, %v1311
      %v1412 = vsel %vm544, %v1313, %v1315
      %v1413 = vsel %vm544, %v1317, %v1319
      %v1414 = vsel %vm544, %v1321, %v1323
      %v1415 = vsel %vm544, %v1325, %v1327
      %v1416 = vsel %vm544, %v1337, %v1339
      %v1417 = vsel %vm544, %v1341, %v1343
      %v1418 = vsel %vm544, %v1345, %v1347
      %v1419 = vsel %vm544, %v1349, %v1351
      %v1420 = vsel %vm544, %v1353, %v1355
      %v1421 = vsel %vm544, %v1357, %v1359
      %v1422 = vsel %vm544, %v1361, %v1363
      %v1423 = vsel %vm544, %v1365, %v1367
      %v1424 = vsel %vm544, %v1369, %v1371
      %v1425 = vsel %vm544, %v1373, %v1375
      %v1426 = vsel %vm544, %v1377, %v1379
      %v1427 = vsel %vm544, %v1381, %v1383
      %v1428 = vsel %vm544, %v1385, %v1387
      %v1429 = vsel %vm544, %v1389, %v1391
      %v1430 = vsel %vm544, %v1393, %v1395
      %v1431 = vsel %vm544, %v1397, %v1399
      %vm1468 = vcmask 523264
      %v1470 = vsel %vm1468, %v1196, 0
      %v1473 = vsel %vm1468, %v1201, 0
      %v1476 = vsel %vm1468, %v1206, 0
      %v1479 = vsel %vm1468, %v1211, 0
      %v1482 = vsel %vm1468, %v1216, 0
      %v1485 = vsel %vm1468, %v1221, 0
      %v1488 = vsel %vm1468, %v1226, 0
      %v1491 = vsel %vm1468, %v1231, 0
      %1493 = vmatprep.subr.bf16.mxu0 0
      %1494 = vmatpush1.bf16.msra.mxu0 %v1400
      %1495 = vmatprep.subr.bf16.mxu0 0
      %1496 = vmatpush1.bf16.msra.mxu0 %v1401
      %1497 = vmatprep.subr.bf16.mxu0 0
      %1498 = vmatpush1.bf16.msra.mxu0 %v1402
      %1499 = vmatprep.subr.bf16.mxu0 0
      %1500 = vmatpush1.bf16.msra.mxu0 %v1403
      %1501 = vmatprep.subr.bf16.mxu0 0
      %1502 = vmatpush1.bf16.msra.mxu0 %v1404
      %1503 = vmatprep.subr.bf16.mxu0 0
      %1504 = vmatpush1.bf16.msra.mxu0 %v1405
      %1505 = vmatprep.subr.bf16.mxu0 0
      %1506 = vmatpush1.bf16.msra.mxu0 %v1406
      %1507 = vmatprep.subr.bf16.mxu0 0
      %1508 = vmatpush1.bf16.msra.mxu0 %v1407
      %1509 = vmatprep.subr.bf16.mxu0 0
      %1510 = vmatpush1.bf16.msra.mxu0 %v1408
      %1511 = vmatprep.subr.bf16.mxu0 0
      %1512 = vmatpush1.bf16.msra.mxu0 %v1409
      %1513 = vmatprep.subr.bf16.mxu0 0
      %1514 = vmatpush1.bf16.msra.mxu0 %v1410
      %1515 = vmatprep.subr.bf16.mxu0 0
      %1516 = vmatpush1.bf16.msra.mxu0 %v1411
      %1517 = vmatprep.subr.bf16.mxu0 0
      %1518 = vmatpush1.bf16.msra.mxu0 %v1412
      %1519 = vmatprep.subr.bf16.mxu0 0
      %1520 = vmatpush1.bf16.msra.mxu0 %v1413
      %1521 = vmatprep.subr.bf16.mxu0 0
      %1522 = vmatpush1.bf16.msra.mxu0 %v1414
      %1523 = vmatprep.subr.bf16.mxu0 0
      %1524 = vmatpush1.bf16.msra.mxu0 %v1415
      %1525 = vmatprep.mubr.bf16.mxu0 %v1193
      %1526 = vmatmul.mubr.bf16.gmra.mrb[0].mxu0 %v1192
      %v1527 = vpop.f32.mrb[0].mxu0
      %v1528 = vadd.f32 %v987, %v1527
      %v1529 = vpop.f32.mrb[0].mxu0
      %v1530 = vpop.f32.mrb[0].mxu0
      %v1531 = vadd.f32 %v992, %v1530
      %v1532 = vpop.f32.mrb[0].mxu0
      %1533 = vmatprep.mubr.bf16.mxu0 %v1198
      %1534 = vmatmul.mubr.bf16.gmra.mrb[0].mxu0 %v1197
      %v1535 = vpop.f32.mrb[0].mxu0
      %v1536 = vadd.f32 %v997, %v1535
      %v1537 = vpop.f32.mrb[0].mxu0
      %v1538 = vpop.f32.mrb[0].mxu0
      %v1539 = vadd.f32 %v1002, %v1538
      %v1540 = vpop.f32.mrb[0].mxu0
      %1541 = vmatprep.mubr.bf16.mxu0 %v1203
      %1542 = vmatmul.mubr.bf16.gmra.mrb[0].mxu0 %v1202
      %v1543 = vpop.f32.mrb[0].mxu0
      %v1544 = vadd.f32 %v1007, %v1543
      %v1545 = vpop.f32.mrb[0].mxu0
      %v1546 = vpop.f32.mrb[0].mxu0
      %v1547 = vadd.f32 %v1012, %v1546
      %v1548 = vpop.f32.mrb[0].mxu0
      %1549 = vmatprep.mubr.bf16.mxu0 %v1208
      %1550 = vmatmul.mubr.bf16.gmra.mrb[0].mxu0 %v1207
      %v1551 = vpop.f32.mrb[0].mxu0
      %v1552 = vadd.f32 %v1017, %v1551
      %v1553 = vpop.f32.mrb[0].mxu0
      %v1554 = vpop.f32.mrb[0].mxu0
      %v1555 = vadd.f32 %v1022, %v1554
      %v1556 = vpop.f32.mrb[0].mxu0
      %1557 = vmatprep.mubr.bf16.mxu0 %v1213
      %1558 = vmatmul.mubr.bf16.gmra.mrb[0].mxu0 %v1212
      %v1559 = vpop.f32.mrb[0].mxu0
      %v1560 = vadd.f32 %v1027, %v1559
      %v1561 = vpop.f32.mrb[0].mxu0
      %v1562 = vpop.f32.mrb[0].mxu0
      %v1563 = vadd.f32 %v1032, %v1562
      %v1564 = vpop.f32.mrb[0].mxu0
      %1565 = vmatprep.mubr.bf16.mxu0 %v1218
      %1566 = vmatmul.mubr.bf16.gmra.mrb[0].mxu0 %v1217
      %v1567 = vpop.f32.mrb[0].mxu0
      %v1568 = vadd.f32 %v1037, %v1567
      %v1569 = vpop.f32.mrb[0].mxu0
      %v1570 = vpop.f32.mrb[0].mxu0
      %v1571 = vadd.f32 %v1042, %v1570
      %v1572 = vpop.f32.mrb[0].mxu0
      %1573 = vmatprep.mubr.bf16.mxu0 %v1223
      %1574 = vmatmul.mubr.bf16.gmra.mrb[0].mxu0 %v1222
      %v1575 = vpop.f32.mrb[0].mxu0
      %v1576 = vadd.f32 %v1047, %v1575
      %v1577 = vpop.f32.mrb[0].mxu0
      %v1578 = vpop.f32.mrb[0].mxu0
      %v1579 = vadd.f32 %v1052, %v1578
      %v1580 = vpop.f32.mrb[0].mxu0
      %1581 = vmatprep.mubr.bf16.mxu0 %v1228
      %1582 = vmatmul.mubr.bf16.gmra.mrb[0].mxu0 %v1227
      %v1583 = vpop.f32.mrb[0].mxu0
      %v1584 = vadd.f32 %v1057, %v1583
      %v1585 = vpop.f32.mrb[0].mxu0
      %v1586 = vpop.f32.mrb[0].mxu0
      %v1587 = vadd.f32 %v1062, %v1586
      %v1588 = vpop.f32.mrb[0].mxu0
      %1589 = vdwg.mxu0
      %1590 = vmatprep.subr.bf16.mxu0 0
      %1591 = vmatpush1.bf16.msra.mxu0 %v1329
      %1592 = vmatprep.subr.bf16.mxu0 0
      %1593 = vmatpush1.bf16.msra.mxu0 %v1331
      %1594 = vmatprep.subr.bf16.mxu0 0
      %1595 = vmatpush1.bf16.msra.mxu0 %v1333
      %1596 = vmatprep.subr.bf16.mxu0 0
      %1597 = vmatpush1.bf16.msra.mxu0 %v1335
      %1598 = vmatprep.subr.bf16.mxu0 0
      %1599 = vmatpush1.bf16.msra.mxu0 %v1416
      %1600 = vmatprep.subr.bf16.mxu0 0
      %1601 = vmatpush1.bf16.msra.mxu0 %v1417
      %1602 = vmatprep.subr.bf16.mxu0 0
      %1603 = vmatpush1.bf16.msra.mxu0 %v1418
      %1604 = vmatprep.subr.bf16.mxu0 0
      %1605 = vmatpush1.bf16.msra.mxu0 %v1419
      %1606 = vmatprep.subr.bf16.mxu0 0
      %1607 = vmatpush1.bf16.msra.mxu0 %v1420
      %1608 = vmatprep.subr.bf16.mxu0 0
      %1609 = vmatpush1.bf16.msra.mxu0 %v1421
      %1610 = vmatprep.subr.bf16.mxu0 0
      %1611 = vmatpush1.bf16.msra.mxu0 %v1422
      %1612 = vmatprep.subr.bf16.mxu0 0
      %1613 = vmatpush1.bf16.msra.mxu0 %v1423
      %1614 = vmatprep.subr.bf16.mxu0 0
      %1615 = vmatpush1.bf16.msra.mxu0 %v1424
      %1616 = vmatprep.subr.bf16.mxu0 0
      %1617 = vmatpush1.bf16.msra.mxu0 %v1425
      %1618 = vmatprep.subr.bf16.mxu0 0
      %1619 = vmatpush1.bf16.msra.mxu0 %v1426
      %1620 = vmatprep.subr.bf16.mxu0 0
      %1621 = vmatpush1.bf16.msra.mxu0 %v1427
      %1622 = vmatprep.mubr.bf16.mxu0 %v1195
      %1623 = vmatmul.mubr.bf16.gmra.mrb[0].mxu0 %v1194
      %v1624 = vpop.f32.mrb[0].mxu0
      %v1625 = vadd.f32 %v1528, %v1624
      %v1626 = vpop.f32.mrb[0].mxu0
      %v1627 = vpop.f32.mrb[0].mxu0
      %v1628 = vadd.f32 %v1531, %v1627
      %v1629 = vpop.f32.mrb[0].mxu0
      %1630 = vmatprep.mubr.bf16.mxu0 %v1200
      %1631 = vmatmul.mubr.bf16.gmra.mrb[0].mxu0 %v1199
      %v1632 = vpop.f32.mrb[0].mxu0
      %v1633 = vadd.f32 %v1536, %v1632
      %v1634 = vpop.f32.mrb[0].mxu0
      %v1635 = vpop.f32.mrb[0].mxu0
      %v1636 = vadd.f32 %v1539, %v1635
      %v1637 = vpop.f32.mrb[0].mxu0
      %1638 = vmatprep.mubr.bf16.mxu0 %v1205
      %1639 = vmatmul.mubr.bf16.gmra.mrb[0].mxu0 %v1204
      %v1640 = vpop.f32.mrb[0].mxu0
      %v1641 = vadd.f32 %v1544, %v1640
      %v1642 = vpop.f32.mrb[0].mxu0
      %v1643 = vpop.f32.mrb[0].mxu0
      %v1644 = vadd.f32 %v1547, %v1643
      %v1645 = vpop.f32.mrb[0].mxu0
      %1646 = vmatprep.mubr.bf16.mxu0 %v1210
      %1647 = vmatmul.mubr.bf16.gmra.mrb[0].mxu0 %v1209
      %v1648 = vpop.f32.mrb[0].mxu0
      %v1649 = vadd.f32 %v1552, %v1648
      %v1650 = vpop.f32.mrb[0].mxu0
      %v1651 = vpop.f32.mrb[0].mxu0
      %v1652 = vadd.f32 %v1555, %v1651
      %v1653 = vpop.f32.mrb[0].mxu0
      %1654 = vmatprep.mubr.bf16.mxu0 %v1215
      %1655 = vmatmul.mubr.bf16.gmra.mrb[0].mxu0 %v1214
      %v1656 = vpop.f32.mrb[0].mxu0
      %v1657 = vadd.f32 %v1560, %v1656
      %v1658 = vpop.f32.mrb[0].mxu0
      %v1659 = vpop.f32.mrb[0].mxu0
      %v1660 = vadd.f32 %v1563, %v1659
      %v1661 = vpop.f32.mrb[0].mxu0
      %1662 = vmatprep.mubr.bf16.mxu0 %v1220
      %1663 = vmatmul.mubr.bf16.gmra.mrb[0].mxu0 %v1219
      %v1664 = vpop.f32.mrb[0].mxu0
      %v1665 = vadd.f32 %v1568, %v1664
      %v1666 = vpop.f32.mrb[0].mxu0
      %v1667 = vpop.f32.mrb[0].mxu0
      %v1668 = vadd.f32 %v1571, %v1667
      %v1669 = vpop.f32.mrb[0].mxu0
      %1670 = vmatprep.mubr.bf16.mxu0 %v1225
      %1671 = vmatmul.mubr.bf16.gmra.mrb[0].mxu0 %v1224
      %v1672 = vpop.f32.mrb[0].mxu0
      %v1673 = vadd.f32 %v1576, %v1672
      %v1674 = vpop.f32.mrb[0].mxu0
      %v1675 = vpop.f32.mrb[0].mxu0
      %v1676 = vadd.f32 %v1579, %v1675
      %v1677 = vpop.f32.mrb[0].mxu0
      %1678 = vmatprep.mubr.bf16.mxu0 %v1230
      %1679 = vmatmul.mubr.bf16.gmra.mrb[0].mxu0 %v1229
      %v1680 = vpop.f32.mrb[0].mxu0
      %v1681 = vadd.f32 %v1584, %v1680
      %v1682 = vpop.f32.mrb[0].mxu0
      %v1683 = vpop.f32.mrb[0].mxu0
      %v1684 = vadd.f32 %v1587, %v1683
      %v1685 = vpop.f32.mrb[0].mxu0
      %1686 = vdwg.mxu0
      %1687 = vmatprep.subr.bf16.mxu0 0
      %1688 = vmatpush1.bf16.msra.mxu0 %v1428
      %1689 = vmatprep.subr.bf16.mxu0 0
      %1690 = vmatpush1.bf16.msra.mxu0 %v1429
      %1691 = vmatprep.subr.bf16.mxu0 0
      %1692 = vmatpush1.bf16.msra.mxu0 %v1430
      %1693 = vmatprep.subr.bf16.mxu0 0
      %1694 = vmatpush1.bf16.msra.mxu0 %v1431
      %1695 = vmatprep.subr.bf16.mxu0 0
      %1696 = vmatpush1.bf16.msra.mxu0 0
      %1697 = vmatprep.subr.bf16.mxu0 0
      %1698 = vmatpush1.bf16.msra.mxu0 0
      %1699 = vmatprep.subr.bf16.mxu0 0
      %1700 = vmatpush1.bf16.msra.mxu0 0
      %1701 = vmatprep.subr.bf16.mxu0 0
      %1702 = vmatpush1.bf16.msra.mxu0 0
      %1703 = vmatprep.subr.bf16.mxu0 0
      %1704 = vmatpush1.bf16.msra.mxu0 0
      %1705 = vmatprep.subr.bf16.mxu0 0
      %1706 = vmatpush1.bf16.msra.mxu0 0
      %1707 = vmatprep.subr.bf16.mxu0 0
      %1708 = vmatpush1.bf16.msra.mxu0 0
      %1709 = vmatprep.subr.bf16.mxu0 0
      %1710 = vmatpush1.bf16.msra.mxu0 0
      %1711 = vmatprep.subr.bf16.mxu0 0
      %1712 = vmatpush1.bf16.msra.mxu0 0
      %1713 = vmatprep.subr.bf16.mxu0 0
      %1714 = vmatpush1.bf16.msra.mxu0 0
      %1715 = vmatprep.subr.bf16.mxu0 0
      %1716 = vmatpush1.bf16.msra.mxu0 0
      %1717 = vmatprep.subr.bf16.mxu0 0
      %1718 = vmatpush1.bf16.msra.mxu0 0
      %1719 = vmatprep.mubr.bf16.mxu0 0
      %1720 = vmatmul.mubr.bf16.gmra.mrb[0].mxu0 %v1470
      %v1721 = vpop.f32.mrb[0].mxu0
      %v1722 = vadd.f32 %v1625, %v1721
      %v1723 = vpop.f32.mrb[0].mxu0
      %v1724 = vpop.f32.mrb[0].mxu0
      %v1725 = vadd.f32 %v1628, %v1724
      %v1726 = vpop.f32.mrb[0].mxu0
      %1727 = vmatprep.mubr.bf16.mxu0 0
      %1728 = vmatmul.mubr.bf16.gmra.mrb[0].mxu0 %v1473
      %v1729 = vpop.f32.mrb[0].mxu0
      %v1730 = vadd.f32 %v1633, %v1729
      %v1731 = vpop.f32.mrb[0].mxu0
      %v1732 = vpop.f32.mrb[0].mxu0
      %v1733 = vadd.f32 %v1636, %v1732
      %v1734 = vpop.f32.mrb[0].mxu0
      %1735 = vmatprep.mubr.bf16.mxu0 0
      %1736 = vmatmul.mubr.bf16.gmra.mrb[0].mxu0 %v1476
      %v1737 = vpop.f32.mrb[0].mxu0
      %v1738 = vadd.f32 %v1641, %v1737
      %v1739 = vpop.f32.mrb[0].mxu0
      %v1740 = vpop.f32.mrb[0].mxu0
      %v1741 = vadd.f32 %v1644, %v1740
      %v1742 = vpop.f32.mrb[0].mxu0
      %1743 = vmatprep.mubr.bf16.mxu0 0
      %1744 = vmatmul.mubr.bf16.gmra.mrb[0].mxu0 %v1479
      %v1745 = vpop.f32.mrb[0].mxu0
      %v1746 = vadd.f32 %v1649, %v1745
      %v1747 = vpop.f32.mrb[0].mxu0
      %v1748 = vpop.f32.mrb[0].mxu0
      %v1749 = vadd.f32 %v1652, %v1748
      %v1750 = vpop.f32.mrb[0].mxu0
      %1751 = vmatprep.mubr.bf16.mxu0 0
      %1752 = vmatmul.mubr.bf16.gmra.mrb[0].mxu0 %v1482
      %v1753 = vpop.f32.mrb[0].mxu0
      %v1754 = vadd.f32 %v1657, %v1753
      %v1755 = vpop.f32.mrb[0].mxu0
      %v1756 = vpop.f32.mrb[0].mxu0
      %v1757 = vadd.f32 %v1660, %v1756
      %v1758 = vpop.f32.mrb[0].mxu0
      %1759 = vmatprep.mubr.bf16.mxu0 0
      %1760 = vmatmul.mubr.bf16.gmra.mrb[0].mxu0 %v1485
      %v1761 = vpop.f32.mrb[0].mxu0
      %v1762 = vadd.f32 %v1665, %v1761
      %v1763 = vpop.f32.mrb[0].mxu0
      %v1764 = vpop.f32.mrb[0].mxu0
      %v1765 = vadd.f32 %v1668, %v1764
      %v1766 = vpop.f32.mrb[0].mxu0
      %1767 = vmatprep.mubr.bf16.mxu0 0
      %1768 = vmatmul.mubr.bf16.gmra.mrb[0].mxu0 %v1488
      %v1769 = vpop.f32.mrb[0].mxu0
      %v1770 = vadd.f32 %v1673, %v1769
      %v1771 = vpop.f32.mrb[0].mxu0
      %v1772 = vpop.f32.mrb[0].mxu0
      %v1773 = vadd.f32 %v1676, %v1772
      %v1774 = vpop.f32.mrb[0].mxu0
      %1775 = vmatprep.mubr.bf16.mxu0 0
      %1776 = vmatmul.mubr.bf16.gmra.mrb[0].mxu0 %v1491
      %v1777 = vpop.f32.mrb[0].mxu0
      %v1778 = vadd.f32 %v1681, %v1777
      %v1779 = vpop.f32.mrb[0].mxu0
      %v1780 = vpop.f32.mrb[0].mxu0
      %v1781 = vadd.f32 %v1684, %v1780
      %v1782 = vpop.f32.mrb[0].mxu0
      %1783 = vdwg.mxu0
      %1784 = vadd.xlane.f32.xlu0 %v1722
      %v1785 = vpop.xlane.xlu0 %1784
      %1786 = vadd.xlane.f32.xlu0 %v1725
      %v1787 = vpop.xlane.xlu0 %1786
      %1788 = vadd.xlane.f32.xlu0 %v1730
      %v1789 = vpop.xlane.xlu0 %1788
      %1790 = vadd.xlane.f32.xlu0 %v1733
      %v1791 = vpop.xlane.xlu0 %1790
      %1792 = vadd.xlane.f32.xlu0 %v1738
      %v1793 = vpop.xlane.xlu0 %1792
      %1794 = vadd.xlane.f32.xlu0 %v1741
      %v1795 = vpop.xlane.xlu0 %1794
      %1796 = vadd.xlane.f32.xlu0 %v1746
      %v1797 = vpop.xlane.xlu0 %1796
      %1798 = vadd.xlane.f32.xlu0 %v1749
      %v1799 = vpop.xlane.xlu0 %1798
      %1800 = vadd.xlane.f32.xlu0 %v1754
      %v1801 = vpop.xlane.xlu0 %1800
      %1802 = vadd.xlane.f32.xlu0 %v1757
      %v1803 = vpop.xlane.xlu0 %1802
      %1804 = vadd.xlane.f32.xlu0 %v1762
      %v1805 = vpop.xlane.xlu0 %1804
      %1806 = vadd.xlane.f32.xlu0 %v1765
      %v1807 = vpop.xlane.xlu0 %1806
      %1808 = vadd.xlane.f32.xlu0 %v1770
      %v1809 = vpop.xlane.xlu0 %1808
      %1810 = vadd.xlane.f32.xlu0 %v1773
      %v1811 = vpop.xlane.xlu0 %1810
      %1812 = vadd.xlane.f32.xlu0 %v1778
      %v1813 = vpop.xlane.xlu0 %1812
      %1814 = vadd.xlane.f32.xlu0 %v1781
      %v1815 = vpop.xlane.xlu0 %1814
      %v1816 = vmul.f32 %v1722, %v1722
      %v1817 = vmul.f32 %v1725, %v1725
      %v1818 = vmul.f32 %v1730, %v1730
      %v1819 = vmul.f32 %v1733, %v1733
      %v1820 = vmul.f32 %v1738, %v1738
      %v1821 = vmul.f32 %v1741, %v1741
      %v1822 = vmul.f32 %v1746, %v1746
      %v1823 = vmul.f32 %v1749, %v1749
      %v1824 = vmul.f32 %v1754, %v1754
      %v1825 = vmul.f32 %v1757, %v1757
      %v1826 = vmul.f32 %v1762, %v1762
      %v1827 = vmul.f32 %v1765, %v1765
      %v1828 = vmul.f32 %v1770, %v1770
      %v1829 = vmul.f32 %v1773, %v1773
      %v1830 = vmul.f32 %v1778, %v1778
      %v1831 = vmul.f32 %v1781, %v1781
      %1832 = vadd.xlane.f32.xlu0 %v1816
      %v1833 = vpop.xlane.xlu0 %1832
      %1834 = vadd.xlane.f32.xlu0 %v1817
      %v1835 = vpop.xlane.xlu0 %1834
      %1836 = vadd.xlane.f32.xlu0 %v1818
      %v1837 = vpop.xlane.xlu0 %1836
      %1838 = vadd.xlane.f32.xlu0 %v1819
      %v1839 = vpop.xlane.xlu0 %1838
      %1840 = vadd.xlane.f32.xlu0 %v1820
      %v1841 = vpop.xlane.xlu0 %1840
      %1842 = vadd.xlane.f32.xlu0 %v1821
      %v1843 = vpop.xlane.xlu0 %1842
      %1844 = vadd.xlane.f32.xlu0 %v1822
      %v1845 = vpop.xlane.xlu0 %1844
      %1846 = vadd.xlane.f32.xlu0 %v1823
      %v1847 = vpop.xlane.xlu0 %1846
      %1848 = vadd.xlane.f32.xlu0 %v1824
      %v1849 = vpop.xlane.xlu0 %1848
      %1850 = vadd.xlane.f32.xlu0 %v1825
      %v1851 = vpop.xlane.xlu0 %1850
      %1852 = vadd.xlane.f32.xlu0 %v1826
      %v1853 = vpop.xlane.xlu0 %1852
      %1854 = vadd.xlane.f32.xlu0 %v1827
      %v1855 = vpop.xlane.xlu0 %1854
      %1856 = vadd.xlane.f32.xlu0 %v1828
      %v1857 = vpop.xlane.xlu0 %1856
      %1858 = vadd.xlane.f32.xlu0 %v1829
      %v1859 = vpop.xlane.xlu0 %1858
      %1860 = vadd.xlane.f32.xlu0 %v1830
      %v1861 = vpop.xlane.xlu0 %1860
      %1862 = vadd.xlane.f32.xlu0 %v1831
      %v1863 = vpop.xlane.xlu0 %1862
      %v1864 = vadd.f32 %v1785, %v1793
      %v1865 = vadd.f32 %v1787, %v1795
      %v1866 = vadd.f32 %v1789, %v1797
      %v1867 = vadd.f32 %v1791, %v1799
      %v1868 = vadd.f32 %v1864, %v1801
      %v1869 = vadd.f32 %v1865, %v1803
      %v1870 = vadd.f32 %v1866, %v1805
      %v1871 = vadd.f32 %v1867, %v1807
      %v1872 = vadd.f32 %v1868, %v1809
      %v1873 = vadd.f32 %v1869, %v1811
      %v1874 = vadd.f32 %v1870, %v1813
      %v1875 = vadd.f32 %v1871, %v1815
      %v1876 = vadd.f32 %v1833, %v1841
      %v1877 = vadd.f32 %v1835, %v1843
      %v1878 = vadd.f32 %v1837, %v1845
      %v1879 = vadd.f32 %v1839, %v1847
      %v1880 = vadd.f32 %v1876, %v1849
      %v1881 = vadd.f32 %v1877, %v1851
      %v1882 = vadd.f32 %v1878, %v1853
      %v1883 = vadd.f32 %v1879, %v1855
      %v1884 = vadd.f32 %v1880, %v1857
      %v1885 = vadd.f32 %v1881, %v1859
      %v1886 = vadd.f32 %v1882, %v1861
      %v1887 = vadd.f32 %v1883, %v1863
      %v1888 = vmul.f32 %v1872, 0.001953125
      %v1889 = vmul.f32 %v1873, 0.001953125
      %v1890 = vmul.f32 %v1874, 0.001953125
      %v1891 = vmul.f32 %v1875, 0.001953125
      %v1892 = vmul.f32 %v1884, 0.001953125
      %v1893 = vmul.f32 %v1885, 0.001953125
      %v1894 = vmul.f32 %v1886, 0.001953125
      %v1895 = vmul.f32 %v1887, 0.001953125
      %v1896 = vmul.f32 %v1888, %v1888
      %v1897 = vmul.f32 %v1889, %v1889
      %v1898 = vmul.f32 %v1890, %v1890
      %v1899 = vmul.f32 %v1891, %v1891
      %v1900 = vsub.f32 %v1892, %v1896
      %v1901 = vsub.f32 %v1893, %v1897
      %v1902 = vsub.f32 %v1894, %v1898
      %v1903 = vsub.f32 %v1895, %v1899
      %v1904 = vmax.f32 %v1900, 0.0
      %v1905 = vmax.f32 %v1901, 0.0
      %v1906 = vmax.f32 %v1902, 0.0
      %v1907 = vmax.f32 %v1903, 0.0
      %v1908 = vadd.f32 %v1904, 1e-05
      %v1909 = vadd.f32 %v1905, 1e-05
      %v1910 = vadd.f32 %v1906, 1e-05
      %v1911 = vadd.f32 %v1907, 1e-05
      %v1912 = vrsqrt.pop %v1908
      %v1913 = vrsqrt.pop %v1909
      %v1914 = vrsqrt.pop %v1910
      %v1915 = vrsqrt.pop %v1911
      %v1916 = vmul.f32 %v331, %v1912
      %v1917 = vmul.f32 %v332, %v1913
      %v1918 = vmul.f32 %v333, %v1914
      %v1919 = vmul.f32 %v334, %v1915
      %v1920 = vmul.f32 %v1888, %v1916
      %v1921 = vmul.f32 %v1889, %v1917
      %v1922 = vmul.f32 %v1890, %v1918
      %v1923 = vmul.f32 %v1891, %v1919
      %v1924 = vsub.f32 %v335, %v1920
      %v1925 = vsub.f32 %v336, %v1921
      %v1926 = vsub.f32 %v337, %v1922
      %v1927 = vsub.f32 %v338, %v1923
      %1929 = vset.pattern.permute.xlu0 0
      %1930 = vperm.xlu0 %1929, %v1916
      %v1931 = vpop.permute.xlu0 %1930
      %1934 = vset.pattern.permute.xlu0 0
      %1935 = vperm.xlu0 %1934, %v1917
      %v1936 = vpop.permute.xlu0 %1935
      %1939 = vset.pattern.permute.xlu0 0
      %1940 = vperm.xlu0 %1939, %v1918
      %v1941 = vpop.permute.xlu0 %1940
      %1944 = vset.pattern.permute.xlu0 0
      %1945 = vperm.xlu0 %1944, %v1919
      %v1946 = vpop.permute.xlu0 %1945
      %v1948 = vmul.f32 %v1722, %v1931
      %v1949 = vmul.f32 %v1725, %v1936
      %v1950 = vmul.f32 %v1730, %v1941
      %v1951 = vmul.f32 %v1733, %v1946
      %1953 = vset.pattern.permute.xlu0 0
      %1954 = vperm.xlu0 %1953, %v1924
      %v1955 = vpop.permute.xlu0 %1954
      %1958 = vset.pattern.permute.xlu0 0
      %1959 = vperm.xlu0 %1958, %v1925
      %v1960 = vpop.permute.xlu0 %1959
      %1963 = vset.pattern.permute.xlu0 0
      %1964 = vperm.xlu0 %1963, %v1926
      %v1965 = vpop.permute.xlu0 %1964
      %1968 = vset.pattern.permute.xlu0 0
      %1969 = vperm.xlu0 %1968, %v1927
      %v1970 = vpop.permute.xlu0 %1969
      %v1972 = vadd.f32 %v1948, %v1955
      %v1973 = vadd.f32 %v1949, %v1960
      %v1974 = vadd.f32 %v1950, %v1965
      %v1975 = vadd.f32 %v1951, %v1970
      %v1976 = vmul.f32 %v1738, %v1931
      %v1977 = vmul.f32 %v1741, %v1936
      %v1978 = vmul.f32 %v1746, %v1941
      %v1979 = vmul.f32 %v1749, %v1946
      %v1980 = vadd.f32 %v1976, %v1955
      %v1981 = vadd.f32 %v1977, %v1960
      %v1982 = vadd.f32 %v1978, %v1965
      %v1983 = vadd.f32 %v1979, %v1970
      %v1984 = vmax.f32 %v1972, %v1980
      %v1985 = vmax.f32 %v1973, %v1981
      %v1986 = vmax.f32 %v1974, %v1982
      %v1987 = vmax.f32 %v1975, %v1983
      %v1988 = vmul.f32 %v1754, %v1931
      %v1989 = vmul.f32 %v1757, %v1936
      %v1990 = vmul.f32 %v1762, %v1941
      %v1991 = vmul.f32 %v1765, %v1946
      %v1992 = vadd.f32 %v1988, %v1955
      %v1993 = vadd.f32 %v1989, %v1960
      %v1994 = vadd.f32 %v1990, %v1965
      %v1995 = vadd.f32 %v1991, %v1970
      %v1996 = vmul.f32 %v1770, %v1931
      %v1997 = vmul.f32 %v1773, %v1936
      %v1998 = vmul.f32 %v1778, %v1941
      %v1999 = vmul.f32 %v1781, %v1946
      %v2000 = vadd.f32 %v1996, %v1955
      %v2001 = vadd.f32 %v1997, %v1960
      %v2002 = vadd.f32 %v1998, %v1965
      %v2003 = vadd.f32 %v1999, %v1970
      %v2004 = vmax.f32 %v1992, %v2000
      %v2005 = vmax.f32 %v1993, %v2001
      %v2006 = vmax.f32 %v1994, %v2002
      %v2007 = vmax.f32 %v1995, %v2003
      %v2008 = vmax.f32 %v1984, %v2004
      %v2009 = vmax.f32 %v1985, %v2005
      %v2010 = vmax.f32 %v1986, %v2006
      %v2011 = vmax.f32 %v1987, %v2007
      %v2012 = vmax.f32 %v2008, 0.0
      %v2013 = vmax.f32 %v2009, 0.0
      %v2014 = vmax.f32 %v2010, 0.0
      %v2015 = vmax.f32 %v2011, 0.0
      %2016 = vst [vmem:[%s256] sm:$0xff] %v2012
      %2017 = vst [vmem:[%s256 + $0x8] sm:$0xff] %v2013
      %2018 = vst [vmem:[%s256 + $0x10] sm:$0xff] %v2014
      %2019 = vst [vmem:[%s256 + $0x18] sm:$0xff] %v2015
      %s2020 = scalar_lea.vmem %s250, 96
      %v2021 = vld [vmem:[%s2020] sm:$0xff]
      %v2022 = vld [vmem:[%s2020 + $0xc] sm:$0xff]
      %v2023 = vld [vmem:[%s2020 + $0x18] sm:$0xff]
      %v2024 = vld [vmem:[%s2020 + $0x24] sm:$0xff]
      %v2025 = vld [vmem:[%s2020 + $0x30] sm:$0xff]
      %v2026 = vld [vmem:[%s2020 + $0x3c] sm:$0xff]
      %v2027 = vld [vmem:[%s2020 + $0x48] sm:$0xff]
      %v2028 = vld [vmem:[%s2020 + $0x54] sm:$0xff]
      %v2029 = vmul.bf16 %v2021, %v361
      %v2030 = vmul.bf16 %v2022, %v361
      %v2031 = vmul.bf16 %v2023, %v361
      %v2032 = vmul.bf16 %v2024, %v361
      %v2033 = vmul.bf16 %v2025, %v361
      %v2034 = vmul.bf16 %v2026, %v361
      %v2035 = vmul.bf16 %v2027, %v361
      %v2036 = vmul.bf16 %v2028, %v361
      %v2037 = vmul.bf16 %v2021, %v385
      %v2038 = vmul.bf16 %v2022, %v385
      %v2039 = vmul.bf16 %v2023, %v385
      %v2040 = vmul.bf16 %v2024, %v385
      %v2041 = vmul.bf16 %v2025, %v385
      %v2042 = vmul.bf16 %v2026, %v385
      %v2043 = vmul.bf16 %v2027, %v385
      %v2044 = vmul.bf16 %v2028, %v385
      %v2045 = vmul.bf16 %v2021, %v409
      %v2046 = vmul.bf16 %v2022, %v409
      %v2047 = vmul.bf16 %v2023, %v409
      %v2048 = vmul.bf16 %v2024, %v409
      %v2049 = vmul.bf16 %v2025, %v409
      %v2050 = vmul.bf16 %v2026, %v409
      %v2051 = vmul.bf16 %v2027, %v409
      %v2052 = vmul.bf16 %v2028, %v409
      %v2053 = vmul.bf16 %v2021, %v433
      %v2054 = vmul.bf16 %v2022, %v433
      %v2055 = vmul.bf16 %v2023, %v433
      %v2056 = vmul.bf16 %v2024, %v433
      %v2057 = vmul.bf16 %v2025, %v433
      %v2058 = vmul.bf16 %v2026, %v433
      %v2059 = vmul.bf16 %v2027, %v433
      %v2060 = vmul.bf16 %v2028, %v433
      %v2061 = vld [vmem:[%s2020 + $0x4] sm:$0xf]
      %v2062 = vld [vmem:[%s2020 + $0x10] sm:$0xf]
      %v2063 = vld [vmem:[%s2020 + $0x1c] sm:$0xf]
      %v2064 = vld [vmem:[%s2020 + $0x28] sm:$0xf]
      %v2065 = vld [vmem:[%s2020 + $0x34] sm:$0xf]
      %v2066 = vld [vmem:[%s2020 + $0x40] sm:$0xf]
      %v2067 = vld [vmem:[%s2020 + $0x4c] sm:$0xf]
      %v2068 = vld [vmem:[%s2020 + $0x58] sm:$0xf]
      %v2069 = vld [vmem:[%s2020 + $0x4] sm:$0xff]
      %v2070 = vld [vmem:[%s2020 + $0x10] sm:$0xff]
      %v2071 = vld [vmem:[%s2020 + $0x1c] sm:$0xff]
      %v2072 = vld [vmem:[%s2020 + $0x28] sm:$0xff]
      %v2073 = vld [vmem:[%s2020 + $0x34] sm:$0xff]
      %v2074 = vld [vmem:[%s2020 + $0x40] sm:$0xff]
      %v2075 = vld [vmem:[%s2020 + $0x4c] sm:$0xff]
      %v2076 = vld [vmem:[%s2020 + $0x58] sm:$0xff]
      %v2077 = vmul.bf16 %v2069, %v473
      %v2078 = vmul.bf16 %v2070, %v473
      %v2079 = vmul.bf16 %v2071, %v473
      %v2080 = vmul.bf16 %v2072, %v473
      %v2081 = vmul.bf16 %v2073, %v473
      %v2082 = vmul.bf16 %v2074, %v473
      %v2083 = vmul.bf16 %v2075, %v473
      %v2084 = vmul.bf16 %v2076, %v473
      %v2085 = vmul.bf16 %v2069, %v497
      %v2086 = vmul.bf16 %v2070, %v497
      %v2087 = vmul.bf16 %v2071, %v497
      %v2088 = vmul.bf16 %v2072, %v497
      %v2089 = vmul.bf16 %v2073, %v497
      %v2090 = vmul.bf16 %v2074, %v497
      %v2091 = vmul.bf16 %v2075, %v497
      %v2092 = vmul.bf16 %v2076, %v497
      %v2093 = vmul.bf16 %v2069, %v521
      %v2094 = vmul.bf16 %v2070, %v521
      %v2095 = vmul.bf16 %v2071, %v521
      %v2096 = vmul.bf16 %v2072, %v521
      %v2097 = vmul.bf16 %v2073, %v521
      %v2098 = vmul.bf16 %v2074, %v521
      %v2099 = vmul.bf16 %v2075, %v521
      %v2100 = vmul.bf16 %v2076, %v521
      %v2101 = vmul.bf16 %v2069, %v545
      %v2102 = vmul.bf16 %v2070, %v545
      %v2103 = vmul.bf16 %v2071, %v545
      %v2104 = vmul.bf16 %v2072, %v545
      %v2105 = vmul.bf16 %v2073, %v545
      %v2106 = vmul.bf16 %v2074, %v545
      %v2107 = vmul.bf16 %v2075, %v545
      %v2108 = vmul.bf16 %v2076, %v545
      %v2117 = vunpack.c.l.b16 %v2029
      %v2118 = vunpack.c.h.b16 %v2029
      %v2119 = vunpack.c.l.b16 %v2030
      %v2120 = vunpack.c.h.b16 %v2030
      %v2121 = vunpack.c.l.b16 %v2031
      %v2122 = vunpack.c.h.b16 %v2031
      %v2123 = vunpack.c.l.b16 %v2032
      %v2124 = vunpack.c.h.b16 %v2032
      %v2125 = vunpack.c.l.b16 %v2033
      %v2126 = vunpack.c.h.b16 %v2033
      %v2127 = vunpack.c.l.b16 %v2034
      %v2128 = vunpack.c.h.b16 %v2034
      %v2129 = vunpack.c.l.b16 %v2035
      %v2130 = vunpack.c.h.b16 %v2035
      %v2131 = vunpack.c.l.b16 %v2036
      %v2132 = vunpack.c.h.b16 %v2036
      %v2133 = vpack.c.b16 %v2119, %v2117
      %v2134 = vpack.c.b16 %v2120, %v2118
      %v2135 = vpack.c.b16 %v2123, %v2121
      %v2136 = vpack.c.b16 %v2124, %v2122
      %v2137 = vpack.c.b16 %v2127, %v2125
      %v2138 = vpack.c.b16 %v2128, %v2126
      %v2139 = vpack.c.b16 %v2131, %v2129
      %v2140 = vpack.c.b16 %v2132, %v2130
      %v2149 = vunpack.c.l.b16 %v2037
      %v2150 = vunpack.c.h.b16 %v2037
      %v2151 = vunpack.c.l.b16 %v2038
      %v2152 = vunpack.c.h.b16 %v2038
      %v2153 = vunpack.c.l.b16 %v2039
      %v2154 = vunpack.c.h.b16 %v2039
      %v2155 = vunpack.c.l.b16 %v2040
      %v2156 = vunpack.c.h.b16 %v2040
      %v2157 = vunpack.c.l.b16 %v2041
      %v2158 = vunpack.c.h.b16 %v2041
      %v2159 = vunpack.c.l.b16 %v2042
      %v2160 = vunpack.c.h.b16 %v2042
      %v2161 = vunpack.c.l.b16 %v2043
      %v2162 = vunpack.c.h.b16 %v2043
      %v2163 = vunpack.c.l.b16 %v2044
      %v2164 = vunpack.c.h.b16 %v2044
      %v2165 = vpack.c.b16 %v2151, %v2149
      %v2166 = vpack.c.b16 %v2152, %v2150
      %v2167 = vpack.c.b16 %v2155, %v2153
      %v2168 = vpack.c.b16 %v2156, %v2154
      %v2169 = vpack.c.b16 %v2159, %v2157
      %v2170 = vpack.c.b16 %v2160, %v2158
      %v2171 = vpack.c.b16 %v2163, %v2161
      %v2172 = vpack.c.b16 %v2164, %v2162
      %2173 = vrot.lane.b32.xlu0 %v2165, 127
      %v2174 = vpop.permute.xlu0 %2173
      %2175 = vrot.lane.b32.xlu0 %v2166, 127
      %v2176 = vpop.permute.xlu0 %2175
      %2177 = vrot.lane.b32.xlu0 %v2167, 127
      %v2178 = vpop.permute.xlu0 %2177
      %2179 = vrot.lane.b32.xlu0 %v2168, 127
      %v2180 = vpop.permute.xlu0 %2179
      %2181 = vrot.lane.b32.xlu0 %v2169, 127
      %v2182 = vpop.permute.xlu0 %2181
      %2183 = vrot.lane.b32.xlu0 %v2170, 127
      %v2184 = vpop.permute.xlu0 %2183
      %2185 = vrot.lane.b32.xlu0 %v2171, 127
      %v2186 = vpop.permute.xlu0 %2185
      %2187 = vrot.lane.b32.xlu0 %v2172, 127
      %v2188 = vpop.permute.xlu0 %2187
      %v2189 = vsel %vm432, %v2174, %v2176
      %v2190 = vsel %vm432, %v2178, %v2180
      %v2191 = vsel %vm432, %v2182, %v2184
      %v2192 = vsel %vm432, %v2186, %v2188
      %v2201 = vunpack.c.l.b16 %v2045
      %v2202 = vunpack.c.h.b16 %v2045
      %v2203 = vunpack.c.l.b16 %v2046
      %v2204 = vunpack.c.h.b16 %v2046
      %v2205 = vunpack.c.l.b16 %v2047
      %v2206 = vunpack.c.h.b16 %v2047
      %v2207 = vunpack.c.l.b16 %v2048
      %v2208 = vunpack.c.h.b16 %v2048
      %v2209 = vunpack.c.l.b16 %v2049
      %v2210 = vunpack.c.h.b16 %v2049
      %v2211 = vunpack.c.l.b16 %v2050
      %v2212 = vunpack.c.h.b16 %v2050
      %v2213 = vunpack.c.l.b16 %v2051
      %v2214 = vunpack.c.h.b16 %v2051
      %v2215 = vunpack.c.l.b16 %v2052
      %v2216 = vunpack.c.h.b16 %v2052
      %v2217 = vpack.c.b16 %v2203, %v2201
      %v2218 = vpack.c.b16 %v2204, %v2202
      %v2219 = vpack.c.b16 %v2207, %v2205
      %v2220 = vpack.c.b16 %v2208, %v2206
      %v2221 = vpack.c.b16 %v2211, %v2209
      %v2222 = vpack.c.b16 %v2212, %v2210
      %v2223 = vpack.c.b16 %v2215, %v2213
      %v2224 = vpack.c.b16 %v2216, %v2214
      %2225 = vrot.lane.b32.xlu0 %v2217, 126
      %v2226 = vpop.permute.xlu0 %2225
      %2227 = vrot.lane.b32.xlu0 %v2218, 126
      %v2228 = vpop.permute.xlu0 %2227
      %2229 = vrot.lane.b32.xlu0 %v2219, 126
      %v2230 = vpop.permute.xlu0 %2229
      %2231 = vrot.lane.b32.xlu0 %v2220, 126
      %v2232 = vpop.permute.xlu0 %2231
      %2233 = vrot.lane.b32.xlu0 %v2221, 126
      %v2234 = vpop.permute.xlu0 %2233
      %2235 = vrot.lane.b32.xlu0 %v2222, 126
      %v2236 = vpop.permute.xlu0 %2235
      %2237 = vrot.lane.b32.xlu0 %v2223, 126
      %v2238 = vpop.permute.xlu0 %2237
      %2239 = vrot.lane.b32.xlu0 %v2224, 126
      %v2240 = vpop.permute.xlu0 %2239
      %v2241 = vsel %vm687, %v2226, %v2228
      %v2242 = vsel %vm687, %v2230, %v2232
      %v2243 = vsel %vm687, %v2234, %v2236
      %v2244 = vsel %vm687, %v2238, %v2240
      %v2253 = vunpack.c.l.b16 %v2053
      %v2254 = vunpack.c.h.b16 %v2053
      %v2255 = vunpack.c.l.b16 %v2054
      %v2256 = vunpack.c.h.b16 %v2054
      %v2257 = vunpack.c.l.b16 %v2055
      %v2258 = vunpack.c.h.b16 %v2055
      %v2259 = vunpack.c.l.b16 %v2056
      %v2260 = vunpack.c.h.b16 %v2056
      %v2261 = vunpack.c.l.b16 %v2057
      %v2262 = vunpack.c.h.b16 %v2057
      %v2263 = vunpack.c.l.b16 %v2058
      %v2264 = vunpack.c.h.b16 %v2058
      %v2265 = vunpack.c.l.b16 %v2059
      %v2266 = vunpack.c.h.b16 %v2059
      %v2267 = vunpack.c.l.b16 %v2060
      %v2268 = vunpack.c.h.b16 %v2060
      %v2269 = vpack.c.b16 %v2255, %v2253
      %v2270 = vpack.c.b16 %v2256, %v2254
      %v2271 = vpack.c.b16 %v2259, %v2257
      %v2272 = vpack.c.b16 %v2260, %v2258
      %v2273 = vpack.c.b16 %v2263, %v2261
      %v2274 = vpack.c.b16 %v2264, %v2262
      %v2275 = vpack.c.b16 %v2267, %v2265
      %v2276 = vpack.c.b16 %v2268, %v2266
      %2277 = vrot.lane.b32.xlu0 %v2269, 120
      %v2278 = vpop.permute.xlu0 %2277
      %2279 = vrot.lane.b32.xlu0 %v2270, 120
      %v2280 = vpop.permute.xlu0 %2279
      %2281 = vrot.lane.b32.xlu0 %v2271, 120
      %v2282 = vpop.permute.xlu0 %2281
      %2283 = vrot.lane.b32.xlu0 %v2272, 120
      %v2284 = vpop.permute.xlu0 %2283
      %2285 = vrot.lane.b32.xlu0 %v2273, 120
      %v2286 = vpop.permute.xlu0 %2285
      %2287 = vrot.lane.b32.xlu0 %v2274, 120
      %v2288 = vpop.permute.xlu0 %2287
      %2289 = vrot.lane.b32.xlu0 %v2275, 120
      %v2290 = vpop.permute.xlu0 %2289
      %2291 = vrot.lane.b32.xlu0 %v2276, 120
      %v2292 = vpop.permute.xlu0 %2291
      %v2293 = vsel %vm384, %v2278, %v2280
      %v2294 = vsel %vm384, %v2282, %v2284
      %v2295 = vsel %vm384, %v2286, %v2288
      %v2296 = vsel %vm384, %v2290, %v2292
      %v2305 = vunpack.c.l.b16 %v2061
      %v2306 = vunpack.c.l.b16 %v2062
      %v2307 = vunpack.c.l.b16 %v2063
      %v2308 = vunpack.c.l.b16 %v2064
      %v2309 = vunpack.c.l.b16 %v2065
      %v2310 = vunpack.c.l.b16 %v2066
      %v2311 = vunpack.c.l.b16 %v2067
      %v2312 = vunpack.c.l.b16 %v2068
      %v2313 = vpack.c.b16 %v2306, %v2305
      %v2314 = vpack.c.b16 %v2308, %v2307
      %v2315 = vpack.c.b16 %v2310, %v2309
      %v2316 = vpack.c.b16 %v2312, %v2311
      %2317 = vrot.lane.b32.xlu0 %v2313, 119
      %v2318 = vpop.permute.xlu0 %2317
      %2319 = vrot.lane.b32.xlu0 %v2314, 119
      %v2320 = vpop.permute.xlu0 %2319
      %2321 = vrot.lane.b32.xlu0 %v2315, 119
      %v2322 = vpop.permute.xlu0 %2321
      %2323 = vrot.lane.b32.xlu0 %v2316, 119
      %v2324 = vpop.permute.xlu0 %2323
      %v2333 = vunpack.c.l.b16 %v2077
      %v2334 = vunpack.c.h.b16 %v2077
      %v2335 = vunpack.c.l.b16 %v2078
      %v2336 = vunpack.c.h.b16 %v2078
      %v2337 = vunpack.c.l.b16 %v2079
      %v2338 = vunpack.c.h.b16 %v2079
      %v2339 = vunpack.c.l.b16 %v2080
      %v2340 = vunpack.c.h.b16 %v2080
      %v2341 = vunpack.c.l.b16 %v2081
      %v2342 = vunpack.c.h.b16 %v2081
      %v2343 = vunpack.c.l.b16 %v2082
      %v2344 = vunpack.c.h.b16 %v2082
      %v2345 = vunpack.c.l.b16 %v2083
      %v2346 = vunpack.c.h.b16 %v2083
      %v2347 = vunpack.c.l.b16 %v2084
      %v2348 = vunpack.c.h.b16 %v2084
      %v2349 = vpack.c.b16 %v2335, %v2333
      %v2350 = vpack.c.b16 %v2336, %v2334
      %v2351 = vpack.c.b16 %v2339, %v2337
      %v2352 = vpack.c.b16 %v2340, %v2338
      %v2353 = vpack.c.b16 %v2343, %v2341
      %v2354 = vpack.c.b16 %v2344, %v2342
      %v2355 = vpack.c.b16 %v2347, %v2345
      %v2356 = vpack.c.b16 %v2348, %v2346
      %2357 = vrot.lane.b32.xlu0 %v2349, 118
      %v2358 = vpop.permute.xlu0 %2357
      %2359 = vrot.lane.b32.xlu0 %v2350, 118
      %v2360 = vpop.permute.xlu0 %2359
      %2361 = vrot.lane.b32.xlu0 %v2351, 118
      %v2362 = vpop.permute.xlu0 %2361
      %2363 = vrot.lane.b32.xlu0 %v2352, 118
      %v2364 = vpop.permute.xlu0 %2363
      %2365 = vrot.lane.b32.xlu0 %v2353, 118
      %v2366 = vpop.permute.xlu0 %2365
      %2367 = vrot.lane.b32.xlu0 %v2354, 118
      %v2368 = vpop.permute.xlu0 %2367
      %2369 = vrot.lane.b32.xlu0 %v2355, 118
      %v2370 = vpop.permute.xlu0 %2369
      %2371 = vrot.lane.b32.xlu0 %v2356, 118
      %v2372 = vpop.permute.xlu0 %2371
      %v2373 = vsel %vm820, %v2358, %v2360
      %v2374 = vsel %vm820, %v2362, %v2364
      %v2375 = vsel %vm820, %v2366, %v2368
      %v2376 = vsel %vm820, %v2370, %v2372
      %v2385 = vunpack.c.l.b16 %v2085
      %v2386 = vunpack.c.h.b16 %v2085
      %v2387 = vunpack.c.l.b16 %v2086
      %v2388 = vunpack.c.h.b16 %v2086
      %v2389 = vunpack.c.l.b16 %v2087
      %v2390 = vunpack.c.h.b16 %v2087
      %v2391 = vunpack.c.l.b16 %v2088
      %v2392 = vunpack.c.h.b16 %v2088
      %v2393 = vunpack.c.l.b16 %v2089
      %v2394 = vunpack.c.h.b16 %v2089
      %v2395 = vunpack.c.l.b16 %v2090
      %v2396 = vunpack.c.h.b16 %v2090
      %v2397 = vunpack.c.l.b16 %v2091
      %v2398 = vunpack.c.h.b16 %v2091
      %v2399 = vunpack.c.l.b16 %v2092
      %v2400 = vunpack.c.h.b16 %v2092
      %v2401 = vpack.c.b16 %v2387, %v2385
      %v2402 = vpack.c.b16 %v2388, %v2386
      %v2403 = vpack.c.b16 %v2391, %v2389
      %v2404 = vpack.c.b16 %v2392, %v2390
      %v2405 = vpack.c.b16 %v2395, %v2393
      %v2406 = vpack.c.b16 %v2396, %v2394
      %v2407 = vpack.c.b16 %v2399, %v2397
      %v2408 = vpack.c.b16 %v2400, %v2398
      %2409 = vrot.lane.b32.xlu0 %v2401, 112
      %v2410 = vpop.permute.xlu0 %2409
      %2411 = vrot.lane.b32.xlu0 %v2402, 112
      %v2412 = vpop.permute.xlu0 %2411
      %2413 = vrot.lane.b32.xlu0 %v2403, 112
      %v2414 = vpop.permute.xlu0 %2413
      %2415 = vrot.lane.b32.xlu0 %v2404, 112
      %v2416 = vpop.permute.xlu0 %2415
      %2417 = vrot.lane.b32.xlu0 %v2405, 112
      %v2418 = vpop.permute.xlu0 %2417
      %2419 = vrot.lane.b32.xlu0 %v2406, 112
      %v2420 = vpop.permute.xlu0 %2419
      %2421 = vrot.lane.b32.xlu0 %v2407, 112
      %v2422 = vpop.permute.xlu0 %2421
      %2423 = vrot.lane.b32.xlu0 %v2408, 112
      %v2424 = vpop.permute.xlu0 %2423
      %v2425 = vsel %vm873, %v2410, %v2412
      %v2426 = vsel %vm873, %v2414, %v2416
      %v2427 = vsel %vm873, %v2418, %v2420
      %v2428 = vsel %vm873, %v2422, %v2424
      %v2437 = vunpack.c.l.b16 %v2093
      %v2438 = vunpack.c.h.b16 %v2093
      %v2439 = vunpack.c.l.b16 %v2094
      %v2440 = vunpack.c.h.b16 %v2094
      %v2441 = vunpack.c.l.b16 %v2095
      %v2442 = vunpack.c.h.b16 %v2095
      %v2443 = vunpack.c.l.b16 %v2096
      %v2444 = vunpack.c.h.b16 %v2096
      %v2445 = vunpack.c.l.b16 %v2097
      %v2446 = vunpack.c.h.b16 %v2097
      %v2447 = vunpack.c.l.b16 %v2098
      %v2448 = vunpack.c.h.b16 %v2098
      %v2449 = vunpack.c.l.b16 %v2099
      %v2450 = vunpack.c.h.b16 %v2099
      %v2451 = vunpack.c.l.b16 %v2100
      %v2452 = vunpack.c.h.b16 %v2100
      %v2453 = vpack.c.b16 %v2439, %v2437
      %v2454 = vpack.c.b16 %v2440, %v2438
      %v2455 = vpack.c.b16 %v2443, %v2441
      %v2456 = vpack.c.b16 %v2444, %v2442
      %v2457 = vpack.c.b16 %v2447, %v2445
      %v2458 = vpack.c.b16 %v2448, %v2446
      %v2459 = vpack.c.b16 %v2451, %v2449
      %v2460 = vpack.c.b16 %v2452, %v2450
      %2461 = vrot.lane.b32.xlu0 %v2453, 111
      %v2462 = vpop.permute.xlu0 %2461
      %2463 = vrot.lane.b32.xlu0 %v2454, 111
      %v2464 = vpop.permute.xlu0 %2463
      %2465 = vrot.lane.b32.xlu0 %v2455, 111
      %v2466 = vpop.permute.xlu0 %2465
      %2467 = vrot.lane.b32.xlu0 %v2456, 111
      %v2468 = vpop.permute.xlu0 %2467
      %2469 = vrot.lane.b32.xlu0 %v2457, 111
      %v2470 = vpop.permute.xlu0 %2469
      %2471 = vrot.lane.b32.xlu0 %v2458, 111
      %v2472 = vpop.permute.xlu0 %2471
      %2473 = vrot.lane.b32.xlu0 %v2459, 111
      %v2474 = vpop.permute.xlu0 %2473
      %2475 = vrot.lane.b32.xlu0 %v2460, 111
      %v2476 = vpop.permute.xlu0 %2475
      %v2477 = vsel %vm926, %v2462, %v2464
      %v2478 = vsel %vm926, %v2466, %v2468
      %v2479 = vsel %vm926, %v2470, %v2472
      %v2480 = vsel %vm926, %v2474, %v2476
      %v2489 = vunpack.c.l.b16 %v2101
      %v2490 = vunpack.c.h.b16 %v2101
      %v2491 = vunpack.c.l.b16 %v2102
      %v2492 = vunpack.c.h.b16 %v2102
      %v2493 = vunpack.c.l.b16 %v2103
      %v2494 = vunpack.c.h.b16 %v2103
      %v2495 = vunpack.c.l.b16 %v2104
      %v2496 = vunpack.c.h.b16 %v2104
      %v2497 = vunpack.c.l.b16 %v2105
      %v2498 = vunpack.c.h.b16 %v2105
      %v2499 = vunpack.c.l.b16 %v2106
      %v2500 = vunpack.c.h.b16 %v2106
      %v2501 = vunpack.c.l.b16 %v2107
      %v2502 = vunpack.c.h.b16 %v2107
      %v2503 = vunpack.c.l.b16 %v2108
      %v2504 = vunpack.c.h.b16 %v2108
      %v2505 = vpack.c.b16 %v2491, %v2489
      %v2506 = vpack.c.b16 %v2492, %v2490
      %v2507 = vpack.c.b16 %v2495, %v2493
      %v2508 = vpack.c.b16 %v2496, %v2494
      %v2509 = vpack.c.b16 %v2499, %v2497
      %v2510 = vpack.c.b16 %v2500, %v2498
      %v2511 = vpack.c.b16 %v2503, %v2501
      %v2512 = vpack.c.b16 %v2504, %v2502
      %2513 = vrot.lane.b32.xlu0 %v2505, 110
      %v2514 = vpop.permute.xlu0 %2513
      %2515 = vrot.lane.b32.xlu0 %v2506, 110
      %v2516 = vpop.permute.xlu0 %2515
      %2517 = vrot.lane.b32.xlu0 %v2507, 110
      %v2518 = vpop.permute.xlu0 %2517
      %2519 = vrot.lane.b32.xlu0 %v2508, 110
      %v2520 = vpop.permute.xlu0 %2519
      %2521 = vrot.lane.b32.xlu0 %v2509, 110
      %v2522 = vpop.permute.xlu0 %2521
      %2523 = vrot.lane.b32.xlu0 %v2510, 110
      %v2524 = vpop.permute.xlu0 %2523
      %2525 = vrot.lane.b32.xlu0 %v2511, 110
      %v2526 = vpop.permute.xlu0 %2525
      %2527 = vrot.lane.b32.xlu0 %v2512, 110
      %v2528 = vpop.permute.xlu0 %2527
      %v2529 = vsel %vm979, %v2514, %v2516
      %v2530 = vsel %vm979, %v2518, %v2520
      %v2531 = vsel %vm979, %v2522, %v2524
      %v2532 = vsel %vm979, %v2526, %v2528
      %2533 = vrot.lane.b32.xlu0 %v2133, 9
      %v2534 = vpop.permute.xlu0 %2533
      %2535 = vrot.lane.b32.xlu0 %v2134, 9
      %v2536 = vpop.permute.xlu0 %2535
      %2537 = vrot.lane.b32.xlu0 %v2135, 9
      %v2538 = vpop.permute.xlu0 %2537
      %2539 = vrot.lane.b32.xlu0 %v2136, 9
      %v2540 = vpop.permute.xlu0 %2539
      %2541 = vrot.lane.b32.xlu0 %v2137, 9
      %v2542 = vpop.permute.xlu0 %2541
      %2543 = vrot.lane.b32.xlu0 %v2138, 9
      %v2544 = vpop.permute.xlu0 %2543
      %2545 = vrot.lane.b32.xlu0 %v2139, 9
      %v2546 = vpop.permute.xlu0 %2545
      %2547 = vrot.lane.b32.xlu0 %v2140, 9
      %v2548 = vpop.permute.xlu0 %2547
      %2549 = vrot.lane.b32.xlu0 %v2189, 9
      %v2550 = vpop.permute.xlu0 %2549
      %2551 = vrot.lane.b32.xlu0 %v2176, 9
      %v2552 = vpop.permute.xlu0 %2551
      %2553 = vrot.lane.b32.xlu0 %v2190, 9
      %v2554 = vpop.permute.xlu0 %2553
      %2555 = vrot.lane.b32.xlu0 %v2180, 9
      %v2556 = vpop.permute.xlu0 %2555
      %2557 = vrot.lane.b32.xlu0 %v2191, 9
      %v2558 = vpop.permute.xlu0 %2557
      %2559 = vrot.lane.b32.xlu0 %v2184, 9
      %v2560 = vpop.permute.xlu0 %2559
      %2561 = vrot.lane.b32.xlu0 %v2192, 9
      %v2562 = vpop.permute.xlu0 %2561
      %2563 = vrot.lane.b32.xlu0 %v2188, 9
      %v2564 = vpop.permute.xlu0 %2563
      %2565 = vrot.lane.b32.xlu0 %v2241, 9
      %v2566 = vpop.permute.xlu0 %2565
      %2567 = vrot.lane.b32.xlu0 %v2228, 9
      %v2568 = vpop.permute.xlu0 %2567
      %2569 = vrot.lane.b32.xlu0 %v2242, 9
      %v2570 = vpop.permute.xlu0 %2569
      %2571 = vrot.lane.b32.xlu0 %v2232, 9
      %v2572 = vpop.permute.xlu0 %2571
      %2573 = vrot.lane.b32.xlu0 %v2243, 9
      %v2574 = vpop.permute.xlu0 %2573
      %2575 = vrot.lane.b32.xlu0 %v2236, 9
      %v2576 = vpop.permute.xlu0 %2575
      %2577 = vrot.lane.b32.xlu0 %v2244, 9
      %v2578 = vpop.permute.xlu0 %2577
      %2579 = vrot.lane.b32.xlu0 %v2240, 9
      %v2580 = vpop.permute.xlu0 %2579
      %2581 = vrot.lane.b32.xlu0 %v2293, 9
      %v2582 = vpop.permute.xlu0 %2581
      %2583 = vrot.lane.b32.xlu0 %v2280, 9
      %v2584 = vpop.permute.xlu0 %2583
      %2585 = vrot.lane.b32.xlu0 %v2294, 9
      %v2586 = vpop.permute.xlu0 %2585
      %2587 = vrot.lane.b32.xlu0 %v2284, 9
      %v2588 = vpop.permute.xlu0 %2587
      %2589 = vrot.lane.b32.xlu0 %v2295, 9
      %v2590 = vpop.permute.xlu0 %2589
      %2591 = vrot.lane.b32.xlu0 %v2288, 9
      %v2592 = vpop.permute.xlu0 %2591
      %2593 = vrot.lane.b32.xlu0 %v2296, 9
      %v2594 = vpop.permute.xlu0 %2593
      %2595 = vrot.lane.b32.xlu0 %v2292, 9
      %v2596 = vpop.permute.xlu0 %2595
      %2597 = vrot.lane.b32.xlu0 %v2318, 9
      %v2598 = vpop.permute.xlu0 %2597
      %2599 = vrot.lane.b32.xlu0 %v2320, 9
      %v2600 = vpop.permute.xlu0 %2599
      %2601 = vrot.lane.b32.xlu0 %v2322, 9
      %v2602 = vpop.permute.xlu0 %2601
      %2603 = vrot.lane.b32.xlu0 %v2324, 9
      %v2604 = vpop.permute.xlu0 %2603
      %2605 = vrot.lane.b32.xlu0 %v2358, 9
      %v2606 = vpop.permute.xlu0 %2605
      %2607 = vrot.lane.b32.xlu0 %v2373, 9
      %v2608 = vpop.permute.xlu0 %2607
      %2609 = vrot.lane.b32.xlu0 %v2362, 9
      %v2610 = vpop.permute.xlu0 %2609
      %2611 = vrot.lane.b32.xlu0 %v2374, 9
      %v2612 = vpop.permute.xlu0 %2611
      %2613 = vrot.lane.b32.xlu0 %v2366, 9
      %v2614 = vpop.permute.xlu0 %2613
      %2615 = vrot.lane.b32.xlu0 %v2375, 9
      %v2616 = vpop.permute.xlu0 %2615
      %2617 = vrot.lane.b32.xlu0 %v2370, 9
      %v2618 = vpop.permute.xlu0 %2617
      %2619 = vrot.lane.b32.xlu0 %v2376, 9
      %v2620 = vpop.permute.xlu0 %2619
      %2621 = vrot.lane.b32.xlu0 %v2410, 9
      %v2622 = vpop.permute.xlu0 %2621
      %2623 = vrot.lane.b32.xlu0 %v2425, 9
      %v2624 = vpop.permute.xlu0 %2623
      %2625 = vrot.lane.b32.xlu0 %v2414, 9
      %v2626 = vpop.permute.xlu0 %2625
      %2627 = vrot.lane.b32.xlu0 %v2426, 9
      %v2628 = vpop.permute.xlu0 %2627
      %2629 = vrot.lane.b32.xlu0 %v2418, 9
      %v2630 = vpop.permute.xlu0 %2629
      %2631 = vrot.lane.b32.xlu0 %v2427, 9
      %v2632 = vpop.permute.xlu0 %2631
      %2633 = vrot.lane.b32.xlu0 %v2422, 9
      %v2634 = vpop.permute.xlu0 %2633
      %2635 = vrot.lane.b32.xlu0 %v2428, 9
      %v2636 = vpop.permute.xlu0 %2635
      %2637 = vrot.lane.b32.xlu0 %v2462, 9
      %v2638 = vpop.permute.xlu0 %2637
      %2639 = vrot.lane.b32.xlu0 %v2477, 9
      %v2640 = vpop.permute.xlu0 %2639
      %2641 = vrot.lane.b32.xlu0 %v2466, 9
      %v2642 = vpop.permute.xlu0 %2641
      %2643 = vrot.lane.b32.xlu0 %v2478, 9
      %v2644 = vpop.permute.xlu0 %2643
      %2645 = vrot.lane.b32.xlu0 %v2470, 9
      %v2646 = vpop.permute.xlu0 %2645
      %2647 = vrot.lane.b32.xlu0 %v2479, 9
      %v2648 = vpop.permute.xlu0 %2647
      %2649 = vrot.lane.b32.xlu0 %v2474, 9
      %v2650 = vpop.permute.xlu0 %2649
      %2651 = vrot.lane.b32.xlu0 %v2480, 9
      %v2652 = vpop.permute.xlu0 %2651
      %2653 = vrot.lane.b32.xlu0 %v2514, 9
      %v2654 = vpop.permute.xlu0 %2653
      %2655 = vrot.lane.b32.xlu0 %v2529, 9
      %v2656 = vpop.permute.xlu0 %2655
      %2657 = vrot.lane.b32.xlu0 %v2518, 9
      %v2658 = vpop.permute.xlu0 %2657
      %2659 = vrot.lane.b32.xlu0 %v2530, 9
      %v2660 = vpop.permute.xlu0 %2659
      %2661 = vrot.lane.b32.xlu0 %v2522, 9
      %v2662 = vpop.permute.xlu0 %2661
      %2663 = vrot.lane.b32.xlu0 %v2531, 9
      %v2664 = vpop.permute.xlu0 %2663
      %2665 = vrot.lane.b32.xlu0 %v2526, 9
      %v2666 = vpop.permute.xlu0 %2665
      %2667 = vrot.lane.b32.xlu0 %v2532, 9
      %v2668 = vpop.permute.xlu0 %2667
      %v2669 = vsel %vm544, %v2534, %v2536
      %v2670 = vsel %vm544, %v2538, %v2540
      %v2671 = vsel %vm544, %v2542, %v2544
      %v2672 = vsel %vm544, %v2546, %v2548
      %v2673 = vsel %vm544, %v2550, %v2552
      %v2674 = vsel %vm544, %v2554, %v2556
      %v2675 = vsel %vm544, %v2558, %v2560
      %v2676 = vsel %vm544, %v2562, %v2564
      %v2677 = vsel %vm544, %v2566, %v2568
      %v2678 = vsel %vm544, %v2570, %v2572
      %v2679 = vsel %vm544, %v2574, %v2576
      %v2680 = vsel %vm544, %v2578, %v2580
      %v2681 = vsel %vm544, %v2582, %v2584
      %v2682 = vsel %vm544, %v2586, %v2588
      %v2683 = vsel %vm544, %v2590, %v2592
      %v2684 = vsel %vm544, %v2594, %v2596
      %v2685 = vsel %vm544, %v2606, %v2608
      %v2686 = vsel %vm544, %v2610, %v2612
      %v2687 = vsel %vm544, %v2614, %v2616
      %v2688 = vsel %vm544, %v2618, %v2620
      %v2689 = vsel %vm544, %v2622, %v2624
      %v2690 = vsel %vm544, %v2626, %v2628
      %v2691 = vsel %vm544, %v2630, %v2632
      %v2692 = vsel %vm544, %v2634, %v2636
      %v2693 = vsel %vm544, %v2638, %v2640
      %v2694 = vsel %vm544, %v2642, %v2644
      %v2695 = vsel %vm544, %v2646, %v2648
      %v2696 = vsel %vm544, %v2650, %v2652
      %v2697 = vsel %vm544, %v2654, %v2656
      %v2698 = vsel %vm544, %v2658, %v2660
      %v2699 = vsel %vm544, %v2662, %v2664
      %v2700 = vsel %vm544, %v2666, %v2668
      %2737 = vmatprep.subr.bf16.mxu0 0
      %2738 = vmatpush1.bf16.msra.mxu0 %v2669
      %2739 = vmatprep.subr.bf16.mxu0 0
      %2740 = vmatpush1.bf16.msra.mxu0 %v2670
      %2741 = vmatprep.subr.bf16.mxu0 0
      %2742 = vmatpush1.bf16.msra.mxu0 %v2671
      %2743 = vmatprep.subr.bf16.mxu0 0
      %2744 = vmatpush1.bf16.msra.mxu0 %v2672
      %2745 = vmatprep.subr.bf16.mxu0 0
      %2746 = vmatpush1.bf16.msra.mxu0 %v2673
      %2747 = vmatprep.subr.bf16.mxu0 0
      %2748 = vmatpush1.bf16.msra.mxu0 %v2674
      %2749 = vmatprep.subr.bf16.mxu0 0
      %2750 = vmatpush1.bf16.msra.mxu0 %v2675
      %2751 = vmatprep.subr.bf16.mxu0 0
      %2752 = vmatpush1.bf16.msra.mxu0 %v2676
      %2753 = vmatprep.subr.bf16.mxu0 0
      %2754 = vmatpush1.bf16.msra.mxu0 %v2677
      %2755 = vmatprep.subr.bf16.mxu0 0
      %2756 = vmatpush1.bf16.msra.mxu0 %v2678
      %2757 = vmatprep.subr.bf16.mxu0 0
      %2758 = vmatpush1.bf16.msra.mxu0 %v2679
      %2759 = vmatprep.subr.bf16.mxu0 0
      %2760 = vmatpush1.bf16.msra.mxu0 %v2680
      %2761 = vmatprep.subr.bf16.mxu0 0
      %2762 = vmatpush1.bf16.msra.mxu0 %v2681
      %2763 = vmatprep.subr.bf16.mxu0 0
      %2764 = vmatpush1.bf16.msra.mxu0 %v2682
      %2765 = vmatprep.subr.bf16.mxu0 0
      %2766 = vmatpush1.bf16.msra.mxu0 %v2683
      %2767 = vmatprep.subr.bf16.mxu0 0
      %2768 = vmatpush1.bf16.msra.mxu0 %v2684
      %2769 = vmatprep.mubr.bf16.mxu0 %v1193
      %2770 = vmatmul.mubr.bf16.gmra.mrb[0].mxu0 %v1192
      %v2771 = vpop.f32.mrb[0].mxu0
      %v2772 = vadd.f32 %v987, %v2771
      %v2773 = vpop.f32.mrb[0].mxu0
      %v2774 = vpop.f32.mrb[0].mxu0
      %v2775 = vadd.f32 %v992, %v2774
      %v2776 = vpop.f32.mrb[0].mxu0
      %2777 = vmatprep.mubr.bf16.mxu0 %v1198
      %2778 = vmatmul.mubr.bf16.gmra.mrb[0].mxu0 %v1197
      %v2779 = vpop.f32.mrb[0].mxu0
      %v2780 = vadd.f32 %v997, %v2779
      %v2781 = vpop.f32.mrb[0].mxu0
      %v2782 = vpop.f32.mrb[0].mxu0
      %v2783 = vadd.f32 %v1002, %v2782
      %v2784 = vpop.f32.mrb[0].mxu0
      %2785 = vmatprep.mubr.bf16.mxu0 %v1203
      %2786 = vmatmul.mubr.bf16.gmra.mrb[0].mxu0 %v1202
      %v2787 = vpop.f32.mrb[0].mxu0
      %v2788 = vadd.f32 %v1007, %v2787
      %v2789 = vpop.f32.mrb[0].mxu0
      %v2790 = vpop.f32.mrb[0].mxu0
      %v2791 = vadd.f32 %v1012, %v2790
      %v2792 = vpop.f32.mrb[0].mxu0
      %2793 = vmatprep.mubr.bf16.mxu0 %v1208
      %2794 = vmatmul.mubr.bf16.gmra.mrb[0].mxu0 %v1207
      %v2795 = vpop.f32.mrb[0].mxu0
      %v2796 = vadd.f32 %v1017, %v2795
      %v2797 = vpop.f32.mrb[0].mxu0
      %v2798 = vpop.f32.mrb[0].mxu0
      %v2799 = vadd.f32 %v1022, %v2798
      %v2800 = vpop.f32.mrb[0].mxu0
      %2801 = vmatprep.mubr.bf16.mxu0 %v1213
      %2802 = vmatmul.mubr.bf16.gmra.mrb[0].mxu0 %v1212
      %v2803 = vpop.f32.mrb[0].mxu0
      %v2804 = vadd.f32 %v1027, %v2803
      %v2805 = vpop.f32.mrb[0].mxu0
      %v2806 = vpop.f32.mrb[0].mxu0
      %v2807 = vadd.f32 %v1032, %v2806
      %v2808 = vpop.f32.mrb[0].mxu0
      %2809 = vmatprep.mubr.bf16.mxu0 %v1218
      %2810 = vmatmul.mubr.bf16.gmra.mrb[0].mxu0 %v1217
      %v2811 = vpop.f32.mrb[0].mxu0
      %v2812 = vadd.f32 %v1037, %v2811
      %v2813 = vpop.f32.mrb[0].mxu0
      %v2814 = vpop.f32.mrb[0].mxu0
      %v2815 = vadd.f32 %v1042, %v2814
      %v2816 = vpop.f32.mrb[0].mxu0
      %2817 = vmatprep.mubr.bf16.mxu0 %v1223
      %2818 = vmatmul.mubr.bf16.gmra.mrb[0].mxu0 %v1222
      %v2819 = vpop.f32.mrb[0].mxu0
      %v2820 = vadd.f32 %v1047, %v2819
      %v2821 = vpop.f32.mrb[0].mxu0
      %v2822 = vpop.f32.mrb[0].mxu0
      %v2823 = vadd.f32 %v1052, %v2822
      %v2824 = vpop.f32.mrb[0].mxu0
      %2825 = vmatprep.mubr.bf16.mxu0 %v1228
      %2826 = vmatmul.mubr.bf16.gmra.mrb[0].mxu0 %v1227
      %v2827 = vpop.f32.mrb[0].mxu0
      %v2828 = vadd.f32 %v1057, %v2827
      %v2829 = vpop.f32.mrb[0].mxu0
      %v2830 = vpop.f32.mrb[0].mxu0
      %v2831 = vadd.f32 %v1062, %v2830
      %v2832 = vpop.f32.mrb[0].mxu0
      %2833 = vdwg.mxu0
      %2834 = vmatprep.subr.bf16.mxu0 0
      %2835 = vmatpush1.bf16.msra.mxu0 %v2598
      %2836 = vmatprep.subr.bf16.mxu0 0
      %2837 = vmatpush1.bf16.msra.mxu0 %v2600
      %2838 = vmatprep.subr.bf16.mxu0 0
      %2839 = vmatpush1.bf16.msra.mxu0 %v2602
      %2840 = vmatprep.subr.bf16.mxu0 0
      %2841 = vmatpush1.bf16.msra.mxu0 %v2604
      %2842 = vmatprep.subr.bf16.mxu0 0
      %2843 = vmatpush1.bf16.msra.mxu0 %v2685
      %2844 = vmatprep.subr.bf16.mxu0 0
      %2845 = vmatpush1.bf16.msra.mxu0 %v2686
      %2846 = vmatprep.subr.bf16.mxu0 0
      %2847 = vmatpush1.bf16.msra.mxu0 %v2687
      %2848 = vmatprep.subr.bf16.mxu0 0
      %2849 = vmatpush1.bf16.msra.mxu0 %v2688
      %2850 = vmatprep.subr.bf16.mxu0 0
      %2851 = vmatpush1.bf16.msra.mxu0 %v2689
      %2852 = vmatprep.subr.bf16.mxu0 0
      %2853 = vmatpush1.bf16.msra.mxu0 %v2690
      %2854 = vmatprep.subr.bf16.mxu0 0
      %2855 = vmatpush1.bf16.msra.mxu0 %v2691
      %2856 = vmatprep.subr.bf16.mxu0 0
      %2857 = vmatpush1.bf16.msra.mxu0 %v2692
      %2858 = vmatprep.subr.bf16.mxu0 0
      %2859 = vmatpush1.bf16.msra.mxu0 %v2693
      %2860 = vmatprep.subr.bf16.mxu0 0
      %2861 = vmatpush1.bf16.msra.mxu0 %v2694
      %2862 = vmatprep.subr.bf16.mxu0 0
      %2863 = vmatpush1.bf16.msra.mxu0 %v2695
      %2864 = vmatprep.subr.bf16.mxu0 0
      %2865 = vmatpush1.bf16.msra.mxu0 %v2696
      %2866 = vmatprep.mubr.bf16.mxu0 %v1195
      %2867 = vmatmul.mubr.bf16.gmra.mrb[0].mxu0 %v1194
      %v2868 = vpop.f32.mrb[0].mxu0
      %v2869 = vadd.f32 %v2772, %v2868
      %v2870 = vpop.f32.mrb[0].mxu0
      %v2871 = vpop.f32.mrb[0].mxu0
      %v2872 = vadd.f32 %v2775, %v2871
      %v2873 = vpop.f32.mrb[0].mxu0
      %2874 = vmatprep.mubr.bf16.mxu0 %v1200
      %2875 = vmatmul.mubr.bf16.gmra.mrb[0].mxu0 %v1199
      %v2876 = vpop.f32.mrb[0].mxu0
      %v2877 = vadd.f32 %v2780, %v2876
      %v2878 = vpop.f32.mrb[0].mxu0
      %v2879 = vpop.f32.mrb[0].mxu0
      %v2880 = vadd.f32 %v2783, %v2879
      %v2881 = vpop.f32.mrb[0].mxu0
      %2882 = vmatprep.mubr.bf16.mxu0 %v1205
      %2883 = vmatmul.mubr.bf16.gmra.mrb[0].mxu0 %v1204
      %v2884 = vpop.f32.mrb[0].mxu0
      %v2885 = vadd.f32 %v2788, %v2884
      %v2886 = vpop.f32.mrb[0].mxu0
      %v2887 = vpop.f32.mrb[0].mxu0
      %v2888 = vadd.f32 %v2791, %v2887
      %v2889 = vpop.f32.mrb[0].mxu0
      %2890 = vmatprep.mubr.bf16.mxu0 %v1210
      %2891 = vmatmul.mubr.bf16.gmra.mrb[0].mxu0 %v1209
      %v2892 = vpop.f32.mrb[0].mxu0
      %v2893 = vadd.f32 %v2796, %v2892
      %v2894 = vpop.f32.mrb[0].mxu0
      %v2895 = vpop.f32.mrb[0].mxu0
      %v2896 = vadd.f32 %v2799, %v2895
      %v2897 = vpop.f32.mrb[0].mxu0
      %2898 = vmatprep.mubr.bf16.mxu0 %v1215
      %2899 = vmatmul.mubr.bf16.gmra.mrb[0].mxu0 %v1214
      %v2900 = vpop.f32.mrb[0].mxu0
      %v2901 = vadd.f32 %v2804, %v2900
      %v2902 = vpop.f32.mrb[0].mxu0
      %v2903 = vpop.f32.mrb[0].mxu0
      %v2904 = vadd.f32 %v2807, %v2903
      %v2905 = vpop.f32.mrb[0].mxu0
      %2906 = vmatprep.mubr.bf16.mxu0 %v1220
      %2907 = vmatmul.mubr.bf16.gmra.mrb[0].mxu0 %v1219
      %v2908 = vpop.f32.mrb[0].mxu0
      %v2909 = vadd.f32 %v2812, %v2908
      %v2910 = vpop.f32.mrb[0].mxu0
      %v2911 = vpop.f32.mrb[0].mxu0
      %v2912 = vadd.f32 %v2815, %v2911
      %v2913 = vpop.f32.mrb[0].mxu0
      %2914 = vmatprep.mubr.bf16.mxu0 %v1225
      %2915 = vmatmul.mubr.bf16.gmra.mrb[0].mxu0 %v1224
      %v2916 = vpop.f32.mrb[0].mxu0
      %v2917 = vadd.f32 %v2820, %v2916
      %v2918 = vpop.f32.mrb[0].mxu0
      %v2919 = vpop.f32.mrb[0].mxu0
      %v2920 = vadd.f32 %v2823, %v2919
      %v2921 = vpop.f32.mrb[0].mxu0
      %2922 = vmatprep.mubr.bf16.mxu0 %v1230
      %2923 = vmatmul.mubr.bf16.gmra.mrb[0].mxu0 %v1229
      %v2924 = vpop.f32.mrb[0].mxu0
      %v2925 = vadd.f32 %v2828, %v2924
      %v2926 = vpop.f32.mrb[0].mxu0
      %v2927 = vpop.f32.mrb[0].mxu0
      %v2928 = vadd.f32 %v2831, %v2927
      %v2929 = vpop.f32.mrb[0].mxu0
      %2930 = vdwg.mxu0
      %2931 = vmatprep.subr.bf16.mxu0 0
      %2932 = vmatpush1.bf16.msra.mxu0 %v2697
      %2933 = vmatprep.subr.bf16.mxu0 0
      %2934 = vmatpush1.bf16.msra.mxu0 %v2698
      %2935 = vmatprep.subr.bf16.mxu0 0
      %2936 = vmatpush1.bf16.msra.mxu0 %v2699
      %2937 = vmatprep.subr.bf16.mxu0 0
      %2938 = vmatpush1.bf16.msra.mxu0 %v2700
      %2939 = vmatprep.subr.bf16.mxu0 0
      %2940 = vmatpush1.bf16.msra.mxu0 0
      %2941 = vmatprep.subr.bf16.mxu0 0
      %2942 = vmatpush1.bf16.msra.mxu0 0
      %2943 = vmatprep.subr.bf16.mxu0 0
      %2944 = vmatpush1.bf16.msra.mxu0 0
      %2945 = vmatprep.subr.bf16.mxu0 0
      %2946 = vmatpush1.bf16.msra.mxu0 0
      %2947 = vmatprep.subr.bf16.mxu0 0
      %2948 = vmatpush1.bf16.msra.mxu0 0
      %2949 = vmatprep.subr.bf16.mxu0 0
      %2950 = vmatpush1.bf16.msra.mxu0 0
      %2951 = vmatprep.subr.bf16.mxu0 0
      %2952 = vmatpush1.bf16.msra.mxu0 0
      %2953 = vmatprep.subr.bf16.mxu0 0
      %2954 = vmatpush1.bf16.msra.mxu0 0
      %2955 = vmatprep.subr.bf16.mxu0 0
      %2956 = vmatpush1.bf16.msra.mxu0 0
      %2957 = vmatprep.subr.bf16.mxu0 0
      %2958 = vmatpush1.bf16.msra.mxu0 0
      %2959 = vmatprep.subr.bf16.mxu0 0
      %2960 = vmatpush1.bf16.msra.mxu0 0
      %2961 = vmatprep.subr.bf16.mxu0 0
      %2962 = vmatpush1.bf16.msra.mxu0 0
      %2963 = vmatprep.mubr.bf16.mxu0 0
      %2964 = vmatmul.mubr.bf16.gmra.mrb[0].mxu0 %v1470
      %v2965 = vpop.f32.mrb[0].mxu0
      %v2966 = vadd.f32 %v2869, %v2965
      %v2967 = vpop.f32.mrb[0].mxu0
      %v2968 = vpop.f32.mrb[0].mxu0
      %v2969 = vadd.f32 %v2872, %v2968
      %v2970 = vpop.f32.mrb[0].mxu0
      %2971 = vmatprep.mubr.bf16.mxu0 0
      %2972 = vmatmul.mubr.bf16.gmra.mrb[0].mxu0 %v1473
      %v2973 = vpop.f32.mrb[0].mxu0
      %v2974 = vadd.f32 %v2877, %v2973
      %v2975 = vpop.f32.mrb[0].mxu0
      %v2976 = vpop.f32.mrb[0].mxu0
      %v2977 = vadd.f32 %v2880, %v2976
      %v2978 = vpop.f32.mrb[0].mxu0
      %2979 = vmatprep.mubr.bf16.mxu0 0
      %2980 = vmatmul.mubr.bf16.gmra.mrb[0].mxu0 %v1476
      %v2981 = vpop.f32.mrb[0].mxu0
      %v2982 = vadd.f32 %v2885, %v2981
      %v2983 = vpop.f32.mrb[0].mxu0
      %v2984 = vpop.f32.mrb[0].mxu0
      %v2985 = vadd.f32 %v2888, %v2984
      %v2986 = vpop.f32.mrb[0].mxu0
      %2987 = vmatprep.mubr.bf16.mxu0 0
      %2988 = vmatmul.mubr.bf16.gmra.mrb[0].mxu0 %v1479
      %v2989 = vpop.f32.mrb[0].mxu0
      %v2990 = vadd.f32 %v2893, %v2989
      %v2991 = vpop.f32.mrb[0].mxu0
      %v2992 = vpop.f32.mrb[0].mxu0
      %v2993 = vadd.f32 %v2896, %v2992
      %v2994 = vpop.f32.mrb[0].mxu0
      %2995 = vmatprep.mubr.bf16.mxu0 0
      %2996 = vmatmul.mubr.bf16.gmra.mrb[0].mxu0 %v1482
      %v2997 = vpop.f32.mrb[0].mxu0
      %v2998 = vadd.f32 %v2901, %v2997
      %v2999 = vpop.f32.mrb[0].mxu0
      %v3000 = vpop.f32.mrb[0].mxu0
      %v3001 = vadd.f32 %v2904, %v3000
      %v3002 = vpop.f32.mrb[0].mxu0
      %3003 = vmatprep.mubr.bf16.mxu0 0
      %3004 = vmatmul.mubr.bf16.gmra.mrb[0].mxu0 %v1485
      %v3005 = vpop.f32.mrb[0].mxu0
      %v3006 = vadd.f32 %v2909, %v3005
      %v3007 = vpop.f32.mrb[0].mxu0
      %v3008 = vpop.f32.mrb[0].mxu0
      %v3009 = vadd.f32 %v2912, %v3008
      %v3010 = vpop.f32.mrb[0].mxu0
      %3011 = vmatprep.mubr.bf16.mxu0 0
      %3012 = vmatmul.mubr.bf16.gmra.mrb[0].mxu0 %v1488
      %v3013 = vpop.f32.mrb[0].mxu0
      %v3014 = vadd.f32 %v2917, %v3013
      %v3015 = vpop.f32.mrb[0].mxu0
      %v3016 = vpop.f32.mrb[0].mxu0
      %v3017 = vadd.f32 %v2920, %v3016
      %v3018 = vpop.f32.mrb[0].mxu0
      %3019 = vmatprep.mubr.bf16.mxu0 0
      %3020 = vmatmul.mubr.bf16.gmra.mrb[0].mxu0 %v1491
      %v3021 = vpop.f32.mrb[0].mxu0
      %v3022 = vadd.f32 %v2925, %v3021
      %v3023 = vpop.f32.mrb[0].mxu0
      %v3024 = vpop.f32.mrb[0].mxu0
      %v3025 = vadd.f32 %v2928, %v3024
      %v3026 = vpop.f32.mrb[0].mxu0
      %3027 = vdwg.mxu0
      %3028 = vadd.xlane.f32.xlu0 %v2966
      %v3029 = vpop.xlane.xlu0 %3028
      %3030 = vadd.xlane.f32.xlu0 %v2969
      %v3031 = vpop.xlane.xlu0 %3030
      %3032 = vadd.xlane.f32.xlu0 %v2974
      %v3033 = vpop.xlane.xlu0 %3032
      %3034 = vadd.xlane.f32.xlu0 %v2977
      %v3035 = vpop.xlane.xlu0 %3034
      %3036 = vadd.xlane.f32.xlu0 %v2982
      %v3037 = vpop.xlane.xlu0 %3036
      %3038 = vadd.xlane.f32.xlu0 %v2985
      %v3039 = vpop.xlane.xlu0 %3038
      %3040 = vadd.xlane.f32.xlu0 %v2990
      %v3041 = vpop.xlane.xlu0 %3040
      %3042 = vadd.xlane.f32.xlu0 %v2993
      %v3043 = vpop.xlane.xlu0 %3042
      %3044 = vadd.xlane.f32.xlu0 %v2998
      %v3045 = vpop.xlane.xlu0 %3044
      %3046 = vadd.xlane.f32.xlu0 %v3001
      %v3047 = vpop.xlane.xlu0 %3046
      %3048 = vadd.xlane.f32.xlu0 %v3006
      %v3049 = vpop.xlane.xlu0 %3048
      %3050 = vadd.xlane.f32.xlu0 %v3009
      %v3051 = vpop.xlane.xlu0 %3050
      %3052 = vadd.xlane.f32.xlu0 %v3014
      %v3053 = vpop.xlane.xlu0 %3052
      %3054 = vadd.xlane.f32.xlu0 %v3017
      %v3055 = vpop.xlane.xlu0 %3054
      %3056 = vadd.xlane.f32.xlu0 %v3022
      %v3057 = vpop.xlane.xlu0 %3056
      %3058 = vadd.xlane.f32.xlu0 %v3025
      %v3059 = vpop.xlane.xlu0 %3058
      %v3060 = vmul.f32 %v2966, %v2966
      %v3061 = vmul.f32 %v2969, %v2969
      %v3062 = vmul.f32 %v2974, %v2974
      %v3063 = vmul.f32 %v2977, %v2977
      %v3064 = vmul.f32 %v2982, %v2982
      %v3065 = vmul.f32 %v2985, %v2985
      %v3066 = vmul.f32 %v2990, %v2990
      %v3067 = vmul.f32 %v2993, %v2993
      %v3068 = vmul.f32 %v2998, %v2998
      %v3069 = vmul.f32 %v3001, %v3001
      %v3070 = vmul.f32 %v3006, %v3006
      %v3071 = vmul.f32 %v3009, %v3009
      %v3072 = vmul.f32 %v3014, %v3014
      %v3073 = vmul.f32 %v3017, %v3017
      %v3074 = vmul.f32 %v3022, %v3022
      %v3075 = vmul.f32 %v3025, %v3025
      %3076 = vadd.xlane.f32.xlu0 %v3060
      %v3077 = vpop.xlane.xlu0 %3076
      %3078 = vadd.xlane.f32.xlu0 %v3061
      %v3079 = vpop.xlane.xlu0 %3078
      %3080 = vadd.xlane.f32.xlu0 %v3062
      %v3081 = vpop.xlane.xlu0 %3080
      %3082 = vadd.xlane.f32.xlu0 %v3063
      %v3083 = vpop.xlane.xlu0 %3082
      %3084 = vadd.xlane.f32.xlu0 %v3064
      %v3085 = vpop.xlane.xlu0 %3084
      %3086 = vadd.xlane.f32.xlu0 %v3065
      %v3087 = vpop.xlane.xlu0 %3086
      %3088 = vadd.xlane.f32.xlu0 %v3066
      %v3089 = vpop.xlane.xlu0 %3088
      %3090 = vadd.xlane.f32.xlu0 %v3067
      %v3091 = vpop.xlane.xlu0 %3090
      %3092 = vadd.xlane.f32.xlu0 %v3068
      %v3093 = vpop.xlane.xlu0 %3092
      %3094 = vadd.xlane.f32.xlu0 %v3069
      %v3095 = vpop.xlane.xlu0 %3094
      %3096 = vadd.xlane.f32.xlu0 %v3070
      %v3097 = vpop.xlane.xlu0 %3096
      %3098 = vadd.xlane.f32.xlu0 %v3071
      %v3099 = vpop.xlane.xlu0 %3098
      %3100 = vadd.xlane.f32.xlu0 %v3072
      %v3101 = vpop.xlane.xlu0 %3100
      %3102 = vadd.xlane.f32.xlu0 %v3073
      %v3103 = vpop.xlane.xlu0 %3102
      %3104 = vadd.xlane.f32.xlu0 %v3074
      %v3105 = vpop.xlane.xlu0 %3104
      %3106 = vadd.xlane.f32.xlu0 %v3075
      %v3107 = vpop.xlane.xlu0 %3106
      %v3108 = vadd.f32 %v3029, %v3037
      %v3109 = vadd.f32 %v3031, %v3039
      %v3110 = vadd.f32 %v3033, %v3041
      %v3111 = vadd.f32 %v3035, %v3043
      %v3112 = vadd.f32 %v3108, %v3045
      %v3113 = vadd.f32 %v3109, %v3047
      %v3114 = vadd.f32 %v3110, %v3049
      %v3115 = vadd.f32 %v3111, %v3051
      %v3116 = vadd.f32 %v3112, %v3053
      %v3117 = vadd.f32 %v3113, %v3055
      %v3118 = vadd.f32 %v3114, %v3057
      %v3119 = vadd.f32 %v3115, %v3059
      %v3120 = vadd.f32 %v3077, %v3085
      %v3121 = vadd.f32 %v3079, %v3087
      %v3122 = vadd.f32 %v3081, %v3089
      %v3123 = vadd.f32 %v3083, %v3091
      %v3124 = vadd.f32 %v3120, %v3093
      %v3125 = vadd.f32 %v3121, %v3095
      %v3126 = vadd.f32 %v3122, %v3097
      %v3127 = vadd.f32 %v3123, %v3099
      %v3128 = vadd.f32 %v3124, %v3101
      %v3129 = vadd.f32 %v3125, %v3103
      %v3130 = vadd.f32 %v3126, %v3105
      %v3131 = vadd.f32 %v3127, %v3107
      %v3132 = vmul.f32 %v3116, 0.001953125
      %v3133 = vmul.f32 %v3117, 0.001953125
      %v3134 = vmul.f32 %v3118, 0.001953125
      %v3135 = vmul.f32 %v3119, 0.001953125
      %v3136 = vmul.f32 %v3128, 0.001953125
      %v3137 = vmul.f32 %v3129, 0.001953125
      %v3138 = vmul.f32 %v3130, 0.001953125
      %v3139 = vmul.f32 %v3131, 0.001953125
      %v3140 = vmul.f32 %v3132, %v3132
      %v3141 = vmul.f32 %v3133, %v3133
      %v3142 = vmul.f32 %v3134, %v3134
      %v3143 = vmul.f32 %v3135, %v3135
      %v3144 = vsub.f32 %v3136, %v3140
      %v3145 = vsub.f32 %v3137, %v3141
      %v3146 = vsub.f32 %v3138, %v3142
      %v3147 = vsub.f32 %v3139, %v3143
      %v3148 = vmax.f32 %v3144, 0.0
      %v3149 = vmax.f32 %v3145, 0.0
      %v3150 = vmax.f32 %v3146, 0.0
      %v3151 = vmax.f32 %v3147, 0.0
      %v3152 = vadd.f32 %v3148, 1e-05
      %v3153 = vadd.f32 %v3149, 1e-05
      %v3154 = vadd.f32 %v3150, 1e-05
      %v3155 = vadd.f32 %v3151, 1e-05
      %v3156 = vrsqrt.pop %v3152
      %v3157 = vrsqrt.pop %v3153
      %v3158 = vrsqrt.pop %v3154
      %v3159 = vrsqrt.pop %v3155
      %v3160 = vmul.f32 %v331, %v3156
      %v3161 = vmul.f32 %v332, %v3157
      %v3162 = vmul.f32 %v333, %v3158
      %v3163 = vmul.f32 %v334, %v3159
      %v3164 = vmul.f32 %v3132, %v3160
      %v3165 = vmul.f32 %v3133, %v3161
      %v3166 = vmul.f32 %v3134, %v3162
      %v3167 = vmul.f32 %v3135, %v3163
      %v3168 = vsub.f32 %v335, %v3164
      %v3169 = vsub.f32 %v336, %v3165
      %v3170 = vsub.f32 %v337, %v3166
      %v3171 = vsub.f32 %v338, %v3167
      %3173 = vset.pattern.permute.xlu0 0
      %3174 = vperm.xlu0 %3173, %v3160
      %v3175 = vpop.permute.xlu0 %3174
      %3178 = vset.pattern.permute.xlu0 0
      %3179 = vperm.xlu0 %3178, %v3161
      %v3180 = vpop.permute.xlu0 %3179
      %3183 = vset.pattern.permute.xlu0 0
      %3184 = vperm.xlu0 %3183, %v3162
      %v3185 = vpop.permute.xlu0 %3184
      %3188 = vset.pattern.permute.xlu0 0
      %3189 = vperm.xlu0 %3188, %v3163
      %v3190 = vpop.permute.xlu0 %3189
      %v3192 = vmul.f32 %v2966, %v3175
      %v3193 = vmul.f32 %v2969, %v3180
      %v3194 = vmul.f32 %v2974, %v3185
      %v3195 = vmul.f32 %v2977, %v3190
      %3197 = vset.pattern.permute.xlu0 0
      %3198 = vperm.xlu0 %3197, %v3168
      %v3199 = vpop.permute.xlu0 %3198
      %3202 = vset.pattern.permute.xlu0 0
      %3203 = vperm.xlu0 %3202, %v3169
      %v3204 = vpop.permute.xlu0 %3203
      %3207 = vset.pattern.permute.xlu0 0
      %3208 = vperm.xlu0 %3207, %v3170
      %v3209 = vpop.permute.xlu0 %3208
      %3212 = vset.pattern.permute.xlu0 0
      %3213 = vperm.xlu0 %3212, %v3171
      %v3214 = vpop.permute.xlu0 %3213
      %v3216 = vadd.f32 %v3192, %v3199
      %v3217 = vadd.f32 %v3193, %v3204
      %v3218 = vadd.f32 %v3194, %v3209
      %v3219 = vadd.f32 %v3195, %v3214
      %v3220 = vmul.f32 %v2982, %v3175
      %v3221 = vmul.f32 %v2985, %v3180
      %v3222 = vmul.f32 %v2990, %v3185
      %v3223 = vmul.f32 %v2993, %v3190
      %v3224 = vadd.f32 %v3220, %v3199
      %v3225 = vadd.f32 %v3221, %v3204
      %v3226 = vadd.f32 %v3222, %v3209
      %v3227 = vadd.f32 %v3223, %v3214
      %v3228 = vmax.f32 %v3216, %v3224
      %v3229 = vmax.f32 %v3217, %v3225
      %v3230 = vmax.f32 %v3218, %v3226
      %v3231 = vmax.f32 %v3219, %v3227
      %v3232 = vmul.f32 %v2998, %v3175
      %v3233 = vmul.f32 %v3001, %v3180
      %v3234 = vmul.f32 %v3006, %v3185
      %v3235 = vmul.f32 %v3009, %v3190
      %v3236 = vadd.f32 %v3232, %v3199
      %v3237 = vadd.f32 %v3233, %v3204
      %v3238 = vadd.f32 %v3234, %v3209
      %v3239 = vadd.f32 %v3235, %v3214
      %v3240 = vmul.f32 %v3014, %v3175
      %v3241 = vmul.f32 %v3017, %v3180
      %v3242 = vmul.f32 %v3022, %v3185
      %v3243 = vmul.f32 %v3025, %v3190
      %v3244 = vadd.f32 %v3240, %v3199
      %v3245 = vadd.f32 %v3241, %v3204
      %v3246 = vadd.f32 %v3242, %v3209
      %v3247 = vadd.f32 %v3243, %v3214
      %v3248 = vmax.f32 %v3236, %v3244
      %v3249 = vmax.f32 %v3237, %v3245
      %v3250 = vmax.f32 %v3238, %v3246
      %v3251 = vmax.f32 %v3239, %v3247
      %v3252 = vmax.f32 %v3228, %v3248
      %v3253 = vmax.f32 %v3229, %v3249
      %v3254 = vmax.f32 %v3230, %v3250
      %v3255 = vmax.f32 %v3231, %v3251
      %v3256 = vmax.f32 %v3252, 0.0
      %v3257 = vmax.f32 %v3253, 0.0
      %v3258 = vmax.f32 %v3254, 0.0
      %v3259 = vmax.f32 %v3255, 0.0
      %3260 = vst [vmem:[%s256 + $0x20] sm:$0xff] %v3256
      %3261 = vst [vmem:[%s256 + $0x28] sm:$0xff] %v3257
      %3262 = vst [vmem:[%s256 + $0x30] sm:$0xff] %v3258
      %3263 = vst [vmem:[%s256 + $0x38] sm:$0xff] %v3259
      %s3264 = smul.u32 8, %s17
      %p3265 = scmp.lt.s32.totalorder %s3264, 15
      %s3266 = scalar_select %p3265, %s3264, 15
      %s3267 = smul.addr %s3266, 8
      %s3268 = scalar_lea.vmem %s6, %s3267
      // Predicated region
      $region45: #{ournet_forward.4} parent=43 // pred_check
        %p3269 = pneg %p166
      $region46: #{ournet_forward.4} parent=43 // pred_check_branch
        %3271 = sbr.rel (%p3269) target = $region48
      $region47: #{ournet_forward.4} parent=43 // pred_region
        %s3272 = smul.u32 8, %s17
      $region48: #{ournet_forward.4} parent=43 // pred_fallthru
        _
    $region44: #{ournet_forward.4} parent=5 // pred_fallthru
      _
    %p3273 = scmp.le.s32.totalorder 2, %s12
    // Predicated region
    $region49: #{ournet_forward.4} parent=5 // pred_check
      %p3274 = pneg %p3273
    $region50: #{ournet_forward.4} parent=5 // pred_check_branch
      %3276 = sbr.rel (%p3274) target = $region52
    $region51: #{ournet_forward.4} parent=5 // pred_region
      %s3277 = ssub.s32 %s12, 2
      // Predicated region
      $region53: #{ournet_forward.4} parent=51 // pred_check
        %p3278 = pneg %p172
      $region54: #{ournet_forward.4} parent=51 // pred_check_branch
        %3280 = sbr.rel (%p3278) target = $region56
      $region55: #{ournet_forward.4} parent=51 // pred_region
        %s3281 = smul.u32 8, %s18
        %p3282 = scmp.lt.s32.totalorder %s3281, 15
        %s3283 = scalar_select %p3282, %s3281, 15
        %s3284 = smul.addr %s3283, 8
        %s3285 = scalar_lea.vmem %s6, %s3284
      $region56: #{ournet_forward.4} parent=51 // pred_fallthru
        _
    $region52: #{ournet_forward.4} parent=5 // pred_fallthru
      _
  $region6: #{ournet_forward.4} parent=0 // loop_footer
    %s16 = sadd.s32 1, %s12
  $region7: #{ournet_forward.4} parent=0 // loop_footer_branch
    %11 = sbr.rel target = $region3
  $region8: #{ournet_forward.4} parent=0 // loop_exit
    _

</llo_original>
